<compile_context>
chip_gen: v6e
topology: v6e:2x2x1
jax: 0.10.0
libtpu: 0.0.40
codegen_flags: <defaults>
</compile_context>

<pallas_src>
import math

import numpy as np
import jax
import jax.numpy as jnp
from jax.experimental import pallas as pl
from jax.experimental.pallas import tpu as pltpu

# ----------------------------- configuration --------------------------------
N_BATCH = 1          # n  (sequences)
M_PERSON = 2         # m  (num_person)
C_IN = 3             # in_channels
T_LEN = 8            # T        (module default 64; small for the demo)
V_JOINT = 25         # num_point
BASE_C = 32          # base_channel (module default 64; small for the demo)
N_STEP = 1           # n_step
ASC = 1              # asc_dim_trans
VP = V_JOINT + ASC   # 26 : joints + augmented dim used inside the ODE
VPP = 32             # VP padded so each t-block is 32 lanes (divides 128)
TVP = T_LEN * VPP    # 256 : lanes per sequence
B_SEQ = N_BATCH * M_PERSON   # 2 : sequences folded into the lane axis
L_LANES = B_SEQ * TVP        # 512 : lane dim of the resident ODE state
NEG_SLOPE = 0.01     # nn.LeakyReLU default negative_slope
HIGHEST = jax.lax.Precision.HIGHEST


# ----------------------------- Pallas kernel --------------------------------
def sode_rk4_kernel(y_ref, pe_ref, abig_ref, w1_ref, w2_ref, w3_ref,
                    b1_ref, b2_ref, b3_ref, wlin_ref, blin_ref,
                    zhat_ref, y_sc, acc_sc):
    """Full DiffeqSolver forward, single invocation, state resident in VMEM.

    State layout is channel-major and lane-dense: Z[c, b*TVP + t*VPP + v]
    (C = 32 sublanes, B*T*VPP = 512 lanes).  The per-(b,t) adjacency /
    joint-linear maps are block-diagonal in this layout, so each becomes one
    lane-dense matmul against kron(I_{B*T}, A_pad^T) / kron(I_{B*T}, Wlin_pad^T)
    held as bf16.  Padding lanes (v >= VP) never contaminate real lanes
    because the corresponding rows/columns of A_pad / Wlin_pad are zero.
    """
    f32 = jnp.float32
    bf16 = jnp.bfloat16

    def mm(a, b):                        # native-bf16 MXU matmul, f32 accumulate
        return jnp.dot(a.astype(bf16), b.astype(bf16),
                       preferred_element_type=f32)

    def leaky(g):                        # LeakyReLU (VPU, f32)
        return jnp.where(g > 0, g, NEG_SLOPE * g)

    def ode_f(z, pe):                    # one ODEFunc evaluation
        g = z + pe                                                  # add_pe
        g = mm(g, abig_ref[...])                                    # einsum('vu,ncu->ncv')
        g = leaky(mm(w1_ref[...], g) + b1_ref[...])                 # conv1 + relu
        g = mm(g, abig_ref[...])                                    # einsum again
        g = leaky(mm(w2_ref[...], g) + b2_ref[...])                 # conv2 + relu
        return mm(w3_ref[...], g) + b3_ref[...]                     # proj

    def joint_linear(z):                 # DiffeqSolver.linear_layer
        return mm(z, wlin_ref[...]) + blin_ref[...]

    y_sc[...] = y_ref[...]               # running RK4 state lives in VMEM

    third = f32(1.0 / 3.0)
    two_third = f32(2.0 / 3.0)
    # TODO(synk): for production n_step > 1, switch this Python unroll to
    # lax.fori_loop(..., unroll=True) and index pe_ref / zhat_ref dynamically.
    for i in range(N_STEP):              # torchdiffeq 'rk4' (3/8 rule), dt = 1
        pe_a = pe_ref[i].astype(f32)     # temporal PE at int(t) for stages 1..3
        pe_b = pe_ref[i + 1].astype(f32)  # temporal PE at int(t) for stage 4

        k1 = ode_f(y_sc[...], pe_a)
        acc_sc[...] = y_sc[...] + 0.125 * k1
        k2 = ode_f(y_sc[...] + third * k1, pe_a)
        d = k1 - k2                      # frees k1 early (vreg pressure)
        acc_sc[...] = acc_sc[...] + 0.375 * k2
        k3 = ode_f(y_sc[...] + (two_third * k2 - third * d), pe_a)
        acc_sc[...] = acc_sc[...] + 0.375 * k3
        k4 = ode_f(y_sc[...] + (d + k3), pe_b)
        y_sc[...] = acc_sc[...] + 0.125 * k4

        # zs[0] = linear(y0) is never used by SODE.extrapolate, so only the
        # post-step predictions are produced.  Per-sequence 256-lane aligned,
        # unmasked stores.
        zh = joint_linear(y_sc[...])                       # (C, B*TVP)
        for b in range(B_SEQ):
            zhat_ref[i, b] = zh[:, b * TVP:(b + 1) * TVP]


# ----------------------------- kernel wrapper --------------------------------
def run_ode_solver(y0, p):
    """y0: (C, B*T*VPP) lane-folded initial state -> (n, B, C, T*VPP) preds."""
    cost = pl.CostEstimate(flops=164_000_000, transcendentals=0,
                           bytes_accessed=1_500_000)
    return pl.pallas_call(
        sode_rk4_kernel,
        out_shape=jax.ShapeDtypeStruct((N_STEP, B_SEQ, BASE_C, TVP),
                                       jnp.float32),
        scratch_shapes=[pltpu.VMEM((BASE_C, L_LANES), jnp.float32),   # y state
                        pltpu.VMEM((BASE_C, L_LANES), jnp.float32)],  # RK4 acc
        cost_estimate=cost,
    )(y0, p['pe_exp'], p['A_big_T'], p['W1_bf'], p['W2_bf'], p['W3_bf'],
      p['b1_slab'], p['b2_slab'], p['b3_slab'], p['Wlin_big_T'],
      p['b_lin_slab'])


# ----------------------------- parameters -------------------------------------
def init_params(key):
    ks = jax.random.split(key, 11)

    def uniform(k, shape, fan_in):
        bound = 1.0 / math.sqrt(fan_in)
        return jax.random.uniform(k, shape, jnp.float32, -bound, bound)

    p = {}
    # to_joint_embedding: nn.Linear(in_channels, base_channel)
    p['w_emb'] = uniform(ks[0], (BASE_C, C_IN), C_IN)
    p['b_emb'] = uniform(ks[1], (BASE_C,), C_IN)
    # pos_embedding: nn.Parameter(randn(1, num_point, base_channel))
    p['pos_emb'] = jax.random.normal(ks[2], (1, V_JOINT, BASE_C), jnp.float32)

    # TODO(synk): the real Graph class (import_class(graph)().A_norm) is not
    # provided; use a deterministic row-normalized chain graph over 25 joints.
    adj = np.eye(V_JOINT, dtype=np.float32)
    for i in range(V_JOINT - 1):
        adj[i, i + 1] = 1.0
        adj[i + 1, i] = 1.0
    a_norm = adj / adj.sum(axis=1, keepdims=True)
    a_aug = np.zeros((VP, VP), dtype=np.float32)        # cat zero col + zero row
    a_aug[:V_JOINT, :V_JOINT] = a_norm
    p['A_aug'] = jnp.asarray(a_aug)

    # ODEFunc conv1/conv2/proj: Conv1d(dim, dim, 1) == (C_out, C_in) matmul
    for i, name in enumerate(['1', '2', '3']):
        p['W' + name] = uniform(ks[3 + 2 * i], (BASE_C, BASE_C), BASE_C)
        p['b' + name] = uniform(ks[4 + 2 * i], (BASE_C,), BASE_C)

    # DiffeqSolver.linear_layer: nn.Linear(num_point + asc_dim_trans, num_point)
    p['W_lin'] = uniform(ks[9], (V_JOINT, VP), VP)
    p['b_lin'] = uniform(ks[10], (V_JOINT,), VP)

    # ODEFunc.init_pe(T + N, dim) — sinusoidal, deterministic
    length = T_LEN + N_STEP
    pos = np.arange(length, dtype=np.float32)[:, None]
    div = np.exp(np.arange(0, BASE_C, 2, dtype=np.float32)
                 * -(math.log(10000.0) / BASE_C))
    pe = np.zeros((length, BASE_C), dtype=np.float32)
    pe[:, 0::2] = np.sin(pos * div)
    pe[:, 1::2] = np.cos(pos * div)
    p['temporal_pe'] = jnp.asarray(pe)

    # ---------- derived, kernel-layout parameters (precomputed once) ----------
    # Lane layout of the resident ODE state: Z[c, b*TVP + t*VPP + v].
    #
    # TODO(synk): at the production T=64 the dense kron below is (B*T*VPP)^2
    # and no longer fits VMEM; it must then be replaced by a per-t-block
    # application of the (VPP,VPP) blocks (fori_loop or a T grid axis), keeping
    # the weight footprint O(VPP^2).  At the demo T=8 / B=2 the dense bf16 form
    # (512 KiB each) is both smaller and faster than 16 tiny unaligned matmuls.
    eye_bt = np.eye(B_SEQ * T_LEN, dtype=np.float32)

    a_pad = np.zeros((VPP, VPP), dtype=np.float32)
    a_pad[:VP, :VP] = a_aug
    p['A_big_T'] = jnp.asarray(np.kron(eye_bt, a_pad.T), dtype=jnp.bfloat16)

    wl_pad = np.zeros((VPP, VPP), dtype=np.float32)
    wl_pad[:V_JOINT, :VP] = np.asarray(p['W_lin'])
    p['Wlin_big_T'] = jnp.asarray(np.kron(eye_bt, wl_pad.T), dtype=jnp.bfloat16)

    # 1x1-conv weights as bf16 MXU operands (accumulation stays f32 in-kernel)
    for name in ['1', '2', '3']:
        p['W' + name + '_bf'] = p['W' + name].astype(jnp.bfloat16)

    # bias lane-broadcasts hoisted host-side: full (C, L) f32 slabs
    for name in ['1', '2', '3']:
        p['b' + name + '_slab'] = jnp.asarray(
            np.tile(np.asarray(p['b' + name])[:, None], (1, L_LANES)))

    bl_pad = np.zeros((VPP,), dtype=np.float32)
    bl_pad[:V_JOINT] = np.asarray(p['b_lin'])
    p['b_lin_slab'] = jnp.asarray(np.tile(bl_pad, (BASE_C, B_SEQ * T_LEN)))

    # temporal-PE slabs (bf16): pe_exp[j, c, b*TVP + t*VPP + v] = pe[j + t, c]
    win = np.stack([pe[j:j + T_LEN] for j in range(N_STEP + 1)], 0)   # (n+1,T,C)
    pe_ctv = np.repeat(np.transpose(win, (0, 2, 1))[:, :, :, None], VPP, axis=3)
    pe_seq = pe_ctv.reshape(N_STEP + 1, BASE_C, TVP)
    p['pe_exp'] = jnp.asarray(np.tile(pe_seq, (1, 1, B_SEQ)), dtype=jnp.bfloat16)
    return p


# ----------------------------- forward (glue + kernel) -----------------------
def embed(x, p):
    """to_joint_embedding + pos_embedding, rearranged to (n m) c t v."""
    N, C, T, V, M = x.shape
    xe = jnp.transpose(x, (0, 4, 2, 3, 1)).reshape(N * M * T, V, C)   # (n m t) v c
    xe = xe @ p['w_emb'].T + p['b_emb']
    xe = xe + p['pos_emb'][:, :V]
    z = xe.reshape(N, M, T, V, BASE_C).transpose(0, 1, 4, 2, 3)
    return z.reshape(N * M, BASE_C, T, V)


def extrapolate(z, p):
    """SODE.extrapolate: rk4 odeint (ODEFunc) + joint linear, fused in Pallas."""
    B, C, T, V = z.shape
    assert (B, C, T, V) == (B_SEQ, BASE_C, T_LEN, V_JOINT)
    # augment + pad the joint axis to VPP lanes and fold the sequences into
    # the lane axis: y0[c, b*TVP + t*VPP + v] = z[b, c, t, v] (pad lanes zero).
    y0 = jnp.pad(z, ((0, 0), (0, 0), (0, 0), (0, VPP - V)))
    y0 = jnp.transpose(y0, (1, 0, 2, 3)).reshape(BASE_C, L_LANES)

    pred = run_ode_solver(y0, p)                           # (n, B, C, T*VPP)
    z_hat5 = pred.reshape(N_STEP, B, C, T, VPP)[..., :V]   # strip pad lanes
    z_hat = z_hat5.reshape(N_STEP * B, C, T, V)

    # shift_idx gather + triangular mask == zero-padded shift by (i+1) along t
    shifted = [jnp.pad(z_hat5[i, :, :, :T - (i + 1), :],
                       ((0, 0), (0, 0), (i + 1, 0), (0, 0)))
               for i in range(N_STEP)]
    z_hat_shifted = jnp.stack(shifted, 0).reshape(N_STEP * B, C, T, V)

    # z_0 is the '(b t) c v' flatten round-tripped back to 'b c t v' == z itself
    return z, z_hat, z_hat_shifted


def sode_forward(x, p):
    z = embed(x, p)
    # TODO(synk): TemporalEncoder (transformer backbone) is not provided in the
    # reference sources; the latent z is used directly as the encoder output.
    z_0, z_hat, z_hat_shifted = extrapolate(z, p)
    # TODO(synk): recon_decoder / cls_decoder / classifier heads depend on the
    # GCN module, which is not provided; outputs y and x_hat are omitted.
    return z_0, z_hat, z_hat_shifted, jnp.float32(0.0)


# ----------------------------- pure-JAX reference (PyTorch layout) ------------
def _ode_func_ref(y, t_int, p, T):
    B = y.shape[0] // T
    pe = jnp.tile(p['temporal_pe'][t_int:t_int + T], (B, 1))[:, :, None]  # (BT, C, 1)
    h = y + pe
    h = jnp.einsum('vu,ncu->ncv', p['A_aug'], h, precision=HIGHEST)
    h = jnp.einsum('oc,ncv->nov', p['W1'], h, precision=HIGHEST) + p['b1'][None, :, None]
    h = jnp.where(h > 0, h, NEG_SLOPE * h)
    h = jnp.einsum('vu,ncu->ncv', p['A_aug'], h, precision=HIGHEST)
    h = jnp.einsum('oc,ncv->nov', p['W2'], h, precision=HIGHEST) + p['b2'][None, :, None]
    h = jnp.where(h > 0, h, NEG_SLOPE * h)
    h = jnp.einsum('oc,ncv->nov', p['W3'], h, precision=HIGHEST) + p['b3'][None, :, None]
    return h


def extrapolate_ref(z, p):
    B, C, T, V = z.shape
    z0_flat = jnp.transpose(z, (0, 2, 1, 3)).reshape(B * T, C, V)
    y = jnp.concatenate([z0_flat, jnp.zeros((B * T, C, ASC), z.dtype)], axis=2)
    ys = [y]
    for i in range(N_STEP):
        f = lambda yy, ti: _ode_func_ref(yy, ti, p, T)
        k1 = f(y, i)
        k2 = f(y + k1 / 3.0, i)
        k3 = f(y + (k2 - k1 / 3.0), i)
        k4 = f(y + (k1 - k2 + k3), i + 1)
        y = y + (k1 + 3.0 * (k2 + k3) + k4) / 8.0
        ys.append(y)
    pred = jnp.stack(ys, 0)
    pred = jnp.einsum('nbcu,vu->nbcv', pred, p['W_lin'],
                      precision=HIGHEST) + p['b_lin']
    zs = pred.reshape(N_STEP + 1, B, T, C, V)
    z_hat = zs[1:]
    t_idx = jnp.arange(T)
    shift = (t_idx[None, :] - jnp.arange(1, N_STEP + 1)[:, None]) % T
    idx = jnp.broadcast_to(shift[:, None, :, None, None], z_hat.shape)
    z_hat_shifted = jnp.take_along_axis(z_hat, idx, axis=2)
    mask = (t_idx[None, :] > jnp.arange(N_STEP)[:, None]).astype(z.dtype)
    z_hat_shifted = mask[:, None, :, None, None] * z_hat_shifted
    to_nbctv = lambda a: jnp.transpose(a, (0, 1, 3, 2, 4)).reshape(N_STEP * B, C, T, V)
    return (jnp.transpose(z0_flat.reshape(B, T, C, V), (0, 2, 1, 3)),
            to_nbctv(z_hat), to_nbctv(z_hat_shifted))


# ----------------------------- main -------------------------------------------
if __name__ == "__main__":
    key = jax.random.PRNGKey(0)
    k_param, k_x = jax.random.split(key)
    params = init_params(k_param)
    x = jax.random.normal(k_x, (N_BATCH, C_IN, T_LEN, V_JOINT, M_PERSON),
                          dtype=jnp.float32)

    fwd = jax.jit(sode_forward)
    z_0, z_hat, z_hat_shifted, zero = fwd(x, params)
    jax.block_until_ready((z_0, z_hat, z_hat_shifted, zero))

    # sanity check against a pure-JAX f32 (precision=HIGHEST) reference.  The
    # kernel intentionally feeds native bf16 operands to the MXU (perf review),
    # which sets the accuracy floor of this comparison.
    z = embed(x, params)
    r0, rh, rhs = extrapolate_ref(z, params)
    np.testing.assert_allclose(np.asarray(z_0), np.asarray(r0),
                               rtol=2.5e-2, atol=2.5e-2)
    np.testing.assert_allclose(np.asarray(z_hat), np.asarray(rh),
                               rtol=2.5e-2, atol=2.5e-2)
    np.testing.assert_allclose(np.asarray(z_hat_shifted), np.asarray(rhs),
                               rtol=2.5e-2, atol=2.5e-2)
    assert z_0.shape == (N_BATCH * M_PERSON, BASE_C, T_LEN, V_JOINT)
    assert z_hat.shape == (N_STEP * N_BATCH * M_PERSON, BASE_C, T_LEN, V_JOINT)
    assert z_hat_shifted.shape == z_hat.shape

    print("KERNEL_OK")
</pallas_src>

<mosaic_0001>
module attributes {stable_mosaic.version = 11 : i64} {
  func.func @sode_rk4_kernel(%arg0: memref<32x512xf32, #tpu.memory_space<vmem>>, %arg1: memref<2x32x512xbf16, #tpu.memory_space<vmem>>, %arg2: memref<512x512xbf16, #tpu.memory_space<vmem>>, %arg3: memref<32x32xbf16, #tpu.memory_space<vmem>>, %arg4: memref<32x32xbf16, #tpu.memory_space<vmem>>, %arg5: memref<32x32xbf16, #tpu.memory_space<vmem>>, %arg6: memref<32x512xf32, #tpu.memory_space<vmem>>, %arg7: memref<32x512xf32, #tpu.memory_space<vmem>>, %arg8: memref<32x512xf32, #tpu.memory_space<vmem>>, %arg9: memref<512x512xbf16, #tpu.memory_space<vmem>>, %arg10: memref<32x512xf32, #tpu.memory_space<vmem>>, %arg11: memref<1x2x32x256xf32, #tpu.memory_space<vmem>>, %arg12: memref<32x512xf32, #tpu.memory_space<vmem>>, %arg13: memref<32x512xf32, #tpu.memory_space<vmem>>) attributes {dimension_semantics = [], scalar_prefetch = 0 : i64, scratch_operands = 2 : i64, tpu.core_type = #tpu.core_type<tc>} {
    %c0 = arith.constant 0 : index
    %c0_0 = arith.constant 0 : index
    %0 = vector.load %arg0[%c0, %c0_0] : memref<32x512xf32, #tpu.memory_space<vmem>>, vector<32x512xf32>
    %c0_1 = arith.constant 0 : index
    %c0_2 = arith.constant 0 : index
    %1 = vector.load %arg12[%c0_1, %c0_2] : memref<32x512xf32, #tpu.memory_space<vmem>>, vector<32x512xf32>
    tpu.vector_store %arg12[%c0_1, %c0_2], %0 {strides = array<i32>} : memref<32x512xf32, #tpu.memory_space<vmem>>, vector<32x512xf32>,
    %c0_3 = arith.constant 0 : index
    %c0_4 = arith.constant 0 : index
    %c0_5 = arith.constant 0 : index
    %2 = vector.load %arg1[%c0_3, %c0_4, %c0_5] : memref<2x32x512xbf16, #tpu.memory_space<vmem>>, vector<1x32x512xbf16>
    %3 = vector.shape_cast %2 : vector<1x32x512xbf16> to vector<32x512xbf16>
    %4 = arith.extf %3 : vector<32x512xbf16> to vector<32x512xf32>
    %c1 = arith.constant 1 : index
    %c0_6 = arith.constant 0 : index
    %c0_7 = arith.constant 0 : index
    %5 = vector.load %arg1[%c1, %c0_6, %c0_7] : memref<2x32x512xbf16, #tpu.memory_space<vmem>>, vector<1x32x512xbf16>
    %6 = vector.shape_cast %5 : vector<1x32x512xbf16> to vector<32x512xbf16>
    %7 = arith.extf %6 : vector<32x512xbf16> to vector<32x512xf32>
    %c0_8 = arith.constant 0 : index
    %c0_9 = arith.constant 0 : index
    %8 = vector.load %arg12[%c0_8, %c0_9] : memref<32x512xf32, #tpu.memory_space<vmem>>, vector<32x512xf32>
    %9 = arith.addf %8, %4 : vector<32x512xf32>
    %c0_10 = arith.constant 0 : index
    %c0_11 = arith.constant 0 : index
    %10 = vector.load %arg2[%c0_10, %c0_11] : memref<512x512xbf16, #tpu.memory_space<vmem>>, vector<512x512xbf16>
    %11 = arith.truncf %9 : vector<32x512xf32> to vector<32x512xbf16>
    %cst = arith.constant dense<0.000000e+00> : vector<32x512xf32>
    %12 = tpu.matmul %11, %10, %cst {dimension_numbers = #tpu.dot_dimension_numbers<[1], [0], [0], [1], [0, 0, 1, 1], [], []>} : vector<32x512xbf16>, vector<512x512xbf16>, vector<32x512xf32> -> vector<32x512xf32>
    %c0_12 = arith.constant 0 : index
    %c0_13 = arith.constant 0 : index
    %13 = vector.load %arg3[%c0_12, %c0_13] : memref<32x32xbf16, #tpu.memory_space<vmem>>, vector<32x32xbf16>
    %14 = arith.truncf %12 : vector<32x512xf32> to vector<32x512xbf16>
    %cst_14 = arith.constant dense<0.000000e+00> : vector<32x512xf32>
    %15 = tpu.matmul %13, %14, %cst_14 {dimension_numbers = #tpu.dot_dimension_numbers<[1], [0], [0], [1], [0, 0, 1, 1], [], []>} : vector<32x32xbf16>, vector<32x512xbf16>, vector<32x512xf32> -> vector<32x512xf32>
    %c0_15 = arith.constant 0 : index
    %c0_16 = arith.constant 0 : index
    %16 = vector.load %arg6[%c0_15, %c0_16] : memref<32x512xf32, #tpu.memory_space<vmem>>, vector<32x512xf32>
    %17 = arith.addf %15, %16 : vector<32x512xf32>
    %cst_17 = arith.constant 0.000000e+00 : f32
    %18 = vector.broadcast %cst_17 : f32 to vector<32x512xf32>
    %19 = arith.cmpf ogt, %17, %18 : vector<32x512xf32>
    %cst_18 = arith.constant 0.00999999977 : f32
    %20 = vector.broadcast %cst_18 : f32 to vector<32x512xf32>
    %21 = arith.mulf %20, %17 : vector<32x512xf32>
    %22 = arith.select %19, %17, %21 : vector<32x512xi1>, vector<32x512xf32>
    %c0_19 = arith.constant 0 : index
    %c0_20 = arith.constant 0 : index
    %23 = vector.load %arg2[%c0_19, %c0_20] : memref<512x512xbf16, #tpu.memory_space<vmem>>, vector<512x512xbf16>
    %24 = arith.truncf %22 : vector<32x512xf32> to vector<32x512xbf16>
    %cst_21 = arith.constant dense<0.000000e+00> : vector<32x512xf32>
    %25 = tpu.matmul %24, %23, %cst_21 {dimension_numbers = #tpu.dot_dimension_numbers<[1], [0], [0], [1], [0, 0, 1, 1], [], []>} : vector<32x512xbf16>, vector<512x512xbf16>, vector<32x512xf32> -> vector<32x512xf32>
    %c0_22 = arith.constant 0 : index
    %c0_23 = arith.constant 0 : index
    %26 = vector.load %arg4[%c0_22, %c0_23] : memref<32x32xbf16, #tpu.memory_space<vmem>>, vector<32x32xbf16>
    %27 = arith.truncf %25 : vector<32x512xf32> to vector<32x512xbf16>
    %cst_24 = arith.constant dense<0.000000e+00> : vector<32x512xf32>
    %28 = tpu.matmul %26, %27, %cst_24 {dimension_numbers = #tpu.dot_dimension_numbers<[1], [0], [0], [1], [0, 0, 1, 1], [], []>} : vector<32x32xbf16>, vector<32x512xbf16>, vector<32x512xf32> -> vector<32x512xf32>
    %c0_25 = arith.constant 0 : index
    %c0_26 = arith.constant 0 : index
    %29 = vector.load %arg7[%c0_25, %c0_26] : memref<32x512xf32, #tpu.memory_space<vmem>>, vector<32x512xf32>
    %30 = arith.addf %28, %29 : vector<32x512xf32>
    %cst_27 = arith.constant 0.000000e+00 : f32
    %31 = vector.broadcast %cst_27 : f32 to vector<32x512xf32>
    %32 = arith.cmpf ogt, %30, %31 : vector<32x512xf32>
    %cst_28 = arith.constant 0.00999999977 : f32
    %33 = vector.broadcast %cst_28 : f32 to vector<32x512xf32>
    %34 = arith.mulf %33, %30 : vector<32x512xf32>
    %35 = arith.select %32, %30, %34 : vector<32x512xi1>, vector<32x512xf32>
    %c0_29 = arith.constant 0 : index
    %c0_30 = arith.constant 0 : index
    %36 = vector.load %arg5[%c0_29, %c0_30] : memref<32x32xbf16, #tpu.memory_space<vmem>>, vector<32x32xbf16>
    %37 = arith.truncf %35 : vector<32x512xf32> to vector<32x512xbf16>
    %cst_31 = arith.constant dense<0.000000e+00> : vector<32x512xf32>
    %38 = tpu.matmul %36, %37, %cst_31 {dimension_numbers = #tpu.dot_dimension_numbers<[1], [0], [0], [1], [0, 0, 1, 1], [], []>} : vector<32x32xbf16>, vector<32x512xbf16>, vector<32x512xf32> -> vector<32x512xf32>
    %c0_32 = arith.constant 0 : index
    %c0_33 = arith.constant 0 : index
    %39 = vector.load %arg8[%c0_32, %c0_33] : memref<32x512xf32, #tpu.memory_space<vmem>>, vector<32x512xf32>
    %40 = arith.addf %38, %39 : vector<32x512xf32>
    %c0_34 = arith.constant 0 : index
    %c0_35 = arith.constant 0 : index
    %41 = vector.load %arg12[%c0_34, %c0_35] : memref<32x512xf32, #tpu.memory_space<vmem>>, vector<32x512xf32>
    %cst_36 = arith.constant 1.250000e-01 : f32
    %42 = vector.broadcast %cst_36 : f32 to vector<32x512xf32>
    %43 = arith.mulf %42, %40 : vector<32x512xf32>
    %44 = arith.addf %41, %43 : vector<32x512xf32>
    %c0_37 = arith.constant 0 : index
    %c0_38 = arith.constant 0 : index
    %45 = vector.load %arg13[%c0_37, %c0_38] : memref<32x512xf32, #tpu.memory_space<vmem>>, vector<32x512xf32>
    tpu.vector_store %arg13[%c0_37, %c0_38], %44 {strides = array<i32>} : memref<32x512xf32, #tpu.memory_space<vmem>>, vector<32x512xf32>,
    %c0_39 = arith.constant 0 : index
    %c0_40 = arith.constant 0 : index
    %46 = vector.load %arg12[%c0_39, %c0_40] : memref<32x512xf32, #tpu.memory_space<vmem>>, vector<32x512xf32>
    %cst_41 = arith.constant 0.333333343 : f32
    %47 = vector.broadcast %cst_41 : f32 to vector<32x512xf32>
    %48 = arith.mulf %47, %40 : vector<32x512xf32>
    %49 = arith.addf %46, %48 : vector<32x512xf32>
    %50 = arith.addf %49, %4 : vector<32x512xf32>
    %c0_42 = arith.constant 0 : index
    %c0_43 = arith.constant 0 : index
    %51 = vector.load %arg2[%c0_42, %c0_43] : memref<512x512xbf16, #tpu.memory_space<vmem>>, vector<512x512xbf16>
    %52 = arith.truncf %50 : vector<32x512xf32> to vector<32x512xbf16>
    %cst_44 = arith.constant dense<0.000000e+00> : vector<32x512xf32>
    %53 = tpu.matmul %52, %51, %cst_44 {dimension_numbers = #tpu.dot_dimension_numbers<[1], [0], [0], [1], [0, 0, 1, 1], [], []>} : vector<32x512xbf16>, vector<512x512xbf16>, vector<32x512xf32> -> vector<32x512xf32>
    %c0_45 = arith.constant 0 : index
    %c0_46 = arith.constant 0 : index
    %54 = vector.load %arg3[%c0_45, %c0_46] : memref<32x32xbf16, #tpu.memory_space<vmem>>, vector<32x32xbf16>
    %55 = arith.truncf %53 : vector<32x512xf32> to vector<32x512xbf16>
    %cst_47 = arith.constant dense<0.000000e+00> : vector<32x512xf32>
    %56 = tpu.matmul %54, %55, %cst_47 {dimension_numbers = #tpu.dot_dimension_numbers<[1], [0], [0], [1], [0, 0, 1, 1], [], []>} : vector<32x32xbf16>, vector<32x512xbf16>, vector<32x512xf32> -> vector<32x512xf32>
    %c0_48 = arith.constant 0 : index
    %c0_49 = arith.constant 0 : index
    %57 = vector.load %arg6[%c0_48, %c0_49] : memref<32x512xf32, #tpu.memory_space<vmem>>, vector<32x512xf32>
    %58 = arith.addf %56, %57 : vector<32x512xf32>
    %cst_50 = arith.constant 0.000000e+00 : f32
    %59 = vector.broadcast %cst_50 : f32 to vector<32x512xf32>
    %60 = arith.cmpf ogt, %58, %59 : vector<32x512xf32>
    %cst_51 = arith.constant 0.00999999977 : f32
    %61 = vector.broadcast %cst_51 : f32 to vector<32x512xf32>
    %62 = arith.mulf %61, %58 : vector<32x512xf32>
    %63 = arith.select %60, %58, %62 : vector<32x512xi1>, vector<32x512xf32>
    %c0_52 = arith.constant 0 : index
    %c0_53 = arith.constant 0 : index
    %64 = vector.load %arg2[%c0_52, %c0_53] : memref<512x512xbf16, #tpu.memory_space<vmem>>, vector<512x512xbf16>
    %65 = arith.truncf %63 : vector<32x512xf32> to vector<32x512xbf16>
    %cst_54 = arith.constant dense<0.000000e+00> : vector<32x512xf32>
    %66 = tpu.matmul %65, %64, %cst_54 {dimension_numbers = #tpu.dot_dimension_numbers<[1], [0], [0], [1], [0, 0, 1, 1], [], []>} : vector<32x512xbf16>, vector<512x512xbf16>, vector<32x512xf32> -> vector<32x512xf32>
    %c0_55 = arith.constant 0 : index
    %c0_56 = arith.constant 0 : index
    %67 = vector.load %arg4[%c0_55, %c0_56] : memref<32x32xbf16, #tpu.memory_space<vmem>>, vector<32x32xbf16>
    %68 = arith.truncf %66 : vector<32x512xf32> to vector<32x512xbf16>
    %cst_57 = arith.constant dense<0.000000e+00> : vector<32x512xf32>
    %69 = tpu.matmul %67, %68, %cst_57 {dimension_numbers = #tpu.dot_dimension_numbers<[1], [0], [0], [1], [0, 0, 1, 1], [], []>} : vector<32x32xbf16>, vector<32x512xbf16>, vector<32x512xf32> -> vector<32x512xf32>
    %c0_58 = arith.constant 0 : index
    %c0_59 = arith.constant 0 : index
    %70 = vector.load %arg7[%c0_58, %c0_59] : memref<32x512xf32, #tpu.memory_space<vmem>>, vector<32x512xf32>
    %71 = arith.addf %69, %70 : vector<32x512xf32>
    %cst_60 = arith.constant 0.000000e+00 : f32
    %72 = vector.broadcast %cst_60 : f32 to vector<32x512xf32>
    %73 = arith.cmpf ogt, %71, %72 : vector<32x512xf32>
    %cst_61 = arith.constant 0.00999999977 : f32
    %74 = vector.broadcast %cst_61 : f32 to vector<32x512xf32>
    %75 = arith.mulf %74, %71 : vector<32x512xf32>
    %76 = arith.select %73, %71, %75 : vector<32x512xi1>, vector<32x512xf32>
    %c0_62 = arith.constant 0 : index
    %c0_63 = arith.constant 0 : index
    %77 = vector.load %arg5[%c0_62, %c0_63] : memref<32x32xbf16, #tpu.memory_space<vmem>>, vector<32x32xbf16>
    %78 = arith.truncf %76 : vector<32x512xf32> to vector<32x512xbf16>
    %cst_64 = arith.constant dense<0.000000e+00> : vector<32x512xf32>
    %79 = tpu.matmul %77, %78, %cst_64 {dimension_numbers = #tpu.dot_dimension_numbers<[1], [0], [0], [1], [0, 0, 1, 1], [], []>} : vector<32x32xbf16>, vector<32x512xbf16>, vector<32x512xf32> -> vector<32x512xf32>
    %c0_65 = arith.constant 0 : index
    %c0_66 = arith.constant 0 : index
    %80 = vector.load %arg8[%c0_65, %c0_66] : memref<32x512xf32, #tpu.memory_space<vmem>>, vector<32x512xf32>
    %81 = arith.addf %79, %80 : vector<32x512xf32>
    %82 = arith.subf %40, %81 : vector<32x512xf32>
    %c0_67 = arith.constant 0 : index
    %c0_68 = arith.constant 0 : index
    %83 = vector.load %arg13[%c0_67, %c0_68] : memref<32x512xf32, #tpu.memory_space<vmem>>, vector<32x512xf32>
    %cst_69 = arith.constant 3.750000e-01 : f32
    %84 = vector.broadcast %cst_69 : f32 to vector<32x512xf32>
    %85 = arith.mulf %84, %81 : vector<32x512xf32>
    %86 = arith.addf %83, %85 : vector<32x512xf32>
    %c0_70 = arith.constant 0 : index
    %c0_71 = arith.constant 0 : index
    %87 = vector.load %arg13[%c0_70, %c0_71] : memref<32x512xf32, #tpu.memory_space<vmem>>, vector<32x512xf32>
    tpu.vector_store %arg13[%c0_70, %c0_71], %86 {strides = array<i32>} : memref<32x512xf32, #tpu.memory_space<vmem>>, vector<32x512xf32>,
    %c0_72 = arith.constant 0 : index
    %c0_73 = arith.constant 0 : index
    %88 = vector.load %arg12[%c0_72, %c0_73] : memref<32x512xf32, #tpu.memory_space<vmem>>, vector<32x512xf32>
    %cst_74 = arith.constant 0.666666686 : f32
    %89 = vector.broadcast %cst_74 : f32 to vector<32x512xf32>
    %90 = arith.mulf %89, %81 : vector<32x512xf32>
    %cst_75 = arith.constant 0.333333343 : f32
    %91 = vector.broadcast %cst_75 : f32 to vector<32x512xf32>
    %92 = arith.mulf %91, %82 : vector<32x512xf32>
    %93 = arith.subf %90, %92 : vector<32x512xf32>
    %94 = arith.addf %88, %93 : vector<32x512xf32>
    %95 = arith.addf %94, %4 : vector<32x512xf32>
    %c0_76 = arith.constant 0 : index
    %c0_77 = arith.constant 0 : index
    %96 = vector.load %arg2[%c0_76, %c0_77] : memref<512x512xbf16, #tpu.memory_space<vmem>>, vector<512x512xbf16>
    %97 = arith.truncf %95 : vector<32x512xf32> to vector<32x512xbf16>
    %cst_78 = arith.constant dense<0.000000e+00> : vector<32x512xf32>
    %98 = tpu.matmul %97, %96, %cst_78 {dimension_numbers = #tpu.dot_dimension_numbers<[1], [0], [0], [1], [0, 0, 1, 1], [], []>} : vector<32x512xbf16>, vector<512x512xbf16>, vector<32x512xf32> -> vector<32x512xf32>
    %c0_79 = arith.constant 0 : index
    %c0_80 = arith.constant 0 : index
    %99 = vector.load %arg3[%c0_79, %c0_80] : memref<32x32xbf16, #tpu.memory_space<vmem>>, vector<32x32xbf16>
    %100 = arith.truncf %98 : vector<32x512xf32> to vector<32x512xbf16>
    %cst_81 = arith.constant dense<0.000000e+00> : vector<32x512xf32>
    %101 = tpu.matmul %99, %100, %cst_81 {dimension_numbers = #tpu.dot_dimension_numbers<[1], [0], [0], [1], [0, 0, 1, 1], [], []>} : vector<32x32xbf16>, vector<32x512xbf16>, vector<32x512xf32> -> vector<32x512xf32>
    %c0_82 = arith.constant 0 : index
    %c0_83 = arith.constant 0 : index
    %102 = vector.load %arg6[%c0_82, %c0_83] : memref<32x512xf32, #tpu.memory_space<vmem>>, vector<32x512xf32>
    %103 = arith.addf %101, %102 : vector<32x512xf32>
    %cst_84 = arith.constant 0.000000e+00 : f32
    %104 = vector.broadcast %cst_84 : f32 to vector<32x512xf32>
    %105 = arith.cmpf ogt, %103, %104 : vector<32x512xf32>
    %cst_85 = arith.constant 0.00999999977 : f32
    %106 = vector.broadcast %cst_85 : f32 to vector<32x512xf32>
    %107 = arith.mulf %106, %103 : vector<32x512xf32>
    %108 = arith.select %105, %103, %107 : vector<32x512xi1>, vector<32x512xf32>
    %c0_86 = arith.constant 0 : index
    %c0_87 = arith.constant 0 : index
    %109 = vector.load %arg2[%c0_86, %c0_87] : memref<512x512xbf16, #tpu.memory_space<vmem>>, vector<512x512xbf16>
    %110 = arith.truncf %108 : vector<32x512xf32> to vector<32x512xbf16>
    %cst_88 = arith.constant dense<0.000000e+00> : vector<32x512xf32>
    %111 = tpu.matmul %110, %109, %cst_88 {dimension_numbers = #tpu.dot_dimension_numbers<[1], [0], [0], [1], [0, 0, 1, 1], [], []>} : vector<32x512xbf16>, vector<512x512xbf16>, vector<32x512xf32> -> vector<32x512xf32>
    %c0_89 = arith.constant 0 : index
    %c0_90 = arith.constant 0 : index
    %112 = vector.load %arg4[%c0_89, %c0_90] : memref<32x32xbf16, #tpu.memory_space<vmem>>, vector<32x32xbf16>
    %113 = arith.truncf %111 : vector<32x512xf32> to vector<32x512xbf16>
    %cst_91 = arith.constant dense<0.000000e+00> : vector<32x512xf32>
    %114 = tpu.matmul %112, %113, %cst_91 {dimension_numbers = #tpu.dot_dimension_numbers<[1], [0], [0], [1], [0, 0, 1, 1], [], []>} : vector<32x32xbf16>, vector<32x512xbf16>, vector<32x512xf32> -> vector<32x512xf32>
    %c0_92 = arith.constant 0 : index
    %c0_93 = arith.constant 0 : index
    %115 = vector.load %arg7[%c0_92, %c0_93] : memref<32x512xf32, #tpu.memory_space<vmem>>, vector<32x512xf32>
    %116 = arith.addf %114, %115 : vector<32x512xf32>
    %cst_94 = arith.constant 0.000000e+00 : f32
    %117 = vector.broadcast %cst_94 : f32 to vector<32x512xf32>
    %118 = arith.cmpf ogt, %116, %117 : vector<32x512xf32>
    %cst_95 = arith.constant 0.00999999977 : f32
    %119 = vector.broadcast %cst_95 : f32 to vector<32x512xf32>
    %120 = arith.mulf %119, %116 : vector<32x512xf32>
    %121 = arith.select %118, %116, %120 : vector<32x512xi1>, vector<32x512xf32>
    %c0_96 = arith.constant 0 : index
    %c0_97 = arith.constant 0 : index
    %122 = vector.load %arg5[%c0_96, %c0_97] : memref<32x32xbf16, #tpu.memory_space<vmem>>, vector<32x32xbf16>
    %123 = arith.truncf %121 : vector<32x512xf32> to vector<32x512xbf16>
    %cst_98 = arith.constant dense<0.000000e+00> : vector<32x512xf32>
    %124 = tpu.matmul %122, %123, %cst_98 {dimension_numbers = #tpu.dot_dimension_numbers<[1], [0], [0], [1], [0, 0, 1, 1], [], []>} : vector<32x32xbf16>, vector<32x512xbf16>, vector<32x512xf32> -> vector<32x512xf32>
    %c0_99 = arith.constant 0 : index
    %c0_100 = arith.constant 0 : index
    %125 = vector.load %arg8[%c0_99, %c0_100] : memref<32x512xf32, #tpu.memory_space<vmem>>, vector<32x512xf32>
    %126 = arith.addf %124, %125 : vector<32x512xf32>
    %c0_101 = arith.constant 0 : index
    %c0_102 = arith.constant 0 : index
    %127 = vector.load %arg13[%c0_101, %c0_102] : memref<32x512xf32, #tpu.memory_space<vmem>>, vector<32x512xf32>
    %cst_103 = arith.constant 3.750000e-01 : f32
    %128 = vector.broadcast %cst_103 : f32 to vector<32x512xf32>
    %129 = arith.mulf %128, %126 : vector<32x512xf32>
    %130 = arith.addf %127, %129 : vector<32x512xf32>
    %c0_104 = arith.constant 0 : index
    %c0_105 = arith.constant 0 : index
    %131 = vector.load %arg13[%c0_104, %c0_105] : memref<32x512xf32, #tpu.memory_space<vmem>>, vector<32x512xf32>
    tpu.vector_store %arg13[%c0_104, %c0_105], %130 {strides = array<i32>} : memref<32x512xf32, #tpu.memory_space<vmem>>, vector<32x512xf32>,
    %c0_106 = arith.constant 0 : index
    %c0_107 = arith.constant 0 : index
    %132 = vector.load %arg12[%c0_106, %c0_107] : memref<32x512xf32, #tpu.memory_space<vmem>>, vector<32x512xf32>
    %133 = arith.addf %82, %126 : vector<32x512xf32>
    %134 = arith.addf %132, %133 : vector<32x512xf32>
    %135 = arith.addf %134, %7 : vector<32x512xf32>
    %c0_108 = arith.constant 0 : index
    %c0_109 = arith.constant 0 : index
    %136 = vector.load %arg2[%c0_108, %c0_109] : memref<512x512xbf16, #tpu.memory_space<vmem>>, vector<512x512xbf16>
    %137 = arith.truncf %135 : vector<32x512xf32> to vector<32x512xbf16>
    %cst_110 = arith.constant dense<0.000000e+00> : vector<32x512xf32>
    %138 = tpu.matmul %137, %136, %cst_110 {dimension_numbers = #tpu.dot_dimension_numbers<[1], [0], [0], [1], [0, 0, 1, 1], [], []>} : vector<32x512xbf16>, vector<512x512xbf16>, vector<32x512xf32> -> vector<32x512xf32>
    %c0_111 = arith.constant 0 : index
    %c0_112 = arith.constant 0 : index
    %139 = vector.load %arg3[%c0_111, %c0_112] : memref<32x32xbf16, #tpu.memory_space<vmem>>, vector<32x32xbf16>
    %140 = arith.truncf %138 : vector<32x512xf32> to vector<32x512xbf16>
    %cst_113 = arith.constant dense<0.000000e+00> : vector<32x512xf32>
    %141 = tpu.matmul %139, %140, %cst_113 {dimension_numbers = #tpu.dot_dimension_numbers<[1], [0], [0], [1], [0, 0, 1, 1], [], []>} : vector<32x32xbf16>, vector<32x512xbf16>, vector<32x512xf32> -> vector<32x512xf32>
    %c0_114 = arith.constant 0 : index
    %c0_115 = arith.constant 0 : index
    %142 = vector.load %arg6[%c0_114, %c0_115] : memref<32x512xf32, #tpu.memory_space<vmem>>, vector<32x512xf32>
    %143 = arith.addf %141, %142 : vector<32x512xf32>
    %cst_116 = arith.constant 0.000000e+00 : f32
    %144 = vector.broadcast %cst_116 : f32 to vector<32x512xf32>
    %145 = arith.cmpf ogt, %143, %144 : vector<32x512xf32>
    %cst_117 = arith.constant 0.00999999977 : f32
    %146 = vector.broadcast %cst_117 : f32 to vector<32x512xf32>
    %147 = arith.mulf %146, %143 : vector<32x512xf32>
    %148 = arith.select %145, %143, %147 : vector<32x512xi1>, vector<32x512xf32>
    %c0_118 = arith.constant 0 : index
    %c0_119 = arith.constant 0 : index
    %149 = vector.load %arg2[%c0_118, %c0_119] : memref<512x512xbf16, #tpu.memory_space<vmem>>, vector<512x512xbf16>
    %150 = arith.truncf %148 : vector<32x512xf32> to vector<32x512xbf16>
    %cst_120 = arith.constant dense<0.000000e+00> : vector<32x512xf32>
    %151 = tpu.matmul %150, %149, %cst_120 {dimension_numbers = #tpu.dot_dimension_numbers<[1], [0], [0], [1], [0, 0, 1, 1], [], []>} : vector<32x512xbf16>, vector<512x512xbf16>, vector<32x512xf32> -> vector<32x512xf32>
    %c0_121 = arith.constant 0 : index
    %c0_122 = arith.constant 0 : index
    %152 = vector.load %arg4[%c0_121, %c0_122] : memref<32x32xbf16, #tpu.memory_space<vmem>>, vector<32x32xbf16>
    %153 = arith.truncf %151 : vector<32x512xf32> to vector<32x512xbf16>
    %cst_123 = arith.constant dense<0.000000e+00> : vector<32x512xf32>
    %154 = tpu.matmul %152, %153, %cst_123 {dimension_numbers = #tpu.dot_dimension_numbers<[1], [0], [0], [1], [0, 0, 1, 1], [], []>} : vector<32x32xbf16>, vector<32x512xbf16>, vector<32x512xf32> -> vector<32x512xf32>
    %c0_124 = arith.constant 0 : index
    %c0_125 = arith.constant 0 : index
    %155 = vector.load %arg7[%c0_124, %c0_125] : memref<32x512xf32, #tpu.memory_space<vmem>>, vector<32x512xf32>
    %156 = arith.addf %154, %155 : vector<32x512xf32>
    %cst_126 = arith.constant 0.000000e+00 : f32
    %157 = vector.broadcast %cst_126 : f32 to vector<32x512xf32>
    %158 = arith.cmpf ogt, %156, %157 : vector<32x512xf32>
    %cst_127 = arith.constant 0.00999999977 : f32
    %159 = vector.broadcast %cst_127 : f32 to vector<32x512xf32>
    %160 = arith.mulf %159, %156 : vector<32x512xf32>
    %161 = arith.select %158, %156, %160 : vector<32x512xi1>, vector<32x512xf32>
    %c0_128 = arith.constant 0 : index
    %c0_129 = arith.constant 0 : index
    %162 = vector.load %arg5[%c0_128, %c0_129] : memref<32x32xbf16, #tpu.memory_space<vmem>>, vector<32x32xbf16>
    %163 = arith.truncf %161 : vector<32x512xf32> to vector<32x512xbf16>
    %cst_130 = arith.constant dense<0.000000e+00> : vector<32x512xf32>
    %164 = tpu.matmul %162, %163, %cst_130 {dimension_numbers = #tpu.dot_dimension_numbers<[1], [0], [0], [1], [0, 0, 1, 1], [], []>} : vector<32x32xbf16>, vector<32x512xbf16>, vector<32x512xf32> -> vector<32x512xf32>
    %c0_131 = arith.constant 0 : index
    %c0_132 = arith.constant 0 : index
    %165 = vector.load %arg8[%c0_131, %c0_132] : memref<32x512xf32, #tpu.memory_space<vmem>>, vector<32x512xf32>
    %166 = arith.addf %164, %165 : vector<32x512xf32>
    %c0_133 = arith.constant 0 : index
    %c0_134 = arith.constant 0 : index
    %167 = vector.load %arg13[%c0_133, %c0_134] : memref<32x512xf32, #tpu.memory_space<vmem>>, vector<32x512xf32>
    %cst_135 = arith.constant 1.250000e-01 : f32
    %168 = vector.broadcast %cst_135 : f32 to vector<32x512xf32>
    %169 = arith.mulf %168, %166 : vector<32x512xf32>
    %170 = arith.addf %167, %169 : vector<32x512xf32>
    %c0_136 = arith.constant 0 : index
    %c0_137 = arith.constant 0 : index
    %171 = vector.load %arg12[%c0_136, %c0_137] : memref<32x512xf32, #tpu.memory_space<vmem>>, vector<32x512xf32>
    tpu.vector_store %arg12[%c0_136, %c0_137], %170 {strides = array<i32>} : memref<32x512xf32, #tpu.memory_space<vmem>>, vector<32x512xf32>,
    %c0_138 = arith.constant 0 : index
    %c0_139 = arith.constant 0 : index
    %172 = vector.load %arg12[%c0_138, %c0_139] : memref<32x512xf32, #tpu.memory_space<vmem>>, vector<32x512xf32>
    %c0_140 = arith.constant 0 : index
    %c0_141 = arith.constant 0 : index
    %173 = vector.load %arg9[%c0_140, %c0_141] : memref<512x512xbf16, #tpu.memory_space<vmem>>, vector<512x512xbf16>
    %174 = arith.truncf %172 : vector<32x512xf32> to vector<32x512xbf16>
    %cst_142 = arith.constant dense<0.000000e+00> : vector<32x512xf32>
    %175 = tpu.matmul %174, %173, %cst_142 {dimension_numbers = #tpu.dot_dimension_numbers<[1], [0], [0], [1], [0, 0, 1, 1], [], []>} : vector<32x512xbf16>, vector<512x512xbf16>, vector<32x512xf32> -> vector<32x512xf32>
    %c0_143 = arith.constant 0 : index
    %c0_144 = arith.constant 0 : index
    %176 = vector.load %arg10[%c0_143, %c0_144] : memref<32x512xf32, #tpu.memory_space<vmem>>, vector<32x512xf32>
    %177 = arith.addf %175, %176 : vector<32x512xf32>
    %178 = vector.extract_strided_slice %177 {offsets = [0, 0], sizes = [32, 256], strides = [1, 1]} : vector<32x512xf32> to vector<32x256xf32>
    %c0_145 = arith.constant 0 : index
    %c0_146 = arith.constant 0 : index
    %c0_147 = arith.constant 0 : index
    %c0_148 = arith.constant 0 : index
    %179 = vector.load %arg11[%c0_145, %c0_146, %c0_147, %c0_148] : memref<1x2x32x256xf32, #tpu.memory_space<vmem>>, vector<1x1x32x256xf32>
    %180 = vector.shape_cast %179 : vector<1x1x32x256xf32> to vector<32x256xf32>
    %181 = vector.shape_cast %178 : vector<32x256xf32> to vector<1x1x32x256xf32>
    tpu.vector_store %arg11[%c0_145, %c0_146, %c0_147, %c0_148], %181 {strides = array<i32>} : memref<1x2x32x256xf32, #tpu.memory_space<vmem>>, vector<1x1x32x256xf32>,
    %182 = vector.extract_strided_slice %177 {offsets = [0, 256], sizes = [32, 256], strides = [1, 1]} : vector<32x512xf32> to vector<32x256xf32>
    %c0_149 = arith.constant 0 : index
    %c1_150 = arith.constant 1 : index
    %c0_151 = arith.constant 0 : index
    %c0_152 = arith.constant 0 : index
    %183 = vector.load %arg11[%c0_149, %c1_150, %c0_151, %c0_152] : memref<1x2x32x256xf32, #tpu.memory_space<vmem>>, vector<1x1x32x256xf32>
    %184 = vector.shape_cast %183 : vector<1x1x32x256xf32> to vector<32x256xf32>
    %185 = vector.shape_cast %182 : vector<32x256xf32> to vector<1x1x32x256xf32>
    tpu.vector_store %arg11[%c0_149, %c1_150, %c0_151, %c0_152], %185 {strides = array<i32>} : memref<1x2x32x256xf32, #tpu.memory_space<vmem>>, vector<1x1x32x256xf32>,
    return
  }
}

</mosaic_0001>

<llo_original>
// kernel: sode_forward.1
$region0: #{sode_forward.1}
  #allocation0 [shape = 'u32[]', space=smem, size = 0x4, offset = 0x4, fixed_abs, tag = 'smem constant byte address 0x4 - core index']
  #allocation1 [shape = 'u32[144,128]{1,0:T(1,128)}', space=vmem, size = 0x12000, scoped, tag = 'internal scratch']
  #allocation2 [shape = 'f32[32,512]{1,0:T(8,128)}', space=vmem, size = 0x10000, scoped, tag = 'scratch operand']
  #allocation3 [shape = 'f32[32,512]{1,0:T(8,128)}', space=vmem, size = 0x10000, scoped, tag = 'scratch operand']
  %s0 = inlined_call_operand.vmem [shape: f32[32,512], index: 0, kind: input, shape index: {}]
  %s1 = inlined_call_operand.vmem [shape: bf16[2,32,512], index: 1, kind: input, shape index: {}]
  %s2 = inlined_call_operand.vmem [shape: bf16[512,512], index: 2, kind: input, shape index: {}]
  %s3 = inlined_call_operand.vmem [shape: bf16[32,32], index: 3, kind: input, shape index: {}]
  %s4 = inlined_call_operand.vmem [shape: bf16[32,32], index: 4, kind: input, shape index: {}]
  %s5 = inlined_call_operand.vmem [shape: bf16[32,32], index: 5, kind: input, shape index: {}]
  %s6 = inlined_call_operand.vmem [shape: f32[32,512], index: 6, kind: input, shape index: {}]
  %s7 = inlined_call_operand.vmem [shape: f32[32,512], index: 7, kind: input, shape index: {}]
  %s8 = inlined_call_operand.vmem [shape: f32[32,512], index: 8, kind: input, shape index: {}]
  %s9 = inlined_call_operand.vmem [shape: bf16[512,512], index: 9, kind: input, shape index: {}]
  %s10 = inlined_call_operand.vmem [shape: f32[32,512], index: 10, kind: input, shape index: {}]
  %s11 = inlined_call_operand.vmem [shape: f32[1,2,32,256], index: 11, kind: output, shape index: {}]
  %s12 = sld [smem:[#allocation0]]
  $region54: #{sode_forward.1} parent=0
    _
  %s14 = ssub.s32 1, %s12
  %s15 = scalar_select 0, %s14, %s12
  // Predicated region
  $region2: #{sode_forward.1} parent=0 // pred_check
    _
  $region3: #{sode_forward.1} parent=0 // pred_check_branch
    %17 = sbr.rel (0) target = $region5
  $region4: #{sode_forward.1} parent=0 // pred_region
    _
  $region5: #{sode_forward.1} parent=0 // pred_fallthru
    _
  // Predicated region
  $region6: #{sode_forward.1} parent=0 // pred_check
    _
  $region7: #{sode_forward.1} parent=0 // pred_check_branch
    %19 = sbr.rel (0) target = $region9
  $region8: #{sode_forward.1} parent=0 // pred_region
    _
  $region9: #{sode_forward.1} parent=0 // pred_fallthru
    _
  // Predicated region
  $region10: #{sode_forward.1} parent=0 // pred_check
    _
  $region11: #{sode_forward.1} parent=0 // pred_check_branch
    %21 = sbr.rel (0) target = $region13
  $region12: #{sode_forward.1} parent=0 // pred_region
    _
  $region13: #{sode_forward.1} parent=0 // pred_fallthru
    _
  // Predicated region
  $region14: #{sode_forward.1} parent=0 // pred_check
    _
  $region15: #{sode_forward.1} parent=0 // pred_check_branch
    %23 = sbr.rel (0) target = $region17
  $region16: #{sode_forward.1} parent=0 // pred_region
    _
  $region17: #{sode_forward.1} parent=0 // pred_fallthru
    _
  // Predicated region
  $region18: #{sode_forward.1} parent=0 // pred_check
    _
  $region19: #{sode_forward.1} parent=0 // pred_check_branch
    %25 = sbr.rel (0) target = $region21
  $region20: #{sode_forward.1} parent=0 // pred_region
    _
  $region21: #{sode_forward.1} parent=0 // pred_fallthru
    _
  // Predicated region
  $region22: #{sode_forward.1} parent=0 // pred_check
    _
  $region23: #{sode_forward.1} parent=0 // pred_check_branch
    %27 = sbr.rel (0) target = $region25
  $region24: #{sode_forward.1} parent=0 // pred_region
    _
  $region25: #{sode_forward.1} parent=0 // pred_fallthru
    _
  // Predicated region
  $region26: #{sode_forward.1} parent=0 // pred_check
    _
  $region27: #{sode_forward.1} parent=0 // pred_check_branch
    %29 = sbr.rel (0) target = $region29
  $region28: #{sode_forward.1} parent=0 // pred_region
    _
  $region29: #{sode_forward.1} parent=0 // pred_fallthru
    _
  // Predicated region
  $region30: #{sode_forward.1} parent=0 // pred_check
    _
  $region31: #{sode_forward.1} parent=0 // pred_check_branch
    %31 = sbr.rel (0) target = $region33
  $region32: #{sode_forward.1} parent=0 // pred_region
    _
  $region33: #{sode_forward.1} parent=0 // pred_fallthru
    _
  // Predicated region
  $region34: #{sode_forward.1} parent=0 // pred_check
    _
  $region35: #{sode_forward.1} parent=0 // pred_check_branch
    %33 = sbr.rel (0) target = $region37
  $region36: #{sode_forward.1} parent=0 // pred_region
    _
  $region37: #{sode_forward.1} parent=0 // pred_fallthru
    _
  // Predicated region
  $region38: #{sode_forward.1} parent=0 // pred_check
    _
  $region39: #{sode_forward.1} parent=0 // pred_check_branch
    %35 = sbr.rel (0) target = $region41
  $region40: #{sode_forward.1} parent=0 // pred_region
    _
  $region41: #{sode_forward.1} parent=0 // pred_fallthru
    _
  // Predicated region
  $region42: #{sode_forward.1} parent=0 // pred_check
    _
  $region43: #{sode_forward.1} parent=0 // pred_check_branch
    %37 = sbr.rel (0) target = $region45
  $region44: #{sode_forward.1} parent=0 // pred_region
    _
  $region45: #{sode_forward.1} parent=0 // pred_fallthru
    _
  %v39 = vld [vmem:[%s0] sm:$0xff]
  %v40 = vld [vmem:[%s0 + $0x8] sm:$0xff]
  %v41 = vld [vmem:[%s0 + $0x10] sm:$0xff]
  %v42 = vld [vmem:[%s0 + $0x18] sm:$0xff]
  %v43 = vld [vmem:[%s0 + $0x20] sm:$0xff]
  %v44 = vld [vmem:[%s0 + $0x28] sm:$0xff]
  %v45 = vld [vmem:[%s0 + $0x30] sm:$0xff]
  %v46 = vld [vmem:[%s0 + $0x38] sm:$0xff]
  %v47 = vld [vmem:[%s0 + $0x40] sm:$0xff]
  %v48 = vld [vmem:[%s0 + $0x48] sm:$0xff]
  %v49 = vld [vmem:[%s0 + $0x50] sm:$0xff]
  %v50 = vld [vmem:[%s0 + $0x58] sm:$0xff]
  %v51 = vld [vmem:[%s0 + $0x60] sm:$0xff]
  %v52 = vld [vmem:[%s0 + $0x68] sm:$0xff]
  %v53 = vld [vmem:[%s0 + $0x70] sm:$0xff]
  %v54 = vld [vmem:[%s0 + $0x78] sm:$0xff]
  %55 = vst [vmem:[#allocation2] sm:$0xff] %v39
  %56 = vst [vmem:[#allocation2 + $0x8] sm:$0xff] %v40
  %57 = vst [vmem:[#allocation2 + $0x10] sm:$0xff] %v41
  %58 = vst [vmem:[#allocation2 + $0x18] sm:$0xff] %v42
  %59 = vst [vmem:[#allocation2 + $0x20] sm:$0xff] %v43
  %60 = vst [vmem:[#allocation2 + $0x28] sm:$0xff] %v44
  %61 = vst [vmem:[#allocation2 + $0x30] sm:$0xff] %v45
  %62 = vst [vmem:[#allocation2 + $0x38] sm:$0xff] %v46
  %63 = vst [vmem:[#allocation2 + $0x40] sm:$0xff] %v47
  %64 = vst [vmem:[#allocation2 + $0x48] sm:$0xff] %v48
  %65 = vst [vmem:[#allocation2 + $0x50] sm:$0xff] %v49
  %66 = vst [vmem:[#allocation2 + $0x58] sm:$0xff] %v50
  %67 = vst [vmem:[#allocation2 + $0x60] sm:$0xff] %v51
  %68 = vst [vmem:[#allocation2 + $0x68] sm:$0xff] %v52
  %69 = vst [vmem:[#allocation2 + $0x70] sm:$0xff] %v53
  %70 = vst [vmem:[#allocation2 + $0x78] sm:$0xff] %v54
  %v71 = vld [vmem:[%s1] sm:$0xff]
  %v72 = vld [vmem:[%s1 + $0x8] sm:$0xff]
  %v73 = vld [vmem:[%s1 + $0x10] sm:$0xff]
  %v74 = vld [vmem:[%s1 + $0x18] sm:$0xff]
  %v75 = vld [vmem:[%s1 + $0x20] sm:$0xff]
  %v76 = vld [vmem:[%s1 + $0x28] sm:$0xff]
  %v77 = vld [vmem:[%s1 + $0x30] sm:$0xff]
  %v78 = vld [vmem:[%s1 + $0x38] sm:$0xff]
  %v79 = vunpack.c.l.bf16 %v71
  %v80 = vunpack.c.h.bf16 %v71
  %v81 = vunpack.c.l.bf16 %v72
  %v82 = vunpack.c.h.bf16 %v72
  %v83 = vunpack.c.l.bf16 %v73
  %v84 = vunpack.c.h.bf16 %v73
  %v85 = vunpack.c.l.bf16 %v74
  %v86 = vunpack.c.h.bf16 %v74
  %v87 = vunpack.c.l.bf16 %v75
  %v88 = vunpack.c.h.bf16 %v75
  %v89 = vunpack.c.l.bf16 %v76
  %v90 = vunpack.c.h.bf16 %v76
  %v91 = vunpack.c.l.bf16 %v77
  %v92 = vunpack.c.h.bf16 %v77
  %v93 = vunpack.c.l.bf16 %v78
  %v94 = vunpack.c.h.bf16 %v78
  %s95 = scalar_lea.vmem %s1, 64
  %v96 = vld [vmem:[%s95] sm:$0xff]
  %v97 = vld [vmem:[%s95 + $0x8] sm:$0xff]
  %v98 = vld [vmem:[%s95 + $0x10] sm:$0xff]
  %v99 = vld [vmem:[%s95 + $0x18] sm:$0xff]
  %v100 = vld [vmem:[%s95 + $0x20] sm:$0xff]
  %v101 = vld [vmem:[%s95 + $0x28] sm:$0xff]
  %v102 = vld [vmem:[%s95 + $0x30] sm:$0xff]
  %v103 = vld [vmem:[%s95 + $0x38] sm:$0xff]
  %v104 = vunpack.c.l.bf16 %v96
  %v105 = vunpack.c.h.bf16 %v96
  %v106 = vunpack.c.l.bf16 %v97
  %v107 = vunpack.c.h.bf16 %v97
  %v108 = vunpack.c.l.bf16 %v98
  %v109 = vunpack.c.h.bf16 %v98
  %v110 = vunpack.c.l.bf16 %v99
  %v111 = vunpack.c.h.bf16 %v99
  %v112 = vunpack.c.l.bf16 %v100
  %v113 = vunpack.c.h.bf16 %v100
  %v114 = vunpack.c.l.bf16 %v101
  %v115 = vunpack.c.h.bf16 %v101
  %v116 = vunpack.c.l.bf16 %v102
  %v117 = vunpack.c.h.bf16 %v102
  %v118 = vunpack.c.l.bf16 %v103
  %v119 = vunpack.c.h.bf16 %v103
  %v120 = vld [vmem:[#allocation2] sm:$0xff]
  %v121 = vld [vmem:[#allocation2 + $0x8] sm:$0xff]
  %v122 = vld [vmem:[#allocation2 + $0x10] sm:$0xff]
  %v123 = vld [vmem:[#allocation2 + $0x18] sm:$0xff]
  %v124 = vld [vmem:[#allocation2 + $0x20] sm:$0xff]
  %v125 = vld [vmem:[#allocation2 + $0x28] sm:$0xff]
  %v126 = vld [vmem:[#allocation2 + $0x30] sm:$0xff]
  %v127 = vld [vmem:[#allocation2 + $0x38] sm:$0xff]
  %v128 = vld [vmem:[#allocation2 + $0x40] sm:$0xff]
  %v129 = vld [vmem:[#allocation2 + $0x48] sm:$0xff]
  %v130 = vld [vmem:[#allocation2 + $0x50] sm:$0xff]
  %v131 = vld [vmem:[#allocation2 + $0x58] sm:$0xff]
  %v132 = vld [vmem:[#allocation2 + $0x60] sm:$0xff]
  %v133 = vld [vmem:[#allocation2 + $0x68] sm:$0xff]
  %v134 = vld [vmem:[#allocation2 + $0x70] sm:$0xff]
  %v135 = vld [vmem:[#allocation2 + $0x78] sm:$0xff]
  %v136 = vadd.f32 %v120, %v79
  %v137 = vadd.f32 %v121, %v80
  %v138 = vadd.f32 %v122, %v81
  %v139 = vadd.f32 %v123, %v82
  %v140 = vadd.f32 %v124, %v83
  %v141 = vadd.f32 %v125, %v84
  %v142 = vadd.f32 %v126, %v85
  %v143 = vadd.f32 %v127, %v86
  %v144 = vadd.f32 %v128, %v87
  %v145 = vadd.f32 %v129, %v88
  %v146 = vadd.f32 %v130, %v89
  %v147 = vadd.f32 %v131, %v90
  %v148 = vadd.f32 %v132, %v91
  %v149 = vadd.f32 %v133, %v92
  %v150 = vadd.f32 %v134, %v93
  %v151 = vadd.f32 %v135, %v94
  %v152 = vld [vmem:[%s2] sm:$0xff]
  %v153 = vld [vmem:[%s2 + $0x8] sm:$0xff]
  %v154 = vld [vmem:[%s2 + $0x10] sm:$0xff]
  %v155 = vld [vmem:[%s2 + $0x18] sm:$0xff]
  %v156 = vld [vmem:[%s2 + $0x20] sm:$0xff]
  %v157 = vld [vmem:[%s2 + $0x28] sm:$0xff]
  %v158 = vld [vmem:[%s2 + $0x30] sm:$0xff]
  %v159 = vld [vmem:[%s2 + $0x38] sm:$0xff]
  %v160 = vld [vmem:[%s2 + $0x40] sm:$0xff]
  %v161 = vld [vmem:[%s2 + $0x48] sm:$0xff]
  %v162 = vld [vmem:[%s2 + $0x50] sm:$0xff]
  %v163 = vld [vmem:[%s2 + $0x58] sm:$0xff]
  %v164 = vld [vmem:[%s2 + $0x60] sm:$0xff]
  %v165 = vld [vmem:[%s2 + $0x68] sm:$0xff]
  %v166 = vld [vmem:[%s2 + $0x70] sm:$0xff]
  %v167 = vld [vmem:[%s2 + $0x78] sm:$0xff]
  %v168 = vld [vmem:[%s2 + $0x80] sm:$0xff]
  %v169 = vld [vmem:[%s2 + $0x88] sm:$0xff]
  %v170 = vld [vmem:[%s2 + $0x90] sm:$0xff]
  %v171 = vld [vmem:[%s2 + $0x98] sm:$0xff]
  %v172 = vld [vmem:[%s2 + $0xa0] sm:$0xff]
  %v173 = vld [vmem:[%s2 + $0xa8] sm:$0xff]
  %v174 = vld [vmem:[%s2 + $0xb0] sm:$0xff]
  %v175 = vld [vmem:[%s2 + $0xb8] sm:$0xff]
  %v176 = vld [vmem:[%s2 + $0xc0] sm:$0xff]
  %v177 = vld [vmem:[%s2 + $0xc8] sm:$0xff]
  %v178 = vld [vmem:[%s2 + $0xd0] sm:$0xff]
  %v179 = vld [vmem:[%s2 + $0xd8] sm:$0xff]
  %v180 = vld [vmem:[%s2 + $0xe0] sm:$0xff]
  %v181 = vld [vmem:[%s2 + $0xe8] sm:$0xff]
  %v182 = vld [vmem:[%s2 + $0xf0] sm:$0xff]
  %v183 = vld [vmem:[%s2 + $0xf8] sm:$0xff]
  %v184 = vld [vmem:[%s2 + $0x100] sm:$0xff]
  %v185 = vld [vmem:[%s2 + $0x108] sm:$0xff]
  %v186 = vld [vmem:[%s2 + $0x110] sm:$0xff]
  %v187 = vld [vmem:[%s2 + $0x118] sm:$0xff]
  %v188 = vld [vmem:[%s2 + $0x120] sm:$0xff]
  %v189 = vld [vmem:[%s2 + $0x128] sm:$0xff]
  %v190 = vld [vmem:[%s2 + $0x130] sm:$0xff]
  %v191 = vld [vmem:[%s2 + $0x138] sm:$0xff]
  %v192 = vld [vmem:[%s2 + $0x140] sm:$0xff]
  %v193 = vld [vmem:[%s2 + $0x148] sm:$0xff]
  %v194 = vld [vmem:[%s2 + $0x150] sm:$0xff]
  %v195 = vld [vmem:[%s2 + $0x158] sm:$0xff]
  %v196 = vld [vmem:[%s2 + $0x160] sm:$0xff]
  %v197 = vld [vmem:[%s2 + $0x168] sm:$0xff]
  %v198 = vld [vmem:[%s2 + $0x170] sm:$0xff]
  %v199 = vld [vmem:[%s2 + $0x178] sm:$0xff]
  %v200 = vld [vmem:[%s2 + $0x180] sm:$0xff]
  %v201 = vld [vmem:[%s2 + $0x188] sm:$0xff]
  %v202 = vld [vmem:[%s2 + $0x190] sm:$0xff]
  %v203 = vld [vmem:[%s2 + $0x198] sm:$0xff]
  %v204 = vld [vmem:[%s2 + $0x1a0] sm:$0xff]
  %v205 = vld [vmem:[%s2 + $0x1a8] sm:$0xff]
  %v206 = vld [vmem:[%s2 + $0x1b0] sm:$0xff]
  %v207 = vld [vmem:[%s2 + $0x1b8] sm:$0xff]
  %v208 = vld [vmem:[%s2 + $0x1c0] sm:$0xff]
  %v209 = vld [vmem:[%s2 + $0x1c8] sm:$0xff]
  %v210 = vld [vmem:[%s2 + $0x1d0] sm:$0xff]
  %v211 = vld [vmem:[%s2 + $0x1d8] sm:$0xff]
  %v212 = vld [vmem:[%s2 + $0x1e0] sm:$0xff]
  %v213 = vld [vmem:[%s2 + $0x1e8] sm:$0xff]
  %v214 = vld [vmem:[%s2 + $0x1f0] sm:$0xff]
  %v215 = vld [vmem:[%s2 + $0x1f8] sm:$0xff]
  %v216 = vld [vmem:[%s2 + $0x200] sm:$0xff]
  %v217 = vld [vmem:[%s2 + $0x208] sm:$0xff]
  %v218 = vld [vmem:[%s2 + $0x210] sm:$0xff]
  %v219 = vld [vmem:[%s2 + $0x218] sm:$0xff]
  %v220 = vld [vmem:[%s2 + $0x220] sm:$0xff]
  %v221 = vld [vmem:[%s2 + $0x228] sm:$0xff]
  %v222 = vld [vmem:[%s2 + $0x230] sm:$0xff]
  %v223 = vld [vmem:[%s2 + $0x238] sm:$0xff]
  %v224 = vld [vmem:[%s2 + $0x240] sm:$0xff]
  %v225 = vld [vmem:[%s2 + $0x248] sm:$0xff]
  %v226 = vld [vmem:[%s2 + $0x250] sm:$0xff]
  %v227 = vld [vmem:[%s2 + $0x258] sm:$0xff]
  %v228 = vld [vmem:[%s2 + $0x260] sm:$0xff]
  %v229 = vld [vmem:[%s2 + $0x268] sm:$0xff]
  %v230 = vld [vmem:[%s2 + $0x270] sm:$0xff]
  %v231 = vld [vmem:[%s2 + $0x278] sm:$0xff]
  %v232 = vld [vmem:[%s2 + $0x280] sm:$0xff]
  %v233 = vld [vmem:[%s2 + $0x288] sm:$0xff]
  %v234 = vld [vmem:[%s2 + $0x290] sm:$0xff]
  %v235 = vld [vmem:[%s2 + $0x298] sm:$0xff]
  %v236 = vld [vmem:[%s2 + $0x2a0] sm:$0xff]
  %v237 = vld [vmem:[%s2 + $0x2a8] sm:$0xff]
  %v238 = vld [vmem:[%s2 + $0x2b0] sm:$0xff]
  %v239 = vld [vmem:[%s2 + $0x2b8] sm:$0xff]
  %v240 = vld [vmem:[%s2 + $0x2c0] sm:$0xff]
  %v241 = vld [vmem:[%s2 + $0x2c8] sm:$0xff]
  %v242 = vld [vmem:[%s2 + $0x2d0] sm:$0xff]
  %v243 = vld [vmem:[%s2 + $0x2d8] sm:$0xff]
  %v244 = vld [vmem:[%s2 + $0x2e0] sm:$0xff]
  %v245 = vld [vmem:[%s2 + $0x2e8] sm:$0xff]
  %v246 = vld [vmem:[%s2 + $0x2f0] sm:$0xff]
  %v247 = vld [vmem:[%s2 + $0x2f8] sm:$0xff]
  %v248 = vld [vmem:[%s2 + $0x300] sm:$0xff]
  %v249 = vld [vmem:[%s2 + $0x308] sm:$0xff]
  %v250 = vld [vmem:[%s2 + $0x310] sm:$0xff]
  %v251 = vld [vmem:[%s2 + $0x318] sm:$0xff]
  %v252 = vld [vmem:[%s2 + $0x320] sm:$0xff]
  %v253 = vld [vmem:[%s2 + $0x328] sm:$0xff]
  %v254 = vld [vmem:[%s2 + $0x330] sm:$0xff]
  %v255 = vld [vmem:[%s2 + $0x338] sm:$0xff]
  %v256 = vld [vmem:[%s2 + $0x340] sm:$0xff]
  %v257 = vld [vmem:[%s2 + $0x348] sm:$0xff]
  %v258 = vld [vmem:[%s2 + $0x350] sm:$0xff]
  %v259 = vld [vmem:[%s2 + $0x358] sm:$0xff]
  %v260 = vld [vmem:[%s2 + $0x360] sm:$0xff]
  %v261 = vld [vmem:[%s2 + $0x368] sm:$0xff]
  %v262 = vld [vmem:[%s2 + $0x370] sm:$0xff]
  %v263 = vld [vmem:[%s2 + $0x378] sm:$0xff]
  %v264 = vld [vmem:[%s2 + $0x380] sm:$0xff]
  %v265 = vld [vmem:[%s2 + $0x388] sm:$0xff]
  %v266 = vld [vmem:[%s2 + $0x390] sm:$0xff]
  %v267 = vld [vmem:[%s2 + $0x398] sm:$0xff]
  %v268 = vld [vmem:[%s2 + $0x3a0] sm:$0xff]
  %v269 = vld [vmem:[%s2 + $0x3a8] sm:$0xff]
  %v270 = vld [vmem:[%s2 + $0x3b0] sm:$0xff]
  %v271 = vld [vmem:[%s2 + $0x3b8] sm:$0xff]
  %v272 = vld [vmem:[%s2 + $0x3c0] sm:$0xff]
  %v273 = vld [vmem:[%s2 + $0x3c8] sm:$0xff]
  %v274 = vld [vmem:[%s2 + $0x3d0] sm:$0xff]
  %v275 = vld [vmem:[%s2 + $0x3d8] sm:$0xff]
  %v276 = vld [vmem:[%s2 + $0x3e0] sm:$0xff]
  %v277 = vld [vmem:[%s2 + $0x3e8] sm:$0xff]
  %v278 = vld [vmem:[%s2 + $0x3f0] sm:$0xff]
  %v279 = vld [vmem:[%s2 + $0x3f8] sm:$0xff]
  %v280 = vpack.c.bf16 %v140, %v136
  %v281 = vpack.c.bf16 %v141, %v137
  %v282 = vpack.c.bf16 %v142, %v138
  %v283 = vpack.c.bf16 %v143, %v139
  %v284 = vpack.c.bf16 %v148, %v144
  %v285 = vpack.c.bf16 %v149, %v145
  %v286 = vpack.c.bf16 %v150, %v146
  %v287 = vpack.c.bf16 %v151, %v147
  %v416 = vunpack.c.l.b16 %v152
  %v417 = vunpack.c.h.b16 %v152
  %v418 = vunpack.c.l.b16 %v153
  %v419 = vunpack.c.h.b16 %v153
  %v420 = vunpack.c.l.b16 %v154
  %v421 = vunpack.c.h.b16 %v154
  %v422 = vunpack.c.l.b16 %v155
  %v423 = vunpack.c.h.b16 %v155
  %v424 = vunpack.c.l.b16 %v156
  %v425 = vunpack.c.h.b16 %v156
  %v426 = vunpack.c.l.b16 %v157
  %v427 = vunpack.c.h.b16 %v157
  %v428 = vunpack.c.l.b16 %v158
  %v429 = vunpack.c.h.b16 %v158
  %v430 = vunpack.c.l.b16 %v159
  %v431 = vunpack.c.h.b16 %v159
  %v432 = vunpack.c.l.b16 %v160
  %v433 = vunpack.c.h.b16 %v160
  %v434 = vunpack.c.l.b16 %v161
  %v435 = vunpack.c.h.b16 %v161
  %v436 = vunpack.c.l.b16 %v162
  %v437 = vunpack.c.h.b16 %v162
  %v438 = vunpack.c.l.b16 %v163
  %v439 = vunpack.c.h.b16 %v163
  %v440 = vunpack.c.l.b16 %v164
  %v441 = vunpack.c.h.b16 %v164
  %v442 = vunpack.c.l.b16 %v165
  %v443 = vunpack.c.h.b16 %v165
  %v444 = vunpack.c.l.b16 %v166
  %v445 = vunpack.c.h.b16 %v166
  %v446 = vunpack.c.l.b16 %v167
  %v447 = vunpack.c.h.b16 %v167
  %v448 = vunpack.c.l.b16 %v168
  %v449 = vunpack.c.h.b16 %v168
  %v450 = vunpack.c.l.b16 %v169
  %v451 = vunpack.c.h.b16 %v169
  %v452 = vunpack.c.l.b16 %v170
  %v453 = vunpack.c.h.b16 %v170
  %v454 = vunpack.c.l.b16 %v171
  %v455 = vunpack.c.h.b16 %v171
  %v456 = vunpack.c.l.b16 %v172
  %v457 = vunpack.c.h.b16 %v172
  %v458 = vunpack.c.l.b16 %v173
  %v459 = vunpack.c.h.b16 %v173
  %v460 = vunpack.c.l.b16 %v174
  %v461 = vunpack.c.h.b16 %v174
  %v462 = vunpack.c.l.b16 %v175
  %v463 = vunpack.c.h.b16 %v175
  %v464 = vunpack.c.l.b16 %v176
  %v465 = vunpack.c.h.b16 %v176
  %v466 = vunpack.c.l.b16 %v177
  %v467 = vunpack.c.h.b16 %v177
  %v468 = vunpack.c.l.b16 %v178
  %v469 = vunpack.c.h.b16 %v178
  %v470 = vunpack.c.l.b16 %v179
  %v471 = vunpack.c.h.b16 %v179
  %v472 = vunpack.c.l.b16 %v180
  %v473 = vunpack.c.h.b16 %v180
  %v474 = vunpack.c.l.b16 %v181
  %v475 = vunpack.c.h.b16 %v181
  %v476 = vunpack.c.l.b16 %v182
  %v477 = vunpack.c.h.b16 %v182
  %v478 = vunpack.c.l.b16 %v183
  %v479 = vunpack.c.h.b16 %v183
  %v480 = vunpack.c.l.b16 %v184
  %v481 = vunpack.c.h.b16 %v184
  %v482 = vunpack.c.l.b16 %v185
  %v483 = vunpack.c.h.b16 %v185
  %v484 = vunpack.c.l.b16 %v186
  %v485 = vunpack.c.h.b16 %v186
  %v486 = vunpack.c.l.b16 %v187
  %v487 = vunpack.c.h.b16 %v187
  %v488 = vunpack.c.l.b16 %v188
  %v489 = vunpack.c.h.b16 %v188
  %v490 = vunpack.c.l.b16 %v189
  %v491 = vunpack.c.h.b16 %v189
  %v492 = vunpack.c.l.b16 %v190
  %v493 = vunpack.c.h.b16 %v190
  %v494 = vunpack.c.l.b16 %v191
  %v495 = vunpack.c.h.b16 %v191
  %v496 = vunpack.c.l.b16 %v192
  %v497 = vunpack.c.h.b16 %v192
  %v498 = vunpack.c.l.b16 %v193
  %v499 = vunpack.c.h.b16 %v193
  %v500 = vunpack.c.l.b16 %v194
  %v501 = vunpack.c.h.b16 %v194
  %v502 = vunpack.c.l.b16 %v195
  %v503 = vunpack.c.h.b16 %v195
  %v504 = vunpack.c.l.b16 %v196
  %v505 = vunpack.c.h.b16 %v196
  %v506 = vunpack.c.l.b16 %v197
  %v507 = vunpack.c.h.b16 %v197
  %v508 = vunpack.c.l.b16 %v198
  %v509 = vunpack.c.h.b16 %v198
  %v510 = vunpack.c.l.b16 %v199
  %v511 = vunpack.c.h.b16 %v199
  %v512 = vunpack.c.l.b16 %v200
  %v513 = vunpack.c.h.b16 %v200
  %v514 = vunpack.c.l.b16 %v201
  %v515 = vunpack.c.h.b16 %v201
  %v516 = vunpack.c.l.b16 %v202
  %v517 = vunpack.c.h.b16 %v202
  %v518 = vunpack.c.l.b16 %v203
  %v519 = vunpack.c.h.b16 %v203
  %v520 = vunpack.c.l.b16 %v204
  %v521 = vunpack.c.h.b16 %v204
  %v522 = vunpack.c.l.b16 %v205
  %v523 = vunpack.c.h.b16 %v205
  %v524 = vunpack.c.l.b16 %v206
  %v525 = vunpack.c.h.b16 %v206
  %v526 = vunpack.c.l.b16 %v207
  %v527 = vunpack.c.h.b16 %v207
  %v528 = vunpack.c.l.b16 %v208
  %v529 = vunpack.c.h.b16 %v208
  %v530 = vunpack.c.l.b16 %v209
  %v531 = vunpack.c.h.b16 %v209
  %v532 = vunpack.c.l.b16 %v210
  %v533 = vunpack.c.h.b16 %v210
  %v534 = vunpack.c.l.b16 %v211
  %v535 = vunpack.c.h.b16 %v211
  %v536 = vunpack.c.l.b16 %v212
  %v537 = vunpack.c.h.b16 %v212
  %v538 = vunpack.c.l.b16 %v213
  %v539 = vunpack.c.h.b16 %v213
  %v540 = vunpack.c.l.b16 %v214
  %v541 = vunpack.c.h.b16 %v214
  %v542 = vunpack.c.l.b16 %v215
  %v543 = vunpack.c.h.b16 %v215
  %v544 = vunpack.c.l.b16 %v216
  %v545 = vunpack.c.h.b16 %v216
  %v546 = vunpack.c.l.b16 %v217
  %v547 = vunpack.c.h.b16 %v217
  %v548 = vunpack.c.l.b16 %v218
  %v549 = vunpack.c.h.b16 %v218
  %v550 = vunpack.c.l.b16 %v219
  %v551 = vunpack.c.h.b16 %v219
  %v552 = vunpack.c.l.b16 %v220
  %v553 = vunpack.c.h.b16 %v220
  %v554 = vunpack.c.l.b16 %v221
  %v555 = vunpack.c.h.b16 %v221
  %v556 = vunpack.c.l.b16 %v222
  %v557 = vunpack.c.h.b16 %v222
  %v558 = vunpack.c.l.b16 %v223
  %v559 = vunpack.c.h.b16 %v223
  %v560 = vunpack.c.l.b16 %v224
  %v561 = vunpack.c.h.b16 %v224
  %v562 = vunpack.c.l.b16 %v225
  %v563 = vunpack.c.h.b16 %v225
  %v564 = vunpack.c.l.b16 %v226
  %v565 = vunpack.c.h.b16 %v226
  %v566 = vunpack.c.l.b16 %v227
  %v567 = vunpack.c.h.b16 %v227
  %v568 = vunpack.c.l.b16 %v228
  %v569 = vunpack.c.h.b16 %v228
  %v570 = vunpack.c.l.b16 %v229
  %v571 = vunpack.c.h.b16 %v229
  %v572 = vunpack.c.l.b16 %v230
  %v573 = vunpack.c.h.b16 %v230
  %v574 = vunpack.c.l.b16 %v231
  %v575 = vunpack.c.h.b16 %v231
  %v576 = vunpack.c.l.b16 %v232
  %v577 = vunpack.c.h.b16 %v232
  %v578 = vunpack.c.l.b16 %v233
  %v579 = vunpack.c.h.b16 %v233
  %v580 = vunpack.c.l.b16 %v234
  %v581 = vunpack.c.h.b16 %v234
  %v582 = vunpack.c.l.b16 %v235
  %v583 = vunpack.c.h.b16 %v235
  %v584 = vunpack.c.l.b16 %v236
  %v585 = vunpack.c.h.b16 %v236
  %v586 = vunpack.c.l.b16 %v237
  %v587 = vunpack.c.h.b16 %v237
  %v588 = vunpack.c.l.b16 %v238
  %v589 = vunpack.c.h.b16 %v238
  %v590 = vunpack.c.l.b16 %v239
  %v591 = vunpack.c.h.b16 %v239
  %v592 = vunpack.c.l.b16 %v240
  %v593 = vunpack.c.h.b16 %v240
  %v594 = vunpack.c.l.b16 %v241
  %v595 = vunpack.c.h.b16 %v241
  %v596 = vunpack.c.l.b16 %v242
  %v597 = vunpack.c.h.b16 %v242
  %v598 = vunpack.c.l.b16 %v243
  %v599 = vunpack.c.h.b16 %v243
  %v600 = vunpack.c.l.b16 %v244
  %v601 = vunpack.c.h.b16 %v244
  %v602 = vunpack.c.l.b16 %v245
  %v603 = vunpack.c.h.b16 %v245
  %v604 = vunpack.c.l.b16 %v246
  %v605 = vunpack.c.h.b16 %v246
  %v606 = vunpack.c.l.b16 %v247
  %v607 = vunpack.c.h.b16 %v247
  %v608 = vunpack.c.l.b16 %v248
  %v609 = vunpack.c.h.b16 %v248
  %v610 = vunpack.c.l.b16 %v249
  %v611 = vunpack.c.h.b16 %v249
  %v612 = vunpack.c.l.b16 %v250
  %v613 = vunpack.c.h.b16 %v250
  %v614 = vunpack.c.l.b16 %v251
  %v615 = vunpack.c.h.b16 %v251
  %v616 = vunpack.c.l.b16 %v252
  %v617 = vunpack.c.h.b16 %v252
  %v618 = vunpack.c.l.b16 %v253
  %v619 = vunpack.c.h.b16 %v253
  %v620 = vunpack.c.l.b16 %v254
  %v621 = vunpack.c.h.b16 %v254
  %v622 = vunpack.c.l.b16 %v255
  %v623 = vunpack.c.h.b16 %v255
  %v624 = vunpack.c.l.b16 %v256
  %v625 = vunpack.c.h.b16 %v256
  %v626 = vunpack.c.l.b16 %v257
  %v627 = vunpack.c.h.b16 %v257
  %v628 = vunpack.c.l.b16 %v258
  %v629 = vunpack.c.h.b16 %v258
  %v630 = vunpack.c.l.b16 %v259
  %v631 = vunpack.c.h.b16 %v259
  %v632 = vunpack.c.l.b16 %v260
  %v633 = vunpack.c.h.b16 %v260
  %v634 = vunpack.c.l.b16 %v261
  %v635 = vunpack.c.h.b16 %v261
  %v636 = vunpack.c.l.b16 %v262
  %v637 = vunpack.c.h.b16 %v262
  %v638 = vunpack.c.l.b16 %v263
  %v639 = vunpack.c.h.b16 %v263
  %v640 = vunpack.c.l.b16 %v264
  %v641 = vunpack.c.h.b16 %v264
  %v642 = vunpack.c.l.b16 %v265
  %v643 = vunpack.c.h.b16 %v265
  %v644 = vunpack.c.l.b16 %v266
  %v645 = vunpack.c.h.b16 %v266
  %v646 = vunpack.c.l.b16 %v267
  %v647 = vunpack.c.h.b16 %v267
  %v648 = vunpack.c.l.b16 %v268
  %v649 = vunpack.c.h.b16 %v268
  %v650 = vunpack.c.l.b16 %v269
  %v651 = vunpack.c.h.b16 %v269
  %v652 = vunpack.c.l.b16 %v270
  %v653 = vunpack.c.h.b16 %v270
  %v654 = vunpack.c.l.b16 %v271
  %v655 = vunpack.c.h.b16 %v271
  %v656 = vunpack.c.l.b16 %v272
  %v657 = vunpack.c.h.b16 %v272
  %v658 = vunpack.c.l.b16 %v273
  %v659 = vunpack.c.h.b16 %v273
  %v660 = vunpack.c.l.b16 %v274
  %v661 = vunpack.c.h.b16 %v274
  %v662 = vunpack.c.l.b16 %v275
  %v663 = vunpack.c.h.b16 %v275
  %v664 = vunpack.c.l.b16 %v276
  %v665 = vunpack.c.h.b16 %v276
  %v666 = vunpack.c.l.b16 %v277
  %v667 = vunpack.c.h.b16 %v277
  %v668 = vunpack.c.l.b16 %v278
  %v669 = vunpack.c.h.b16 %v278
  %v670 = vunpack.c.l.b16 %v279
  %v671 = vunpack.c.h.b16 %v279
  %v672 = vpack.c.b16 %v420, %v416
  %v673 = vpack.c.b16 %v421, %v417
  %v674 = vpack.c.b16 %v422, %v418
  %v675 = vpack.c.b16 %v423, %v419
  %v676 = vpack.c.b16 %v428, %v424
  %v677 = vpack.c.b16 %v429, %v425
  %v678 = vpack.c.b16 %v430, %v426
  %v679 = vpack.c.b16 %v431, %v427
  %v680 = vpack.c.b16 %v436, %v432
  %v681 = vpack.c.b16 %v437, %v433
  %v682 = vpack.c.b16 %v438, %v434
  %v683 = vpack.c.b16 %v439, %v435
  %v684 = vpack.c.b16 %v444, %v440
  %v685 = vpack.c.b16 %v445, %v441
  %v686 = vpack.c.b16 %v446, %v442
  %v687 = vpack.c.b16 %v447, %v443
  %v688 = vpack.c.b16 %v452, %v448
  %v689 = vpack.c.b16 %v453, %v449
  %v690 = vpack.c.b16 %v454, %v450
  %v691 = vpack.c.b16 %v455, %v451
  %v692 = vpack.c.b16 %v460, %v456
  %v693 = vpack.c.b16 %v461, %v457
  %v694 = vpack.c.b16 %v462, %v458
  %v695 = vpack.c.b16 %v463, %v459
  %v696 = vpack.c.b16 %v468, %v464
  %v697 = vpack.c.b16 %v469, %v465
  %v698 = vpack.c.b16 %v470, %v466
  %v699 = vpack.c.b16 %v471, %v467
  %v700 = vpack.c.b16 %v476, %v472
  %v701 = vpack.c.b16 %v477, %v473
  %v702 = vpack.c.b16 %v478, %v474
  %v703 = vpack.c.b16 %v479, %v475
  %v704 = vpack.c.b16 %v484, %v480
  %v705 = vpack.c.b16 %v485, %v481
  %v706 = vpack.c.b16 %v486, %v482
  %v707 = vpack.c.b16 %v487, %v483
  %v708 = vpack.c.b16 %v492, %v488
  %v709 = vpack.c.b16 %v493, %v489
  %v710 = vpack.c.b16 %v494, %v490
  %v711 = vpack.c.b16 %v495, %v491
  %v712 = vpack.c.b16 %v500, %v496
  %v713 = vpack.c.b16 %v501, %v497
  %v714 = vpack.c.b16 %v502, %v498
  %v715 = vpack.c.b16 %v503, %v499
  %v716 = vpack.c.b16 %v508, %v504
  %v717 = vpack.c.b16 %v509, %v505
  %v718 = vpack.c.b16 %v510, %v506
  %v719 = vpack.c.b16 %v511, %v507
  %v720 = vpack.c.b16 %v516, %v512
  %v721 = vpack.c.b16 %v517, %v513
  %v722 = vpack.c.b16 %v518, %v514
  %v723 = vpack.c.b16 %v519, %v515
  %v724 = vpack.c.b16 %v524, %v520
  %v725 = vpack.c.b16 %v525, %v521
  %v726 = vpack.c.b16 %v526, %v522
  %v727 = vpack.c.b16 %v527, %v523
  %v728 = vpack.c.b16 %v532, %v528
  %v729 = vpack.c.b16 %v533, %v529
  %v730 = vpack.c.b16 %v534, %v530
  %v731 = vpack.c.b16 %v535, %v531
  %v732 = vpack.c.b16 %v540, %v536
  %v733 = vpack.c.b16 %v541, %v537
  %v734 = vpack.c.b16 %v542, %v538
  %v735 = vpack.c.b16 %v543, %v539
  %v736 = vpack.c.b16 %v548, %v544
  %v737 = vpack.c.b16 %v549, %v545
  %v738 = vpack.c.b16 %v550, %v546
  %v739 = vpack.c.b16 %v551, %v547
  %v740 = vpack.c.b16 %v556, %v552
  %v741 = vpack.c.b16 %v557, %v553
  %v742 = vpack.c.b16 %v558, %v554
  %v743 = vpack.c.b16 %v559, %v555
  %v744 = vpack.c.b16 %v564, %v560
  %v745 = vpack.c.b16 %v565, %v561
  %v746 = vpack.c.b16 %v566, %v562
  %v747 = vpack.c.b16 %v567, %v563
  %v748 = vpack.c.b16 %v572, %v568
  %v749 = vpack.c.b16 %v573, %v569
  %v750 = vpack.c.b16 %v574, %v570
  %v751 = vpack.c.b16 %v575, %v571
  %v752 = vpack.c.b16 %v580, %v576
  %v753 = vpack.c.b16 %v581, %v577
  %v754 = vpack.c.b16 %v582, %v578
  %v755 = vpack.c.b16 %v583, %v579
  %v756 = vpack.c.b16 %v588, %v584
  %v757 = vpack.c.b16 %v589, %v585
  %v758 = vpack.c.b16 %v590, %v586
  %v759 = vpack.c.b16 %v591, %v587
  %v760 = vpack.c.b16 %v596, %v592
  %v761 = vpack.c.b16 %v597, %v593
  %v762 = vpack.c.b16 %v598, %v594
  %v763 = vpack.c.b16 %v599, %v595
  %v764 = vpack.c.b16 %v604, %v600
  %v765 = vpack.c.b16 %v605, %v601
  %v766 = vpack.c.b16 %v606, %v602
  %v767 = vpack.c.b16 %v607, %v603
  %v768 = vpack.c.b16 %v612, %v608
  %v769 = vpack.c.b16 %v613, %v609
  %v770 = vpack.c.b16 %v614, %v610
  %v771 = vpack.c.b16 %v615, %v611
  %v772 = vpack.c.b16 %v620, %v616
  %v773 = vpack.c.b16 %v621, %v617
  %v774 = vpack.c.b16 %v622, %v618
  %v775 = vpack.c.b16 %v623, %v619
  %v776 = vpack.c.b16 %v628, %v624
  %v777 = vpack.c.b16 %v629, %v625
  %v778 = vpack.c.b16 %v630, %v626
  %v779 = vpack.c.b16 %v631, %v627
  %v780 = vpack.c.b16 %v636, %v632
  %v781 = vpack.c.b16 %v637, %v633
  %v782 = vpack.c.b16 %v638, %v634
  %v783 = vpack.c.b16 %v639, %v635
  %v784 = vpack.c.b16 %v644, %v640
  %v785 = vpack.c.b16 %v645, %v641
  %v786 = vpack.c.b16 %v646, %v642
  %v787 = vpack.c.b16 %v647, %v643
  %v788 = vpack.c.b16 %v652, %v648
  %v789 = vpack.c.b16 %v653, %v649
  %v790 = vpack.c.b16 %v654, %v650
  %v791 = vpack.c.b16 %v655, %v651
  %v792 = vpack.c.b16 %v660, %v656
  %v793 = vpack.c.b16 %v661, %v657
  %v794 = vpack.c.b16 %v662, %v658
  %v795 = vpack.c.b16 %v663, %v659
  %v796 = vpack.c.b16 %v668, %v664
  %v797 = vpack.c.b16 %v669, %v665
  %v798 = vpack.c.b16 %v670, %v666
  %v799 = vpack.c.b16 %v671, %v667
  %928 = vmatprep.subr.bf16.mxu0 %v701
  %929 = vmatpush1.bf16.msra.mxu0 %v700
  %930 = vmatprep.subr.bf16.mxu0 %v697
  %931 = vmatpush1.bf16.msra.mxu0 %v696
  %932 = vmatprep.subr.bf16.mxu0 %v693
  %933 = vmatpush1.bf16.msra.mxu0 %v692
  %934 = vmatprep.subr.bf16.mxu0 %v689
  %935 = vmatpush1.bf16.msra.mxu0 %v688
  %936 = vmatprep.subr.bf16.mxu0 %v685
  %937 = vmatpush1.bf16.msra.mxu0 %v684
  %938 = vmatprep.subr.bf16.mxu0 %v681
  %939 = vmatpush1.bf16.msra.mxu0 %v680
  %940 = vmatprep.subr.bf16.mxu0 %v677
  %941 = vmatpush1.bf16.msra.mxu0 %v676
  %942 = vmatprep.subr.bf16.mxu0 %v673
  %943 = vmatpush1.bf16.msra.mxu0 %v672
  %944 = vmatprep.subr.bf16.mxu0 %v733
  %945 = vmatpush2.bf16.msra.mxu0 %v732
  %946 = vmatprep.subr.bf16.mxu0 %v729
  %947 = vmatpush2.bf16.msra.mxu0 %v728
  %948 = vmatprep.subr.bf16.mxu0 %v725
  %949 = vmatpush2.bf16.msra.mxu0 %v724
  %950 = vmatprep.subr.bf16.mxu0 %v721
  %951 = vmatpush2.bf16.msra.mxu0 %v720
  %952 = vmatprep.subr.bf16.mxu0 %v717
  %953 = vmatpush2.bf16.msra.mxu0 %v716
  %954 = vmatprep.subr.bf16.mxu0 %v713
  %955 = vmatpush2.bf16.msra.mxu0 %v712
  %956 = vmatprep.subr.bf16.mxu0 %v709
  %957 = vmatpush2.bf16.msra.mxu0 %v708
  %958 = vmatprep.subr.bf16.mxu0 %v705
  %959 = vmatpush2.bf16.msra.mxu0 %v704
  %960 = vmatprep.mubr.bf16.mxu0 %v281
  %961 = vmatmul.mubr.bf16.gmra.mxu0 %v280
  %v962 = vpop.f32.mrf.mxu0
  %v963 = vadd.f32 0.0, %v962
  %v964 = vpop.f32.mrf.mxu0
  %v965 = vadd.f32 0.0, %v964
  %v966 = vpop.f32.mrf.mxu0
  %v967 = vadd.f32 0.0, %v966
  %v968 = vpop.f32.mrf.mxu0
  %v969 = vadd.f32 0.0, %v968
  %970 = vmatprep.mubr.bf16.mxu0 %v285
  %971 = vmatmul.mubr.bf16.gmra.mxu0 %v284
  %v972 = vpop.f32.mrf.mxu0
  %v973 = vadd.f32 0.0, %v972
  %v974 = vpop.f32.mrf.mxu0
  %v975 = vadd.f32 0.0, %v974
  %v976 = vpop.f32.mrf.mxu0
  %v977 = vadd.f32 0.0, %v976
  %v978 = vpop.f32.mrf.mxu0
  %v979 = vadd.f32 0.0, %v978
  %980 = vdwg.mxu0
  %981 = vmatprep.subr.bf16.mxu0 %v765
  %982 = vmatpush1.bf16.msra.mxu0 %v764
  %983 = vmatprep.subr.bf16.mxu0 %v761
  %984 = vmatpush1.bf16.msra.mxu0 %v760
  %985 = vmatprep.subr.bf16.mxu0 %v757
  %986 = vmatpush1.bf16.msra.mxu0 %v756
  %987 = vmatprep.subr.bf16.mxu0 %v753
  %988 = vmatpush1.bf16.msra.mxu0 %v752
  %989 = vmatprep.subr.bf16.mxu0 %v749
  %990 = vmatpush1.bf16.msra.mxu0 %v748
  %991 = vmatprep.subr.bf16.mxu0 %v745
  %992 = vmatpush1.bf16.msra.mxu0 %v744
  %993 = vmatprep.subr.bf16.mxu0 %v741
  %994 = vmatpush1.bf16.msra.mxu0 %v740
  %995 = vmatprep.subr.bf16.mxu0 %v737
  %996 = vmatpush1.bf16.msra.mxu0 %v736
  %997 = vmatprep.subr.bf16.mxu0 %v797
  %998 = vmatpush2.bf16.msra.mxu0 %v796
  %999 = vmatprep.subr.bf16.mxu0 %v793
  %1000 = vmatpush2.bf16.msra.mxu0 %v792
  %1001 = vmatprep.subr.bf16.mxu0 %v789
  %1002 = vmatpush2.bf16.msra.mxu0 %v788
  %1003 = vmatprep.subr.bf16.mxu0 %v785
  %1004 = vmatpush2.bf16.msra.mxu0 %v784
  %1005 = vmatprep.subr.bf16.mxu0 %v781
  %1006 = vmatpush2.bf16.msra.mxu0 %v780
  %1007 = vmatprep.subr.bf16.mxu0 %v777
  %1008 = vmatpush2.bf16.msra.mxu0 %v776
  %1009 = vmatprep.subr.bf16.mxu0 %v773
  %1010 = vmatpush2.bf16.msra.mxu0 %v772
  %1011 = vmatprep.subr.bf16.mxu0 %v769
  %1012 = vmatpush2.bf16.msra.mxu0 %v768
  %1013 = vmatprep.mubr.bf16.mxu0 %v283
  %1014 = vmatmul.mubr.bf16.gmra.mxu0 %v282
  %v1015 = vpop.f32.mrf.mxu0
  %v1016 = vadd.f32 %v963, %v1015
  %v1017 = vpop.f32.mrf.mxu0
  %v1018 = vadd.f32 %v965, %v1017
  %v1019 = vpop.f32.mrf.mxu0
  %v1020 = vadd.f32 %v967, %v1019
  %v1021 = vpop.f32.mrf.mxu0
  %v1022 = vadd.f32 %v969, %v1021
  %1023 = vmatprep.mubr.bf16.mxu0 %v287
  %1024 = vmatmul.mubr.bf16.gmra.mxu0 %v286
  %v1025 = vpop.f32.mrf.mxu0
  %v1026 = vadd.f32 %v973, %v1025
  %v1027 = vpop.f32.mrf.mxu0
  %v1028 = vadd.f32 %v975, %v1027
  %v1029 = vpop.f32.mrf.mxu0
  %v1030 = vadd.f32 %v977, %v1029
  %v1031 = vpop.f32.mrf.mxu0
  %v1032 = vadd.f32 %v979, %v1031
  %1033 = vdwg.mxu0
  %1034 = vmatprep.subr.bf16.mxu0 %v703
  %1035 = vmatpush1.bf16.msra.mxu0 %v702
  %1036 = vmatprep.subr.bf16.mxu0 %v699
  %1037 = vmatpush1.bf16.msra.mxu0 %v698
  %1038 = vmatprep.subr.bf16.mxu0 %v695
  %1039 = vmatpush1.bf16.msra.mxu0 %v694
  %1040 = vmatprep.subr.bf16.mxu0 %v691
  %1041 = vmatpush1.bf16.msra.mxu0 %v690
  %1042 = vmatprep.subr.bf16.mxu0 %v687
  %1043 = vmatpush1.bf16.msra.mxu0 %v686
  %1044 = vmatprep.subr.bf16.mxu0 %v683
  %1045 = vmatpush1.bf16.msra.mxu0 %v682
  %1046 = vmatprep.subr.bf16.mxu0 %v679
  %1047 = vmatpush1.bf16.msra.mxu0 %v678
  %1048 = vmatprep.subr.bf16.mxu0 %v675
  %1049 = vmatpush1.bf16.msra.mxu0 %v674
  %1050 = vmatprep.subr.bf16.mxu0 %v735
  %1051 = vmatpush2.bf16.msra.mxu0 %v734
  %1052 = vmatprep.subr.bf16.mxu0 %v731
  %1053 = vmatpush2.bf16.msra.mxu0 %v730
  %1054 = vmatprep.subr.bf16.mxu0 %v727
  %1055 = vmatpush2.bf16.msra.mxu0 %v726
  %1056 = vmatprep.subr.bf16.mxu0 %v723
  %1057 = vmatpush2.bf16.msra.mxu0 %v722
  %1058 = vmatprep.subr.bf16.mxu0 %v719
  %1059 = vmatpush2.bf16.msra.mxu0 %v718
  %1060 = vmatprep.subr.bf16.mxu0 %v715
  %1061 = vmatpush2.bf16.msra.mxu0 %v714
  %1062 = vmatprep.subr.bf16.mxu0 %v711
  %1063 = vmatpush2.bf16.msra.mxu0 %v710
  %1064 = vmatprep.subr.bf16.mxu0 %v707
  %1065 = vmatpush2.bf16.msra.mxu0 %v706
  %1066 = vmatprep.mubr.bf16.mxu0 %v281
  %1067 = vmatmul.mubr.bf16.gmra.mxu0 %v280
  %v1068 = vpop.f32.mrf.mxu0
  %v1069 = vadd.f32 0.0, %v1068
  %v1070 = vpop.f32.mrf.mxu0
  %v1071 = vadd.f32 0.0, %v1070
  %v1072 = vpop.f32.mrf.mxu0
  %v1073 = vadd.f32 0.0, %v1072
  %v1074 = vpop.f32.mrf.mxu0
  %v1075 = vadd.f32 0.0, %v1074
  %1076 = vmatprep.mubr.bf16.mxu0 %v285
  %1077 = vmatmul.mubr.bf16.gmra.mxu0 %v284
  %v1078 = vpop.f32.mrf.mxu0
  %v1079 = vadd.f32 0.0, %v1078
  %v1080 = vpop.f32.mrf.mxu0
  %v1081 = vadd.f32 0.0, %v1080
  %v1082 = vpop.f32.mrf.mxu0
  %v1083 = vadd.f32 0.0, %v1082
  %v1084 = vpop.f32.mrf.mxu0
  %v1085 = vadd.f32 0.0, %v1084
  %1086 = vdwg.mxu0
  %1087 = vmatprep.subr.bf16.mxu0 %v767
  %1088 = vmatpush1.bf16.msra.mxu0 %v766
  %1089 = vmatprep.subr.bf16.mxu0 %v763
  %1090 = vmatpush1.bf16.msra.mxu0 %v762
  %1091 = vmatprep.subr.bf16.mxu0 %v759
  %1092 = vmatpush1.bf16.msra.mxu0 %v758
  %1093 = vmatprep.subr.bf16.mxu0 %v755
  %1094 = vmatpush1.bf16.msra.mxu0 %v754
  %1095 = vmatprep.subr.bf16.mxu0 %v751
  %1096 = vmatpush1.bf16.msra.mxu0 %v750
  %1097 = vmatprep.subr.bf16.mxu0 %v747
  %1098 = vmatpush1.bf16.msra.mxu0 %v746
  %1099 = vmatprep.subr.bf16.mxu0 %v743
  %1100 = vmatpush1.bf16.msra.mxu0 %v742
  %1101 = vmatprep.subr.bf16.mxu0 %v739
  %1102 = vmatpush1.bf16.msra.mxu0 %v738
  %1103 = vmatprep.subr.bf16.mxu0 %v799
  %1104 = vmatpush2.bf16.msra.mxu0 %v798
  %1105 = vmatprep.subr.bf16.mxu0 %v795
  %1106 = vmatpush2.bf16.msra.mxu0 %v794
  %1107 = vmatprep.subr.bf16.mxu0 %v791
  %1108 = vmatpush2.bf16.msra.mxu0 %v790
  %1109 = vmatprep.subr.bf16.mxu0 %v787
  %1110 = vmatpush2.bf16.msra.mxu0 %v786
  %1111 = vmatprep.subr.bf16.mxu0 %v783
  %1112 = vmatpush2.bf16.msra.mxu0 %v782
  %1113 = vmatprep.subr.bf16.mxu0 %v779
  %1114 = vmatpush2.bf16.msra.mxu0 %v778
  %1115 = vmatprep.subr.bf16.mxu0 %v775
  %1116 = vmatpush2.bf16.msra.mxu0 %v774
  %1117 = vmatprep.subr.bf16.mxu0 %v771
  %1118 = vmatpush2.bf16.msra.mxu0 %v770
  %1119 = vmatprep.mubr.bf16.mxu0 %v283
  %1120 = vmatmul.mubr.bf16.gmra.mxu0 %v282
  %v1121 = vpop.f32.mrf.mxu0
  %v1122 = vadd.f32 %v1069, %v1121
  %v1123 = vpop.f32.mrf.mxu0
  %v1124 = vadd.f32 %v1071, %v1123
  %v1125 = vpop.f32.mrf.mxu0
  %v1126 = vadd.f32 %v1073, %v1125
  %v1127 = vpop.f32.mrf.mxu0
  %v1128 = vadd.f32 %v1075, %v1127
  %1129 = vmatprep.mubr.bf16.mxu0 %v287
  %1130 = vmatmul.mubr.bf16.gmra.mxu0 %v286
  %v1131 = vpop.f32.mrf.mxu0
  %v1132 = vadd.f32 %v1079, %v1131
  %v1133 = vpop.f32.mrf.mxu0
  %v1134 = vadd.f32 %v1081, %v1133
  %v1135 = vpop.f32.mrf.mxu0
  %v1136 = vadd.f32 %v1083, %v1135
  %v1137 = vpop.f32.mrf.mxu0
  %v1138 = vadd.f32 %v1085, %v1137
  %1139 = vdwg.mxu0
  %v1140 = vld [vmem:[%s3] sm:$0xf]
  %v1141 = vld [vmem:[%s3 + $0x4] sm:$0xf]
  %v1142 = vld [vmem:[%s3 + $0x8] sm:$0xf]
  %v1143 = vld [vmem:[%s3 + $0xc] sm:$0xf]
  %v1144 = vpack.c.bf16 %v1020, %v1016
  %v1145 = vpack.c.bf16 %v1022, %v1018
  %v1146 = vpack.c.bf16 %v1126, %v1122
  %v1147 = vpack.c.bf16 %v1128, %v1124
  %v1148 = vpack.c.bf16 %v1030, %v1026
  %v1149 = vpack.c.bf16 %v1032, %v1028
  %v1150 = vpack.c.bf16 %v1136, %v1132
  %v1151 = vpack.c.bf16 %v1138, %v1134
  %v1152 = vld [vmem:[%s6] sm:$0xff]
  %v1153 = vld [vmem:[%s6 + $0x8] sm:$0xff]
  %v1154 = vld [vmem:[%s6 + $0x10] sm:$0xff]
  %v1155 = vld [vmem:[%s6 + $0x18] sm:$0xff]
  %v1156 = vld [vmem:[%s6 + $0x20] sm:$0xff]
  %v1157 = vld [vmem:[%s6 + $0x28] sm:$0xff]
  %v1158 = vld [vmem:[%s6 + $0x30] sm:$0xff]
  %v1159 = vld [vmem:[%s6 + $0x38] sm:$0xff]
  %v1160 = vld [vmem:[%s6 + $0x40] sm:$0xff]
  %v1161 = vld [vmem:[%s6 + $0x48] sm:$0xff]
  %v1162 = vld [vmem:[%s6 + $0x50] sm:$0xff]
  %v1163 = vld [vmem:[%s6 + $0x58] sm:$0xff]
  %v1164 = vld [vmem:[%s6 + $0x60] sm:$0xff]
  %v1165 = vld [vmem:[%s6 + $0x68] sm:$0xff]
  %v1166 = vld [vmem:[%s6 + $0x70] sm:$0xff]
  %v1167 = vld [vmem:[%s6 + $0x78] sm:$0xff]
  %v1172 = vunpack.c.l.b16 %v1140
  %v1173 = vunpack.c.l.b16 %v1141
  %v1174 = vunpack.c.l.b16 %v1142
  %v1175 = vunpack.c.l.b16 %v1143
  %v1176 = vpack.c.b16 %v1173, %v1172
  %v1177 = vpack.c.b16 %v1175, %v1174
  %vm1178 = vcmask 261120
  %v1180 = vsel %vm1178, %v1176, 0
  %v1183 = vsel %vm1178, %v1177, 0
  %1185 = vmatprep.subr.bf16.mxu0 0
  %1186 = vmatpush1.bf16.msra.mxu0 0
  %1187 = vmatprep.subr.bf16.mxu0 0
  %1188 = vmatpush1.bf16.msra.mxu0 0
  %1189 = vmatprep.subr.bf16.mxu0 0
  %1190 = vmatpush1.bf16.msra.mxu0 0
  %1191 = vmatprep.subr.bf16.mxu0 0
  %1192 = vmatpush1.bf16.msra.mxu0 0
  %1193 = vmatprep.subr.bf16.mxu0 0
  %1194 = vmatpush1.bf16.msra.mxu0 0
  %1195 = vmatprep.subr.bf16.mxu0 0
  %1196 = vmatpush1.bf16.msra.mxu0 0
  %1197 = vmatprep.subr.bf16.mxu0 %v1149
  %1198 = vmatpush1.bf16.msra.mxu0 %v1148
  %1199 = vmatprep.subr.bf16.mxu0 %v1145
  %1200 = vmatpush1.bf16.msra.mxu0 %v1144
  %1201 = vmatprep.subr.bf16.mxu0 0
  %1202 = vmatpush2.bf16.msra.mxu0 0
  %1203 = vmatprep.subr.bf16.mxu0 0
  %1204 = vmatpush2.bf16.msra.mxu0 0
  %1205 = vmatprep.subr.bf16.mxu0 0
  %1206 = vmatpush2.bf16.msra.mxu0 0
  %1207 = vmatprep.subr.bf16.mxu0 0
  %1208 = vmatpush2.bf16.msra.mxu0 0
  %1209 = vmatprep.subr.bf16.mxu0 0
  %1210 = vmatpush2.bf16.msra.mxu0 0
  %1211 = vmatprep.subr.bf16.mxu0 0
  %1212 = vmatpush2.bf16.msra.mxu0 0
  %1213 = vmatprep.subr.bf16.mxu0 0
  %1214 = vmatpush2.bf16.msra.mxu0 0
  %1215 = vmatprep.subr.bf16.mxu0 0
  %1216 = vmatpush2.bf16.msra.mxu0 0
  %1217 = vmatprep.mubr.bf16.mxu0 0
  %1218 = vmatmul.mubr.bf16.gmra.mxu0 %v1180
  %v1219 = vpop.f32.mrf.mxu0
  %v1220 = vadd.f32 %v1152, %v1219
  %v1221 = vpop.f32.mrf.mxu0
  %v1222 = vadd.f32 %v1153, %v1221
  %v1223 = vpop.f32.mrf.mxu0
  %v1224 = vadd.f32 %v1156, %v1223
  %v1225 = vpop.f32.mrf.mxu0
  %v1226 = vadd.f32 %v1157, %v1225
  %1227 = vmatprep.mubr.bf16.mxu0 0
  %1228 = vmatmul.mubr.bf16.gmra.mxu0 %v1183
  %v1229 = vpop.f32.mrf.mxu0
  %v1230 = vadd.f32 %v1160, %v1229
  %v1231 = vpop.f32.mrf.mxu0
  %v1232 = vadd.f32 %v1161, %v1231
  %v1233 = vpop.f32.mrf.mxu0
  %v1234 = vadd.f32 %v1164, %v1233
  %v1235 = vpop.f32.mrf.mxu0
  %v1236 = vadd.f32 %v1165, %v1235
  %1237 = vdwg.mxu0
  %1238 = vmatprep.subr.bf16.mxu0 0
  %1239 = vmatpush1.bf16.msra.mxu0 0
  %1240 = vmatprep.subr.bf16.mxu0 0
  %1241 = vmatpush1.bf16.msra.mxu0 0
  %1242 = vmatprep.subr.bf16.mxu0 0
  %1243 = vmatpush1.bf16.msra.mxu0 0
  %1244 = vmatprep.subr.bf16.mxu0 0
  %1245 = vmatpush1.bf16.msra.mxu0 0
  %1246 = vmatprep.subr.bf16.mxu0 0
  %1247 = vmatpush1.bf16.msra.mxu0 0
  %1248 = vmatprep.subr.bf16.mxu0 0
  %1249 = vmatpush1.bf16.msra.mxu0 0
  %1250 = vmatprep.subr.bf16.mxu0 %v1151
  %1251 = vmatpush1.bf16.msra.mxu0 %v1150
  %1252 = vmatprep.subr.bf16.mxu0 %v1147
  %1253 = vmatpush1.bf16.msra.mxu0 %v1146
  %1254 = vmatprep.subr.bf16.mxu0 0
  %1255 = vmatpush2.bf16.msra.mxu0 0
  %1256 = vmatprep.subr.bf16.mxu0 0
  %1257 = vmatpush2.bf16.msra.mxu0 0
  %1258 = vmatprep.subr.bf16.mxu0 0
  %1259 = vmatpush2.bf16.msra.mxu0 0
  %1260 = vmatprep.subr.bf16.mxu0 0
  %1261 = vmatpush2.bf16.msra.mxu0 0
  %1262 = vmatprep.subr.bf16.mxu0 0
  %1263 = vmatpush2.bf16.msra.mxu0 0
  %1264 = vmatprep.subr.bf16.mxu0 0
  %1265 = vmatpush2.bf16.msra.mxu0 0
  %1266 = vmatprep.subr.bf16.mxu0 0
  %1267 = vmatpush2.bf16.msra.mxu0 0
  %1268 = vmatprep.subr.bf16.mxu0 0
  %1269 = vmatpush2.bf16.msra.mxu0 0
  %1270 = vmatprep.mubr.bf16.mxu0 0
  %1271 = vmatmul.mubr.bf16.gmra.mxu0 %v1180
  %v1272 = vpop.f32.mrf.mxu0
  %v1273 = vadd.f32 %v1154, %v1272
  %v1274 = vpop.f32.mrf.mxu0
  %v1275 = vadd.f32 %v1155, %v1274
  %v1276 = vpop.f32.mrf.mxu0
  %v1277 = vadd.f32 %v1158, %v1276
  %v1278 = vpop.f32.mrf.mxu0
  %v1279 = vadd.f32 %v1159, %v1278
  %1280 = vmatprep.mubr.bf16.mxu0 0
  %1281 = vmatmul.mubr.bf16.gmra.mxu0 %v1183
  %v1282 = vpop.f32.mrf.mxu0
  %v1283 = vadd.f32 %v1162, %v1282
  %v1284 = vpop.f32.mrf.mxu0
  %v1285 = vadd.f32 %v1163, %v1284
  %v1286 = vpop.f32.mrf.mxu0
  %v1287 = vadd.f32 %v1166, %v1286
  %v1288 = vpop.f32.mrf.mxu0
  %v1289 = vadd.f32 %v1167, %v1288
  %1290 = vdwg.mxu0
  %vm1291 = vcmp.gt.f32.partialorder %v1220, 0.0
  %vm1292 = vcmp.gt.f32.partialorder %v1222, 0.0
  %vm1293 = vcmp.gt.f32.partialorder %v1273, 0.0
  %vm1294 = vcmp.gt.f32.partialorder %v1275, 0.0
  %vm1295 = vcmp.gt.f32.partialorder %v1224, 0.0
  %vm1296 = vcmp.gt.f32.partialorder %v1226, 0.0
  %vm1297 = vcmp.gt.f32.partialorder %v1277, 0.0
  %vm1298 = vcmp.gt.f32.partialorder %v1279, 0.0
  %vm1299 = vcmp.gt.f32.partialorder %v1230, 0.0
  %vm1300 = vcmp.gt.f32.partialorder %v1232, 0.0
  %vm1301 = vcmp.gt.f32.partialorder %v1283, 0.0
  %vm1302 = vcmp.gt.f32.partialorder %v1285, 0.0
  %vm1303 = vcmp.gt.f32.partialorder %v1234, 0.0
  %vm1304 = vcmp.gt.f32.partialorder %v1236, 0.0
  %vm1305 = vcmp.gt.f32.partialorder %v1287, 0.0
  %vm1306 = vcmp.gt.f32.partialorder %v1289, 0.0
  %v1307 = vmul.f32 %v1220, 0.01
  %v1308 = vmul.f32 %v1222, 0.01
  %v1309 = vmul.f32 %v1273, 0.01
  %v1310 = vmul.f32 %v1275, 0.01
  %v1311 = vmul.f32 %v1224, 0.01
  %v1312 = vmul.f32 %v1226, 0.01
  %v1313 = vmul.f32 %v1277, 0.01
  %v1314 = vmul.f32 %v1279, 0.01
  %v1315 = vmul.f32 %v1230, 0.01
  %v1316 = vmul.f32 %v1232, 0.01
  %v1317 = vmul.f32 %v1283, 0.01
  %v1318 = vmul.f32 %v1285, 0.01
  %v1319 = vmul.f32 %v1234, 0.01
  %v1320 = vmul.f32 %v1236, 0.01
  %v1321 = vmul.f32 %v1287, 0.01
  %v1322 = vmul.f32 %v1289, 0.01
  %v1323 = vsel %vm1291, %v1220, %v1307
  %v1324 = vsel %vm1292, %v1222, %v1308
  %v1325 = vsel %vm1293, %v1273, %v1309
  %v1326 = vsel %vm1294, %v1275, %v1310
  %v1327 = vsel %vm1295, %v1224, %v1311
  %v1328 = vsel %vm1296, %v1226, %v1312
  %v1329 = vsel %vm1297, %v1277, %v1313
  %v1330 = vsel %vm1298, %v1279, %v1314
  %v1331 = vsel %vm1299, %v1230, %v1315
  %v1332 = vsel %vm1300, %v1232, %v1316
  %v1333 = vsel %vm1301, %v1283, %v1317
  %v1334 = vsel %vm1302, %v1285, %v1318
  %v1335 = vsel %vm1303, %v1234, %v1319
  %v1336 = vsel %vm1304, %v1236, %v1320
  %v1337 = vsel %vm1305, %v1287, %v1321
  %v1338 = vsel %vm1306, %v1289, %v1322
  %v1339 = vpack.c.bf16 %v1327, %v1323
  %v1340 = vpack.c.bf16 %v1328, %v1324
  %v1341 = vpack.c.bf16 %v1329, %v1325
  %v1342 = vpack.c.bf16 %v1330, %v1326
  %v1343 = vpack.c.bf16 %v1335, %v1331
  %v1344 = vpack.c.bf16 %v1336, %v1332
  %v1345 = vpack.c.bf16 %v1337, %v1333
  %v1346 = vpack.c.bf16 %v1338, %v1334
  %1347 = vmatprep.subr.bf16.mxu0 %v701
  %1348 = vmatpush1.bf16.msra.mxu0 %v700
  %1349 = vmatprep.subr.bf16.mxu0 %v697
  %1350 = vmatpush1.bf16.msra.mxu0 %v696
  %1351 = vmatprep.subr.bf16.mxu0 %v693
  %1352 = vmatpush1.bf16.msra.mxu0 %v692
  %1353 = vmatprep.subr.bf16.mxu0 %v689
  %1354 = vmatpush1.bf16.msra.mxu0 %v688
  %1355 = vmatprep.subr.bf16.mxu0 %v685
  %1356 = vmatpush1.bf16.msra.mxu0 %v684
  %1357 = vmatprep.subr.bf16.mxu0 %v681
  %1358 = vmatpush1.bf16.msra.mxu0 %v680
  %1359 = vmatprep.subr.bf16.mxu0 %v677
  %1360 = vmatpush1.bf16.msra.mxu0 %v676
  %1361 = vmatprep.subr.bf16.mxu0 %v673
  %1362 = vmatpush1.bf16.msra.mxu0 %v672
  %1363 = vmatprep.subr.bf16.mxu0 %v733
  %1364 = vmatpush2.bf16.msra.mxu0 %v732
  %1365 = vmatprep.subr.bf16.mxu0 %v729
  %1366 = vmatpush2.bf16.msra.mxu0 %v728
  %1367 = vmatprep.subr.bf16.mxu0 %v725
  %1368 = vmatpush2.bf16.msra.mxu0 %v724
  %1369 = vmatprep.subr.bf16.mxu0 %v721
  %1370 = vmatpush2.bf16.msra.mxu0 %v720
  %1371 = vmatprep.subr.bf16.mxu0 %v717
  %1372 = vmatpush2.bf16.msra.mxu0 %v716
  %1373 = vmatprep.subr.bf16.mxu0 %v713
  %1374 = vmatpush2.bf16.msra.mxu0 %v712
  %1375 = vmatprep.subr.bf16.mxu0 %v709
  %1376 = vmatpush2.bf16.msra.mxu0 %v708
  %1377 = vmatprep.subr.bf16.mxu0 %v705
  %1378 = vmatpush2.bf16.msra.mxu0 %v704
  %1379 = vmatprep.mubr.bf16.mxu0 %v1340
  %1380 = vmatmul.mubr.bf16.gmra.mxu0 %v1339
  %v1381 = vpop.f32.mrf.mxu0
  %v1382 = vadd.f32 0.0, %v1381
  %v1383 = vpop.f32.mrf.mxu0
  %v1384 = vadd.f32 0.0, %v1383
  %v1385 = vpop.f32.mrf.mxu0
  %v1386 = vadd.f32 0.0, %v1385
  %v1387 = vpop.f32.mrf.mxu0
  %v1388 = vadd.f32 0.0, %v1387
  %1389 = vmatprep.mubr.bf16.mxu0 %v1344
  %1390 = vmatmul.mubr.bf16.gmra.mxu0 %v1343
  %v1391 = vpop.f32.mrf.mxu0
  %v1392 = vadd.f32 0.0, %v1391
  %v1393 = vpop.f32.mrf.mxu0
  %v1394 = vadd.f32 0.0, %v1393
  %v1395 = vpop.f32.mrf.mxu0
  %v1396 = vadd.f32 0.0, %v1395
  %v1397 = vpop.f32.mrf.mxu0
  %v1398 = vadd.f32 0.0, %v1397
  %1399 = vdwg.mxu0
  %1400 = vmatprep.subr.bf16.mxu0 %v765
  %1401 = vmatpush1.bf16.msra.mxu0 %v764
  %1402 = vmatprep.subr.bf16.mxu0 %v761
  %1403 = vmatpush1.bf16.msra.mxu0 %v760
  %1404 = vmatprep.subr.bf16.mxu0 %v757
  %1405 = vmatpush1.bf16.msra.mxu0 %v756
  %1406 = vmatprep.subr.bf16.mxu0 %v753
  %1407 = vmatpush1.bf16.msra.mxu0 %v752
  %1408 = vmatprep.subr.bf16.mxu0 %v749
  %1409 = vmatpush1.bf16.msra.mxu0 %v748
  %1410 = vmatprep.subr.bf16.mxu0 %v745
  %1411 = vmatpush1.bf16.msra.mxu0 %v744
  %1412 = vmatprep.subr.bf16.mxu0 %v741
  %1413 = vmatpush1.bf16.msra.mxu0 %v740
  %1414 = vmatprep.subr.bf16.mxu0 %v737
  %1415 = vmatpush1.bf16.msra.mxu0 %v736
  %1416 = vmatprep.subr.bf16.mxu0 %v797
  %1417 = vmatpush2.bf16.msra.mxu0 %v796
  %1418 = vmatprep.subr.bf16.mxu0 %v793
  %1419 = vmatpush2.bf16.msra.mxu0 %v792
  %1420 = vmatprep.subr.bf16.mxu0 %v789
  %1421 = vmatpush2.bf16.msra.mxu0 %v788
  %1422 = vmatprep.subr.bf16.mxu0 %v785
  %1423 = vmatpush2.bf16.msra.mxu0 %v784
  %1424 = vmatprep.subr.bf16.mxu0 %v781
  %1425 = vmatpush2.bf16.msra.mxu0 %v780
  %1426 = vmatprep.subr.bf16.mxu0 %v777
  %1427 = vmatpush2.bf16.msra.mxu0 %v776
  %1428 = vmatprep.subr.bf16.mxu0 %v773
  %1429 = vmatpush2.bf16.msra.mxu0 %v772
  %1430 = vmatprep.subr.bf16.mxu0 %v769
  %1431 = vmatpush2.bf16.msra.mxu0 %v768
  %1432 = vmatprep.mubr.bf16.mxu0 %v1342
  %1433 = vmatmul.mubr.bf16.gmra.mxu0 %v1341
  %v1434 = vpop.f32.mrf.mxu0
  %v1435 = vadd.f32 %v1382, %v1434
  %v1436 = vpop.f32.mrf.mxu0
  %v1437 = vadd.f32 %v1384, %v1436
  %v1438 = vpop.f32.mrf.mxu0
  %v1439 = vadd.f32 %v1386, %v1438
  %v1440 = vpop.f32.mrf.mxu0
  %v1441 = vadd.f32 %v1388, %v1440
  %1442 = vmatprep.mubr.bf16.mxu0 %v1346
  %1443 = vmatmul.mubr.bf16.gmra.mxu0 %v1345
  %v1444 = vpop.f32.mrf.mxu0
  %v1445 = vadd.f32 %v1392, %v1444
  %v1446 = vpop.f32.mrf.mxu0
  %v1447 = vadd.f32 %v1394, %v1446
  %v1448 = vpop.f32.mrf.mxu0
  %v1449 = vadd.f32 %v1396, %v1448
  %v1450 = vpop.f32.mrf.mxu0
  %v1451 = vadd.f32 %v1398, %v1450
  %1452 = vdwg.mxu0
  %1453 = vmatprep.subr.bf16.mxu0 %v703
  %1454 = vmatpush1.bf16.msra.mxu0 %v702
  %1455 = vmatprep.subr.bf16.mxu0 %v699
  %1456 = vmatpush1.bf16.msra.mxu0 %v698
  %1457 = vmatprep.subr.bf16.mxu0 %v695
  %1458 = vmatpush1.bf16.msra.mxu0 %v694
  %1459 = vmatprep.subr.bf16.mxu0 %v691
  %1460 = vmatpush1.bf16.msra.mxu0 %v690
  %1461 = vmatprep.subr.bf16.mxu0 %v687
  %1462 = vmatpush1.bf16.msra.mxu0 %v686
  %1463 = vmatprep.subr.bf16.mxu0 %v683
  %1464 = vmatpush1.bf16.msra.mxu0 %v682
  %1465 = vmatprep.subr.bf16.mxu0 %v679
  %1466 = vmatpush1.bf16.msra.mxu0 %v678
  %1467 = vmatprep.subr.bf16.mxu0 %v675
  %1468 = vmatpush1.bf16.msra.mxu0 %v674
  %1469 = vmatprep.subr.bf16.mxu0 %v735
  %1470 = vmatpush2.bf16.msra.mxu0 %v734
  %1471 = vmatprep.subr.bf16.mxu0 %v731
  %1472 = vmatpush2.bf16.msra.mxu0 %v730
  %1473 = vmatprep.subr.bf16.mxu0 %v727
  %1474 = vmatpush2.bf16.msra.mxu0 %v726
  %1475 = vmatprep.subr.bf16.mxu0 %v723
  %1476 = vmatpush2.bf16.msra.mxu0 %v722
  %1477 = vmatprep.subr.bf16.mxu0 %v719
  %1478 = vmatpush2.bf16.msra.mxu0 %v718
  %1479 = vmatprep.subr.bf16.mxu0 %v715
  %1480 = vmatpush2.bf16.msra.mxu0 %v714
  %1481 = vmatprep.subr.bf16.mxu0 %v711
  %1482 = vmatpush2.bf16.msra.mxu0 %v710
  %1483 = vmatprep.subr.bf16.mxu0 %v707
  %1484 = vmatpush2.bf16.msra.mxu0 %v706
  %1485 = vmatprep.mubr.bf16.mxu0 %v1340
  %1486 = vmatmul.mubr.bf16.gmra.mxu0 %v1339
  %v1487 = vpop.f32.mrf.mxu0
  %v1488 = vadd.f32 0.0, %v1487
  %v1489 = vpop.f32.mrf.mxu0
  %v1490 = vadd.f32 0.0, %v1489
  %v1491 = vpop.f32.mrf.mxu0
  %v1492 = vadd.f32 0.0, %v1491
  %v1493 = vpop.f32.mrf.mxu0
  %v1494 = vadd.f32 0.0, %v1493
  %1495 = vmatprep.mubr.bf16.mxu0 %v1344
  %1496 = vmatmul.mubr.bf16.gmra.mxu0 %v1343
  %v1497 = vpop.f32.mrf.mxu0
  %v1498 = vadd.f32 0.0, %v1497
  %v1499 = vpop.f32.mrf.mxu0
  %v1500 = vadd.f32 0.0, %v1499
  %v1501 = vpop.f32.mrf.mxu0
  %v1502 = vadd.f32 0.0, %v1501
  %v1503 = vpop.f32.mrf.mxu0
  %v1504 = vadd.f32 0.0, %v1503
  %1505 = vdwg.mxu0
  %1506 = vmatprep.subr.bf16.mxu0 %v767
  %1507 = vmatpush1.bf16.msra.mxu0 %v766
  %1508 = vmatprep.subr.bf16.mxu0 %v763
  %1509 = vmatpush1.bf16.msra.mxu0 %v762
  %1510 = vmatprep.subr.bf16.mxu0 %v759
  %1511 = vmatpush1.bf16.msra.mxu0 %v758
  %1512 = vmatprep.subr.bf16.mxu0 %v755
  %1513 = vmatpush1.bf16.msra.mxu0 %v754
  %1514 = vmatprep.subr.bf16.mxu0 %v751
  %1515 = vmatpush1.bf16.msra.mxu0 %v750
  %1516 = vmatprep.subr.bf16.mxu0 %v747
  %1517 = vmatpush1.bf16.msra.mxu0 %v746
  %1518 = vmatprep.subr.bf16.mxu0 %v743
  %1519 = vmatpush1.bf16.msra.mxu0 %v742
  %1520 = vmatprep.subr.bf16.mxu0 %v739
  %1521 = vmatpush1.bf16.msra.mxu0 %v738
  %1522 = vmatprep.subr.bf16.mxu0 %v799
  %1523 = vmatpush2.bf16.msra.mxu0 %v798
  %1524 = vmatprep.subr.bf16.mxu0 %v795
  %1525 = vmatpush2.bf16.msra.mxu0 %v794
  %1526 = vmatprep.subr.bf16.mxu0 %v791
  %1527 = vmatpush2.bf16.msra.mxu0 %v790
  %1528 = vmatprep.subr.bf16.mxu0 %v787
  %1529 = vmatpush2.bf16.msra.mxu0 %v786
  %1530 = vmatprep.subr.bf16.mxu0 %v783
  %1531 = vmatpush2.bf16.msra.mxu0 %v782
  %1532 = vmatprep.subr.bf16.mxu0 %v779
  %1533 = vmatpush2.bf16.msra.mxu0 %v778
  %1534 = vmatprep.subr.bf16.mxu0 %v775
  %1535 = vmatpush2.bf16.msra.mxu0 %v774
  %1536 = vmatprep.subr.bf16.mxu0 %v771
  %1537 = vmatpush2.bf16.msra.mxu0 %v770
  %1538 = vmatprep.mubr.bf16.mxu0 %v1342
  %1539 = vmatmul.mubr.bf16.gmra.mxu0 %v1341
  %v1540 = vpop.f32.mrf.mxu0
  %v1541 = vadd.f32 %v1488, %v1540
  %v1542 = vpop.f32.mrf.mxu0
  %v1543 = vadd.f32 %v1490, %v1542
  %v1544 = vpop.f32.mrf.mxu0
  %v1545 = vadd.f32 %v1492, %v1544
  %v1546 = vpop.f32.mrf.mxu0
  %v1547 = vadd.f32 %v1494, %v1546
  %1548 = vmatprep.mubr.bf16.mxu0 %v1346
  %1549 = vmatmul.mubr.bf16.gmra.mxu0 %v1345
  %v1550 = vpop.f32.mrf.mxu0
  %v1551 = vadd.f32 %v1498, %v1550
  %v1552 = vpop.f32.mrf.mxu0
  %v1553 = vadd.f32 %v1500, %v1552
  %v1554 = vpop.f32.mrf.mxu0
  %v1555 = vadd.f32 %v1502, %v1554
  %v1556 = vpop.f32.mrf.mxu0
  %v1557 = vadd.f32 %v1504, %v1556
  %1558 = vdwg.mxu0
  %v1559 = vld [vmem:[%s4] sm:$0xf]
  %v1560 = vld [vmem:[%s4 + $0x4] sm:$0xf]
  %v1561 = vld [vmem:[%s4 + $0x8] sm:$0xf]
  %v1562 = vld [vmem:[%s4 + $0xc] sm:$0xf]
  %v1563 = vpack.c.bf16 %v1439, %v1435
  %v1564 = vpack.c.bf16 %v1441, %v1437
  %v1565 = vpack.c.bf16 %v1545, %v1541
  %v1566 = vpack.c.bf16 %v1547, %v1543
  %v1567 = vpack.c.bf16 %v1449, %v1445
  %v1568 = vpack.c.bf16 %v1451, %v1447
  %v1569 = vpack.c.bf16 %v1555, %v1551
  %v1570 = vpack.c.bf16 %v1557, %v1553
  %v1571 = vld [vmem:[%s7] sm:$0xff]
  %v1572 = vld [vmem:[%s7 + $0x8] sm:$0xff]
  %v1573 = vld [vmem:[%s7 + $0x10] sm:$0xff]
  %v1574 = vld [vmem:[%s7 + $0x18] sm:$0xff]
  %v1575 = vld [vmem:[%s7 + $0x20] sm:$0xff]
  %v1576 = vld [vmem:[%s7 + $0x28] sm:$0xff]
  %v1577 = vld [vmem:[%s7 + $0x30] sm:$0xff]
  %v1578 = vld [vmem:[%s7 + $0x38] sm:$0xff]
  %v1579 = vld [vmem:[%s7 + $0x40] sm:$0xff]
  %v1580 = vld [vmem:[%s7 + $0x48] sm:$0xff]
  %v1581 = vld [vmem:[%s7 + $0x50] sm:$0xff]
  %v1582 = vld [vmem:[%s7 + $0x58] sm:$0xff]
  %v1583 = vld [vmem:[%s7 + $0x60] sm:$0xff]
  %v1584 = vld [vmem:[%s7 + $0x68] sm:$0xff]
  %v1585 = vld [vmem:[%s7 + $0x70] sm:$0xff]
  %v1586 = vld [vmem:[%s7 + $0x78] sm:$0xff]
  %v1591 = vunpack.c.l.b16 %v1559
  %v1592 = vunpack.c.l.b16 %v1560
  %v1593 = vunpack.c.l.b16 %v1561
  %v1594 = vunpack.c.l.b16 %v1562
  %v1595 = vpack.c.b16 %v1592, %v1591
  %v1596 = vpack.c.b16 %v1594, %v1593
  %v1598 = vsel %vm1178, %v1595, 0
  %v1601 = vsel %vm1178, %v1596, 0
  %1603 = vmatprep.subr.bf16.mxu0 0
  %1604 = vmatpush1.bf16.msra.mxu0 0
  %1605 = vmatprep.subr.bf16.mxu0 0
  %1606 = vmatpush1.bf16.msra.mxu0 0
  %1607 = vmatprep.subr.bf16.mxu0 0
  %1608 = vmatpush1.bf16.msra.mxu0 0
  %1609 = vmatprep.subr.bf16.mxu0 0
  %1610 = vmatpush1.bf16.msra.mxu0 0
  %1611 = vmatprep.subr.bf16.mxu0 0
  %1612 = vmatpush1.bf16.msra.mxu0 0
  %1613 = vmatprep.subr.bf16.mxu0 0
  %1614 = vmatpush1.bf16.msra.mxu0 0
  %1615 = vmatprep.subr.bf16.mxu0 %v1568
  %1616 = vmatpush1.bf16.msra.mxu0 %v1567
  %1617 = vmatprep.subr.bf16.mxu0 %v1564
  %1618 = vmatpush1.bf16.msra.mxu0 %v1563
  %1619 = vmatprep.subr.bf16.mxu0 0
  %1620 = vmatpush2.bf16.msra.mxu0 0
  %1621 = vmatprep.subr.bf16.mxu0 0
  %1622 = vmatpush2.bf16.msra.mxu0 0
  %1623 = vmatprep.subr.bf16.mxu0 0
  %1624 = vmatpush2.bf16.msra.mxu0 0
  %1625 = vmatprep.subr.bf16.mxu0 0
  %1626 = vmatpush2.bf16.msra.mxu0 0
  %1627 = vmatprep.subr.bf16.mxu0 0
  %1628 = vmatpush2.bf16.msra.mxu0 0
  %1629 = vmatprep.subr.bf16.mxu0 0
  %1630 = vmatpush2.bf16.msra.mxu0 0
  %1631 = vmatprep.subr.bf16.mxu0 0
  %1632 = vmatpush2.bf16.msra.mxu0 0
  %1633 = vmatprep.subr.bf16.mxu0 0
  %1634 = vmatpush2.bf16.msra.mxu0 0
  %1635 = vmatprep.mubr.bf16.mxu0 0
  %1636 = vmatmul.mubr.bf16.gmra.mxu0 %v1598
  %v1637 = vpop.f32.mrf.mxu0
  %v1638 = vadd.f32 %v1571, %v1637
  %v1639 = vpop.f32.mrf.mxu0
  %v1640 = vadd.f32 %v1572, %v1639
  %v1641 = vpop.f32.mrf.mxu0
  %v1642 = vadd.f32 %v1575, %v1641
  %v1643 = vpop.f32.mrf.mxu0
  %v1644 = vadd.f32 %v1576, %v1643
  %1645 = vmatprep.mubr.bf16.mxu0 0
  %1646 = vmatmul.mubr.bf16.gmra.mxu0 %v1601
  %v1647 = vpop.f32.mrf.mxu0
  %v1648 = vadd.f32 %v1579, %v1647
  %v1649 = vpop.f32.mrf.mxu0
  %v1650 = vadd.f32 %v1580, %v1649
  %v1651 = vpop.f32.mrf.mxu0
  %v1652 = vadd.f32 %v1583, %v1651
  %v1653 = vpop.f32.mrf.mxu0
  %v1654 = vadd.f32 %v1584, %v1653
  %1655 = vdwg.mxu0
  %1656 = vmatprep.subr.bf16.mxu0 0
  %1657 = vmatpush1.bf16.msra.mxu0 0
  %1658 = vmatprep.subr.bf16.mxu0 0
  %1659 = vmatpush1.bf16.msra.mxu0 0
  %1660 = vmatprep.subr.bf16.mxu0 0
  %1661 = vmatpush1.bf16.msra.mxu0 0
  %1662 = vmatprep.subr.bf16.mxu0 0
  %1663 = vmatpush1.bf16.msra.mxu0 0
  %1664 = vmatprep.subr.bf16.mxu0 0
  %1665 = vmatpush1.bf16.msra.mxu0 0
  %1666 = vmatprep.subr.bf16.mxu0 0
  %1667 = vmatpush1.bf16.msra.mxu0 0
  %1668 = vmatprep.subr.bf16.mxu0 %v1570
  %1669 = vmatpush1.bf16.msra.mxu0 %v1569
  %1670 = vmatprep.subr.bf16.mxu0 %v1566
  %1671 = vmatpush1.bf16.msra.mxu0 %v1565
  %1672 = vmatprep.subr.bf16.mxu0 0
  %1673 = vmatpush2.bf16.msra.mxu0 0
  %1674 = vmatprep.subr.bf16.mxu0 0
  %1675 = vmatpush2.bf16.msra.mxu0 0
  %1676 = vmatprep.subr.bf16.mxu0 0
  %1677 = vmatpush2.bf16.msra.mxu0 0
  %1678 = vmatprep.subr.bf16.mxu0 0
  %1679 = vmatpush2.bf16.msra.mxu0 0
  %1680 = vmatprep.subr.bf16.mxu0 0
  %1681 = vmatpush2.bf16.msra.mxu0 0
  %1682 = vmatprep.subr.bf16.mxu0 0
  %1683 = vmatpush2.bf16.msra.mxu0 0
  %1684 = vmatprep.subr.bf16.mxu0 0
  %1685 = vmatpush2.bf16.msra.mxu0 0
  %1686 = vmatprep.subr.bf16.mxu0 0
  %1687 = vmatpush2.bf16.msra.mxu0 0
  %1688 = vmatprep.mubr.bf16.mxu0 0
  %1689 = vmatmul.mubr.bf16.gmra.mxu0 %v1598
  %v1690 = vpop.f32.mrf.mxu0
  %v1691 = vadd.f32 %v1573, %v1690
  %v1692 = vpop.f32.mrf.mxu0
  %v1693 = vadd.f32 %v1574, %v1692
  %v1694 = vpop.f32.mrf.mxu0
  %v1695 = vadd.f32 %v1577, %v1694
  %v1696 = vpop.f32.mrf.mxu0
  %v1697 = vadd.f32 %v1578, %v1696
  %1698 = vmatprep.mubr.bf16.mxu0 0
  %1699 = vmatmul.mubr.bf16.gmra.mxu0 %v1601
  %v1700 = vpop.f32.mrf.mxu0
  %v1701 = vadd.f32 %v1581, %v1700
  %v1702 = vpop.f32.mrf.mxu0
  %v1703 = vadd.f32 %v1582, %v1702
  %v1704 = vpop.f32.mrf.mxu0
  %v1705 = vadd.f32 %v1585, %v1704
  %v1706 = vpop.f32.mrf.mxu0
  %v1707 = vadd.f32 %v1586, %v1706
  %1708 = vdwg.mxu0
  %vm1709 = vcmp.gt.f32.partialorder %v1638, 0.0
  %vm1710 = vcmp.gt.f32.partialorder %v1640, 0.0
  %vm1711 = vcmp.gt.f32.partialorder %v1691, 0.0
  %vm1712 = vcmp.gt.f32.partialorder %v1693, 0.0
  %vm1713 = vcmp.gt.f32.partialorder %v1642, 0.0
  %vm1714 = vcmp.gt.f32.partialorder %v1644, 0.0
  %vm1715 = vcmp.gt.f32.partialorder %v1695, 0.0
  %vm1716 = vcmp.gt.f32.partialorder %v1697, 0.0
  %vm1717 = vcmp.gt.f32.partialorder %v1648, 0.0
  %vm1718 = vcmp.gt.f32.partialorder %v1650, 0.0
  %vm1719 = vcmp.gt.f32.partialorder %v1701, 0.0
  %vm1720 = vcmp.gt.f32.partialorder %v1703, 0.0
  %vm1721 = vcmp.gt.f32.partialorder %v1652, 0.0
  %vm1722 = vcmp.gt.f32.partialorder %v1654, 0.0
  %vm1723 = vcmp.gt.f32.partialorder %v1705, 0.0
  %vm1724 = vcmp.gt.f32.partialorder %v1707, 0.0
  %v1725 = vmul.f32 %v1638, 0.01
  %v1726 = vmul.f32 %v1640, 0.01
  %v1727 = vmul.f32 %v1691, 0.01
  %v1728 = vmul.f32 %v1693, 0.01
  %v1729 = vmul.f32 %v1642, 0.01
  %v1730 = vmul.f32 %v1644, 0.01
  %v1731 = vmul.f32 %v1695, 0.01
  %v1732 = vmul.f32 %v1697, 0.01
  %v1733 = vmul.f32 %v1648, 0.01
  %v1734 = vmul.f32 %v1650, 0.01
  %v1735 = vmul.f32 %v1701, 0.01
  %v1736 = vmul.f32 %v1703, 0.01
  %v1737 = vmul.f32 %v1652, 0.01
  %v1738 = vmul.f32 %v1654, 0.01
  %v1739 = vmul.f32 %v1705, 0.01
  %v1740 = vmul.f32 %v1707, 0.01
  %v1741 = vsel %vm1709, %v1638, %v1725
  %v1742 = vsel %vm1710, %v1640, %v1726
  %v1743 = vsel %vm1711, %v1691, %v1727
  %v1744 = vsel %vm1712, %v1693, %v1728
  %v1745 = vsel %vm1713, %v1642, %v1729
  %v1746 = vsel %vm1714, %v1644, %v1730
  %v1747 = vsel %vm1715, %v1695, %v1731
  %v1748 = vsel %vm1716, %v1697, %v1732
  %v1749 = vsel %vm1717, %v1648, %v1733
  %v1750 = vsel %vm1718, %v1650, %v1734
  %v1751 = vsel %vm1719, %v1701, %v1735
  %v1752 = vsel %vm1720, %v1703, %v1736
  %v1753 = vsel %vm1721, %v1652, %v1737
  %v1754 = vsel %vm1722, %v1654, %v1738
  %v1755 = vsel %vm1723, %v1705, %v1739
  %v1756 = vsel %vm1724, %v1707, %v1740
  %v1757 = vld [vmem:[%s5] sm:$0xf]
  %v1758 = vld [vmem:[%s5 + $0x4] sm:$0xf]
  %v1759 = vld [vmem:[%s5 + $0x8] sm:$0xf]
  %v1760 = vld [vmem:[%s5 + $0xc] sm:$0xf]
  %v1761 = vpack.c.bf16 %v1745, %v1741
  %v1762 = vpack.c.bf16 %v1746, %v1742
  %v1763 = vpack.c.bf16 %v1747, %v1743
  %v1764 = vpack.c.bf16 %v1748, %v1744
  %v1765 = vpack.c.bf16 %v1753, %v1749
  %v1766 = vpack.c.bf16 %v1754, %v1750
  %v1767 = vpack.c.bf16 %v1755, %v1751
  %v1768 = vpack.c.bf16 %v1756, %v1752
  %v1769 = vld [vmem:[%s8] sm:$0xff]
  %v1770 = vld [vmem:[%s8 + $0x8] sm:$0xff]
  %v1771 = vld [vmem:[%s8 + $0x10] sm:$0xff]
  %v1772 = vld [vmem:[%s8 + $0x18] sm:$0xff]
  %v1773 = vld [vmem:[%s8 + $0x20] sm:$0xff]
  %v1774 = vld [vmem:[%s8 + $0x28] sm:$0xff]
  %v1775 = vld [vmem:[%s8 + $0x30] sm:$0xff]
  %v1776 = vld [vmem:[%s8 + $0x38] sm:$0xff]
  %v1777 = vld [vmem:[%s8 + $0x40] sm:$0xff]
  %v1778 = vld [vmem:[%s8 + $0x48] sm:$0xff]
  %v1779 = vld [vmem:[%s8 + $0x50] sm:$0xff]
  %v1780 = vld [vmem:[%s8 + $0x58] sm:$0xff]
  %v1781 = vld [vmem:[%s8 + $0x60] sm:$0xff]
  %v1782 = vld [vmem:[%s8 + $0x68] sm:$0xff]
  %v1783 = vld [vmem:[%s8 + $0x70] sm:$0xff]
  %v1784 = vld [vmem:[%s8 + $0x78] sm:$0xff]
  %v1789 = vunpack.c.l.b16 %v1757
  %v1790 = vunpack.c.l.b16 %v1758
  %v1791 = vunpack.c.l.b16 %v1759
  %v1792 = vunpack.c.l.b16 %v1760
  %v1793 = vpack.c.b16 %v1790, %v1789
  %v1794 = vpack.c.b16 %v1792, %v1791
  %v1796 = vsel %vm1178, %v1793, 0
  %v1799 = vsel %vm1178, %v1794, 0
  %1801 = vmatprep.subr.bf16.mxu0 0
  %1802 = vmatpush1.bf16.msra.mxu0 0
  %1803 = vmatprep.subr.bf16.mxu0 0
  %1804 = vmatpush1.bf16.msra.mxu0 0
  %1805 = vmatprep.subr.bf16.mxu0 0
  %1806 = vmatpush1.bf16.msra.mxu0 0
  %1807 = vmatprep.subr.bf16.mxu0 0
  %1808 = vmatpush1.bf16.msra.mxu0 0
  %1809 = vmatprep.subr.bf16.mxu0 0
  %1810 = vmatpush1.bf16.msra.mxu0 0
  %1811 = vmatprep.subr.bf16.mxu0 0
  %1812 = vmatpush1.bf16.msra.mxu0 0
  %1813 = vmatprep.subr.bf16.mxu0 %v1766
  %1814 = vmatpush1.bf16.msra.mxu0 %v1765
  %1815 = vmatprep.subr.bf16.mxu0 %v1762
  %1816 = vmatpush1.bf16.msra.mxu0 %v1761
  %1817 = vmatprep.subr.bf16.mxu0 0
  %1818 = vmatpush2.bf16.msra.mxu0 0
  %1819 = vmatprep.subr.bf16.mxu0 0
  %1820 = vmatpush2.bf16.msra.mxu0 0
  %1821 = vmatprep.subr.bf16.mxu0 0
  %1822 = vmatpush2.bf16.msra.mxu0 0
  %1823 = vmatprep.subr.bf16.mxu0 0
  %1824 = vmatpush2.bf16.msra.mxu0 0
  %1825 = vmatprep.subr.bf16.mxu0 0
  %1826 = vmatpush2.bf16.msra.mxu0 0
  %1827 = vmatprep.subr.bf16.mxu0 0
  %1828 = vmatpush2.bf16.msra.mxu0 0
  %1829 = vmatprep.subr.bf16.mxu0 0
  %1830 = vmatpush2.bf16.msra.mxu0 0
  %1831 = vmatprep.subr.bf16.mxu0 0
  %1832 = vmatpush2.bf16.msra.mxu0 0
  %1833 = vmatprep.mubr.bf16.mxu0 0
  %1834 = vmatmul.mubr.bf16.gmra.mxu0 %v1796
  %v1835 = vpop.f32.mrf.mxu0
  %v1836 = vadd.f32 %v1769, %v1835
  %v1837 = vpop.f32.mrf.mxu0
  %v1838 = vadd.f32 %v1770, %v1837
  %v1839 = vpop.f32.mrf.mxu0
  %v1840 = vadd.f32 %v1773, %v1839
  %v1841 = vpop.f32.mrf.mxu0
  %v1842 = vadd.f32 %v1774, %v1841
  %1843 = vmatprep.mubr.bf16.mxu0 0
  %1844 = vmatmul.mubr.bf16.gmra.mxu0 %v1799
  %v1845 = vpop.f32.mrf.mxu0
  %v1846 = vadd.f32 %v1777, %v1845
  %v1847 = vpop.f32.mrf.mxu0
  %v1848 = vadd.f32 %v1778, %v1847
  %v1849 = vpop.f32.mrf.mxu0
  %v1850 = vadd.f32 %v1781, %v1849
  %v1851 = vpop.f32.mrf.mxu0
  %v1852 = vadd.f32 %v1782, %v1851
  %1853 = vdwg.mxu0
  %1854 = vmatprep.subr.bf16.mxu0 0
  %1855 = vmatpush1.bf16.msra.mxu0 0
  %1856 = vmatprep.subr.bf16.mxu0 0
  %1857 = vmatpush1.bf16.msra.mxu0 0
  %1858 = vmatprep.subr.bf16.mxu0 0
  %1859 = vmatpush1.bf16.msra.mxu0 0
  %1860 = vmatprep.subr.bf16.mxu0 0
  %1861 = vmatpush1.bf16.msra.mxu0 0
  %1862 = vmatprep.subr.bf16.mxu0 0
  %1863 = vmatpush1.bf16.msra.mxu0 0
  %1864 = vmatprep.subr.bf16.mxu0 0
  %1865 = vmatpush1.bf16.msra.mxu0 0
  %1866 = vmatprep.subr.bf16.mxu0 %v1768
  %1867 = vmatpush1.bf16.msra.mxu0 %v1767
  %1868 = vmatprep.subr.bf16.mxu0 %v1764
  %1869 = vmatpush1.bf16.msra.mxu0 %v1763
  %1870 = vmatprep.subr.bf16.mxu0 0
  %1871 = vmatpush2.bf16.msra.mxu0 0
  %1872 = vmatprep.subr.bf16.mxu0 0
  %1873 = vmatpush2.bf16.msra.mxu0 0
  %1874 = vmatprep.subr.bf16.mxu0 0
  %1875 = vmatpush2.bf16.msra.mxu0 0
  %1876 = vmatprep.subr.bf16.mxu0 0
  %1877 = vmatpush2.bf16.msra.mxu0 0
  %1878 = vmatprep.subr.bf16.mxu0 0
  %1879 = vmatpush2.bf16.msra.mxu0 0
  %1880 = vmatprep.subr.bf16.mxu0 0
  %1881 = vmatpush2.bf16.msra.mxu0 0
  %1882 = vmatprep.subr.bf16.mxu0 0
  %1883 = vmatpush2.bf16.msra.mxu0 0
  %1884 = vmatprep.subr.bf16.mxu0 0
  %1885 = vmatpush2.bf16.msra.mxu0 0
  %1886 = vmatprep.mubr.bf16.mxu0 0
  %1887 = vmatmul.mubr.bf16.gmra.mxu0 %v1796
  %v1888 = vpop.f32.mrf.mxu0
  %v1889 = vadd.f32 %v1771, %v1888
  %v1890 = vpop.f32.mrf.mxu0
  %v1891 = vadd.f32 %v1772, %v1890
  %v1892 = vpop.f32.mrf.mxu0
  %v1893 = vadd.f32 %v1775, %v1892
  %v1894 = vpop.f32.mrf.mxu0
  %v1895 = vadd.f32 %v1776, %v1894
  %1896 = vmatprep.mubr.bf16.mxu0 0
  %1897 = vmatmul.mubr.bf16.gmra.mxu0 %v1799
  %v1898 = vpop.f32.mrf.mxu0
  %v1899 = vadd.f32 %v1779, %v1898
  %v1900 = vpop.f32.mrf.mxu0
  %v1901 = vadd.f32 %v1780, %v1900
  %v1902 = vpop.f32.mrf.mxu0
  %v1903 = vadd.f32 %v1783, %v1902
  %v1904 = vpop.f32.mrf.mxu0
  %v1905 = vadd.f32 %v1784, %v1904
  %1906 = vdwg.mxu0
  %v1907 = vmul.f32 %v1836, 0.125
  %v1908 = vmul.f32 %v1838, 0.125
  %v1909 = vmul.f32 %v1889, 0.125
  %v1910 = vmul.f32 %v1891, 0.125
  %v1911 = vmul.f32 %v1840, 0.125
  %v1912 = vmul.f32 %v1842, 0.125
  %v1913 = vmul.f32 %v1893, 0.125
  %v1914 = vmul.f32 %v1895, 0.125
  %v1915 = vmul.f32 %v1846, 0.125
  %v1916 = vmul.f32 %v1848, 0.125
  %v1917 = vmul.f32 %v1899, 0.125
  %v1918 = vmul.f32 %v1901, 0.125
  %v1919 = vmul.f32 %v1850, 0.125
  %v1920 = vmul.f32 %v1852, 0.125
  %v1921 = vmul.f32 %v1903, 0.125
  %v1922 = vmul.f32 %v1905, 0.125
  %v1923 = vadd.f32 %v120, %v1907
  %v1924 = vadd.f32 %v121, %v1908
  %v1925 = vadd.f32 %v122, %v1909
  %v1926 = vadd.f32 %v123, %v1910
  %v1927 = vadd.f32 %v124, %v1911
  %v1928 = vadd.f32 %v125, %v1912
  %v1929 = vadd.f32 %v126, %v1913
  %v1930 = vadd.f32 %v127, %v1914
  %v1931 = vadd.f32 %v128, %v1915
  %v1932 = vadd.f32 %v129, %v1916
  %v1933 = vadd.f32 %v130, %v1917
  %v1934 = vadd.f32 %v131, %v1918
  %v1935 = vadd.f32 %v132, %v1919
  %v1936 = vadd.f32 %v133, %v1920
  %v1937 = vadd.f32 %v134, %v1921
  %v1938 = vadd.f32 %v135, %v1922
  %1939 = vst [vmem:[#allocation3] sm:$0xff] %v1923
  %1940 = vst [vmem:[#allocation3 + $0x8] sm:$0xff] %v1924
  %1941 = vst [vmem:[#allocation3 + $0x10] sm:$0xff] %v1925
  %1942 = vst [vmem:[#allocation3 + $0x18] sm:$0xff] %v1926
  %1943 = vst [vmem:[#allocation3 + $0x20] sm:$0xff] %v1927
  %1944 = vst [vmem:[#allocation3 + $0x28] sm:$0xff] %v1928
  %1945 = vst [vmem:[#allocation3 + $0x30] sm:$0xff] %v1929
  %1946 = vst [vmem:[#allocation3 + $0x38] sm:$0xff] %v1930
  %1947 = vst [vmem:[#allocation3 + $0x40] sm:$0xff] %v1931
  %1948 = vst [vmem:[#allocation3 + $0x48] sm:$0xff] %v1932
  %1949 = vst [vmem:[#allocation3 + $0x50] sm:$0xff] %v1933
  %1950 = vst [vmem:[#allocation3 + $0x58] sm:$0xff] %v1934
  %1951 = vst [vmem:[#allocation3 + $0x60] sm:$0xff] %v1935
  %1952 = vst [vmem:[#allocation3 + $0x68] sm:$0xff] %v1936
  %1953 = vst [vmem:[#allocation3 + $0x70] sm:$0xff] %v1937
  %1954 = vst [vmem:[#allocation3 + $0x78] sm:$0xff] %v1938
  %v1955 = vld [vmem:[#allocation2] sm:$0xff]
  %v1956 = vld [vmem:[#allocation2 + $0x8] sm:$0xff]
  %v1957 = vld [vmem:[#allocation2 + $0x10] sm:$0xff]
  %v1958 = vld [vmem:[#allocation2 + $0x18] sm:$0xff]
  %v1959 = vld [vmem:[#allocation2 + $0x20] sm:$0xff]
  %v1960 = vld [vmem:[#allocation2 + $0x28] sm:$0xff]
  %v1961 = vld [vmem:[#allocation2 + $0x30] sm:$0xff]
  %v1962 = vld [vmem:[#allocation2 + $0x38] sm:$0xff]
  %v1963 = vld [vmem:[#allocation2 + $0x40] sm:$0xff]
  %v1964 = vld [vmem:[#allocation2 + $0x48] sm:$0xff]
  %v1965 = vld [vmem:[#allocation2 + $0x50] sm:$0xff]
  %v1966 = vld [vmem:[#allocation2 + $0x58] sm:$0xff]
  %v1967 = vld [vmem:[#allocation2 + $0x60] sm:$0xff]
  %v1968 = vld [vmem:[#allocation2 + $0x68] sm:$0xff]
  %v1969 = vld [vmem:[#allocation2 + $0x70] sm:$0xff]
  %v1970 = vld [vmem:[#allocation2 + $0x78] sm:$0xff]
  %v1971 = vmul.f32 %v1836, 0.33333334
  %v1972 = vmul.f32 %v1838, 0.33333334
  %v1973 = vmul.f32 %v1889, 0.33333334
  %v1974 = vmul.f32 %v1891, 0.33333334
  %v1975 = vmul.f32 %v1840, 0.33333334
  %v1976 = vmul.f32 %v1842, 0.33333334
  %v1977 = vmul.f32 %v1893, 0.33333334
  %v1978 = vmul.f32 %v1895, 0.33333334
  %v1979 = vmul.f32 %v1846, 0.33333334
  %v1980 = vmul.f32 %v1848, 0.33333334
  %v1981 = vmul.f32 %v1899, 0.33333334
  %v1982 = vmul.f32 %v1901, 0.33333334
  %v1983 = vmul.f32 %v1850, 0.33333334
  %v1984 = vmul.f32 %v1852, 0.33333334
  %v1985 = vmul.f32 %v1903, 0.33333334
  %v1986 = vmul.f32 %v1905, 0.33333334
  %v1987 = vadd.f32 %v1955, %v1971
  %v1988 = vadd.f32 %v1956, %v1972
  %v1989 = vadd.f32 %v1957, %v1973
  %v1990 = vadd.f32 %v1958, %v1974
  %v1991 = vadd.f32 %v1959, %v1975
  %v1992 = vadd.f32 %v1960, %v1976
  %v1993 = vadd.f32 %v1961, %v1977
  %v1994 = vadd.f32 %v1962, %v1978
  %v1995 = vadd.f32 %v1963, %v1979
  %v1996 = vadd.f32 %v1964, %v1980
  %v1997 = vadd.f32 %v1965, %v1981
  %v1998 = vadd.f32 %v1966, %v1982
  %v1999 = vadd.f32 %v1967, %v1983
  %v2000 = vadd.f32 %v1968, %v1984
  %v2001 = vadd.f32 %v1969, %v1985
  %v2002 = vadd.f32 %v1970, %v1986
  %v2003 = vadd.f32 %v1987, %v79
  %v2004 = vadd.f32 %v1988, %v80
  %v2005 = vadd.f32 %v1989, %v81
  %v2006 = vadd.f32 %v1990, %v82
  %v2007 = vadd.f32 %v1991, %v83
  %v2008 = vadd.f32 %v1992, %v84
  %v2009 = vadd.f32 %v1993, %v85
  %v2010 = vadd.f32 %v1994, %v86
  %v2011 = vadd.f32 %v1995, %v87
  %v2012 = vadd.f32 %v1996, %v88
  %v2013 = vadd.f32 %v1997, %v89
  %v2014 = vadd.f32 %v1998, %v90
  %v2015 = vadd.f32 %v1999, %v91
  %v2016 = vadd.f32 %v2000, %v92
  %v2017 = vadd.f32 %v2001, %v93
  %v2018 = vadd.f32 %v2002, %v94
  %v2019 = vld [vmem:[%s2] sm:$0xff]
  %v2020 = vld [vmem:[%s2 + $0x8] sm:$0xff]
  %v2021 = vld [vmem:[%s2 + $0x10] sm:$0xff]
  %v2022 = vld [vmem:[%s2 + $0x18] sm:$0xff]
  %v2023 = vld [vmem:[%s2 + $0x20] sm:$0xff]
  %v2024 = vld [vmem:[%s2 + $0x28] sm:$0xff]
  %v2025 = vld [vmem:[%s2 + $0x30] sm:$0xff]
  %v2026 = vld [vmem:[%s2 + $0x38] sm:$0xff]
  %v2027 = vld [vmem:[%s2 + $0x40] sm:$0xff]
  %v2028 = vld [vmem:[%s2 + $0x48] sm:$0xff]
  %v2029 = vld [vmem:[%s2 + $0x50] sm:$0xff]
  %v2030 = vld [vmem:[%s2 + $0x58] sm:$0xff]
  %v2031 = vld [vmem:[%s2 + $0x60] sm:$0xff]
  %v2032 = vld [vmem:[%s2 + $0x68] sm:$0xff]
  %v2033 = vld [vmem:[%s2 + $0x70] sm:$0xff]
  %v2034 = vld [vmem:[%s2 + $0x78] sm:$0xff]
  %v2035 = vld [vmem:[%s2 + $0x80] sm:$0xff]
  %v2036 = vld [vmem:[%s2 + $0x88] sm:$0xff]
  %v2037 = vld [vmem:[%s2 + $0x90] sm:$0xff]
  %v2038 = vld [vmem:[%s2 + $0x98] sm:$0xff]
  %v2039 = vld [vmem:[%s2 + $0xa0] sm:$0xff]
  %v2040 = vld [vmem:[%s2 + $0xa8] sm:$0xff]
  %v2041 = vld [vmem:[%s2 + $0xb0] sm:$0xff]
  %v2042 = vld [vmem:[%s2 + $0xb8] sm:$0xff]
  %v2043 = vld [vmem:[%s2 + $0xc0] sm:$0xff]
  %v2044 = vld [vmem:[%s2 + $0xc8] sm:$0xff]
  %v2045 = vld [vmem:[%s2 + $0xd0] sm:$0xff]
  %v2046 = vld [vmem:[%s2 + $0xd8] sm:$0xff]
  %v2047 = vld [vmem:[%s2 + $0xe0] sm:$0xff]
  %v2048 = vld [vmem:[%s2 + $0xe8] sm:$0xff]
  %v2049 = vld [vmem:[%s2 + $0xf0] sm:$0xff]
  %v2050 = vld [vmem:[%s2 + $0xf8] sm:$0xff]
  %v2051 = vld [vmem:[%s2 + $0x100] sm:$0xff]
  %v2052 = vld [vmem:[%s2 + $0x108] sm:$0xff]
  %v2053 = vld [vmem:[%s2 + $0x110] sm:$0xff]
  %v2054 = vld [vmem:[%s2 + $0x118] sm:$0xff]
  %v2055 = vld [vmem:[%s2 + $0x120] sm:$0xff]
  %v2056 = vld [vmem:[%s2 + $0x128] sm:$0xff]
  %v2057 = vld [vmem:[%s2 + $0x130] sm:$0xff]
  %v2058 = vld [vmem:[%s2 + $0x138] sm:$0xff]
  %v2059 = vld [vmem:[%s2 + $0x140] sm:$0xff]
  %v2060 = vld [vmem:[%s2 + $0x148] sm:$0xff]
  %v2061 = vld [vmem:[%s2 + $0x150] sm:$0xff]
  %v2062 = vld [vmem:[%s2 + $0x158] sm:$0xff]
  %v2063 = vld [vmem:[%s2 + $0x160] sm:$0xff]
  %v2064 = vld [vmem:[%s2 + $0x168] sm:$0xff]
  %v2065 = vld [vmem:[%s2 + $0x170] sm:$0xff]
  %v2066 = vld [vmem:[%s2 + $0x178] sm:$0xff]
  %v2067 = vld [vmem:[%s2 + $0x180] sm:$0xff]
  %v2068 = vld [vmem:[%s2 + $0x188] sm:$0xff]
  %v2069 = vld [vmem:[%s2 + $0x190] sm:$0xff]
  %v2070 = vld [vmem:[%s2 + $0x198] sm:$0xff]
  %v2071 = vld [vmem:[%s2 + $0x1a0] sm:$0xff]
  %v2072 = vld [vmem:[%s2 + $0x1a8] sm:$0xff]
  %v2073 = vld [vmem:[%s2 + $0x1b0] sm:$0xff]
  %v2074 = vld [vmem:[%s2 + $0x1b8] sm:$0xff]
  %v2075 = vld [vmem:[%s2 + $0x1c0] sm:$0xff]
  %v2076 = vld [vmem:[%s2 + $0x1c8] sm:$0xff]
  %v2077 = vld [vmem:[%s2 + $0x1d0] sm:$0xff]
  %v2078 = vld [vmem:[%s2 + $0x1d8] sm:$0xff]
  %v2079 = vld [vmem:[%s2 + $0x1e0] sm:$0xff]
  %v2080 = vld [vmem:[%s2 + $0x1e8] sm:$0xff]
  %v2081 = vld [vmem:[%s2 + $0x1f0] sm:$0xff]
  %v2082 = vld [vmem:[%s2 + $0x1f8] sm:$0xff]
  %v2083 = vld [vmem:[%s2 + $0x200] sm:$0xff]
  %v2084 = vld [vmem:[%s2 + $0x208] sm:$0xff]
  %v2085 = vld [vmem:[%s2 + $0x210] sm:$0xff]
  %v2086 = vld [vmem:[%s2 + $0x218] sm:$0xff]
  %v2087 = vld [vmem:[%s2 + $0x220] sm:$0xff]
  %v2088 = vld [vmem:[%s2 + $0x228] sm:$0xff]
  %v2089 = vld [vmem:[%s2 + $0x230] sm:$0xff]
  %v2090 = vld [vmem:[%s2 + $0x238] sm:$0xff]
  %v2091 = vld [vmem:[%s2 + $0x240] sm:$0xff]
  %v2092 = vld [vmem:[%s2 + $0x248] sm:$0xff]
  %v2093 = vld [vmem:[%s2 + $0x250] sm:$0xff]
  %v2094 = vld [vmem:[%s2 + $0x258] sm:$0xff]
  %v2095 = vld [vmem:[%s2 + $0x260] sm:$0xff]
  %v2096 = vld [vmem:[%s2 + $0x268] sm:$0xff]
  %v2097 = vld [vmem:[%s2 + $0x270] sm:$0xff]
  %v2098 = vld [vmem:[%s2 + $0x278] sm:$0xff]
  %v2099 = vld [vmem:[%s2 + $0x280] sm:$0xff]
  %v2100 = vld [vmem:[%s2 + $0x288] sm:$0xff]
  %v2101 = vld [vmem:[%s2 + $0x290] sm:$0xff]
  %v2102 = vld [vmem:[%s2 + $0x298] sm:$0xff]
  %v2103 = vld [vmem:[%s2 + $0x2a0] sm:$0xff]
  %v2104 = vld [vmem:[%s2 + $0x2a8] sm:$0xff]
  %v2105 = vld [vmem:[%s2 + $0x2b0] sm:$0xff]
  %v2106 = vld [vmem:[%s2 + $0x2b8] sm:$0xff]
  %v2107 = vld [vmem:[%s2 + $0x2c0] sm:$0xff]
  %v2108 = vld [vmem:[%s2 + $0x2c8] sm:$0xff]
  %v2109 = vld [vmem:[%s2 + $0x2d0] sm:$0xff]
  %v2110 = vld [vmem:[%s2 + $0x2d8] sm:$0xff]
  %v2111 = vld [vmem:[%s2 + $0x2e0] sm:$0xff]
  %v2112 = vld [vmem:[%s2 + $0x2e8] sm:$0xff]
  %v2113 = vld [vmem:[%s2 + $0x2f0] sm:$0xff]
  %v2114 = vld [vmem:[%s2 + $0x2f8] sm:$0xff]
  %v2115 = vld [vmem:[%s2 + $0x300] sm:$0xff]
  %v2116 = vld [vmem:[%s2 + $0x308] sm:$0xff]
  %v2117 = vld [vmem:[%s2 + $0x310] sm:$0xff]
  %v2118 = vld [vmem:[%s2 + $0x318] sm:$0xff]
  %v2119 = vld [vmem:[%s2 + $0x320] sm:$0xff]
  %v2120 = vld [vmem:[%s2 + $0x328] sm:$0xff]
  %v2121 = vld [vmem:[%s2 + $0x330] sm:$0xff]
  %v2122 = vld [vmem:[%s2 + $0x338] sm:$0xff]
  %v2123 = vld [vmem:[%s2 + $0x340] sm:$0xff]
  %v2124 = vld [vmem:[%s2 + $0x348] sm:$0xff]
  %v2125 = vld [vmem:[%s2 + $0x350] sm:$0xff]
  %v2126 = vld [vmem:[%s2 + $0x358] sm:$0xff]
  %v2127 = vld [vmem:[%s2 + $0x360] sm:$0xff]
  %v2128 = vld [vmem:[%s2 + $0x368] sm:$0xff]
  %v2129 = vld [vmem:[%s2 + $0x370] sm:$0xff]
  %v2130 = vld [vmem:[%s2 + $0x378] sm:$0xff]
  %v2131 = vld [vmem:[%s2 + $0x380] sm:$0xff]
  %v2132 = vld [vmem:[%s2 + $0x388] sm:$0xff]
  %v2133 = vld [vmem:[%s2 + $0x390] sm:$0xff]
  %v2134 = vld [vmem:[%s2 + $0x398] sm:$0xff]
  %v2135 = vld [vmem:[%s2 + $0x3a0] sm:$0xff]
  %v2136 = vld [vmem:[%s2 + $0x3a8] sm:$0xff]
  %v2137 = vld [vmem:[%s2 + $0x3b0] sm:$0xff]
  %v2138 = vld [vmem:[%s2 + $0x3b8] sm:$0xff]
  %v2139 = vld [vmem:[%s2 + $0x3c0] sm:$0xff]
  %v2140 = vld [vmem:[%s2 + $0x3c8] sm:$0xff]
  %v2141 = vld [vmem:[%s2 + $0x3d0] sm:$0xff]
  %v2142 = vld [vmem:[%s2 + $0x3d8] sm:$0xff]
  %v2143 = vld [vmem:[%s2 + $0x3e0] sm:$0xff]
  %v2144 = vld [vmem:[%s2 + $0x3e8] sm:$0xff]
  %v2145 = vld [vmem:[%s2 + $0x3f0] sm:$0xff]
  %v2146 = vld [vmem:[%s2 + $0x3f8] sm:$0xff]
  %v2147 = vpack.c.bf16 %v2007, %v2003
  %v2148 = vpack.c.bf16 %v2008, %v2004
  %v2149 = vpack.c.bf16 %v2009, %v2005
  %v2150 = vpack.c.bf16 %v2010, %v2006
  %v2151 = vpack.c.bf16 %v2015, %v2011
  %v2152 = vpack.c.bf16 %v2016, %v2012
  %v2153 = vpack.c.bf16 %v2017, %v2013
  %v2154 = vpack.c.bf16 %v2018, %v2014
  %v2283 = vunpack.c.l.b16 %v2019
  %v2284 = vunpack.c.h.b16 %v2019
  %v2285 = vunpack.c.l.b16 %v2020
  %v2286 = vunpack.c.h.b16 %v2020
  %v2287 = vunpack.c.l.b16 %v2021
  %v2288 = vunpack.c.h.b16 %v2021
  %v2289 = vunpack.c.l.b16 %v2022
  %v2290 = vunpack.c.h.b16 %v2022
  %v2291 = vunpack.c.l.b16 %v2023
  %v2292 = vunpack.c.h.b16 %v2023
  %v2293 = vunpack.c.l.b16 %v2024
  %v2294 = vunpack.c.h.b16 %v2024
  %v2295 = vunpack.c.l.b16 %v2025
  %v2296 = vunpack.c.h.b16 %v2025
  %v2297 = vunpack.c.l.b16 %v2026
  %v2298 = vunpack.c.h.b16 %v2026
  %v2299 = vunpack.c.l.b16 %v2027
  %v2300 = vunpack.c.h.b16 %v2027
  %v2301 = vunpack.c.l.b16 %v2028
  %v2302 = vunpack.c.h.b16 %v2028
  %v2303 = vunpack.c.l.b16 %v2029
  %v2304 = vunpack.c.h.b16 %v2029
  %v2305 = vunpack.c.l.b16 %v2030
  %v2306 = vunpack.c.h.b16 %v2030
  %v2307 = vunpack.c.l.b16 %v2031
  %v2308 = vunpack.c.h.b16 %v2031
  %v2309 = vunpack.c.l.b16 %v2032
  %v2310 = vunpack.c.h.b16 %v2032
  %v2311 = vunpack.c.l.b16 %v2033
  %v2312 = vunpack.c.h.b16 %v2033
  %v2313 = vunpack.c.l.b16 %v2034
  %v2314 = vunpack.c.h.b16 %v2034
  %v2315 = vunpack.c.l.b16 %v2035
  %v2316 = vunpack.c.h.b16 %v2035
  %v2317 = vunpack.c.l.b16 %v2036
  %v2318 = vunpack.c.h.b16 %v2036
  %v2319 = vunpack.c.l.b16 %v2037
  %v2320 = vunpack.c.h.b16 %v2037
  %v2321 = vunpack.c.l.b16 %v2038
  %v2322 = vunpack.c.h.b16 %v2038
  %v2323 = vunpack.c.l.b16 %v2039
  %v2324 = vunpack.c.h.b16 %v2039
  %v2325 = vunpack.c.l.b16 %v2040
  %v2326 = vunpack.c.h.b16 %v2040
  %v2327 = vunpack.c.l.b16 %v2041
  %v2328 = vunpack.c.h.b16 %v2041
  %v2329 = vunpack.c.l.b16 %v2042
  %v2330 = vunpack.c.h.b16 %v2042
  %v2331 = vunpack.c.l.b16 %v2043
  %v2332 = vunpack.c.h.b16 %v2043
  %v2333 = vunpack.c.l.b16 %v2044
  %v2334 = vunpack.c.h.b16 %v2044
  %v2335 = vunpack.c.l.b16 %v2045
  %v2336 = vunpack.c.h.b16 %v2045
  %v2337 = vunpack.c.l.b16 %v2046
  %v2338 = vunpack.c.h.b16 %v2046
  %v2339 = vunpack.c.l.b16 %v2047
  %v2340 = vunpack.c.h.b16 %v2047
  %v2341 = vunpack.c.l.b16 %v2048
  %v2342 = vunpack.c.h.b16 %v2048
  %v2343 = vunpack.c.l.b16 %v2049
  %v2344 = vunpack.c.h.b16 %v2049
  %v2345 = vunpack.c.l.b16 %v2050
  %v2346 = vunpack.c.h.b16 %v2050
  %v2347 = vunpack.c.l.b16 %v2051
  %v2348 = vunpack.c.h.b16 %v2051
  %v2349 = vunpack.c.l.b16 %v2052
  %v2350 = vunpack.c.h.b16 %v2052
  %v2351 = vunpack.c.l.b16 %v2053
  %v2352 = vunpack.c.h.b16 %v2053
  %v2353 = vunpack.c.l.b16 %v2054
  %v2354 = vunpack.c.h.b16 %v2054
  %v2355 = vunpack.c.l.b16 %v2055
  %v2356 = vunpack.c.h.b16 %v2055
  %v2357 = vunpack.c.l.b16 %v2056
  %v2358 = vunpack.c.h.b16 %v2056
  %v2359 = vunpack.c.l.b16 %v2057
  %v2360 = vunpack.c.h.b16 %v2057
  %v2361 = vunpack.c.l.b16 %v2058
  %v2362 = vunpack.c.h.b16 %v2058
  %v2363 = vunpack.c.l.b16 %v2059
  %v2364 = vunpack.c.h.b16 %v2059
  %v2365 = vunpack.c.l.b16 %v2060
  %v2366 = vunpack.c.h.b16 %v2060
  %v2367 = vunpack.c.l.b16 %v2061
  %v2368 = vunpack.c.h.b16 %v2061
  %v2369 = vunpack.c.l.b16 %v2062
  %v2370 = vunpack.c.h.b16 %v2062
  %v2371 = vunpack.c.l.b16 %v2063
  %v2372 = vunpack.c.h.b16 %v2063
  %v2373 = vunpack.c.l.b16 %v2064
  %v2374 = vunpack.c.h.b16 %v2064
  %v2375 = vunpack.c.l.b16 %v2065
  %v2376 = vunpack.c.h.b16 %v2065
  %v2377 = vunpack.c.l.b16 %v2066
  %v2378 = vunpack.c.h.b16 %v2066
  %v2379 = vunpack.c.l.b16 %v2067
  %v2380 = vunpack.c.h.b16 %v2067
  %v2381 = vunpack.c.l.b16 %v2068
  %v2382 = vunpack.c.h.b16 %v2068
  %v2383 = vunpack.c.l.b16 %v2069
  %v2384 = vunpack.c.h.b16 %v2069
  %v2385 = vunpack.c.l.b16 %v2070
  %v2386 = vunpack.c.h.b16 %v2070
  %v2387 = vunpack.c.l.b16 %v2071
  %v2388 = vunpack.c.h.b16 %v2071
  %v2389 = vunpack.c.l.b16 %v2072
  %v2390 = vunpack.c.h.b16 %v2072
  %v2391 = vunpack.c.l.b16 %v2073
  %v2392 = vunpack.c.h.b16 %v2073
  %v2393 = vunpack.c.l.b16 %v2074
  %v2394 = vunpack.c.h.b16 %v2074
  %v2395 = vunpack.c.l.b16 %v2075
  %v2396 = vunpack.c.h.b16 %v2075
  %v2397 = vunpack.c.l.b16 %v2076
  %v2398 = vunpack.c.h.b16 %v2076
  %v2399 = vunpack.c.l.b16 %v2077
  %v2400 = vunpack.c.h.b16 %v2077
  %v2401 = vunpack.c.l.b16 %v2078
  %v2402 = vunpack.c.h.b16 %v2078
  %v2403 = vunpack.c.l.b16 %v2079
  %v2404 = vunpack.c.h.b16 %v2079
  %v2405 = vunpack.c.l.b16 %v2080
  %v2406 = vunpack.c.h.b16 %v2080
  %v2407 = vunpack.c.l.b16 %v2081
  %v2408 = vunpack.c.h.b16 %v2081
  %v2409 = vunpack.c.l.b16 %v2082
  %v2410 = vunpack.c.h.b16 %v2082
  %v2411 = vunpack.c.l.b16 %v2083
  %v2412 = vunpack.c.h.b16 %v2083
  %v2413 = vunpack.c.l.b16 %v2084
  %v2414 = vunpack.c.h.b16 %v2084
  %v2415 = vunpack.c.l.b16 %v2085
  %v2416 = vunpack.c.h.b16 %v2085
  %v2417 = vunpack.c.l.b16 %v2086
  %v2418 = vunpack.c.h.b16 %v2086
  %v2419 = vunpack.c.l.b16 %v2087
  %v2420 = vunpack.c.h.b16 %v2087
  %v2421 = vunpack.c.l.b16 %v2088
  %v2422 = vunpack.c.h.b16 %v2088
  %v2423 = vunpack.c.l.b16 %v2089
  %v2424 = vunpack.c.h.b16 %v2089
  %v2425 = vunpack.c.l.b16 %v2090
  %v2426 = vunpack.c.h.b16 %v2090
  %v2427 = vunpack.c.l.b16 %v2091
  %v2428 = vunpack.c.h.b16 %v2091
  %v2429 = vunpack.c.l.b16 %v2092
  %v2430 = vunpack.c.h.b16 %v2092
  %v2431 = vunpack.c.l.b16 %v2093
  %v2432 = vunpack.c.h.b16 %v2093
  %v2433 = vunpack.c.l.b16 %v2094
  %v2434 = vunpack.c.h.b16 %v2094
  %v2435 = vunpack.c.l.b16 %v2095
  %v2436 = vunpack.c.h.b16 %v2095
  %v2437 = vunpack.c.l.b16 %v2096
  %v2438 = vunpack.c.h.b16 %v2096
  %v2439 = vunpack.c.l.b16 %v2097
  %v2440 = vunpack.c.h.b16 %v2097
  %v2441 = vunpack.c.l.b16 %v2098
  %v2442 = vunpack.c.h.b16 %v2098
  %v2443 = vunpack.c.l.b16 %v2099
  %v2444 = vunpack.c.h.b16 %v2099
  %v2445 = vunpack.c.l.b16 %v2100
  %v2446 = vunpack.c.h.b16 %v2100
  %v2447 = vunpack.c.l.b16 %v2101
  %v2448 = vunpack.c.h.b16 %v2101
  %v2449 = vunpack.c.l.b16 %v2102
  %v2450 = vunpack.c.h.b16 %v2102
  %v2451 = vunpack.c.l.b16 %v2103
  %v2452 = vunpack.c.h.b16 %v2103
  %v2453 = vunpack.c.l.b16 %v2104
  %v2454 = vunpack.c.h.b16 %v2104
  %v2455 = vunpack.c.l.b16 %v2105
  %v2456 = vunpack.c.h.b16 %v2105
  %v2457 = vunpack.c.l.b16 %v2106
  %v2458 = vunpack.c.h.b16 %v2106
  %v2459 = vunpack.c.l.b16 %v2107
  %v2460 = vunpack.c.h.b16 %v2107
  %v2461 = vunpack.c.l.b16 %v2108
  %v2462 = vunpack.c.h.b16 %v2108
  %v2463 = vunpack.c.l.b16 %v2109
  %v2464 = vunpack.c.h.b16 %v2109
  %v2465 = vunpack.c.l.b16 %v2110
  %v2466 = vunpack.c.h.b16 %v2110
  %v2467 = vunpack.c.l.b16 %v2111
  %v2468 = vunpack.c.h.b16 %v2111
  %v2469 = vunpack.c.l.b16 %v2112
  %v2470 = vunpack.c.h.b16 %v2112
  %v2471 = vunpack.c.l.b16 %v2113
  %v2472 = vunpack.c.h.b16 %v2113
  %v2473 = vunpack.c.l.b16 %v2114
  %v2474 = vunpack.c.h.b16 %v2114
  %v2475 = vunpack.c.l.b16 %v2115
  %v2476 = vunpack.c.h.b16 %v2115
  %v2477 = vunpack.c.l.b16 %v2116
  %v2478 = vunpack.c.h.b16 %v2116
  %v2479 = vunpack.c.l.b16 %v2117
  %v2480 = vunpack.c.h.b16 %v2117
  %v2481 = vunpack.c.l.b16 %v2118
  %v2482 = vunpack.c.h.b16 %v2118
  %v2483 = vunpack.c.l.b16 %v2119
  %v2484 = vunpack.c.h.b16 %v2119
  %v2485 = vunpack.c.l.b16 %v2120
  %v2486 = vunpack.c.h.b16 %v2120
  %v2487 = vunpack.c.l.b16 %v2121
  %v2488 = vunpack.c.h.b16 %v2121
  %v2489 = vunpack.c.l.b16 %v2122
  %v2490 = vunpack.c.h.b16 %v2122
  %v2491 = vunpack.c.l.b16 %v2123
  %v2492 = vunpack.c.h.b16 %v2123
  %v2493 = vunpack.c.l.b16 %v2124
  %v2494 = vunpack.c.h.b16 %v2124
  %v2495 = vunpack.c.l.b16 %v2125
  %v2496 = vunpack.c.h.b16 %v2125
  %v2497 = vunpack.c.l.b16 %v2126
  %v2498 = vunpack.c.h.b16 %v2126
  %v2499 = vunpack.c.l.b16 %v2127
  %v2500 = vunpack.c.h.b16 %v2127
  %v2501 = vunpack.c.l.b16 %v2128
  %v2502 = vunpack.c.h.b16 %v2128
  %v2503 = vunpack.c.l.b16 %v2129
  %v2504 = vunpack.c.h.b16 %v2129
  %v2505 = vunpack.c.l.b16 %v2130
  %v2506 = vunpack.c.h.b16 %v2130
  %v2507 = vunpack.c.l.b16 %v2131
  %v2508 = vunpack.c.h.b16 %v2131
  %v2509 = vunpack.c.l.b16 %v2132
  %v2510 = vunpack.c.h.b16 %v2132
  %v2511 = vunpack.c.l.b16 %v2133
  %v2512 = vunpack.c.h.b16 %v2133
  %v2513 = vunpack.c.l.b16 %v2134
  %v2514 = vunpack.c.h.b16 %v2134
  %v2515 = vunpack.c.l.b16 %v2135
  %v2516 = vunpack.c.h.b16 %v2135
  %v2517 = vunpack.c.l.b16 %v2136
  %v2518 = vunpack.c.h.b16 %v2136
  %v2519 = vunpack.c.l.b16 %v2137
  %v2520 = vunpack.c.h.b16 %v2137
  %v2521 = vunpack.c.l.b16 %v2138
  %v2522 = vunpack.c.h.b16 %v2138
  %v2523 = vunpack.c.l.b16 %v2139
  %v2524 = vunpack.c.h.b16 %v2139
  %v2525 = vunpack.c.l.b16 %v2140
  %v2526 = vunpack.c.h.b16 %v2140
  %v2527 = vunpack.c.l.b16 %v2141
  %v2528 = vunpack.c.h.b16 %v2141
  %v2529 = vunpack.c.l.b16 %v2142
  %v2530 = vunpack.c.h.b16 %v2142
  %v2531 = vunpack.c.l.b16 %v2143
  %v2532 = vunpack.c.h.b16 %v2143
  %v2533 = vunpack.c.l.b16 %v2144
  %v2534 = vunpack.c.h.b16 %v2144
  %v2535 = vunpack.c.l.b16 %v2145
  %v2536 = vunpack.c.h.b16 %v2145
  %v2537 = vunpack.c.l.b16 %v2146
  %v2538 = vunpack.c.h.b16 %v2146
  %v2539 = vpack.c.b16 %v2287, %v2283
  %v2540 = vpack.c.b16 %v2288, %v2284
  %v2541 = vpack.c.b16 %v2289, %v2285
  %v2542 = vpack.c.b16 %v2290, %v2286
  %v2543 = vpack.c.b16 %v2295, %v2291
  %v2544 = vpack.c.b16 %v2296, %v2292
  %v2545 = vpack.c.b16 %v2297, %v2293
  %v2546 = vpack.c.b16 %v2298, %v2294
  %v2547 = vpack.c.b16 %v2303, %v2299
  %v2548 = vpack.c.b16 %v2304, %v2300
  %v2549 = vpack.c.b16 %v2305, %v2301
  %v2550 = vpack.c.b16 %v2306, %v2302
  %v2551 = vpack.c.b16 %v2311, %v2307
  %v2552 = vpack.c.b16 %v2312, %v2308
  %v2553 = vpack.c.b16 %v2313, %v2309
  %v2554 = vpack.c.b16 %v2314, %v2310
  %v2555 = vpack.c.b16 %v2319, %v2315
  %v2556 = vpack.c.b16 %v2320, %v2316
  %v2557 = vpack.c.b16 %v2321, %v2317
  %v2558 = vpack.c.b16 %v2322, %v2318
  %v2559 = vpack.c.b16 %v2327, %v2323
  %v2560 = vpack.c.b16 %v2328, %v2324
  %v2561 = vpack.c.b16 %v2329, %v2325
  %v2562 = vpack.c.b16 %v2330, %v2326
  %v2563 = vpack.c.b16 %v2335, %v2331
  %v2564 = vpack.c.b16 %v2336, %v2332
  %v2565 = vpack.c.b16 %v2337, %v2333
  %v2566 = vpack.c.b16 %v2338, %v2334
  %v2567 = vpack.c.b16 %v2343, %v2339
  %v2568 = vpack.c.b16 %v2344, %v2340
  %v2569 = vpack.c.b16 %v2345, %v2341
  %v2570 = vpack.c.b16 %v2346, %v2342
  %v2571 = vpack.c.b16 %v2351, %v2347
  %v2572 = vpack.c.b16 %v2352, %v2348
  %v2573 = vpack.c.b16 %v2353, %v2349
  %v2574 = vpack.c.b16 %v2354, %v2350
  %v2575 = vpack.c.b16 %v2359, %v2355
  %v2576 = vpack.c.b16 %v2360, %v2356
  %v2577 = vpack.c.b16 %v2361, %v2357
  %v2578 = vpack.c.b16 %v2362, %v2358
  %v2579 = vpack.c.b16 %v2367, %v2363
  %v2580 = vpack.c.b16 %v2368, %v2364
  %v2581 = vpack.c.b16 %v2369, %v2365
  %v2582 = vpack.c.b16 %v2370, %v2366
  %v2583 = vpack.c.b16 %v2375, %v2371
  %v2584 = vpack.c.b16 %v2376, %v2372
  %v2585 = vpack.c.b16 %v2377, %v2373
  %v2586 = vpack.c.b16 %v2378, %v2374
  %v2587 = vpack.c.b16 %v2383, %v2379
  %v2588 = vpack.c.b16 %v2384, %v2380
  %v2589 = vpack.c.b16 %v2385, %v2381
  %v2590 = vpack.c.b16 %v2386, %v2382
  %v2591 = vpack.c.b16 %v2391, %v2387
  %v2592 = vpack.c.b16 %v2392, %v2388
  %v2593 = vpack.c.b16 %v2393, %v2389
  %v2594 = vpack.c.b16 %v2394, %v2390
  %v2595 = vpack.c.b16 %v2399, %v2395
  %v2596 = vpack.c.b16 %v2400, %v2396
  %v2597 = vpack.c.b16 %v2401, %v2397
  %v2598 = vpack.c.b16 %v2402, %v2398
  %v2599 = vpack.c.b16 %v2407, %v2403
  %v2600 = vpack.c.b16 %v2408, %v2404
  %v2601 = vpack.c.b16 %v2409, %v2405
  %v2602 = vpack.c.b16 %v2410, %v2406
  %v2603 = vpack.c.b16 %v2415, %v2411
  %v2604 = vpack.c.b16 %v2416, %v2412
  %v2605 = vpack.c.b16 %v2417, %v2413
  %v2606 = vpack.c.b16 %v2418, %v2414
  %v2607 = vpack.c.b16 %v2423, %v2419
  %v2608 = vpack.c.b16 %v2424, %v2420
  %v2609 = vpack.c.b16 %v2425, %v2421
  %v2610 = vpack.c.b16 %v2426, %v2422
  %v2611 = vpack.c.b16 %v2431, %v2427
  %v2612 = vpack.c.b16 %v2432, %v2428
  %v2613 = vpack.c.b16 %v2433, %v2429
  %v2614 = vpack.c.b16 %v2434, %v2430
  %v2615 = vpack.c.b16 %v2439, %v2435
  %v2616 = vpack.c.b16 %v2440, %v2436
  %v2617 = vpack.c.b16 %v2441, %v2437
  %v2618 = vpack.c.b16 %v2442, %v2438
  %v2619 = vpack.c.b16 %v2447, %v2443
  %v2620 = vpack.c.b16 %v2448, %v2444
  %v2621 = vpack.c.b16 %v2449, %v2445
  %v2622 = vpack.c.b16 %v2450, %v2446
  %v2623 = vpack.c.b16 %v2455, %v2451
  %v2624 = vpack.c.b16 %v2456, %v2452
  %v2625 = vpack.c.b16 %v2457, %v2453
  %v2626 = vpack.c.b16 %v2458, %v2454
  %v2627 = vpack.c.b16 %v2463, %v2459
  %v2628 = vpack.c.b16 %v2464, %v2460
  %v2629 = vpack.c.b16 %v2465, %v2461
  %v2630 = vpack.c.b16 %v2466, %v2462
  %v2631 = vpack.c.b16 %v2471, %v2467
  %v2632 = vpack.c.b16 %v2472, %v2468
  %v2633 = vpack.c.b16 %v2473, %v2469
  %v2634 = vpack.c.b16 %v2474, %v2470
  %v2635 = vpack.c.b16 %v2479, %v2475
  %v2636 = vpack.c.b16 %v2480, %v2476
  %v2637 = vpack.c.b16 %v2481, %v2477
  %v2638 = vpack.c.b16 %v2482, %v2478
  %v2639 = vpack.c.b16 %v2487, %v2483
  %v2640 = vpack.c.b16 %v2488, %v2484
  %v2641 = vpack.c.b16 %v2489, %v2485
  %v2642 = vpack.c.b16 %v2490, %v2486
  %v2643 = vpack.c.b16 %v2495, %v2491
  %v2644 = vpack.c.b16 %v2496, %v2492
  %v2645 = vpack.c.b16 %v2497, %v2493
  %v2646 = vpack.c.b16 %v2498, %v2494
  %v2647 = vpack.c.b16 %v2503, %v2499
  %v2648 = vpack.c.b16 %v2504, %v2500
  %v2649 = vpack.c.b16 %v2505, %v2501
  %v2650 = vpack.c.b16 %v2506, %v2502
  %v2651 = vpack.c.b16 %v2511, %v2507
  %v2652 = vpack.c.b16 %v2512, %v2508
  %v2653 = vpack.c.b16 %v2513, %v2509
  %v2654 = vpack.c.b16 %v2514, %v2510
  %v2655 = vpack.c.b16 %v2519, %v2515
  %v2656 = vpack.c.b16 %v2520, %v2516
  %v2657 = vpack.c.b16 %v2521, %v2517
  %v2658 = vpack.c.b16 %v2522, %v2518
  %v2659 = vpack.c.b16 %v2527, %v2523
  %v2660 = vpack.c.b16 %v2528, %v2524
  %v2661 = vpack.c.b16 %v2529, %v2525
  %v2662 = vpack.c.b16 %v2530, %v2526
  %v2663 = vpack.c.b16 %v2535, %v2531
  %v2664 = vpack.c.b16 %v2536, %v2532
  %v2665 = vpack.c.b16 %v2537, %v2533
  %v2666 = vpack.c.b16 %v2538, %v2534
  %2795 = vmatprep.subr.bf16.mxu0 %v2568
  %2796 = vmatpush1.bf16.msra.mxu0 %v2567
  %2797 = vmatprep.subr.bf16.mxu0 %v2564
  %2798 = vmatpush1.bf16.msra.mxu0 %v2563
  %2799 = vmatprep.subr.bf16.mxu0 %v2560
  %2800 = vmatpush1.bf16.msra.mxu0 %v2559
  %2801 = vmatprep.subr.bf16.mxu0 %v2556
  %2802 = vmatpush1.bf16.msra.mxu0 %v2555
  %2803 = vmatprep.subr.bf16.mxu0 %v2552
  %2804 = vmatpush1.bf16.msra.mxu0 %v2551
  %2805 = vmatprep.subr.bf16.mxu0 %v2548
  %2806 = vmatpush1.bf16.msra.mxu0 %v2547
  %2807 = vmatprep.subr.bf16.mxu0 %v2544
  %2808 = vmatpush1.bf16.msra.mxu0 %v2543
  %2809 = vmatprep.subr.bf16.mxu0 %v2540
  %2810 = vmatpush1.bf16.msra.mxu0 %v2539
  %2811 = vmatprep.subr.bf16.mxu0 %v2600
  %2812 = vmatpush2.bf16.msra.mxu0 %v2599
  %2813 = vmatprep.subr.bf16.mxu0 %v2596
  %2814 = vmatpush2.bf16.msra.mxu0 %v2595
  %2815 = vmatprep.subr.bf16.mxu0 %v2592
  %2816 = vmatpush2.bf16.msra.mxu0 %v2591
  %2817 = vmatprep.subr.bf16.mxu0 %v2588
  %2818 = vmatpush2.bf16.msra.mxu0 %v2587
  %2819 = vmatprep.subr.bf16.mxu0 %v2584
  %2820 = vmatpush2.bf16.msra.mxu0 %v2583
  %2821 = vmatprep.subr.bf16.mxu0 %v2580
  %2822 = vmatpush2.bf16.msra.mxu0 %v2579
  %2823 = vmatprep.subr.bf16.mxu0 %v2576
  %2824 = vmatpush2.bf16.msra.mxu0 %v2575
  %2825 = vmatprep.subr.bf16.mxu0 %v2572
  %2826 = vmatpush2.bf16.msra.mxu0 %v2571
  %2827 = vmatprep.mubr.bf16.mxu0 %v2148
  %2828 = vmatmul.mubr.bf16.gmra.mxu0 %v2147
  %v2829 = vpop.f32.mrf.mxu0
  %v2830 = vadd.f32 0.0, %v2829
  %v2831 = vpop.f32.mrf.mxu0
  %v2832 = vadd.f32 0.0, %v2831
  %v2833 = vpop.f32.mrf.mxu0
  %v2834 = vadd.f32 0.0, %v2833
  %v2835 = vpop.f32.mrf.mxu0
  %v2836 = vadd.f32 0.0, %v2835
  %2837 = vmatprep.mubr.bf16.mxu0 %v2152
  %2838 = vmatmul.mubr.bf16.gmra.mxu0 %v2151
  %v2839 = vpop.f32.mrf.mxu0
  %v2840 = vadd.f32 0.0, %v2839
  %v2841 = vpop.f32.mrf.mxu0
  %v2842 = vadd.f32 0.0, %v2841
  %v2843 = vpop.f32.mrf.mxu0
  %v2844 = vadd.f32 0.0, %v2843
  %v2845 = vpop.f32.mrf.mxu0
  %v2846 = vadd.f32 0.0, %v2845
  %2847 = vdwg.mxu0
  %2848 = vmatprep.subr.bf16.mxu0 %v2632
  %2849 = vmatpush1.bf16.msra.mxu0 %v2631
  %2850 = vmatprep.subr.bf16.mxu0 %v2628
  %2851 = vmatpush1.bf16.msra.mxu0 %v2627
  %2852 = vmatprep.subr.bf16.mxu0 %v2624
  %2853 = vmatpush1.bf16.msra.mxu0 %v2623
  %2854 = vmatprep.subr.bf16.mxu0 %v2620
  %2855 = vmatpush1.bf16.msra.mxu0 %v2619
  %2856 = vmatprep.subr.bf16.mxu0 %v2616
  %2857 = vmatpush1.bf16.msra.mxu0 %v2615
  %2858 = vmatprep.subr.bf16.mxu0 %v2612
  %2859 = vmatpush1.bf16.msra.mxu0 %v2611
  %2860 = vmatprep.subr.bf16.mxu0 %v2608
  %2861 = vmatpush1.bf16.msra.mxu0 %v2607
  %2862 = vmatprep.subr.bf16.mxu0 %v2604
  %2863 = vmatpush1.bf16.msra.mxu0 %v2603
  %2864 = vmatprep.subr.bf16.mxu0 %v2664
  %2865 = vmatpush2.bf16.msra.mxu0 %v2663
  %2866 = vmatprep.subr.bf16.mxu0 %v2660
  %2867 = vmatpush2.bf16.msra.mxu0 %v2659
  %2868 = vmatprep.subr.bf16.mxu0 %v2656
  %2869 = vmatpush2.bf16.msra.mxu0 %v2655
  %2870 = vmatprep.subr.bf16.mxu0 %v2652
  %2871 = vmatpush2.bf16.msra.mxu0 %v2651
  %2872 = vmatprep.subr.bf16.mxu0 %v2648
  %2873 = vmatpush2.bf16.msra.mxu0 %v2647
  %2874 = vmatprep.subr.bf16.mxu0 %v2644
  %2875 = vmatpush2.bf16.msra.mxu0 %v2643
  %2876 = vmatprep.subr.bf16.mxu0 %v2640
  %2877 = vmatpush2.bf16.msra.mxu0 %v2639
  %2878 = vmatprep.subr.bf16.mxu0 %v2636
  %2879 = vmatpush2.bf16.msra.mxu0 %v2635
  %2880 = vmatprep.mubr.bf16.mxu0 %v2150
  %2881 = vmatmul.mubr.bf16.gmra.mxu0 %v2149
  %v2882 = vpop.f32.mrf.mxu0
  %v2883 = vadd.f32 %v2830, %v2882
  %v2884 = vpop.f32.mrf.mxu0
  %v2885 = vadd.f32 %v2832, %v2884
  %v2886 = vpop.f32.mrf.mxu0
  %v2887 = vadd.f32 %v2834, %v2886
  %v2888 = vpop.f32.mrf.mxu0
  %v2889 = vadd.f32 %v2836, %v2888
  %2890 = vmatprep.mubr.bf16.mxu0 %v2154
  %2891 = vmatmul.mubr.bf16.gmra.mxu0 %v2153
  %v2892 = vpop.f32.mrf.mxu0
  %v2893 = vadd.f32 %v2840, %v2892
  %v2894 = vpop.f32.mrf.mxu0
  %v2895 = vadd.f32 %v2842, %v2894
  %v2896 = vpop.f32.mrf.mxu0
  %v2897 = vadd.f32 %v2844, %v2896
  %v2898 = vpop.f32.mrf.mxu0
  %v2899 = vadd.f32 %v2846, %v2898
  %2900 = vdwg.mxu0
  %2901 = vmatprep.subr.bf16.mxu0 %v2570
  %2902 = vmatpush1.bf16.msra.mxu0 %v2569
  %2903 = vmatprep.subr.bf16.mxu0 %v2566
  %2904 = vmatpush1.bf16.msra.mxu0 %v2565
  %2905 = vmatprep.subr.bf16.mxu0 %v2562
  %2906 = vmatpush1.bf16.msra.mxu0 %v2561
  %2907 = vmatprep.subr.bf16.mxu0 %v2558
  %2908 = vmatpush1.bf16.msra.mxu0 %v2557
  %2909 = vmatprep.subr.bf16.mxu0 %v2554
  %2910 = vmatpush1.bf16.msra.mxu0 %v2553
  %2911 = vmatprep.subr.bf16.mxu0 %v2550
  %2912 = vmatpush1.bf16.msra.mxu0 %v2549
  %2913 = vmatprep.subr.bf16.mxu0 %v2546
  %2914 = vmatpush1.bf16.msra.mxu0 %v2545
  %2915 = vmatprep.subr.bf16.mxu0 %v2542
  %2916 = vmatpush1.bf16.msra.mxu0 %v2541
  %2917 = vmatprep.subr.bf16.mxu0 %v2602
  %2918 = vmatpush2.bf16.msra.mxu0 %v2601
  %2919 = vmatprep.subr.bf16.mxu0 %v2598
  %2920 = vmatpush2.bf16.msra.mxu0 %v2597
  %2921 = vmatprep.subr.bf16.mxu0 %v2594
  %2922 = vmatpush2.bf16.msra.mxu0 %v2593
  %2923 = vmatprep.subr.bf16.mxu0 %v2590
  %2924 = vmatpush2.bf16.msra.mxu0 %v2589
  %2925 = vmatprep.subr.bf16.mxu0 %v2586
  %2926 = vmatpush2.bf16.msra.mxu0 %v2585
  %2927 = vmatprep.subr.bf16.mxu0 %v2582
  %2928 = vmatpush2.bf16.msra.mxu0 %v2581
  %2929 = vmatprep.subr.bf16.mxu0 %v2578
  %2930 = vmatpush2.bf16.msra.mxu0 %v2577
  %2931 = vmatprep.subr.bf16.mxu0 %v2574
  %2932 = vmatpush2.bf16.msra.mxu0 %v2573
  %2933 = vmatprep.mubr.bf16.mxu0 %v2148
  %2934 = vmatmul.mubr.bf16.gmra.mxu0 %v2147
  %v2935 = vpop.f32.mrf.mxu0
  %v2936 = vadd.f32 0.0, %v2935
  %v2937 = vpop.f32.mrf.mxu0
  %v2938 = vadd.f32 0.0, %v2937
  %v2939 = vpop.f32.mrf.mxu0
  %v2940 = vadd.f32 0.0, %v2939
  %v2941 = vpop.f32.mrf.mxu0
  %v2942 = vadd.f32 0.0, %v2941
  %2943 = vmatprep.mubr.bf16.mxu0 %v2152
  %2944 = vmatmul.mubr.bf16.gmra.mxu0 %v2151
  %v2945 = vpop.f32.mrf.mxu0
  %v2946 = vadd.f32 0.0, %v2945
  %v2947 = vpop.f32.mrf.mxu0
  %v2948 = vadd.f32 0.0, %v2947
  %v2949 = vpop.f32.mrf.mxu0
  %v2950 = vadd.f32 0.0, %v2949
  %v2951 = vpop.f32.mrf.mxu0
  %v2952 = vadd.f32 0.0, %v2951
  %2953 = vdwg.mxu0
  %2954 = vmatprep.subr.bf16.mxu0 %v2634
  %2955 = vmatpush1.bf16.msra.mxu0 %v2633
  %2956 = vmatprep.subr.bf16.mxu0 %v2630
  %2957 = vmatpush1.bf16.msra.mxu0 %v2629
  %2958 = vmatprep.subr.bf16.mxu0 %v2626
  %2959 = vmatpush1.bf16.msra.mxu0 %v2625
  %2960 = vmatprep.subr.bf16.mxu0 %v2622
  %2961 = vmatpush1.bf16.msra.mxu0 %v2621
  %2962 = vmatprep.subr.bf16.mxu0 %v2618
  %2963 = vmatpush1.bf16.msra.mxu0 %v2617
  %2964 = vmatprep.subr.bf16.mxu0 %v2614
  %2965 = vmatpush1.bf16.msra.mxu0 %v2613
  %2966 = vmatprep.subr.bf16.mxu0 %v2610
  %2967 = vmatpush1.bf16.msra.mxu0 %v2609
  %2968 = vmatprep.subr.bf16.mxu0 %v2606
  %2969 = vmatpush1.bf16.msra.mxu0 %v2605
  %2970 = vmatprep.subr.bf16.mxu0 %v2666
  %2971 = vmatpush2.bf16.msra.mxu0 %v2665
  %2972 = vmatprep.subr.bf16.mxu0 %v2662
  %2973 = vmatpush2.bf16.msra.mxu0 %v2661
  %2974 = vmatprep.subr.bf16.mxu0 %v2658
  %2975 = vmatpush2.bf16.msra.mxu0 %v2657
  %2976 = vmatprep.subr.bf16.mxu0 %v2654
  %2977 = vmatpush2.bf16.msra.mxu0 %v2653
  %2978 = vmatprep.subr.bf16.mxu0 %v2650
  %2979 = vmatpush2.bf16.msra.mxu0 %v2649
  %2980 = vmatprep.subr.bf16.mxu0 %v2646
  %2981 = vmatpush2.bf16.msra.mxu0 %v2645
  %2982 = vmatprep.subr.bf16.mxu0 %v2642
  %2983 = vmatpush2.bf16.msra.mxu0 %v2641
  %2984 = vmatprep.subr.bf16.mxu0 %v2638
  %2985 = vmatpush2.bf16.msra.mxu0 %v2637
  %2986 = vmatprep.mubr.bf16.mxu0 %v2150
  %2987 = vmatmul.mubr.bf16.gmra.mxu0 %v2149
  %v2988 = vpop.f32.mrf.mxu0
  %v2989 = vadd.f32 %v2936, %v2988
  %v2990 = vpop.f32.mrf.mxu0
  %v2991 = vadd.f32 %v2938, %v2990
  %v2992 = vpop.f32.mrf.mxu0
  %v2993 = vadd.f32 %v2940, %v2992
  %v2994 = vpop.f32.mrf.mxu0
  %v2995 = vadd.f32 %v2942, %v2994
  %2996 = vmatprep.mubr.bf16.mxu0 %v2154
  %2997 = vmatmul.mubr.bf16.gmra.mxu0 %v2153
  %v2998 = vpop.f32.mrf.mxu0
  %v2999 = vadd.f32 %v2946, %v2998
  %v3000 = vpop.f32.mrf.mxu0
  %v3001 = vadd.f32 %v2948, %v3000
  %v3002 = vpop.f32.mrf.mxu0
  %v3003 = vadd.f32 %v2950, %v3002
  %v3004 = vpop.f32.mrf.mxu0
  %v3005 = vadd.f32 %v2952, %v3004
  %3006 = vdwg.mxu0
  %v3007 = vld [vmem:[%s3] sm:$0xf]
  %v3008 = vld [vmem:[%s3 + $0x4] sm:$0xf]
  %v3009 = vld [vmem:[%s3 + $0x8] sm:$0xf]
  %v3010 = vld [vmem:[%s3 + $0xc] sm:$0xf]
  %v3011 = vpack.c.bf16 %v2887, %v2883
  %v3012 = vpack.c.bf16 %v2889, %v2885
  %v3013 = vpack.c.bf16 %v2993, %v2989
  %v3014 = vpack.c.bf16 %v2995, %v2991
  %v3015 = vpack.c.bf16 %v2897, %v2893
  %v3016 = vpack.c.bf16 %v2899, %v2895
  %v3017 = vpack.c.bf16 %v3003, %v2999
  %v3018 = vpack.c.bf16 %v3005, %v3001
  %v3019 = vld [vmem:[%s6] sm:$0xff]
  %v3020 = vld [vmem:[%s6 + $0x8] sm:$0xff]
  %v3021 = vld [vmem:[%s6 + $0x10] sm:$0xff]
  %v3022 = vld [vmem:[%s6 + $0x18] sm:$0xff]
  %v3023 = vld [vmem:[%s6 + $0x20] sm:$0xff]
  %v3024 = vld [vmem:[%s6 + $0x28] sm:$0xff]
  %v3025 = vld [vmem:[%s6 + $0x30] sm:$0xff]
  %v3026 = vld [vmem:[%s6 + $0x38] sm:$0xff]
  %v3027 = vld [vmem:[%s6 + $0x40] sm:$0xff]
  %v3028 = vld [vmem:[%s6 + $0x48] sm:$0xff]
  %v3029 = vld [vmem:[%s6 + $0x50] sm:$0xff]
  %v3030 = vld [vmem:[%s6 + $0x58] sm:$0xff]
  %v3031 = vld [vmem:[%s6 + $0x60] sm:$0xff]
  %v3032 = vld [vmem:[%s6 + $0x68] sm:$0xff]
  %v3033 = vld [vmem:[%s6 + $0x70] sm:$0xff]
  %v3034 = vld [vmem:[%s6 + $0x78] sm:$0xff]
  %v3039 = vunpack.c.l.b16 %v3007
  %v3040 = vunpack.c.l.b16 %v3008
  %v3041 = vunpack.c.l.b16 %v3009
  %v3042 = vunpack.c.l.b16 %v3010
  %v3043 = vpack.c.b16 %v3040, %v3039
  %v3044 = vpack.c.b16 %v3042, %v3041
  %v3046 = vsel %vm1178, %v3043, 0
  %v3049 = vsel %vm1178, %v3044, 0
  %3051 = vmatprep.subr.bf16.mxu0 0
  %3052 = vmatpush1.bf16.msra.mxu0 0
  %3053 = vmatprep.subr.bf16.mxu0 0
  %3054 = vmatpush1.bf16.msra.mxu0 0
  %3055 = vmatprep.subr.bf16.mxu0 0
  %3056 = vmatpush1.bf16.msra.mxu0 0
  %3057 = vmatprep.subr.bf16.mxu0 0
  %3058 = vmatpush1.bf16.msra.mxu0 0
  %3059 = vmatprep.subr.bf16.mxu0 0
  %3060 = vmatpush1.bf16.msra.mxu0 0
  %3061 = vmatprep.subr.bf16.mxu0 0
  %3062 = vmatpush1.bf16.msra.mxu0 0
  %3063 = vmatprep.subr.bf16.mxu0 %v3016
  %3064 = vmatpush1.bf16.msra.mxu0 %v3015
  %3065 = vmatprep.subr.bf16.mxu0 %v3012
  %3066 = vmatpush1.bf16.msra.mxu0 %v3011
  %3067 = vmatprep.subr.bf16.mxu0 0
  %3068 = vmatpush2.bf16.msra.mxu0 0
  %3069 = vmatprep.subr.bf16.mxu0 0
  %3070 = vmatpush2.bf16.msra.mxu0 0
  %3071 = vmatprep.subr.bf16.mxu0 0
  %3072 = vmatpush2.bf16.msra.mxu0 0
  %3073 = vmatprep.subr.bf16.mxu0 0
  %3074 = vmatpush2.bf16.msra.mxu0 0
  %3075 = vmatprep.subr.bf16.mxu0 0
  %3076 = vmatpush2.bf16.msra.mxu0 0
  %3077 = vmatprep.subr.bf16.mxu0 0
  %3078 = vmatpush2.bf16.msra.mxu0 0
  %3079 = vmatprep.subr.bf16.mxu0 0
  %3080 = vmatpush2.bf16.msra.mxu0 0
  %3081 = vmatprep.subr.bf16.mxu0 0
  %3082 = vmatpush2.bf16.msra.mxu0 0
  %3083 = vmatprep.mubr.bf16.mxu0 0
  %3084 = vmatmul.mubr.bf16.gmra.mxu0 %v3046
  %v3085 = vpop.f32.mrf.mxu0
  %v3086 = vadd.f32 %v3019, %v3085
  %v3087 = vpop.f32.mrf.mxu0
  %v3088 = vadd.f32 %v3020, %v3087
  %v3089 = vpop.f32.mrf.mxu0
  %v3090 = vadd.f32 %v3023, %v3089
  %v3091 = vpop.f32.mrf.mxu0
  %v3092 = vadd.f32 %v3024, %v3091
  %3093 = vmatprep.mubr.bf16.mxu0 0
  %3094 = vmatmul.mubr.bf16.gmra.mxu0 %v3049
  %v3095 = vpop.f32.mrf.mxu0
  %v3096 = vadd.f32 %v3027, %v3095
  %v3097 = vpop.f32.mrf.mxu0
  %v3098 = vadd.f32 %v3028, %v3097
  %v3099 = vpop.f32.mrf.mxu0
  %v3100 = vadd.f32 %v3031, %v3099
  %v3101 = vpop.f32.mrf.mxu0
  %v3102 = vadd.f32 %v3032, %v3101
  %3103 = vdwg.mxu0
  %3104 = vmatprep.subr.bf16.mxu0 0
  %3105 = vmatpush1.bf16.msra.mxu0 0
  %3106 = vmatprep.subr.bf16.mxu0 0
  %3107 = vmatpush1.bf16.msra.mxu0 0
  %3108 = vmatprep.subr.bf16.mxu0 0
  %3109 = vmatpush1.bf16.msra.mxu0 0
  %3110 = vmatprep.subr.bf16.mxu0 0
  %3111 = vmatpush1.bf16.msra.mxu0 0
  %3112 = vmatprep.subr.bf16.mxu0 0
  %3113 = vmatpush1.bf16.msra.mxu0 0
  %3114 = vmatprep.subr.bf16.mxu0 0
  %3115 = vmatpush1.bf16.msra.mxu0 0
  %3116 = vmatprep.subr.bf16.mxu0 %v3018
  %3117 = vmatpush1.bf16.msra.mxu0 %v3017
  %3118 = vmatprep.subr.bf16.mxu0 %v3014
  %3119 = vmatpush1.bf16.msra.mxu0 %v3013
  %3120 = vmatprep.subr.bf16.mxu0 0
  %3121 = vmatpush2.bf16.msra.mxu0 0
  %3122 = vmatprep.subr.bf16.mxu0 0
  %3123 = vmatpush2.bf16.msra.mxu0 0
  %3124 = vmatprep.subr.bf16.mxu0 0
  %3125 = vmatpush2.bf16.msra.mxu0 0
  %3126 = vmatprep.subr.bf16.mxu0 0
  %3127 = vmatpush2.bf16.msra.mxu0 0
  %3128 = vmatprep.subr.bf16.mxu0 0
  %3129 = vmatpush2.bf16.msra.mxu0 0
  %3130 = vmatprep.subr.bf16.mxu0 0
  %3131 = vmatpush2.bf16.msra.mxu0 0
  %3132 = vmatprep.subr.bf16.mxu0 0
  %3133 = vmatpush2.bf16.msra.mxu0 0
  %3134 = vmatprep.subr.bf16.mxu0 0
  %3135 = vmatpush2.bf16.msra.mxu0 0
  %3136 = vmatprep.mubr.bf16.mxu0 0
  %3137 = vmatmul.mubr.bf16.gmra.mxu0 %v3046
  %v3138 = vpop.f32.mrf.mxu0
  %v3139 = vadd.f32 %v3021, %v3138
  %v3140 = vpop.f32.mrf.mxu0
  %v3141 = vadd.f32 %v3022, %v3140
  %v3142 = vpop.f32.mrf.mxu0
  %v3143 = vadd.f32 %v3025, %v3142
  %v3144 = vpop.f32.mrf.mxu0
  %v3145 = vadd.f32 %v3026, %v3144
  %3146 = vmatprep.mubr.bf16.mxu0 0
  %3147 = vmatmul.mubr.bf16.gmra.mxu0 %v3049
  %v3148 = vpop.f32.mrf.mxu0
  %v3149 = vadd.f32 %v3029, %v3148
  %v3150 = vpop.f32.mrf.mxu0
  %v3151 = vadd.f32 %v3030, %v3150
  %v3152 = vpop.f32.mrf.mxu0
  %v3153 = vadd.f32 %v3033, %v3152
  %v3154 = vpop.f32.mrf.mxu0
  %v3155 = vadd.f32 %v3034, %v3154
  %3156 = vdwg.mxu0
  %vm3157 = vcmp.gt.f32.partialorder %v3086, 0.0
  %vm3158 = vcmp.gt.f32.partialorder %v3088, 0.0
  %vm3159 = vcmp.gt.f32.partialorder %v3139, 0.0
  %vm3160 = vcmp.gt.f32.partialorder %v3141, 0.0
  %vm3161 = vcmp.gt.f32.partialorder %v3090, 0.0
  %vm3162 = vcmp.gt.f32.partialorder %v3092, 0.0
  %vm3163 = vcmp.gt.f32.partialorder %v3143, 0.0
  %vm3164 = vcmp.gt.f32.partialorder %v3145, 0.0
  %vm3165 = vcmp.gt.f32.partialorder %v3096, 0.0
  %vm3166 = vcmp.gt.f32.partialorder %v3098, 0.0
  %vm3167 = vcmp.gt.f32.partialorder %v3149, 0.0
  %vm3168 = vcmp.gt.f32.partialorder %v3151, 0.0
  %vm3169 = vcmp.gt.f32.partialorder %v3100, 0.0
  %vm3170 = vcmp.gt.f32.partialorder %v3102, 0.0
  %vm3171 = vcmp.gt.f32.partialorder %v3153, 0.0
  %vm3172 = vcmp.gt.f32.partialorder %v3155, 0.0
  %v3173 = vmul.f32 %v3086, 0.01
  %v3174 = vmul.f32 %v3088, 0.01
  %v3175 = vmul.f32 %v3139, 0.01
  %v3176 = vmul.f32 %v3141, 0.01
  %v3177 = vmul.f32 %v3090, 0.01
  %v3178 = vmul.f32 %v3092, 0.01
  %v3179 = vmul.f32 %v3143, 0.01
  %v3180 = vmul.f32 %v3145, 0.01
  %v3181 = vmul.f32 %v3096, 0.01
  %v3182 = vmul.f32 %v3098, 0.01
  %v3183 = vmul.f32 %v3149, 0.01
  %v3184 = vmul.f32 %v3151, 0.01
  %v3185 = vmul.f32 %v3100, 0.01
  %v3186 = vmul.f32 %v3102, 0.01
  %v3187 = vmul.f32 %v3153, 0.01
  %v3188 = vmul.f32 %v3155, 0.01
  %v3189 = vsel %vm3157, %v3086, %v3173
  %v3190 = vsel %vm3158, %v3088, %v3174
  %v3191 = vsel %vm3159, %v3139, %v3175
  %v3192 = vsel %vm3160, %v3141, %v3176
  %v3193 = vsel %vm3161, %v3090, %v3177
  %v3194 = vsel %vm3162, %v3092, %v3178
  %v3195 = vsel %vm3163, %v3143, %v3179
  %v3196 = vsel %vm3164, %v3145, %v3180
  %v3197 = vsel %vm3165, %v3096, %v3181
  %v3198 = vsel %vm3166, %v3098, %v3182
  %v3199 = vsel %vm3167, %v3149, %v3183
  %v3200 = vsel %vm3168, %v3151, %v3184
  %v3201 = vsel %vm3169, %v3100, %v3185
  %v3202 = vsel %vm3170, %v3102, %v3186
  %v3203 = vsel %vm3171, %v3153, %v3187
  %v3204 = vsel %vm3172, %v3155, %v3188
  %v3205 = vpack.c.bf16 %v3193, %v3189
  %v3206 = vpack.c.bf16 %v3194, %v3190
  %v3207 = vpack.c.bf16 %v3195, %v3191
  %v3208 = vpack.c.bf16 %v3196, %v3192
  %v3209 = vpack.c.bf16 %v3201, %v3197
  %v3210 = vpack.c.bf16 %v3202, %v3198
  %v3211 = vpack.c.bf16 %v3203, %v3199
  %v3212 = vpack.c.bf16 %v3204, %v3200
  %3213 = vmatprep.subr.bf16.mxu0 %v2568
  %3214 = vmatpush1.bf16.msra.mxu0 %v2567
  %3215 = vmatprep.subr.bf16.mxu0 %v2564
  %3216 = vmatpush1.bf16.msra.mxu0 %v2563
  %3217 = vmatprep.subr.bf16.mxu0 %v2560
  %3218 = vmatpush1.bf16.msra.mxu0 %v2559
  %3219 = vmatprep.subr.bf16.mxu0 %v2556
  %3220 = vmatpush1.bf16.msra.mxu0 %v2555
  %3221 = vmatprep.subr.bf16.mxu0 %v2552
  %3222 = vmatpush1.bf16.msra.mxu0 %v2551
  %3223 = vmatprep.subr.bf16.mxu0 %v2548
  %3224 = vmatpush1.bf16.msra.mxu0 %v2547
  %3225 = vmatprep.subr.bf16.mxu0 %v2544
  %3226 = vmatpush1.bf16.msra.mxu0 %v2543
  %3227 = vmatprep.subr.bf16.mxu0 %v2540
  %3228 = vmatpush1.bf16.msra.mxu0 %v2539
  %3229 = vmatprep.subr.bf16.mxu0 %v2600
  %3230 = vmatpush2.bf16.msra.mxu0 %v2599
  %3231 = vmatprep.subr.bf16.mxu0 %v2596
  %3232 = vmatpush2.bf16.msra.mxu0 %v2595
  %3233 = vmatprep.subr.bf16.mxu0 %v2592
  %3234 = vmatpush2.bf16.msra.mxu0 %v2591
  %3235 = vmatprep.subr.bf16.mxu0 %v2588
  %3236 = vmatpush2.bf16.msra.mxu0 %v2587
  %3237 = vmatprep.subr.bf16.mxu0 %v2584
  %3238 = vmatpush2.bf16.msra.mxu0 %v2583
  %3239 = vmatprep.subr.bf16.mxu0 %v2580
  %3240 = vmatpush2.bf16.msra.mxu0 %v2579
  %3241 = vmatprep.subr.bf16.mxu0 %v2576
  %3242 = vmatpush2.bf16.msra.mxu0 %v2575
  %3243 = vmatprep.subr.bf16.mxu0 %v2572
  %3244 = vmatpush2.bf16.msra.mxu0 %v2571
  %3245 = vmatprep.mubr.bf16.mxu0 %v3206
  %3246 = vmatmul.mubr.bf16.gmra.mxu0 %v3205
  %v3247 = vpop.f32.mrf.mxu0
  %v3248 = vadd.f32 0.0, %v3247
  %v3249 = vpop.f32.mrf.mxu0
  %v3250 = vadd.f32 0.0, %v3249
  %v3251 = vpop.f32.mrf.mxu0
  %v3252 = vadd.f32 0.0, %v3251
  %v3253 = vpop.f32.mrf.mxu0
  %v3254 = vadd.f32 0.0, %v3253
  %3255 = vmatprep.mubr.bf16.mxu0 %v3210
  %3256 = vmatmul.mubr.bf16.gmra.mxu0 %v3209
  %v3257 = vpop.f32.mrf.mxu0
  %v3258 = vadd.f32 0.0, %v3257
  %v3259 = vpop.f32.mrf.mxu0
  %v3260 = vadd.f32 0.0, %v3259
  %v3261 = vpop.f32.mrf.mxu0
  %v3262 = vadd.f32 0.0, %v3261
  %v3263 = vpop.f32.mrf.mxu0
  %v3264 = vadd.f32 0.0, %v3263
  %3265 = vdwg.mxu0
  %3266 = vmatprep.subr.bf16.mxu0 %v2632
  %3267 = vmatpush1.bf16.msra.mxu0 %v2631
  %3268 = vmatprep.subr.bf16.mxu0 %v2628
  %3269 = vmatpush1.bf16.msra.mxu0 %v2627
  %3270 = vmatprep.subr.bf16.mxu0 %v2624
  %3271 = vmatpush1.bf16.msra.mxu0 %v2623
  %3272 = vmatprep.subr.bf16.mxu0 %v2620
  %3273 = vmatpush1.bf16.msra.mxu0 %v2619
  %3274 = vmatprep.subr.bf16.mxu0 %v2616
  %3275 = vmatpush1.bf16.msra.mxu0 %v2615
  %3276 = vmatprep.subr.bf16.mxu0 %v2612
  %3277 = vmatpush1.bf16.msra.mxu0 %v2611
  %3278 = vmatprep.subr.bf16.mxu0 %v2608
  %3279 = vmatpush1.bf16.msra.mxu0 %v2607
  %3280 = vmatprep.subr.bf16.mxu0 %v2604
  %3281 = vmatpush1.bf16.msra.mxu0 %v2603
  %3282 = vmatprep.subr.bf16.mxu0 %v2664
  %3283 = vmatpush2.bf16.msra.mxu0 %v2663
  %3284 = vmatprep.subr.bf16.mxu0 %v2660
  %3285 = vmatpush2.bf16.msra.mxu0 %v2659
  %3286 = vmatprep.subr.bf16.mxu0 %v2656
  %3287 = vmatpush2.bf16.msra.mxu0 %v2655
  %3288 = vmatprep.subr.bf16.mxu0 %v2652
  %3289 = vmatpush2.bf16.msra.mxu0 %v2651
  %3290 = vmatprep.subr.bf16.mxu0 %v2648
  %3291 = vmatpush2.bf16.msra.mxu0 %v2647
  %3292 = vmatprep.subr.bf16.mxu0 %v2644
  %3293 = vmatpush2.bf16.msra.mxu0 %v2643
  %3294 = vmatprep.subr.bf16.mxu0 %v2640
  %3295 = vmatpush2.bf16.msra.mxu0 %v2639
  %3296 = vmatprep.subr.bf16.mxu0 %v2636
  %3297 = vmatpush2.bf16.msra.mxu0 %v2635
  %3298 = vmatprep.mubr.bf16.mxu0 %v3208
  %3299 = vmatmul.mubr.bf16.gmra.mxu0 %v3207
  %v3300 = vpop.f32.mrf.mxu0
  %v3301 = vadd.f32 %v3248, %v3300
  %v3302 = vpop.f32.mrf.mxu0
  %v3303 = vadd.f32 %v3250, %v3302
  %v3304 = vpop.f32.mrf.mxu0
  %v3305 = vadd.f32 %v3252, %v3304
  %v3306 = vpop.f32.mrf.mxu0
  %v3307 = vadd.f32 %v3254, %v3306
  %3308 = vmatprep.mubr.bf16.mxu0 %v3212
  %3309 = vmatmul.mubr.bf16.gmra.mxu0 %v3211
  %v3310 = vpop.f32.mrf.mxu0
  %v3311 = vadd.f32 %v3258, %v3310
  %v3312 = vpop.f32.mrf.mxu0
  %v3313 = vadd.f32 %v3260, %v3312
  %v3314 = vpop.f32.mrf.mxu0
  %v3315 = vadd.f32 %v3262, %v3314
  %v3316 = vpop.f32.mrf.mxu0
  %v3317 = vadd.f32 %v3264, %v3316
  %3318 = vdwg.mxu0
  %3319 = vmatprep.subr.bf16.mxu0 %v2570
  %3320 = vmatpush1.bf16.msra.mxu0 %v2569
  %3321 = vmatprep.subr.bf16.mxu0 %v2566
  %3322 = vmatpush1.bf16.msra.mxu0 %v2565
  %3323 = vmatprep.subr.bf16.mxu0 %v2562
  %3324 = vmatpush1.bf16.msra.mxu0 %v2561
  %3325 = vmatprep.subr.bf16.mxu0 %v2558
  %3326 = vmatpush1.bf16.msra.mxu0 %v2557
  %3327 = vmatprep.subr.bf16.mxu0 %v2554
  %3328 = vmatpush1.bf16.msra.mxu0 %v2553
  %3329 = vmatprep.subr.bf16.mxu0 %v2550
  %3330 = vmatpush1.bf16.msra.mxu0 %v2549
  %3331 = vmatprep.subr.bf16.mxu0 %v2546
  %3332 = vmatpush1.bf16.msra.mxu0 %v2545
  %3333 = vmatprep.subr.bf16.mxu0 %v2542
  %3334 = vmatpush1.bf16.msra.mxu0 %v2541
  %3335 = vmatprep.subr.bf16.mxu0 %v2602
  %3336 = vmatpush2.bf16.msra.mxu0 %v2601
  %3337 = vmatprep.subr.bf16.mxu0 %v2598
  %3338 = vmatpush2.bf16.msra.mxu0 %v2597
  %3339 = vmatprep.subr.bf16.mxu0 %v2594
  %3340 = vmatpush2.bf16.msra.mxu0 %v2593
  %3341 = vmatprep.subr.bf16.mxu0 %v2590
  %3342 = vmatpush2.bf16.msra.mxu0 %v2589
  %3343 = vmatprep.subr.bf16.mxu0 %v2586
  %3344 = vmatpush2.bf16.msra.mxu0 %v2585
  %3345 = vmatprep.subr.bf16.mxu0 %v2582
  %3346 = vmatpush2.bf16.msra.mxu0 %v2581
  %3347 = vmatprep.subr.bf16.mxu0 %v2578
  %3348 = vmatpush2.bf16.msra.mxu0 %v2577
  %3349 = vmatprep.subr.bf16.mxu0 %v2574
  %3350 = vmatpush2.bf16.msra.mxu0 %v2573
  %3351 = vmatprep.mubr.bf16.mxu0 %v3206
  %3352 = vmatmul.mubr.bf16.gmra.mxu0 %v3205
  %v3353 = vpop.f32.mrf.mxu0
  %v3354 = vadd.f32 0.0, %v3353
  %v3355 = vpop.f32.mrf.mxu0
  %v3356 = vadd.f32 0.0, %v3355
  %v3357 = vpop.f32.mrf.mxu0
  %v3358 = vadd.f32 0.0, %v3357
  %v3359 = vpop.f32.mrf.mxu0
  %v3360 = vadd.f32 0.0, %v3359
  %3361 = vmatprep.mubr.bf16.mxu0 %v3210
  %3362 = vmatmul.mubr.bf16.gmra.mxu0 %v3209
  %v3363 = vpop.f32.mrf.mxu0
  %v3364 = vadd.f32 0.0, %v3363
  %v3365 = vpop.f32.mrf.mxu0
  %v3366 = vadd.f32 0.0, %v3365
  %v3367 = vpop.f32.mrf.mxu0
  %v3368 = vadd.f32 0.0, %v3367
  %v3369 = vpop.f32.mrf.mxu0
  %v3370 = vadd.f32 0.0, %v3369
  %3371 = vdwg.mxu0
  %3372 = vmatprep.subr.bf16.mxu0 %v2634
  %3373 = vmatpush1.bf16.msra.mxu0 %v2633
  %3374 = vmatprep.subr.bf16.mxu0 %v2630
  %3375 = vmatpush1.bf16.msra.mxu0 %v2629
  %3376 = vmatprep.subr.bf16.mxu0 %v2626
  %3377 = vmatpush1.bf16.msra.mxu0 %v2625
  %3378 = vmatprep.subr.bf16.mxu0 %v2622
  %3379 = vmatpush1.bf16.msra.mxu0 %v2621
  %3380 = vmatprep.subr.bf16.mxu0 %v2618
  %3381 = vmatpush1.bf16.msra.mxu0 %v2617
  %3382 = vmatprep.subr.bf16.mxu0 %v2614
  %3383 = vmatpush1.bf16.msra.mxu0 %v2613
  %3384 = vmatprep.subr.bf16.mxu0 %v2610
  %3385 = vmatpush1.bf16.msra.mxu0 %v2609
  %3386 = vmatprep.subr.bf16.mxu0 %v2606
  %3387 = vmatpush1.bf16.msra.mxu0 %v2605
  %3388 = vmatprep.subr.bf16.mxu0 %v2666
  %3389 = vmatpush2.bf16.msra.mxu0 %v2665
  %3390 = vmatprep.subr.bf16.mxu0 %v2662
  %3391 = vmatpush2.bf16.msra.mxu0 %v2661
  %3392 = vmatprep.subr.bf16.mxu0 %v2658
  %3393 = vmatpush2.bf16.msra.mxu0 %v2657
  %3394 = vmatprep.subr.bf16.mxu0 %v2654
  %3395 = vmatpush2.bf16.msra.mxu0 %v2653
  %3396 = vmatprep.subr.bf16.mxu0 %v2650
  %3397 = vmatpush2.bf16.msra.mxu0 %v2649
  %3398 = vmatprep.subr.bf16.mxu0 %v2646
  %3399 = vmatpush2.bf16.msra.mxu0 %v2645
  %3400 = vmatprep.subr.bf16.mxu0 %v2642
  %3401 = vmatpush2.bf16.msra.mxu0 %v2641
  %3402 = vmatprep.subr.bf16.mxu0 %v2638
  %3403 = vmatpush2.bf16.msra.mxu0 %v2637
  %3404 = vmatprep.mubr.bf16.mxu0 %v3208
  %3405 = vmatmul.mubr.bf16.gmra.mxu0 %v3207
  %v3406 = vpop.f32.mrf.mxu0
  %v3407 = vadd.f32 %v3354, %v3406
  %v3408 = vpop.f32.mrf.mxu0
  %v3409 = vadd.f32 %v3356, %v3408
  %v3410 = vpop.f32.mrf.mxu0
  %v3411 = vadd.f32 %v3358, %v3410
  %v3412 = vpop.f32.mrf.mxu0
  %v3413 = vadd.f32 %v3360, %v3412
  %3414 = vmatprep.mubr.bf16.mxu0 %v3212
  %3415 = vmatmul.mubr.bf16.gmra.mxu0 %v3211
  %v3416 = vpop.f32.mrf.mxu0
  %v3417 = vadd.f32 %v3364, %v3416
  %v3418 = vpop.f32.mrf.mxu0
  %v3419 = vadd.f32 %v3366, %v3418
  %v3420 = vpop.f32.mrf.mxu0
  %v3421 = vadd.f32 %v3368, %v3420
  %v3422 = vpop.f32.mrf.mxu0
  %v3423 = vadd.f32 %v3370, %v3422
  %3424 = vdwg.mxu0
  %v3425 = vld [vmem:[%s4] sm:$0xf]
  %v3426 = vld [vmem:[%s4 + $0x4] sm:$0xf]
  %v3427 = vld [vmem:[%s4 + $0x8] sm:$0xf]
  %v3428 = vld [vmem:[%s4 + $0xc] sm:$0xf]
  %v3429 = vpack.c.bf16 %v3305, %v3301
  %v3430 = vpack.c.bf16 %v3307, %v3303
  %v3431 = vpack.c.bf16 %v3411, %v3407
  %v3432 = vpack.c.bf16 %v3413, %v3409
  %v3433 = vpack.c.bf16 %v3315, %v3311
  %v3434 = vpack.c.bf16 %v3317, %v3313
  %v3435 = vpack.c.bf16 %v3421, %v3417
  %v3436 = vpack.c.bf16 %v3423, %v3419
  %v3437 = vld [vmem:[%s7] sm:$0xff]
  %v3438 = vld [vmem:[%s7 + $0x8] sm:$0xff]
  %v3439 = vld [vmem:[%s7 + $0x10] sm:$0xff]
  %v3440 = vld [vmem:[%s7 + $0x18] sm:$0xff]
  %v3441 = vld [vmem:[%s7 + $0x20] sm:$0xff]
  %v3442 = vld [vmem:[%s7 + $0x28] sm:$0xff]
  %v3443 = vld [vmem:[%s7 + $0x30] sm:$0xff]
  %v3444 = vld [vmem:[%s7 + $0x38] sm:$0xff]
  %v3445 = vld [vmem:[%s7 + $0x40] sm:$0xff]
  %v3446 = vld [vmem:[%s7 + $0x48] sm:$0xff]
  %v3447 = vld [vmem:[%s7 + $0x50] sm:$0xff]
  %v3448 = vld [vmem:[%s7 + $0x58] sm:$0xff]
  %v3449 = vld [vmem:[%s7 + $0x60] sm:$0xff]
  %v3450 = vld [vmem:[%s7 + $0x68] sm:$0xff]
  %v3451 = vld [vmem:[%s7 + $0x70] sm:$0xff]
  %v3452 = vld [vmem:[%s7 + $0x78] sm:$0xff]
  %v3457 = vunpack.c.l.b16 %v3425
  %v3458 = vunpack.c.l.b16 %v3426
  %v3459 = vunpack.c.l.b16 %v3427
  %v3460 = vunpack.c.l.b16 %v3428
  %v3461 = vpack.c.b16 %v3458, %v3457
  %v3462 = vpack.c.b16 %v3460, %v3459
  %v3464 = vsel %vm1178, %v3461, 0
  %v3467 = vsel %vm1178, %v3462, 0
  %3469 = vmatprep.subr.bf16.mxu0 0
  %3470 = vmatpush1.bf16.msra.mxu0 0
  %3471 = vmatprep.subr.bf16.mxu0 0
  %3472 = vmatpush1.bf16.msra.mxu0 0
  %3473 = vmatprep.subr.bf16.mxu0 0
  %3474 = vmatpush1.bf16.msra.mxu0 0
  %3475 = vmatprep.subr.bf16.mxu0 0
  %3476 = vmatpush1.bf16.msra.mxu0 0
  %3477 = vmatprep.subr.bf16.mxu0 0
  %3478 = vmatpush1.bf16.msra.mxu0 0
  %3479 = vmatprep.subr.bf16.mxu0 0
  %3480 = vmatpush1.bf16.msra.mxu0 0
  %3481 = vmatprep.subr.bf16.mxu0 %v3434
  %3482 = vmatpush1.bf16.msra.mxu0 %v3433
  %3483 = vmatprep.subr.bf16.mxu0 %v3430
  %3484 = vmatpush1.bf16.msra.mxu0 %v3429
  %3485 = vmatprep.subr.bf16.mxu0 0
  %3486 = vmatpush2.bf16.msra.mxu0 0
  %3487 = vmatprep.subr.bf16.mxu0 0
  %3488 = vmatpush2.bf16.msra.mxu0 0
  %3489 = vmatprep.subr.bf16.mxu0 0
  %3490 = vmatpush2.bf16.msra.mxu0 0
  %3491 = vmatprep.subr.bf16.mxu0 0
  %3492 = vmatpush2.bf16.msra.mxu0 0
  %3493 = vmatprep.subr.bf16.mxu0 0
  %3494 = vmatpush2.bf16.msra.mxu0 0
  %3495 = vmatprep.subr.bf16.mxu0 0
  %3496 = vmatpush2.bf16.msra.mxu0 0
  %3497 = vmatprep.subr.bf16.mxu0 0
  %3498 = vmatpush2.bf16.msra.mxu0 0
  %3499 = vmatprep.subr.bf16.mxu0 0
  %3500 = vmatpush2.bf16.msra.mxu0 0
  %3501 = vmatprep.mubr.bf16.mxu0 0
  %3502 = vmatmul.mubr.bf16.gmra.mxu0 %v3464
  %v3503 = vpop.f32.mrf.mxu0
  %v3504 = vadd.f32 %v3437, %v3503
  %v3505 = vpop.f32.mrf.mxu0
  %v3506 = vadd.f32 %v3438, %v3505
  %v3507 = vpop.f32.mrf.mxu0
  %v3508 = vadd.f32 %v3441, %v3507
  %v3509 = vpop.f32.mrf.mxu0
  %v3510 = vadd.f32 %v3442, %v3509
  %3511 = vmatprep.mubr.bf16.mxu0 0
  %3512 = vmatmul.mubr.bf16.gmra.mxu0 %v3467
  %v3513 = vpop.f32.mrf.mxu0
  %v3514 = vadd.f32 %v3445, %v3513
  %v3515 = vpop.f32.mrf.mxu0
  %v3516 = vadd.f32 %v3446, %v3515
  %v3517 = vpop.f32.mrf.mxu0
  %v3518 = vadd.f32 %v3449, %v3517
  %v3519 = vpop.f32.mrf.mxu0
  %v3520 = vadd.f32 %v3450, %v3519
  %3521 = vdwg.mxu0
  %3522 = vmatprep.subr.bf16.mxu0 0
  %3523 = vmatpush1.bf16.msra.mxu0 0
  %3524 = vmatprep.subr.bf16.mxu0 0
  %3525 = vmatpush1.bf16.msra.mxu0 0
  %3526 = vmatprep.subr.bf16.mxu0 0
  %3527 = vmatpush1.bf16.msra.mxu0 0
  %3528 = vmatprep.subr.bf16.mxu0 0
  %3529 = vmatpush1.bf16.msra.mxu0 0
  %3530 = vmatprep.subr.bf16.mxu0 0
  %3531 = vmatpush1.bf16.msra.mxu0 0
  %3532 = vmatprep.subr.bf16.mxu0 0
  %3533 = vmatpush1.bf16.msra.mxu0 0
  %3534 = vmatprep.subr.bf16.mxu0 %v3436
  %3535 = vmatpush1.bf16.msra.mxu0 %v3435
  %3536 = vmatprep.subr.bf16.mxu0 %v3432
  %3537 = vmatpush1.bf16.msra.mxu0 %v3431
  %3538 = vmatprep.subr.bf16.mxu0 0
  %3539 = vmatpush2.bf16.msra.mxu0 0
  %3540 = vmatprep.subr.bf16.mxu0 0
  %3541 = vmatpush2.bf16.msra.mxu0 0
  %3542 = vmatprep.subr.bf16.mxu0 0
  %3543 = vmatpush2.bf16.msra.mxu0 0
  %3544 = vmatprep.subr.bf16.mxu0 0
  %3545 = vmatpush2.bf16.msra.mxu0 0
  %3546 = vmatprep.subr.bf16.mxu0 0
  %3547 = vmatpush2.bf16.msra.mxu0 0
  %3548 = vmatprep.subr.bf16.mxu0 0
  %3549 = vmatpush2.bf16.msra.mxu0 0
  %3550 = vmatprep.subr.bf16.mxu0 0
  %3551 = vmatpush2.bf16.msra.mxu0 0
  %3552 = vmatprep.subr.bf16.mxu0 0
  %3553 = vmatpush2.bf16.msra.mxu0 0
  %3554 = vmatprep.mubr.bf16.mxu0 0
  %3555 = vmatmul.mubr.bf16.gmra.mxu0 %v3464
  %v3556 = vpop.f32.mrf.mxu0
  %v3557 = vadd.f32 %v3439, %v3556
  %v3558 = vpop.f32.mrf.mxu0
  %v3559 = vadd.f32 %v3440, %v3558
  %v3560 = vpop.f32.mrf.mxu0
  %v3561 = vadd.f32 %v3443, %v3560
  %v3562 = vpop.f32.mrf.mxu0
  %v3563 = vadd.f32 %v3444, %v3562
  %3564 = vmatprep.mubr.bf16.mxu0 0
  %3565 = vmatmul.mubr.bf16.gmra.mxu0 %v3467
  %v3566 = vpop.f32.mrf.mxu0
  %v3567 = vadd.f32 %v3447, %v3566
  %v3568 = vpop.f32.mrf.mxu0
  %v3569 = vadd.f32 %v3448, %v3568
  %v3570 = vpop.f32.mrf.mxu0
  %v3571 = vadd.f32 %v3451, %v3570
  %v3572 = vpop.f32.mrf.mxu0
  %v3573 = vadd.f32 %v3452, %v3572
  %3574 = vdwg.mxu0
  %vm3575 = vcmp.gt.f32.partialorder %v3504, 0.0
  %vm3576 = vcmp.gt.f32.partialorder %v3506, 0.0
  %vm3577 = vcmp.gt.f32.partialorder %v3557, 0.0
  %vm3578 = vcmp.gt.f32.partialorder %v3559, 0.0
  %vm3579 = vcmp.gt.f32.partialorder %v3508, 0.0
  %vm3580 = vcmp.gt.f32.partialorder %v3510, 0.0
  %vm3581 = vcmp.gt.f32.partialorder %v3561, 0.0
  %vm3582 = vcmp.gt.f32.partialorder %v3563, 0.0
  %vm3583 = vcmp.gt.f32.partialorder %v3514, 0.0
  %vm3584 = vcmp.gt.f32.partialorder %v3516, 0.0
  %vm3585 = vcmp.gt.f32.partialorder %v3567, 0.0
  %vm3586 = vcmp.gt.f32.partialorder %v3569, 0.0
  %vm3587 = vcmp.gt.f32.partialorder %v3518, 0.0
  %vm3588 = vcmp.gt.f32.partialorder %v3520, 0.0
  %vm3589 = vcmp.gt.f32.partialorder %v3571, 0.0
  %vm3590 = vcmp.gt.f32.partialorder %v3573, 0.0
  %v3591 = vmul.f32 %v3504, 0.01
  %v3592 = vmul.f32 %v3506, 0.01
  %v3593 = vmul.f32 %v3557, 0.01
  %v3594 = vmul.f32 %v3559, 0.01
  %v3595 = vmul.f32 %v3508, 0.01
  %v3596 = vmul.f32 %v3510, 0.01
  %v3597 = vmul.f32 %v3561, 0.01
  %v3598 = vmul.f32 %v3563, 0.01
  %v3599 = vmul.f32 %v3514, 0.01
  %v3600 = vmul.f32 %v3516, 0.01
  %v3601 = vmul.f32 %v3567, 0.01
  %v3602 = vmul.f32 %v3569, 0.01
  %v3603 = vmul.f32 %v3518, 0.01
  %v3604 = vmul.f32 %v3520, 0.01
  %v3605 = vmul.f32 %v3571, 0.01
  %v3606 = vmul.f32 %v3573, 0.01
  %v3607 = vsel %vm3575, %v3504, %v3591
  %v3608 = vsel %vm3576, %v3506, %v3592
  %v3609 = vsel %vm3577, %v3557, %v3593
  %v3610 = vsel %vm3578, %v3559, %v3594
  %v3611 = vsel %vm3579, %v3508, %v3595
  %v3612 = vsel %vm3580, %v3510, %v3596
  %v3613 = vsel %vm3581, %v3561, %v3597
  %v3614 = vsel %vm3582, %v3563, %v3598
  %v3615 = vsel %vm3583, %v3514, %v3599
  %v3616 = vsel %vm3584, %v3516, %v3600
  %v3617 = vsel %vm3585, %v3567, %v3601
  %v3618 = vsel %vm3586, %v3569, %v3602
  %v3619 = vsel %vm3587, %v3518, %v3603
  %v3620 = vsel %vm3588, %v3520, %v3604
  %v3621 = vsel %vm3589, %v3571, %v3605
  %v3622 = vsel %vm3590, %v3573, %v3606
  %v3623 = vld [vmem:[%s5] sm:$0xf]
  %v3624 = vld [vmem:[%s5 + $0x4] sm:$0xf]
  %v3625 = vld [vmem:[%s5 + $0x8] sm:$0xf]
  %v3626 = vld [vmem:[%s5 + $0xc] sm:$0xf]
  %v3627 = vpack.c.bf16 %v3611, %v3607
  %v3628 = vpack.c.bf16 %v3612, %v3608
  %v3629 = vpack.c.bf16 %v3613, %v3609
  %v3630 = vpack.c.bf16 %v3614, %v3610
  %v3631 = vpack.c.bf16 %v3619, %v3615
  %v3632 = vpack.c.bf16 %v3620, %v3616
  %v3633 = vpack.c.bf16 %v3621, %v3617
  %v3634 = vpack.c.bf16 %v3622, %v3618
  %v3635 = vld [vmem:[%s8] sm:$0xff]
  %v3636 = vld [vmem:[%s8 + $0x8] sm:$0xff]
  %v3637 = vld [vmem:[%s8 + $0x10] sm:$0xff]
  %v3638 = vld [vmem:[%s8 + $0x18] sm:$0xff]
  %v3639 = vld [vmem:[%s8 + $0x20] sm:$0xff]
  %v3640 = vld [vmem:[%s8 + $0x28] sm:$0xff]
  %v3641 = vld [vmem:[%s8 + $0x30] sm:$0xff]
  %v3642 = vld [vmem:[%s8 + $0x38] sm:$0xff]
  %v3643 = vld [vmem:[%s8 + $0x40] sm:$0xff]
  %v3644 = vld [vmem:[%s8 + $0x48] sm:$0xff]
  %v3645 = vld [vmem:[%s8 + $0x50] sm:$0xff]
  %v3646 = vld [vmem:[%s8 + $0x58] sm:$0xff]
  %v3647 = vld [vmem:[%s8 + $0x60] sm:$0xff]
  %v3648 = vld [vmem:[%s8 + $0x68] sm:$0xff]
  %v3649 = vld [vmem:[%s8 + $0x70] sm:$0xff]
  %v3650 = vld [vmem:[%s8 + $0x78] sm:$0xff]
  %v3655 = vunpack.c.l.b16 %v3623
  %v3656 = vunpack.c.l.b16 %v3624
  %v3657 = vunpack.c.l.b16 %v3625
  %v3658 = vunpack.c.l.b16 %v3626
  %v3659 = vpack.c.b16 %v3656, %v3655
  %v3660 = vpack.c.b16 %v3658, %v3657
  %v3662 = vsel %vm1178, %v3659, 0
  %v3665 = vsel %vm1178, %v3660, 0
  %3667 = vmatprep.subr.bf16.mxu0 0
  %3668 = vmatpush1.bf16.msra.mxu0 0
  %3669 = vmatprep.subr.bf16.mxu0 0
  %3670 = vmatpush1.bf16.msra.mxu0 0
  %3671 = vmatprep.subr.bf16.mxu0 0
  %3672 = vmatpush1.bf16.msra.mxu0 0
  %3673 = vmatprep.subr.bf16.mxu0 0
  %3674 = vmatpush1.bf16.msra.mxu0 0
  %3675 = vmatprep.subr.bf16.mxu0 0
  %3676 = vmatpush1.bf16.msra.mxu0 0
  %3677 = vmatprep.subr.bf16.mxu0 0
  %3678 = vmatpush1.bf16.msra.mxu0 0
  %3679 = vmatprep.subr.bf16.mxu0 %v3632
  %3680 = vmatpush1.bf16.msra.mxu0 %v3631
  %3681 = vmatprep.subr.bf16.mxu0 %v3628
  %3682 = vmatpush1.bf16.msra.mxu0 %v3627
  %3683 = vmatprep.subr.bf16.mxu0 0
  %3684 = vmatpush2.bf16.msra.mxu0 0
  %3685 = vmatprep.subr.bf16.mxu0 0
  %3686 = vmatpush2.bf16.msra.mxu0 0
  %3687 = vmatprep.subr.bf16.mxu0 0
  %3688 = vmatpush2.bf16.msra.mxu0 0
  %3689 = vmatprep.subr.bf16.mxu0 0
  %3690 = vmatpush2.bf16.msra.mxu0 0
  %3691 = vmatprep.subr.bf16.mxu0 0
  %3692 = vmatpush2.bf16.msra.mxu0 0
  %3693 = vmatprep.subr.bf16.mxu0 0
  %3694 = vmatpush2.bf16.msra.mxu0 0
  %3695 = vmatprep.subr.bf16.mxu0 0
  %3696 = vmatpush2.bf16.msra.mxu0 0
  %3697 = vmatprep.subr.bf16.mxu0 0
  %3698 = vmatpush2.bf16.msra.mxu0 0
  %3699 = vmatprep.mubr.bf16.mxu0 0
  %3700 = vmatmul.mubr.bf16.gmra.mxu0 %v3662
  %v3701 = vpop.f32.mrf.mxu0
  %v3702 = vadd.f32 %v3635, %v3701
  %v3703 = vpop.f32.mrf.mxu0
  %v3704 = vadd.f32 %v3636, %v3703
  %v3705 = vpop.f32.mrf.mxu0
  %v3706 = vadd.f32 %v3639, %v3705
  %v3707 = vpop.f32.mrf.mxu0
  %v3708 = vadd.f32 %v3640, %v3707
  %3709 = vmatprep.mubr.bf16.mxu0 0
  %3710 = vmatmul.mubr.bf16.gmra.mxu0 %v3665
  %v3711 = vpop.f32.mrf.mxu0
  %v3712 = vadd.f32 %v3643, %v3711
  %v3713 = vpop.f32.mrf.mxu0
  %v3714 = vadd.f32 %v3644, %v3713
  %v3715 = vpop.f32.mrf.mxu0
  %v3716 = vadd.f32 %v3647, %v3715
  %v3717 = vpop.f32.mrf.mxu0
  %v3718 = vadd.f32 %v3648, %v3717
  %3719 = vdwg.mxu0
  %3720 = vmatprep.subr.bf16.mxu0 0
  %3721 = vmatpush1.bf16.msra.mxu0 0
  %3722 = vmatprep.subr.bf16.mxu0 0
  %3723 = vmatpush1.bf16.msra.mxu0 0
  %3724 = vmatprep.subr.bf16.mxu0 0
  %3725 = vmatpush1.bf16.msra.mxu0 0
  %3726 = vmatprep.subr.bf16.mxu0 0
  %3727 = vmatpush1.bf16.msra.mxu0 0
  %3728 = vmatprep.subr.bf16.mxu0 0
  %3729 = vmatpush1.bf16.msra.mxu0 0
  %3730 = vmatprep.subr.bf16.mxu0 0
  %3731 = vmatpush1.bf16.msra.mxu0 0
  %3732 = vmatprep.subr.bf16.mxu0 %v3634
  %3733 = vmatpush1.bf16.msra.mxu0 %v3633
  %3734 = vmatprep.subr.bf16.mxu0 %v3630
  %3735 = vmatpush1.bf16.msra.mxu0 %v3629
  %3736 = vmatprep.subr.bf16.mxu0 0
  %3737 = vmatpush2.bf16.msra.mxu0 0
  %3738 = vmatprep.subr.bf16.mxu0 0
  %3739 = vmatpush2.bf16.msra.mxu0 0
  %3740 = vmatprep.subr.bf16.mxu0 0
  %3741 = vmatpush2.bf16.msra.mxu0 0
  %3742 = vmatprep.subr.bf16.mxu0 0
  %3743 = vmatpush2.bf16.msra.mxu0 0
  %3744 = vmatprep.subr.bf16.mxu0 0
  %3745 = vmatpush2.bf16.msra.mxu0 0
  %3746 = vmatprep.subr.bf16.mxu0 0
  %3747 = vmatpush2.bf16.msra.mxu0 0
  %3748 = vmatprep.subr.bf16.mxu0 0
  %3749 = vmatpush2.bf16.msra.mxu0 0
  %3750 = vmatprep.subr.bf16.mxu0 0
  %3751 = vmatpush2.bf16.msra.mxu0 0
  %3752 = vmatprep.mubr.bf16.mxu0 0
  %3753 = vmatmul.mubr.bf16.gmra.mxu0 %v3662
  %v3754 = vpop.f32.mrf.mxu0
  %v3755 = vadd.f32 %v3637, %v3754
  %v3756 = vpop.f32.mrf.mxu0
  %v3757 = vadd.f32 %v3638, %v3756
  %v3758 = vpop.f32.mrf.mxu0
  %v3759 = vadd.f32 %v3641, %v3758
  %v3760 = vpop.f32.mrf.mxu0
  %v3761 = vadd.f32 %v3642, %v3760
  %3762 = vmatprep.mubr.bf16.mxu0 0
  %3763 = vmatmul.mubr.bf16.gmra.mxu0 %v3665
  %v3764 = vpop.f32.mrf.mxu0
  %v3765 = vadd.f32 %v3645, %v3764
  %v3766 = vpop.f32.mrf.mxu0
  %v3767 = vadd.f32 %v3646, %v3766
  %v3768 = vpop.f32.mrf.mxu0
  %v3769 = vadd.f32 %v3649, %v3768
  %v3770 = vpop.f32.mrf.mxu0
  %v3771 = vadd.f32 %v3650, %v3770
  %3772 = vdwg.mxu0
  %v3773 = vsub.f32 %v1836, %v3702
  %v3774 = vsub.f32 %v1838, %v3704
  %v3775 = vsub.f32 %v1889, %v3755
  %v3776 = vsub.f32 %v1891, %v3757
  %v3777 = vsub.f32 %v1840, %v3706
  %v3778 = vsub.f32 %v1842, %v3708
  %v3779 = vsub.f32 %v1893, %v3759
  %v3780 = vsub.f32 %v1895, %v3761
  %v3781 = vsub.f32 %v1846, %v3712
  %v3782 = vsub.f32 %v1848, %v3714
  %v3783 = vsub.f32 %v1899, %v3765
  %v3784 = vsub.f32 %v1901, %v3767
  %v3785 = vsub.f32 %v1850, %v3716
  %v3786 = vsub.f32 %v1852, %v3718
  %v3787 = vsub.f32 %v1903, %v3769
  %v3788 = vsub.f32 %v1905, %v3771
  %v3789 = vld [vmem:[#allocation3] sm:$0xff]
  %v3790 = vld [vmem:[#allocation3 + $0x8] sm:$0xff]
  %v3791 = vld [vmem:[#allocation3 + $0x10] sm:$0xff]
  %v3792 = vld [vmem:[#allocation3 + $0x18] sm:$0xff]
  %v3793 = vld [vmem:[#allocation3 + $0x20] sm:$0xff]
  %v3794 = vld [vmem:[#allocation3 + $0x28] sm:$0xff]
  %v3795 = vld [vmem:[#allocation3 + $0x30] sm:$0xff]
  %v3796 = vld [vmem:[#allocation3 + $0x38] sm:$0xff]
  %v3797 = vld [vmem:[#allocation3 + $0x40] sm:$0xff]
  %v3798 = vld [vmem:[#allocation3 + $0x48] sm:$0xff]
  %v3799 = vld [vmem:[#allocation3 + $0x50] sm:$0xff]
  %v3800 = vld [vmem:[#allocation3 + $0x58] sm:$0xff]
  %v3801 = vld [vmem:[#allocation3 + $0x60] sm:$0xff]
  %v3802 = vld [vmem:[#allocation3 + $0x68] sm:$0xff]
  %v3803 = vld [vmem:[#allocation3 + $0x70] sm:$0xff]
  %v3804 = vld [vmem:[#allocation3 + $0x78] sm:$0xff]
  %v3805 = vmul.f32 %v3702, 0.375
  %v3806 = vmul.f32 %v3704, 0.375
  %v3807 = vmul.f32 %v3755, 0.375
  %v3808 = vmul.f32 %v3757, 0.375
  %v3809 = vmul.f32 %v3706, 0.375
  %v3810 = vmul.f32 %v3708, 0.375
  %v3811 = vmul.f32 %v3759, 0.375
  %v3812 = vmul.f32 %v3761, 0.375
  %v3813 = vmul.f32 %v3712, 0.375
  %v3814 = vmul.f32 %v3714, 0.375
  %v3815 = vmul.f32 %v3765, 0.375
  %v3816 = vmul.f32 %v3767, 0.375
  %v3817 = vmul.f32 %v3716, 0.375
  %v3818 = vmul.f32 %v3718, 0.375
  %v3819 = vmul.f32 %v3769, 0.375
  %v3820 = vmul.f32 %v3771, 0.375
  %v3821 = vadd.f32 %v3789, %v3805
  %v3822 = vadd.f32 %v3790, %v3806
  %v3823 = vadd.f32 %v3791, %v3807
  %v3824 = vadd.f32 %v3792, %v3808
  %v3825 = vadd.f32 %v3793, %v3809
  %v3826 = vadd.f32 %v3794, %v3810
  %v3827 = vadd.f32 %v3795, %v3811
  %v3828 = vadd.f32 %v3796, %v3812
  %v3829 = vadd.f32 %v3797, %v3813
  %v3830 = vadd.f32 %v3798, %v3814
  %v3831 = vadd.f32 %v3799, %v3815
  %v3832 = vadd.f32 %v3800, %v3816
  %v3833 = vadd.f32 %v3801, %v3817
  %v3834 = vadd.f32 %v3802, %v3818
  %v3835 = vadd.f32 %v3803, %v3819
  %v3836 = vadd.f32 %v3804, %v3820
  %3837 = vst [vmem:[#allocation3] sm:$0xff] %v3821
  %3838 = vst [vmem:[#allocation3 + $0x8] sm:$0xff] %v3822
  %3839 = vst [vmem:[#allocation3 + $0x10] sm:$0xff] %v3823
  %3840 = vst [vmem:[#allocation3 + $0x18] sm:$0xff] %v3824
  %3841 = vst [vmem:[#allocation3 + $0x20] sm:$0xff] %v3825
  %3842 = vst [vmem:[#allocation3 + $0x28] sm:$0xff] %v3826
  %3843 = vst [vmem:[#allocation3 + $0x30] sm:$0xff] %v3827
  %3844 = vst [vmem:[#allocation3 + $0x38] sm:$0xff] %v3828
  %3845 = vst [vmem:[#allocation3 + $0x40] sm:$0xff] %v3829
  %3846 = vst [vmem:[#allocation3 + $0x48] sm:$0xff] %v3830
  %3847 = vst [vmem:[#allocation3 + $0x50] sm:$0xff] %v3831
  %3848 = vst [vmem:[#allocation3 + $0x58] sm:$0xff] %v3832
  %3849 = vst [vmem:[#allocation3 + $0x60] sm:$0xff] %v3833
  %3850 = vst [vmem:[#allocation3 + $0x68] sm:$0xff] %v3834
  %3851 = vst [vmem:[#allocation3 + $0x70] sm:$0xff] %v3835
  %3852 = vst [vmem:[#allocation3 + $0x78] sm:$0xff] %v3836
  %v3853 = vld [vmem:[#allocation2] sm:$0xff]
  %v3854 = vld [vmem:[#allocation2 + $0x8] sm:$0xff]
  %v3855 = vld [vmem:[#allocation2 + $0x10] sm:$0xff]
  %v3856 = vld [vmem:[#allocation2 + $0x18] sm:$0xff]
  %v3857 = vld [vmem:[#allocation2 + $0x20] sm:$0xff]
  %v3858 = vld [vmem:[#allocation2 + $0x28] sm:$0xff]
  %v3859 = vld [vmem:[#allocation2 + $0x30] sm:$0xff]
  %v3860 = vld [vmem:[#allocation2 + $0x38] sm:$0xff]
  %v3861 = vld [vmem:[#allocation2 + $0x40] sm:$0xff]
  %v3862 = vld [vmem:[#allocation2 + $0x48] sm:$0xff]
  %v3863 = vld [vmem:[#allocation2 + $0x50] sm:$0xff]
  %v3864 = vld [vmem:[#allocation2 + $0x58] sm:$0xff]
  %v3865 = vld [vmem:[#allocation2 + $0x60] sm:$0xff]
  %v3866 = vld [vmem:[#allocation2 + $0x68] sm:$0xff]
  %v3867 = vld [vmem:[#allocation2 + $0x70] sm:$0xff]
  %v3868 = vld [vmem:[#allocation2 + $0x78] sm:$0xff]
  %v3869 = vmul.f32 %v3702, 0.6666667
  %v3870 = vmul.f32 %v3704, 0.6666667
  %v3871 = vmul.f32 %v3755, 0.6666667
  %v3872 = vmul.f32 %v3757, 0.6666667
  %v3873 = vmul.f32 %v3706, 0.6666667
  %v3874 = vmul.f32 %v3708, 0.6666667
  %v3875 = vmul.f32 %v3759, 0.6666667
  %v3876 = vmul.f32 %v3761, 0.6666667
  %v3877 = vmul.f32 %v3712, 0.6666667
  %v3878 = vmul.f32 %v3714, 0.6666667
  %v3879 = vmul.f32 %v3765, 0.6666667
  %v3880 = vmul.f32 %v3767, 0.6666667
  %v3881 = vmul.f32 %v3716, 0.6666667
  %v3882 = vmul.f32 %v3718, 0.6666667
  %v3883 = vmul.f32 %v3769, 0.6666667
  %v3884 = vmul.f32 %v3771, 0.6666667
  %v3885 = vmul.f32 %v3773, 0.33333334
  %v3886 = vmul.f32 %v3774, 0.33333334
  %v3887 = vmul.f32 %v3775, 0.33333334
  %v3888 = vmul.f32 %v3776, 0.33333334
  %v3889 = vmul.f32 %v3777, 0.33333334
  %v3890 = vmul.f32 %v3778, 0.33333334
  %v3891 = vmul.f32 %v3779, 0.33333334
  %v3892 = vmul.f32 %v3780, 0.33333334
  %v3893 = vmul.f32 %v3781, 0.33333334
  %v3894 = vmul.f32 %v3782, 0.33333334
  %v3895 = vmul.f32 %v3783, 0.33333334
  %v3896 = vmul.f32 %v3784, 0.33333334
  %v3897 = vmul.f32 %v3785, 0.33333334
  %v3898 = vmul.f32 %v3786, 0.33333334
  %v3899 = vmul.f32 %v3787, 0.33333334
  %v3900 = vmul.f32 %v3788, 0.33333334
  %v3901 = vsub.f32 %v3869, %v3885
  %v3902 = vsub.f32 %v3870, %v3886
  %v3903 = vsub.f32 %v3871, %v3887
  %v3904 = vsub.f32 %v3872, %v3888
  %v3905 = vsub.f32 %v3873, %v3889
  %v3906 = vsub.f32 %v3874, %v3890
  %v3907 = vsub.f32 %v3875, %v3891
  %v3908 = vsub.f32 %v3876, %v3892
  %v3909 = vsub.f32 %v3877, %v3893
  %v3910 = vsub.f32 %v3878, %v3894
  %v3911 = vsub.f32 %v3879, %v3895
  %v3912 = vsub.f32 %v3880, %v3896
  %v3913 = vsub.f32 %v3881, %v3897
  %v3914 = vsub.f32 %v3882, %v3898
  %v3915 = vsub.f32 %v3883, %v3899
  %v3916 = vsub.f32 %v3884, %v3900
  %v3917 = vadd.f32 %v3853, %v3901
  %v3918 = vadd.f32 %v3854, %v3902
  %v3919 = vadd.f32 %v3855, %v3903
  %v3920 = vadd.f32 %v3856, %v3904
  %v3921 = vadd.f32 %v3857, %v3905
  %v3922 = vadd.f32 %v3858, %v3906
  %v3923 = vadd.f32 %v3859, %v3907
  %v3924 = vadd.f32 %v3860, %v3908
  %v3925 = vadd.f32 %v3861, %v3909
  %v3926 = vadd.f32 %v3862, %v3910
  %v3927 = vadd.f32 %v3863, %v3911
  %v3928 = vadd.f32 %v3864, %v3912
  %v3929 = vadd.f32 %v3865, %v3913
  %v3930 = vadd.f32 %v3866, %v3914
  %v3931 = vadd.f32 %v3867, %v3915
  %v3932 = vadd.f32 %v3868, %v3916
  %v3933 = vadd.f32 %v3917, %v79
  %v3934 = vadd.f32 %v3918, %v80
  %v3935 = vadd.f32 %v3919, %v81
  %v3936 = vadd.f32 %v3920, %v82
  %v3937 = vadd.f32 %v3921, %v83
  %v3938 = vadd.f32 %v3922, %v84
  %v3939 = vadd.f32 %v3923, %v85
  %v3940 = vadd.f32 %v3924, %v86
  %v3941 = vadd.f32 %v3925, %v87
  %v3942 = vadd.f32 %v3926, %v88
  %v3943 = vadd.f32 %v3927, %v89
  %v3944 = vadd.f32 %v3928, %v90
  %v3945 = vadd.f32 %v3929, %v91
  %v3946 = vadd.f32 %v3930, %v92
  %v3947 = vadd.f32 %v3931, %v93
  %v3948 = vadd.f32 %v3932, %v94
  %v3949 = vld [vmem:[%s2] sm:$0xff]
  %v3950 = vld [vmem:[%s2 + $0x8] sm:$0xff]
  %v3951 = vld [vmem:[%s2 + $0x10] sm:$0xff]
  %v3952 = vld [vmem:[%s2 + $0x18] sm:$0xff]
  %v3953 = vld [vmem:[%s2 + $0x20] sm:$0xff]
  %v3954 = vld [vmem:[%s2 + $0x28] sm:$0xff]
  %v3955 = vld [vmem:[%s2 + $0x30] sm:$0xff]
  %v3956 = vld [vmem:[%s2 + $0x38] sm:$0xff]
  %v3957 = vld [vmem:[%s2 + $0x40] sm:$0xff]
  %v3958 = vld [vmem:[%s2 + $0x48] sm:$0xff]
  %v3959 = vld [vmem:[%s2 + $0x50] sm:$0xff]
  %v3960 = vld [vmem:[%s2 + $0x58] sm:$0xff]
  %v3961 = vld [vmem:[%s2 + $0x60] sm:$0xff]
  %v3962 = vld [vmem:[%s2 + $0x68] sm:$0xff]
  %v3963 = vld [vmem:[%s2 + $0x70] sm:$0xff]
  %v3964 = vld [vmem:[%s2 + $0x78] sm:$0xff]
  %v3965 = vld [vmem:[%s2 + $0x80] sm:$0xff]
  %v3966 = vld [vmem:[%s2 + $0x88] sm:$0xff]
  %v3967 = vld [vmem:[%s2 + $0x90] sm:$0xff]
  %v3968 = vld [vmem:[%s2 + $0x98] sm:$0xff]
  %v3969 = vld [vmem:[%s2 + $0xa0] sm:$0xff]
  %v3970 = vld [vmem:[%s2 + $0xa8] sm:$0xff]
  %v3971 = vld [vmem:[%s2 + $0xb0] sm:$0xff]
  %v3972 = vld [vmem:[%s2 + $0xb8] sm:$0xff]
  %v3973 = vld [vmem:[%s2 + $0xc0] sm:$0xff]
  %v3974 = vld [vmem:[%s2 + $0xc8] sm:$0xff]
  %v3975 = vld [vmem:[%s2 + $0xd0] sm:$0xff]
  %v3976 = vld [vmem:[%s2 + $0xd8] sm:$0xff]
  %v3977 = vld [vmem:[%s2 + $0xe0] sm:$0xff]
  %v3978 = vld [vmem:[%s2 + $0xe8] sm:$0xff]
  %v3979 = vld [vmem:[%s2 + $0xf0] sm:$0xff]
  %v3980 = vld [vmem:[%s2 + $0xf8] sm:$0xff]
  %v3981 = vld [vmem:[%s2 + $0x100] sm:$0xff]
  %v3982 = vld [vmem:[%s2 + $0x108] sm:$0xff]
  %v3983 = vld [vmem:[%s2 + $0x110] sm:$0xff]
  %v3984 = vld [vmem:[%s2 + $0x118] sm:$0xff]
  %v3985 = vld [vmem:[%s2 + $0x120] sm:$0xff]
  %v3986 = vld [vmem:[%s2 + $0x128] sm:$0xff]
  %v3987 = vld [vmem:[%s2 + $0x130] sm:$0xff]
  %v3988 = vld [vmem:[%s2 + $0x138] sm:$0xff]
  %v3989 = vld [vmem:[%s2 + $0x140] sm:$0xff]
  %v3990 = vld [vmem:[%s2 + $0x148] sm:$0xff]
  %v3991 = vld [vmem:[%s2 + $0x150] sm:$0xff]
  %v3992 = vld [vmem:[%s2 + $0x158] sm:$0xff]
  %v3993 = vld [vmem:[%s2 + $0x160] sm:$0xff]
  %v3994 = vld [vmem:[%s2 + $0x168] sm:$0xff]
  %v3995 = vld [vmem:[%s2 + $0x170] sm:$0xff]
  %v3996 = vld [vmem:[%s2 + $0x178] sm:$0xff]
  %v3997 = vld [vmem:[%s2 + $0x180] sm:$0xff]
  %v3998 = vld [vmem:[%s2 + $0x188] sm:$0xff]
  %v3999 = vld [vmem:[%s2 + $0x190] sm:$0xff]
  %v4000 = vld [vmem:[%s2 + $0x198] sm:$0xff]
  %v4001 = vld [vmem:[%s2 + $0x1a0] sm:$0xff]
  %v4002 = vld [vmem:[%s2 + $0x1a8] sm:$0xff]
  %v4003 = vld [vmem:[%s2 + $0x1b0] sm:$0xff]
  %v4004 = vld [vmem:[%s2 + $0x1b8] sm:$0xff]
  %v4005 = vld [vmem:[%s2 + $0x1c0] sm:$0xff]
  %v4006 = vld [vmem:[%s2 + $0x1c8] sm:$0xff]
  %v4007 = vld [vmem:[%s2 + $0x1d0] sm:$0xff]
  %v4008 = vld [vmem:[%s2 + $0x1d8] sm:$0xff]
  %v4009 = vld [vmem:[%s2 + $0x1e0] sm:$0xff]
  %v4010 = vld [vmem:[%s2 + $0x1e8] sm:$0xff]
  %v4011 = vld [vmem:[%s2 + $0x1f0] sm:$0xff]
  %v4012 = vld [vmem:[%s2 + $0x1f8] sm:$0xff]
  %v4013 = vld [vmem:[%s2 + $0x200] sm:$0xff]
  %v4014 = vld [vmem:[%s2 + $0x208] sm:$0xff]
  %v4015 = vld [vmem:[%s2 + $0x210] sm:$0xff]
  %v4016 = vld [vmem:[%s2 + $0x218] sm:$0xff]
  %v4017 = vld [vmem:[%s2 + $0x220] sm:$0xff]
  %v4018 = vld [vmem:[%s2 + $0x228] sm:$0xff]
  %v4019 = vld [vmem:[%s2 + $0x230] sm:$0xff]
  %v4020 = vld [vmem:[%s2 + $0x238] sm:$0xff]
  %v4021 = vld [vmem:[%s2 + $0x240] sm:$0xff]
  %v4022 = vld [vmem:[%s2 + $0x248] sm:$0xff]
  %v4023 = vld [vmem:[%s2 + $0x250] sm:$0xff]
  %v4024 = vld [vmem:[%s2 + $0x258] sm:$0xff]
  %v4025 = vld [vmem:[%s2 + $0x260] sm:$0xff]
  %v4026 = vld [vmem:[%s2 + $0x268] sm:$0xff]
  %v4027 = vld [vmem:[%s2 + $0x270] sm:$0xff]
  %v4028 = vld [vmem:[%s2 + $0x278] sm:$0xff]
  %v4029 = vld [vmem:[%s2 + $0x280] sm:$0xff]
  %v4030 = vld [vmem:[%s2 + $0x288] sm:$0xff]
  %v4031 = vld [vmem:[%s2 + $0x290] sm:$0xff]
  %v4032 = vld [vmem:[%s2 + $0x298] sm:$0xff]
  %v4033 = vld [vmem:[%s2 + $0x2a0] sm:$0xff]
  %v4034 = vld [vmem:[%s2 + $0x2a8] sm:$0xff]
  %v4035 = vld [vmem:[%s2 + $0x2b0] sm:$0xff]
  %v4036 = vld [vmem:[%s2 + $0x2b8] sm:$0xff]
  %v4037 = vld [vmem:[%s2 + $0x2c0] sm:$0xff]
  %v4038 = vld [vmem:[%s2 + $0x2c8] sm:$0xff]
  %v4039 = vld [vmem:[%s2 + $0x2d0] sm:$0xff]
  %v4040 = vld [vmem:[%s2 + $0x2d8] sm:$0xff]
  %v4041 = vld [vmem:[%s2 + $0x2e0] sm:$0xff]
  %v4042 = vld [vmem:[%s2 + $0x2e8] sm:$0xff]
  %v4043 = vld [vmem:[%s2 + $0x2f0] sm:$0xff]
  %v4044 = vld [vmem:[%s2 + $0x2f8] sm:$0xff]
  %v4045 = vld [vmem:[%s2 + $0x300] sm:$0xff]
  %v4046 = vld [vmem:[%s2 + $0x308] sm:$0xff]
  %v4047 = vld [vmem:[%s2 + $0x310] sm:$0xff]
  %v4048 = vld [vmem:[%s2 + $0x318] sm:$0xff]
  %v4049 = vld [vmem:[%s2 + $0x320] sm:$0xff]
  %v4050 = vld [vmem:[%s2 + $0x328] sm:$0xff]
  %v4051 = vld [vmem:[%s2 + $0x330] sm:$0xff]
  %v4052 = vld [vmem:[%s2 + $0x338] sm:$0xff]
  %v4053 = vld [vmem:[%s2 + $0x340] sm:$0xff]
  %v4054 = vld [vmem:[%s2 + $0x348] sm:$0xff]
  %v4055 = vld [vmem:[%s2 + $0x350] sm:$0xff]
  %v4056 = vld [vmem:[%s2 + $0x358] sm:$0xff]
  %v4057 = vld [vmem:[%s2 + $0x360] sm:$0xff]
  %v4058 = vld [vmem:[%s2 + $0x368] sm:$0xff]
  %v4059 = vld [vmem:[%s2 + $0x370] sm:$0xff]
  %v4060 = vld [vmem:[%s2 + $0x378] sm:$0xff]
  %v4061 = vld [vmem:[%s2 + $0x380] sm:$0xff]
  %v4062 = vld [vmem:[%s2 + $0x388] sm:$0xff]
  %v4063 = vld [vmem:[%s2 + $0x390] sm:$0xff]
  %v4064 = vld [vmem:[%s2 + $0x398] sm:$0xff]
  %v4065 = vld [vmem:[%s2 + $0x3a0] sm:$0xff]
  %v4066 = vld [vmem:[%s2 + $0x3a8] sm:$0xff]
  %v4067 = vld [vmem:[%s2 + $0x3b0] sm:$0xff]
  %v4068 = vld [vmem:[%s2 + $0x3b8] sm:$0xff]
  %v4069 = vld [vmem:[%s2 + $0x3c0] sm:$0xff]
  %v4070 = vld [vmem:[%s2 + $0x3c8] sm:$0xff]
  %v4071 = vld [vmem:[%s2 + $0x3d0] sm:$0xff]
  %v4072 = vld [vmem:[%s2 + $0x3d8] sm:$0xff]
  %v4073 = vld [vmem:[%s2 + $0x3e0] sm:$0xff]
  %v4074 = vld [vmem:[%s2 + $0x3e8] sm:$0xff]
  %v4075 = vld [vmem:[%s2 + $0x3f0] sm:$0xff]
  %v4076 = vld [vmem:[%s2 + $0x3f8] sm:$0xff]
  %v4077 = vpack.c.bf16 %v3937, %v3933
  %v4078 = vpack.c.bf16 %v3938, %v3934
  %v4079 = vpack.c.bf16 %v3939, %v3935
  %v4080 = vpack.c.bf16 %v3940, %v3936
  %v4081 = vpack.c.bf16 %v3945, %v3941
  %v4082 = vpack.c.bf16 %v3946, %v3942
  %v4083 = vpack.c.bf16 %v3947, %v3943
  %v4084 = vpack.c.bf16 %v3948, %v3944
  %v4213 = vunpack.c.l.b16 %v3949
  %v4214 = vunpack.c.h.b16 %v3949
  %v4215 = vunpack.c.l.b16 %v3950
  %v4216 = vunpack.c.h.b16 %v3950
  %v4217 = vunpack.c.l.b16 %v3951
  %v4218 = vunpack.c.h.b16 %v3951
  %v4219 = vunpack.c.l.b16 %v3952
  %v4220 = vunpack.c.h.b16 %v3952
  %v4221 = vunpack.c.l.b16 %v3953
  %v4222 = vunpack.c.h.b16 %v3953
  %v4223 = vunpack.c.l.b16 %v3954
  %v4224 = vunpack.c.h.b16 %v3954
  %v4225 = vunpack.c.l.b16 %v3955
  %v4226 = vunpack.c.h.b16 %v3955
  %v4227 = vunpack.c.l.b16 %v3956
  %v4228 = vunpack.c.h.b16 %v3956
  %v4229 = vunpack.c.l.b16 %v3957
  %v4230 = vunpack.c.h.b16 %v3957
  %v4231 = vunpack.c.l.b16 %v3958
  %v4232 = vunpack.c.h.b16 %v3958
  %v4233 = vunpack.c.l.b16 %v3959
  %v4234 = vunpack.c.h.b16 %v3959
  %v4235 = vunpack.c.l.b16 %v3960
  %v4236 = vunpack.c.h.b16 %v3960
  %v4237 = vunpack.c.l.b16 %v3961
  %v4238 = vunpack.c.h.b16 %v3961
  %v4239 = vunpack.c.l.b16 %v3962
  %v4240 = vunpack.c.h.b16 %v3962
  %v4241 = vunpack.c.l.b16 %v3963
  %v4242 = vunpack.c.h.b16 %v3963
  %v4243 = vunpack.c.l.b16 %v3964
  %v4244 = vunpack.c.h.b16 %v3964
  %v4245 = vunpack.c.l.b16 %v3965
  %v4246 = vunpack.c.h.b16 %v3965
  %v4247 = vunpack.c.l.b16 %v3966
  %v4248 = vunpack.c.h.b16 %v3966
  %v4249 = vunpack.c.l.b16 %v3967
  %v4250 = vunpack.c.h.b16 %v3967
  %v4251 = vunpack.c.l.b16 %v3968
  %v4252 = vunpack.c.h.b16 %v3968
  %v4253 = vunpack.c.l.b16 %v3969
  %v4254 = vunpack.c.h.b16 %v3969
  %v4255 = vunpack.c.l.b16 %v3970
  %v4256 = vunpack.c.h.b16 %v3970
  %v4257 = vunpack.c.l.b16 %v3971
  %v4258 = vunpack.c.h.b16 %v3971
  %v4259 = vunpack.c.l.b16 %v3972
  %v4260 = vunpack.c.h.b16 %v3972
  %v4261 = vunpack.c.l.b16 %v3973
  %v4262 = vunpack.c.h.b16 %v3973
  %v4263 = vunpack.c.l.b16 %v3974
  %v4264 = vunpack.c.h.b16 %v3974
  %v4265 = vunpack.c.l.b16 %v3975
  %v4266 = vunpack.c.h.b16 %v3975
  %v4267 = vunpack.c.l.b16 %v3976
  %v4268 = vunpack.c.h.b16 %v3976
  %v4269 = vunpack.c.l.b16 %v3977
  %v4270 = vunpack.c.h.b16 %v3977
  %v4271 = vunpack.c.l.b16 %v3978
  %v4272 = vunpack.c.h.b16 %v3978
  %v4273 = vunpack.c.l.b16 %v3979
  %v4274 = vunpack.c.h.b16 %v3979
  %v4275 = vunpack.c.l.b16 %v3980
  %v4276 = vunpack.c.h.b16 %v3980
  %v4277 = vunpack.c.l.b16 %v3981
  %v4278 = vunpack.c.h.b16 %v3981
  %v4279 = vunpack.c.l.b16 %v3982
  %v4280 = vunpack.c.h.b16 %v3982
  %v4281 = vunpack.c.l.b16 %v3983
  %v4282 = vunpack.c.h.b16 %v3983
  %v4283 = vunpack.c.l.b16 %v3984
  %v4284 = vunpack.c.h.b16 %v3984
  %v4285 = vunpack.c.l.b16 %v3985
  %v4286 = vunpack.c.h.b16 %v3985
  %v4287 = vunpack.c.l.b16 %v3986
  %v4288 = vunpack.c.h.b16 %v3986
  %v4289 = vunpack.c.l.b16 %v3987
  %v4290 = vunpack.c.h.b16 %v3987
  %v4291 = vunpack.c.l.b16 %v3988
  %v4292 = vunpack.c.h.b16 %v3988
  %v4293 = vunpack.c.l.b16 %v3989
  %v4294 = vunpack.c.h.b16 %v3989
  %v4295 = vunpack.c.l.b16 %v3990
  %v4296 = vunpack.c.h.b16 %v3990
  %v4297 = vunpack.c.l.b16 %v3991
  %v4298 = vunpack.c.h.b16 %v3991
  %v4299 = vunpack.c.l.b16 %v3992
  %v4300 = vunpack.c.h.b16 %v3992
  %v4301 = vunpack.c.l.b16 %v3993
  %v4302 = vunpack.c.h.b16 %v3993
  %v4303 = vunpack.c.l.b16 %v3994
  %v4304 = vunpack.c.h.b16 %v3994
  %v4305 = vunpack.c.l.b16 %v3995
  %v4306 = vunpack.c.h.b16 %v3995
  %v4307 = vunpack.c.l.b16 %v3996
  %v4308 = vunpack.c.h.b16 %v3996
  %v4309 = vunpack.c.l.b16 %v3997
  %v4310 = vunpack.c.h.b16 %v3997
  %v4311 = vunpack.c.l.b16 %v3998
  %v4312 = vunpack.c.h.b16 %v3998
  %v4313 = vunpack.c.l.b16 %v3999
  %v4314 = vunpack.c.h.b16 %v3999
  %v4315 = vunpack.c.l.b16 %v4000
  %v4316 = vunpack.c.h.b16 %v4000
  %v4317 = vunpack.c.l.b16 %v4001
  %v4318 = vunpack.c.h.b16 %v4001
  %v4319 = vunpack.c.l.b16 %v4002
  %v4320 = vunpack.c.h.b16 %v4002
  %v4321 = vunpack.c.l.b16 %v4003
  %v4322 = vunpack.c.h.b16 %v4003
  %v4323 = vunpack.c.l.b16 %v4004
  %v4324 = vunpack.c.h.b16 %v4004
  %v4325 = vunpack.c.l.b16 %v4005
  %v4326 = vunpack.c.h.b16 %v4005
  %v4327 = vunpack.c.l.b16 %v4006
  %v4328 = vunpack.c.h.b16 %v4006
  %v4329 = vunpack.c.l.b16 %v4007
  %v4330 = vunpack.c.h.b16 %v4007
  %v4331 = vunpack.c.l.b16 %v4008
  %v4332 = vunpack.c.h.b16 %v4008
  %v4333 = vunpack.c.l.b16 %v4009
  %v4334 = vunpack.c.h.b16 %v4009
  %v4335 = vunpack.c.l.b16 %v4010
  %v4336 = vunpack.c.h.b16 %v4010
  %v4337 = vunpack.c.l.b16 %v4011
  %v4338 = vunpack.c.h.b16 %v4011
  %v4339 = vunpack.c.l.b16 %v4012
  %v4340 = vunpack.c.h.b16 %v4012
  %v4341 = vunpack.c.l.b16 %v4013
  %v4342 = vunpack.c.h.b16 %v4013
  %v4343 = vunpack.c.l.b16 %v4014
  %v4344 = vunpack.c.h.b16 %v4014
  %v4345 = vunpack.c.l.b16 %v4015
  %v4346 = vunpack.c.h.b16 %v4015
  %v4347 = vunpack.c.l.b16 %v4016
  %v4348 = vunpack.c.h.b16 %v4016
  %v4349 = vunpack.c.l.b16 %v4017
  %v4350 = vunpack.c.h.b16 %v4017
  %v4351 = vunpack.c.l.b16 %v4018
  %v4352 = vunpack.c.h.b16 %v4018
  %v4353 = vunpack.c.l.b16 %v4019
  %v4354 = vunpack.c.h.b16 %v4019
  %v4355 = vunpack.c.l.b16 %v4020
  %v4356 = vunpack.c.h.b16 %v4020
  %v4357 = vunpack.c.l.b16 %v4021
  %v4358 = vunpack.c.h.b16 %v4021
  %v4359 = vunpack.c.l.b16 %v4022
  %v4360 = vunpack.c.h.b16 %v4022
  %v4361 = vunpack.c.l.b16 %v4023
  %v4362 = vunpack.c.h.b16 %v4023
  %v4363 = vunpack.c.l.b16 %v4024
  %v4364 = vunpack.c.h.b16 %v4024
  %v4365 = vunpack.c.l.b16 %v4025
  %v4366 = vunpack.c.h.b16 %v4025
  %v4367 = vunpack.c.l.b16 %v4026
  %v4368 = vunpack.c.h.b16 %v4026
  %v4369 = vunpack.c.l.b16 %v4027
  %v4370 = vunpack.c.h.b16 %v4027
  %v4371 = vunpack.c.l.b16 %v4028
  %v4372 = vunpack.c.h.b16 %v4028
  %v4373 = vunpack.c.l.b16 %v4029
  %v4374 = vunpack.c.h.b16 %v4029
  %v4375 = vunpack.c.l.b16 %v4030
  %v4376 = vunpack.c.h.b16 %v4030
  %v4377 = vunpack.c.l.b16 %v4031
  %v4378 = vunpack.c.h.b16 %v4031
  %v4379 = vunpack.c.l.b16 %v4032
  %v4380 = vunpack.c.h.b16 %v4032
  %v4381 = vunpack.c.l.b16 %v4033
  %v4382 = vunpack.c.h.b16 %v4033
  %v4383 = vunpack.c.l.b16 %v4034
  %v4384 = vunpack.c.h.b16 %v4034
  %v4385 = vunpack.c.l.b16 %v4035
  %v4386 = vunpack.c.h.b16 %v4035
  %v4387 = vunpack.c.l.b16 %v4036
  %v4388 = vunpack.c.h.b16 %v4036
  %v4389 = vunpack.c.l.b16 %v4037
  %v4390 = vunpack.c.h.b16 %v4037
  %v4391 = vunpack.c.l.b16 %v4038
  %v4392 = vunpack.c.h.b16 %v4038
  %v4393 = vunpack.c.l.b16 %v4039
  %v4394 = vunpack.c.h.b16 %v4039
  %v4395 = vunpack.c.l.b16 %v4040
  %v4396 = vunpack.c.h.b16 %v4040
  %v4397 = vunpack.c.l.b16 %v4041
  %v4398 = vunpack.c.h.b16 %v4041
  %v4399 = vunpack.c.l.b16 %v4042
  %v4400 = vunpack.c.h.b16 %v4042
  %v4401 = vunpack.c.l.b16 %v4043
  %v4402 = vunpack.c.h.b16 %v4043
  %v4403 = vunpack.c.l.b16 %v4044
  %v4404 = vunpack.c.h.b16 %v4044
  %v4405 = vunpack.c.l.b16 %v4045
  %v4406 = vunpack.c.h.b16 %v4045
  %v4407 = vunpack.c.l.b16 %v4046
  %v4408 = vunpack.c.h.b16 %v4046
  %v4409 = vunpack.c.l.b16 %v4047
  %v4410 = vunpack.c.h.b16 %v4047
  %v4411 = vunpack.c.l.b16 %v4048
  %v4412 = vunpack.c.h.b16 %v4048
  %v4413 = vunpack.c.l.b16 %v4049
  %v4414 = vunpack.c.h.b16 %v4049
  %v4415 = vunpack.c.l.b16 %v4050
  %v4416 = vunpack.c.h.b16 %v4050
  %v4417 = vunpack.c.l.b16 %v4051
  %v4418 = vunpack.c.h.b16 %v4051
  %v4419 = vunpack.c.l.b16 %v4052
  %v4420 = vunpack.c.h.b16 %v4052
  %v4421 = vunpack.c.l.b16 %v4053
  %v4422 = vunpack.c.h.b16 %v4053
  %v4423 = vunpack.c.l.b16 %v4054
  %v4424 = vunpack.c.h.b16 %v4054
  %v4425 = vunpack.c.l.b16 %v4055
  %v4426 = vunpack.c.h.b16 %v4055
  %v4427 = vunpack.c.l.b16 %v4056
  %v4428 = vunpack.c.h.b16 %v4056
  %v4429 = vunpack.c.l.b16 %v4057
  %v4430 = vunpack.c.h.b16 %v4057
  %v4431 = vunpack.c.l.b16 %v4058
  %v4432 = vunpack.c.h.b16 %v4058
  %v4433 = vunpack.c.l.b16 %v4059
  %v4434 = vunpack.c.h.b16 %v4059
  %v4435 = vunpack.c.l.b16 %v4060
  %v4436 = vunpack.c.h.b16 %v4060
  %v4437 = vunpack.c.l.b16 %v4061
  %v4438 = vunpack.c.h.b16 %v4061
  %v4439 = vunpack.c.l.b16 %v4062
  %v4440 = vunpack.c.h.b16 %v4062
  %v4441 = vunpack.c.l.b16 %v4063
  %v4442 = vunpack.c.h.b16 %v4063
  %v4443 = vunpack.c.l.b16 %v4064
  %v4444 = vunpack.c.h.b16 %v4064
  %v4445 = vunpack.c.l.b16 %v4065
  %v4446 = vunpack.c.h.b16 %v4065
  %v4447 = vunpack.c.l.b16 %v4066
  %v4448 = vunpack.c.h.b16 %v4066
  %v4449 = vunpack.c.l.b16 %v4067
  %v4450 = vunpack.c.h.b16 %v4067
  %v4451 = vunpack.c.l.b16 %v4068
  %v4452 = vunpack.c.h.b16 %v4068
  %v4453 = vunpack.c.l.b16 %v4069
  %v4454 = vunpack.c.h.b16 %v4069
  %v4455 = vunpack.c.l.b16 %v4070
  %v4456 = vunpack.c.h.b16 %v4070
  %v4457 = vunpack.c.l.b16 %v4071
  %v4458 = vunpack.c.h.b16 %v4071
  %v4459 = vunpack.c.l.b16 %v4072
  %v4460 = vunpack.c.h.b16 %v4072
  %v4461 = vunpack.c.l.b16 %v4073
  %v4462 = vunpack.c.h.b16 %v4073
  %v4463 = vunpack.c.l.b16 %v4074
  %v4464 = vunpack.c.h.b16 %v4074
  %v4465 = vunpack.c.l.b16 %v4075
  %v4466 = vunpack.c.h.b16 %v4075
  %v4467 = vunpack.c.l.b16 %v4076
  %v4468 = vunpack.c.h.b16 %v4076
  %v4469 = vpack.c.b16 %v4217, %v4213
  %v4470 = vpack.c.b16 %v4218, %v4214
  %v4471 = vpack.c.b16 %v4219, %v4215
  %v4472 = vpack.c.b16 %v4220, %v4216
  %v4473 = vpack.c.b16 %v4225, %v4221
  %v4474 = vpack.c.b16 %v4226, %v4222
  %v4475 = vpack.c.b16 %v4227, %v4223
  %v4476 = vpack.c.b16 %v4228, %v4224
  %v4477 = vpack.c.b16 %v4233, %v4229
  %v4478 = vpack.c.b16 %v4234, %v4230
  %v4479 = vpack.c.b16 %v4235, %v4231
  %v4480 = vpack.c.b16 %v4236, %v4232
  %v4481 = vpack.c.b16 %v4241, %v4237
  %v4482 = vpack.c.b16 %v4242, %v4238
  %v4483 = vpack.c.b16 %v4243, %v4239
  %v4484 = vpack.c.b16 %v4244, %v4240
  %v4485 = vpack.c.b16 %v4249, %v4245
  %v4486 = vpack.c.b16 %v4250, %v4246
  %v4487 = vpack.c.b16 %v4251, %v4247
  %v4488 = vpack.c.b16 %v4252, %v4248
  %v4489 = vpack.c.b16 %v4257, %v4253
  %v4490 = vpack.c.b16 %v4258, %v4254
  %v4491 = vpack.c.b16 %v4259, %v4255
  %v4492 = vpack.c.b16 %v4260, %v4256
  %v4493 = vpack.c.b16 %v4265, %v4261
  %v4494 = vpack.c.b16 %v4266, %v4262
  %v4495 = vpack.c.b16 %v4267, %v4263
  %v4496 = vpack.c.b16 %v4268, %v4264
  %v4497 = vpack.c.b16 %v4273, %v4269
  %v4498 = vpack.c.b16 %v4274, %v4270
  %v4499 = vpack.c.b16 %v4275, %v4271
  %v4500 = vpack.c.b16 %v4276, %v4272
  %v4501 = vpack.c.b16 %v4281, %v4277
  %v4502 = vpack.c.b16 %v4282, %v4278
  %v4503 = vpack.c.b16 %v4283, %v4279
  %v4504 = vpack.c.b16 %v4284, %v4280
  %v4505 = vpack.c.b16 %v4289, %v4285
  %v4506 = vpack.c.b16 %v4290, %v4286
  %v4507 = vpack.c.b16 %v4291, %v4287
  %v4508 = vpack.c.b16 %v4292, %v4288
  %v4509 = vpack.c.b16 %v4297, %v4293
  %v4510 = vpack.c.b16 %v4298, %v4294
  %v4511 = vpack.c.b16 %v4299, %v4295
  %v4512 = vpack.c.b16 %v4300, %v4296
  %v4513 = vpack.c.b16 %v4305, %v4301
  %v4514 = vpack.c.b16 %v4306, %v4302
  %v4515 = vpack.c.b16 %v4307, %v4303
  %v4516 = vpack.c.b16 %v4308, %v4304
  %v4517 = vpack.c.b16 %v4313, %v4309
  %v4518 = vpack.c.b16 %v4314, %v4310
  %v4519 = vpack.c.b16 %v4315, %v4311
  %v4520 = vpack.c.b16 %v4316, %v4312
  %v4521 = vpack.c.b16 %v4321, %v4317
  %v4522 = vpack.c.b16 %v4322, %v4318
  %v4523 = vpack.c.b16 %v4323, %v4319
  %v4524 = vpack.c.b16 %v4324, %v4320
  %v4525 = vpack.c.b16 %v4329, %v4325
  %v4526 = vpack.c.b16 %v4330, %v4326
  %v4527 = vpack.c.b16 %v4331, %v4327
  %v4528 = vpack.c.b16 %v4332, %v4328
  %v4529 = vpack.c.b16 %v4337, %v4333
  %v4530 = vpack.c.b16 %v4338, %v4334
  %v4531 = vpack.c.b16 %v4339, %v4335
  %v4532 = vpack.c.b16 %v4340, %v4336
  %v4533 = vpack.c.b16 %v4345, %v4341
  %v4534 = vpack.c.b16 %v4346, %v4342
  %v4535 = vpack.c.b16 %v4347, %v4343
  %v4536 = vpack.c.b16 %v4348, %v4344
  %v4537 = vpack.c.b16 %v4353, %v4349
  %v4538 = vpack.c.b16 %v4354, %v4350
  %v4539 = vpack.c.b16 %v4355, %v4351
  %v4540 = vpack.c.b16 %v4356, %v4352
  %v4541 = vpack.c.b16 %v4361, %v4357
  %v4542 = vpack.c.b16 %v4362, %v4358
  %v4543 = vpack.c.b16 %v4363, %v4359
  %v4544 = vpack.c.b16 %v4364, %v4360
  %v4545 = vpack.c.b16 %v4369, %v4365
  %v4546 = vpack.c.b16 %v4370, %v4366
  %v4547 = vpack.c.b16 %v4371, %v4367
  %v4548 = vpack.c.b16 %v4372, %v4368
  %v4549 = vpack.c.b16 %v4377, %v4373
  %v4550 = vpack.c.b16 %v4378, %v4374
  %v4551 = vpack.c.b16 %v4379, %v4375
  %v4552 = vpack.c.b16 %v4380, %v4376
  %v4553 = vpack.c.b16 %v4385, %v4381
  %v4554 = vpack.c.b16 %v4386, %v4382
  %v4555 = vpack.c.b16 %v4387, %v4383
  %v4556 = vpack.c.b16 %v4388, %v4384
  %v4557 = vpack.c.b16 %v4393, %v4389
  %v4558 = vpack.c.b16 %v4394, %v4390
  %v4559 = vpack.c.b16 %v4395, %v4391
  %v4560 = vpack.c.b16 %v4396, %v4392
  %v4561 = vpack.c.b16 %v4401, %v4397
  %v4562 = vpack.c.b16 %v4402, %v4398
  %v4563 = vpack.c.b16 %v4403, %v4399
  %v4564 = vpack.c.b16 %v4404, %v4400
  %v4565 = vpack.c.b16 %v4409, %v4405
  %v4566 = vpack.c.b16 %v4410, %v4406
  %v4567 = vpack.c.b16 %v4411, %v4407
  %v4568 = vpack.c.b16 %v4412, %v4408
  %v4569 = vpack.c.b16 %v4417, %v4413
  %v4570 = vpack.c.b16 %v4418, %v4414
  %v4571 = vpack.c.b16 %v4419, %v4415
  %v4572 = vpack.c.b16 %v4420, %v4416
  %v4573 = vpack.c.b16 %v4425, %v4421
  %v4574 = vpack.c.b16 %v4426, %v4422
  %v4575 = vpack.c.b16 %v4427, %v4423
  %v4576 = vpack.c.b16 %v4428, %v4424
  %v4577 = vpack.c.b16 %v4433, %v4429
  %v4578 = vpack.c.b16 %v4434, %v4430
  %v4579 = vpack.c.b16 %v4435, %v4431
  %v4580 = vpack.c.b16 %v4436, %v4432
  %v4581 = vpack.c.b16 %v4441, %v4437
  %v4582 = vpack.c.b16 %v4442, %v4438
  %v4583 = vpack.c.b16 %v4443, %v4439
  %v4584 = vpack.c.b16 %v4444, %v4440
  %v4585 = vpack.c.b16 %v4449, %v4445
  %v4586 = vpack.c.b16 %v4450, %v4446
  %v4587 = vpack.c.b16 %v4451, %v4447
  %v4588 = vpack.c.b16 %v4452, %v4448
  %v4589 = vpack.c.b16 %v4457, %v4453
  %v4590 = vpack.c.b16 %v4458, %v4454
  %v4591 = vpack.c.b16 %v4459, %v4455
  %v4592 = vpack.c.b16 %v4460, %v4456
  %v4593 = vpack.c.b16 %v4465, %v4461
  %v4594 = vpack.c.b16 %v4466, %v4462
  %v4595 = vpack.c.b16 %v4467, %v4463
  %v4596 = vpack.c.b16 %v4468, %v4464
  %4725 = vmatprep.subr.bf16.mxu0 %v4498
  %4726 = vmatpush1.bf16.msra.mxu0 %v4497
  %4727 = vmatprep.subr.bf16.mxu0 %v4494
  %4728 = vmatpush1.bf16.msra.mxu0 %v4493
  %4729 = vmatprep.subr.bf16.mxu0 %v4490
  %4730 = vmatpush1.bf16.msra.mxu0 %v4489
  %4731 = vmatprep.subr.bf16.mxu0 %v4486
  %4732 = vmatpush1.bf16.msra.mxu0 %v4485
  %4733 = vmatprep.subr.bf16.mxu0 %v4482
  %4734 = vmatpush1.bf16.msra.mxu0 %v4481
  %4735 = vmatprep.subr.bf16.mxu0 %v4478
  %4736 = vmatpush1.bf16.msra.mxu0 %v4477
  %4737 = vmatprep.subr.bf16.mxu0 %v4474
  %4738 = vmatpush1.bf16.msra.mxu0 %v4473
  %4739 = vmatprep.subr.bf16.mxu0 %v4470
  %4740 = vmatpush1.bf16.msra.mxu0 %v4469
  %4741 = vmatprep.subr.bf16.mxu0 %v4530
  %4742 = vmatpush2.bf16.msra.mxu0 %v4529
  %4743 = vmatprep.subr.bf16.mxu0 %v4526
  %4744 = vmatpush2.bf16.msra.mxu0 %v4525
  %4745 = vmatprep.subr.bf16.mxu0 %v4522
  %4746 = vmatpush2.bf16.msra.mxu0 %v4521
  %4747 = vmatprep.subr.bf16.mxu0 %v4518
  %4748 = vmatpush2.bf16.msra.mxu0 %v4517
  %4749 = vmatprep.subr.bf16.mxu0 %v4514
  %4750 = vmatpush2.bf16.msra.mxu0 %v4513
  %4751 = vmatprep.subr.bf16.mxu0 %v4510
  %4752 = vmatpush2.bf16.msra.mxu0 %v4509
  %4753 = vmatprep.subr.bf16.mxu0 %v4506
  %4754 = vmatpush2.bf16.msra.mxu0 %v4505
  %4755 = vmatprep.subr.bf16.mxu0 %v4502
  %4756 = vmatpush2.bf16.msra.mxu0 %v4501
  %4757 = vmatprep.mubr.bf16.mxu0 %v4078
  %4758 = vmatmul.mubr.bf16.gmra.mxu0 %v4077
  %v4759 = vpop.f32.mrf.mxu0
  %v4760 = vadd.f32 0.0, %v4759
  %v4761 = vpop.f32.mrf.mxu0
  %v4762 = vadd.f32 0.0, %v4761
  %v4763 = vpop.f32.mrf.mxu0
  %v4764 = vadd.f32 0.0, %v4763
  %v4765 = vpop.f32.mrf.mxu0
  %v4766 = vadd.f32 0.0, %v4765
  %4767 = vmatprep.mubr.bf16.mxu0 %v4082
  %4768 = vmatmul.mubr.bf16.gmra.mxu0 %v4081
  %v4769 = vpop.f32.mrf.mxu0
  %v4770 = vadd.f32 0.0, %v4769
  %v4771 = vpop.f32.mrf.mxu0
  %v4772 = vadd.f32 0.0, %v4771
  %v4773 = vpop.f32.mrf.mxu0
  %v4774 = vadd.f32 0.0, %v4773
  %v4775 = vpop.f32.mrf.mxu0
  %v4776 = vadd.f32 0.0, %v4775
  %4777 = vdwg.mxu0
  %4778 = vmatprep.subr.bf16.mxu0 %v4562
  %4779 = vmatpush1.bf16.msra.mxu0 %v4561
  %4780 = vmatprep.subr.bf16.mxu0 %v4558
  %4781 = vmatpush1.bf16.msra.mxu0 %v4557
  %4782 = vmatprep.subr.bf16.mxu0 %v4554
  %4783 = vmatpush1.bf16.msra.mxu0 %v4553
  %4784 = vmatprep.subr.bf16.mxu0 %v4550
  %4785 = vmatpush1.bf16.msra.mxu0 %v4549
  %4786 = vmatprep.subr.bf16.mxu0 %v4546
  %4787 = vmatpush1.bf16.msra.mxu0 %v4545
  %4788 = vmatprep.subr.bf16.mxu0 %v4542
  %4789 = vmatpush1.bf16.msra.mxu0 %v4541
  %4790 = vmatprep.subr.bf16.mxu0 %v4538
  %4791 = vmatpush1.bf16.msra.mxu0 %v4537
  %4792 = vmatprep.subr.bf16.mxu0 %v4534
  %4793 = vmatpush1.bf16.msra.mxu0 %v4533
  %4794 = vmatprep.subr.bf16.mxu0 %v4594
  %4795 = vmatpush2.bf16.msra.mxu0 %v4593
  %4796 = vmatprep.subr.bf16.mxu0 %v4590
  %4797 = vmatpush2.bf16.msra.mxu0 %v4589
  %4798 = vmatprep.subr.bf16.mxu0 %v4586
  %4799 = vmatpush2.bf16.msra.mxu0 %v4585
  %4800 = vmatprep.subr.bf16.mxu0 %v4582
  %4801 = vmatpush2.bf16.msra.mxu0 %v4581
  %4802 = vmatprep.subr.bf16.mxu0 %v4578
  %4803 = vmatpush2.bf16.msra.mxu0 %v4577
  %4804 = vmatprep.subr.bf16.mxu0 %v4574
  %4805 = vmatpush2.bf16.msra.mxu0 %v4573
  %4806 = vmatprep.subr.bf16.mxu0 %v4570
  %4807 = vmatpush2.bf16.msra.mxu0 %v4569
  %4808 = vmatprep.subr.bf16.mxu0 %v4566
  %4809 = vmatpush2.bf16.msra.mxu0 %v4565
  %4810 = vmatprep.mubr.bf16.mxu0 %v4080
  %4811 = vmatmul.mubr.bf16.gmra.mxu0 %v4079
  %v4812 = vpop.f32.mrf.mxu0
  %v4813 = vadd.f32 %v4760, %v4812
  %v4814 = vpop.f32.mrf.mxu0
  %v4815 = vadd.f32 %v4762, %v4814
  %v4816 = vpop.f32.mrf.mxu0
  %v4817 = vadd.f32 %v4764, %v4816
  %v4818 = vpop.f32.mrf.mxu0
  %v4819 = vadd.f32 %v4766, %v4818
  %4820 = vmatprep.mubr.bf16.mxu0 %v4084
  %4821 = vmatmul.mubr.bf16.gmra.mxu0 %v4083
  %v4822 = vpop.f32.mrf.mxu0
  %v4823 = vadd.f32 %v4770, %v4822
  %v4824 = vpop.f32.mrf.mxu0
  %v4825 = vadd.f32 %v4772, %v4824
  %v4826 = vpop.f32.mrf.mxu0
  %v4827 = vadd.f32 %v4774, %v4826
  %v4828 = vpop.f32.mrf.mxu0
  %v4829 = vadd.f32 %v4776, %v4828
  %4830 = vdwg.mxu0
  %4831 = vmatprep.subr.bf16.mxu0 %v4500
  %4832 = vmatpush1.bf16.msra.mxu0 %v4499
  %4833 = vmatprep.subr.bf16.mxu0 %v4496
  %4834 = vmatpush1.bf16.msra.mxu0 %v4495
  %4835 = vmatprep.subr.bf16.mxu0 %v4492
  %4836 = vmatpush1.bf16.msra.mxu0 %v4491
  %4837 = vmatprep.subr.bf16.mxu0 %v4488
  %4838 = vmatpush1.bf16.msra.mxu0 %v4487
  %4839 = vmatprep.subr.bf16.mxu0 %v4484
  %4840 = vmatpush1.bf16.msra.mxu0 %v4483
  %4841 = vmatprep.subr.bf16.mxu0 %v4480
  %4842 = vmatpush1.bf16.msra.mxu0 %v4479
  %4843 = vmatprep.subr.bf16.mxu0 %v4476
  %4844 = vmatpush1.bf16.msra.mxu0 %v4475
  %4845 = vmatprep.subr.bf16.mxu0 %v4472
  %4846 = vmatpush1.bf16.msra.mxu0 %v4471
  %4847 = vmatprep.subr.bf16.mxu0 %v4532
  %4848 = vmatpush2.bf16.msra.mxu0 %v4531
  %4849 = vmatprep.subr.bf16.mxu0 %v4528
  %4850 = vmatpush2.bf16.msra.mxu0 %v4527
  %4851 = vmatprep.subr.bf16.mxu0 %v4524
  %4852 = vmatpush2.bf16.msra.mxu0 %v4523
  %4853 = vmatprep.subr.bf16.mxu0 %v4520
  %4854 = vmatpush2.bf16.msra.mxu0 %v4519
  %4855 = vmatprep.subr.bf16.mxu0 %v4516
  %4856 = vmatpush2.bf16.msra.mxu0 %v4515
  %4857 = vmatprep.subr.bf16.mxu0 %v4512
  %4858 = vmatpush2.bf16.msra.mxu0 %v4511
  %4859 = vmatprep.subr.bf16.mxu0 %v4508
  %4860 = vmatpush2.bf16.msra.mxu0 %v4507
  %4861 = vmatprep.subr.bf16.mxu0 %v4504
  %4862 = vmatpush2.bf16.msra.mxu0 %v4503
  %4863 = vmatprep.mubr.bf16.mxu0 %v4078
  %4864 = vmatmul.mubr.bf16.gmra.mxu0 %v4077
  %v4865 = vpop.f32.mrf.mxu0
  %v4866 = vadd.f32 0.0, %v4865
  %v4867 = vpop.f32.mrf.mxu0
  %v4868 = vadd.f32 0.0, %v4867
  %v4869 = vpop.f32.mrf.mxu0
  %v4870 = vadd.f32 0.0, %v4869
  %v4871 = vpop.f32.mrf.mxu0
  %v4872 = vadd.f32 0.0, %v4871
  %4873 = vmatprep.mubr.bf16.mxu0 %v4082
  %4874 = vmatmul.mubr.bf16.gmra.mxu0 %v4081
  %v4875 = vpop.f32.mrf.mxu0
  %v4876 = vadd.f32 0.0, %v4875
  %v4877 = vpop.f32.mrf.mxu0
  %v4878 = vadd.f32 0.0, %v4877
  %v4879 = vpop.f32.mrf.mxu0
  %v4880 = vadd.f32 0.0, %v4879
  %v4881 = vpop.f32.mrf.mxu0
  %v4882 = vadd.f32 0.0, %v4881
  %4883 = vdwg.mxu0
  %4884 = vmatprep.subr.bf16.mxu0 %v4564
  %4885 = vmatpush1.bf16.msra.mxu0 %v4563
  %4886 = vmatprep.subr.bf16.mxu0 %v4560
  %4887 = vmatpush1.bf16.msra.mxu0 %v4559
  %4888 = vmatprep.subr.bf16.mxu0 %v4556
  %4889 = vmatpush1.bf16.msra.mxu0 %v4555
  %4890 = vmatprep.subr.bf16.mxu0 %v4552
  %4891 = vmatpush1.bf16.msra.mxu0 %v4551
  %4892 = vmatprep.subr.bf16.mxu0 %v4548
  %4893 = vmatpush1.bf16.msra.mxu0 %v4547
  %4894 = vmatprep.subr.bf16.mxu0 %v4544
  %4895 = vmatpush1.bf16.msra.mxu0 %v4543
  %4896 = vmatprep.subr.bf16.mxu0 %v4540
  %4897 = vmatpush1.bf16.msra.mxu0 %v4539
  %4898 = vmatprep.subr.bf16.mxu0 %v4536
  %4899 = vmatpush1.bf16.msra.mxu0 %v4535
  %4900 = vmatprep.subr.bf16.mxu0 %v4596
  %4901 = vmatpush2.bf16.msra.mxu0 %v4595
  %4902 = vmatprep.subr.bf16.mxu0 %v4592
  %4903 = vmatpush2.bf16.msra.mxu0 %v4591
  %4904 = vmatprep.subr.bf16.mxu0 %v4588
  %4905 = vmatpush2.bf16.msra.mxu0 %v4587
  %4906 = vmatprep.subr.bf16.mxu0 %v4584
  %4907 = vmatpush2.bf16.msra.mxu0 %v4583
  %4908 = vmatprep.subr.bf16.mxu0 %v4580
  %4909 = vmatpush2.bf16.msra.mxu0 %v4579
  %4910 = vmatprep.subr.bf16.mxu0 %v4576
  %4911 = vmatpush2.bf16.msra.mxu0 %v4575
  %4912 = vmatprep.subr.bf16.mxu0 %v4572
  %4913 = vmatpush2.bf16.msra.mxu0 %v4571
  %4914 = vmatprep.subr.bf16.mxu0 %v4568
  %4915 = vmatpush2.bf16.msra.mxu0 %v4567
  %4916 = vmatprep.mubr.bf16.mxu0 %v4080
  %4917 = vmatmul.mubr.bf16.gmra.mxu0 %v4079
  %v4918 = vpop.f32.mrf.mxu0
  %v4919 = vadd.f32 %v4866, %v4918
  %v4920 = vpop.f32.mrf.mxu0
  %v4921 = vadd.f32 %v4868, %v4920
  %v4922 = vpop.f32.mrf.mxu0
  %v4923 = vadd.f32 %v4870, %v4922
  %v4924 = vpop.f32.mrf.mxu0
  %v4925 = vadd.f32 %v4872, %v4924
  %4926 = vmatprep.mubr.bf16.mxu0 %v4084
  %4927 = vmatmul.mubr.bf16.gmra.mxu0 %v4083
  %v4928 = vpop.f32.mrf.mxu0
  %v4929 = vadd.f32 %v4876, %v4928
  %v4930 = vpop.f32.mrf.mxu0
  %v4931 = vadd.f32 %v4878, %v4930
  %v4932 = vpop.f32.mrf.mxu0
  %v4933 = vadd.f32 %v4880, %v4932
  %v4934 = vpop.f32.mrf.mxu0
  %v4935 = vadd.f32 %v4882, %v4934
  %4936 = vdwg.mxu0
  %v4937 = vld [vmem:[%s3] sm:$0xf]
  %v4938 = vld [vmem:[%s3 + $0x4] sm:$0xf]
  %v4939 = vld [vmem:[%s3 + $0x8] sm:$0xf]
  %v4940 = vld [vmem:[%s3 + $0xc] sm:$0xf]
  %v4941 = vpack.c.bf16 %v4817, %v4813
  %v4942 = vpack.c.bf16 %v4819, %v4815
  %v4943 = vpack.c.bf16 %v4923, %v4919
  %v4944 = vpack.c.bf16 %v4925, %v4921
  %v4945 = vpack.c.bf16 %v4827, %v4823
  %v4946 = vpack.c.bf16 %v4829, %v4825
  %v4947 = vpack.c.bf16 %v4933, %v4929
  %v4948 = vpack.c.bf16 %v4935, %v4931
  %v4949 = vld [vmem:[%s6] sm:$0xff]
  %v4950 = vld [vmem:[%s6 + $0x8] sm:$0xff]
  %v4951 = vld [vmem:[%s6 + $0x10] sm:$0xff]
  %v4952 = vld [vmem:[%s6 + $0x18] sm:$0xff]
  %v4953 = vld [vmem:[%s6 + $0x20] sm:$0xff]
  %v4954 = vld [vmem:[%s6 + $0x28] sm:$0xff]
  %v4955 = vld [vmem:[%s6 + $0x30] sm:$0xff]
  %v4956 = vld [vmem:[%s6 + $0x38] sm:$0xff]
  %v4957 = vld [vmem:[%s6 + $0x40] sm:$0xff]
  %v4958 = vld [vmem:[%s6 + $0x48] sm:$0xff]
  %v4959 = vld [vmem:[%s6 + $0x50] sm:$0xff]
  %v4960 = vld [vmem:[%s6 + $0x58] sm:$0xff]
  %v4961 = vld [vmem:[%s6 + $0x60] sm:$0xff]
  %v4962 = vld [vmem:[%s6 + $0x68] sm:$0xff]
  %v4963 = vld [vmem:[%s6 + $0x70] sm:$0xff]
  %v4964 = vld [vmem:[%s6 + $0x78] sm:$0xff]
  %v4969 = vunpack.c.l.b16 %v4937
  %v4970 = vunpack.c.l.b16 %v4938
  %v4971 = vunpack.c.l.b16 %v4939
  %v4972 = vunpack.c.l.b16 %v4940
  %v4973 = vpack.c.b16 %v4970, %v4969
  %v4974 = vpack.c.b16 %v4972, %v4971
  %v4976 = vsel %vm1178, %v4973, 0
  %v4979 = vsel %vm1178, %v4974, 0
  %4981 = vmatprep.subr.bf16.mxu0 0
  %4982 = vmatpush1.bf16.msra.mxu0 0
  %4983 = vmatprep.subr.bf16.mxu0 0
  %4984 = vmatpush1.bf16.msra.mxu0 0
  %4985 = vmatprep.subr.bf16.mxu0 0
  %4986 = vmatpush1.bf16.msra.mxu0 0
  %4987 = vmatprep.subr.bf16.mxu0 0
  %4988 = vmatpush1.bf16.msra.mxu0 0
  %4989 = vmatprep.subr.bf16.mxu0 0
  %4990 = vmatpush1.bf16.msra.mxu0 0
  %4991 = vmatprep.subr.bf16.mxu0 0
  %4992 = vmatpush1.bf16.msra.mxu0 0
  %4993 = vmatprep.subr.bf16.mxu0 %v4946
  %4994 = vmatpush1.bf16.msra.mxu0 %v4945
  %4995 = vmatprep.subr.bf16.mxu0 %v4942
  %4996 = vmatpush1.bf16.msra.mxu0 %v4941
  %4997 = vmatprep.subr.bf16.mxu0 0
  %4998 = vmatpush2.bf16.msra.mxu0 0
  %4999 = vmatprep.subr.bf16.mxu0 0
  %5000 = vmatpush2.bf16.msra.mxu0 0
  %5001 = vmatprep.subr.bf16.mxu0 0
  %5002 = vmatpush2.bf16.msra.mxu0 0
  %5003 = vmatprep.subr.bf16.mxu0 0
  %5004 = vmatpush2.bf16.msra.mxu0 0
  %5005 = vmatprep.subr.bf16.mxu0 0
  %5006 = vmatpush2.bf16.msra.mxu0 0
  %5007 = vmatprep.subr.bf16.mxu0 0
  %5008 = vmatpush2.bf16.msra.mxu0 0
  %5009 = vmatprep.subr.bf16.mxu0 0
  %5010 = vmatpush2.bf16.msra.mxu0 0
  %5011 = vmatprep.subr.bf16.mxu0 0
  %5012 = vmatpush2.bf16.msra.mxu0 0
  %5013 = vmatprep.mubr.bf16.mxu0 0
  %5014 = vmatmul.mubr.bf16.gmra.mxu0 %v4976
  %v5015 = vpop.f32.mrf.mxu0
  %v5016 = vadd.f32 %v4949, %v5015
  %v5017 = vpop.f32.mrf.mxu0
  %v5018 = vadd.f32 %v4950, %v5017
  %v5019 = vpop.f32.mrf.mxu0
  %v5020 = vadd.f32 %v4953, %v5019
  %v5021 = vpop.f32.mrf.mxu0
  %v5022 = vadd.f32 %v4954, %v5021
  %5023 = vmatprep.mubr.bf16.mxu0 0
  %5024 = vmatmul.mubr.bf16.gmra.mxu0 %v4979
  %v5025 = vpop.f32.mrf.mxu0
  %v5026 = vadd.f32 %v4957, %v5025
  %v5027 = vpop.f32.mrf.mxu0
  %v5028 = vadd.f32 %v4958, %v5027
  %v5029 = vpop.f32.mrf.mxu0
  %v5030 = vadd.f32 %v4961, %v5029
  %v5031 = vpop.f32.mrf.mxu0
  %v5032 = vadd.f32 %v4962, %v5031
  %5033 = vdwg.mxu0
  %5034 = vmatprep.subr.bf16.mxu0 0
  %5035 = vmatpush1.bf16.msra.mxu0 0
  %5036 = vmatprep.subr.bf16.mxu0 0
  %5037 = vmatpush1.bf16.msra.mxu0 0
  %5038 = vmatprep.subr.bf16.mxu0 0
  %5039 = vmatpush1.bf16.msra.mxu0 0
  %5040 = vmatprep.subr.bf16.mxu0 0
  %5041 = vmatpush1.bf16.msra.mxu0 0
  %5042 = vmatprep.subr.bf16.mxu0 0
  %5043 = vmatpush1.bf16.msra.mxu0 0
  %5044 = vmatprep.subr.bf16.mxu0 0
  %5045 = vmatpush1.bf16.msra.mxu0 0
  %5046 = vmatprep.subr.bf16.mxu0 %v4948
  %5047 = vmatpush1.bf16.msra.mxu0 %v4947
  %5048 = vmatprep.subr.bf16.mxu0 %v4944
  %5049 = vmatpush1.bf16.msra.mxu0 %v4943
  %5050 = vmatprep.subr.bf16.mxu0 0
  %5051 = vmatpush2.bf16.msra.mxu0 0
  %5052 = vmatprep.subr.bf16.mxu0 0
  %5053 = vmatpush2.bf16.msra.mxu0 0
  %5054 = vmatprep.subr.bf16.mxu0 0
  %5055 = vmatpush2.bf16.msra.mxu0 0
  %5056 = vmatprep.subr.bf16.mxu0 0
  %5057 = vmatpush2.bf16.msra.mxu0 0
  %5058 = vmatprep.subr.bf16.mxu0 0
  %5059 = vmatpush2.bf16.msra.mxu0 0
  %5060 = vmatprep.subr.bf16.mxu0 0
  %5061 = vmatpush2.bf16.msra.mxu0 0
  %5062 = vmatprep.subr.bf16.mxu0 0
  %5063 = vmatpush2.bf16.msra.mxu0 0
  %5064 = vmatprep.subr.bf16.mxu0 0
  %5065 = vmatpush2.bf16.msra.mxu0 0
  %5066 = vmatprep.mubr.bf16.mxu0 0
  %5067 = vmatmul.mubr.bf16.gmra.mxu0 %v4976
  %v5068 = vpop.f32.mrf.mxu0
  %v5069 = vadd.f32 %v4951, %v5068
  %v5070 = vpop.f32.mrf.mxu0
  %v5071 = vadd.f32 %v4952, %v5070
  %v5072 = vpop.f32.mrf.mxu0
  %v5073 = vadd.f32 %v4955, %v5072
  %v5074 = vpop.f32.mrf.mxu0
  %v5075 = vadd.f32 %v4956, %v5074
  %5076 = vmatprep.mubr.bf16.mxu0 0
  %5077 = vmatmul.mubr.bf16.gmra.mxu0 %v4979
  %v5078 = vpop.f32.mrf.mxu0
  %v5079 = vadd.f32 %v4959, %v5078
  %v5080 = vpop.f32.mrf.mxu0
  %v5081 = vadd.f32 %v4960, %v5080
  %v5082 = vpop.f32.mrf.mxu0
  %v5083 = vadd.f32 %v4963, %v5082
  %v5084 = vpop.f32.mrf.mxu0
  %v5085 = vadd.f32 %v4964, %v5084
  %5086 = vdwg.mxu0
  %vm5087 = vcmp.gt.f32.partialorder %v5016, 0.0
  %vm5088 = vcmp.gt.f32.partialorder %v5018, 0.0
  %vm5089 = vcmp.gt.f32.partialorder %v5069, 0.0
  %vm5090 = vcmp.gt.f32.partialorder %v5071, 0.0
  %vm5091 = vcmp.gt.f32.partialorder %v5020, 0.0
  %vm5092 = vcmp.gt.f32.partialorder %v5022, 0.0
  %vm5093 = vcmp.gt.f32.partialorder %v5073, 0.0
  %vm5094 = vcmp.gt.f32.partialorder %v5075, 0.0
  %vm5095 = vcmp.gt.f32.partialorder %v5026, 0.0
  %vm5096 = vcmp.gt.f32.partialorder %v5028, 0.0
  %vm5097 = vcmp.gt.f32.partialorder %v5079, 0.0
  %vm5098 = vcmp.gt.f32.partialorder %v5081, 0.0
  %vm5099 = vcmp.gt.f32.partialorder %v5030, 0.0
  %vm5100 = vcmp.gt.f32.partialorder %v5032, 0.0
  %vm5101 = vcmp.gt.f32.partialorder %v5083, 0.0
  %vm5102 = vcmp.gt.f32.partialorder %v5085, 0.0
  %v5103 = vmul.f32 %v5016, 0.01
  %v5104 = vmul.f32 %v5018, 0.01
  %v5105 = vmul.f32 %v5069, 0.01
  %v5106 = vmul.f32 %v5071, 0.01
  %v5107 = vmul.f32 %v5020, 0.01
  %v5108 = vmul.f32 %v5022, 0.01
  %v5109 = vmul.f32 %v5073, 0.01
  %v5110 = vmul.f32 %v5075, 0.01
  %v5111 = vmul.f32 %v5026, 0.01
  %v5112 = vmul.f32 %v5028, 0.01
  %v5113 = vmul.f32 %v5079, 0.01
  %v5114 = vmul.f32 %v5081, 0.01
  %v5115 = vmul.f32 %v5030, 0.01
  %v5116 = vmul.f32 %v5032, 0.01
  %v5117 = vmul.f32 %v5083, 0.01
  %v5118 = vmul.f32 %v5085, 0.01
  %v5119 = vsel %vm5087, %v5016, %v5103
  %v5120 = vsel %vm5088, %v5018, %v5104
  %v5121 = vsel %vm5089, %v5069, %v5105
  %v5122 = vsel %vm5090, %v5071, %v5106
  %v5123 = vsel %vm5091, %v5020, %v5107
  %v5124 = vsel %vm5092, %v5022, %v5108
  %v5125 = vsel %vm5093, %v5073, %v5109
  %v5126 = vsel %vm5094, %v5075, %v5110
  %v5127 = vsel %vm5095, %v5026, %v5111
  %v5128 = vsel %vm5096, %v5028, %v5112
  %v5129 = vsel %vm5097, %v5079, %v5113
  %v5130 = vsel %vm5098, %v5081, %v5114
  %v5131 = vsel %vm5099, %v5030, %v5115
  %v5132 = vsel %vm5100, %v5032, %v5116
  %v5133 = vsel %vm5101, %v5083, %v5117
  %v5134 = vsel %vm5102, %v5085, %v5118
  %v5135 = vpack.c.bf16 %v5123, %v5119
  %v5136 = vpack.c.bf16 %v5124, %v5120
  %v5137 = vpack.c.bf16 %v5125, %v5121
  %v5138 = vpack.c.bf16 %v5126, %v5122
  %v5139 = vpack.c.bf16 %v5131, %v5127
  %v5140 = vpack.c.bf16 %v5132, %v5128
  %v5141 = vpack.c.bf16 %v5133, %v5129
  %v5142 = vpack.c.bf16 %v5134, %v5130
  %5143 = vmatprep.subr.bf16.mxu0 %v4498
  %5144 = vmatpush1.bf16.msra.mxu0 %v4497
  %5145 = vmatprep.subr.bf16.mxu0 %v4494
  %5146 = vmatpush1.bf16.msra.mxu0 %v4493
  %5147 = vmatprep.subr.bf16.mxu0 %v4490
  %5148 = vmatpush1.bf16.msra.mxu0 %v4489
  %5149 = vmatprep.subr.bf16.mxu0 %v4486
  %5150 = vmatpush1.bf16.msra.mxu0 %v4485
  %5151 = vmatprep.subr.bf16.mxu0 %v4482
  %5152 = vmatpush1.bf16.msra.mxu0 %v4481
  %5153 = vmatprep.subr.bf16.mxu0 %v4478
  %5154 = vmatpush1.bf16.msra.mxu0 %v4477
  %5155 = vmatprep.subr.bf16.mxu0 %v4474
  %5156 = vmatpush1.bf16.msra.mxu0 %v4473
  %5157 = vmatprep.subr.bf16.mxu0 %v4470
  %5158 = vmatpush1.bf16.msra.mxu0 %v4469
  %5159 = vmatprep.subr.bf16.mxu0 %v4530
  %5160 = vmatpush2.bf16.msra.mxu0 %v4529
  %5161 = vmatprep.subr.bf16.mxu0 %v4526
  %5162 = vmatpush2.bf16.msra.mxu0 %v4525
  %5163 = vmatprep.subr.bf16.mxu0 %v4522
  %5164 = vmatpush2.bf16.msra.mxu0 %v4521
  %5165 = vmatprep.subr.bf16.mxu0 %v4518
  %5166 = vmatpush2.bf16.msra.mxu0 %v4517
  %5167 = vmatprep.subr.bf16.mxu0 %v4514
  %5168 = vmatpush2.bf16.msra.mxu0 %v4513
  %5169 = vmatprep.subr.bf16.mxu0 %v4510
  %5170 = vmatpush2.bf16.msra.mxu0 %v4509
  %5171 = vmatprep.subr.bf16.mxu0 %v4506
  %5172 = vmatpush2.bf16.msra.mxu0 %v4505
  %5173 = vmatprep.subr.bf16.mxu0 %v4502
  %5174 = vmatpush2.bf16.msra.mxu0 %v4501
  %5175 = vmatprep.mubr.bf16.mxu0 %v5136
  %5176 = vmatmul.mubr.bf16.gmra.mxu0 %v5135
  %v5177 = vpop.f32.mrf.mxu0
  %v5178 = vadd.f32 0.0, %v5177
  %v5179 = vpop.f32.mrf.mxu0
  %v5180 = vadd.f32 0.0, %v5179
  %v5181 = vpop.f32.mrf.mxu0
  %v5182 = vadd.f32 0.0, %v5181
  %v5183 = vpop.f32.mrf.mxu0
  %v5184 = vadd.f32 0.0, %v5183
  %5185 = vmatprep.mubr.bf16.mxu0 %v5140
  %5186 = vmatmul.mubr.bf16.gmra.mxu0 %v5139
  %v5187 = vpop.f32.mrf.mxu0
  %v5188 = vadd.f32 0.0, %v5187
  %v5189 = vpop.f32.mrf.mxu0
  %v5190 = vadd.f32 0.0, %v5189
  %v5191 = vpop.f32.mrf.mxu0
  %v5192 = vadd.f32 0.0, %v5191
  %v5193 = vpop.f32.mrf.mxu0
  %v5194 = vadd.f32 0.0, %v5193
  %5195 = vdwg.mxu0
  %5196 = vmatprep.subr.bf16.mxu0 %v4562
  %5197 = vmatpush1.bf16.msra.mxu0 %v4561
  %5198 = vmatprep.subr.bf16.mxu0 %v4558
  %5199 = vmatpush1.bf16.msra.mxu0 %v4557
  %5200 = vmatprep.subr.bf16.mxu0 %v4554
  %5201 = vmatpush1.bf16.msra.mxu0 %v4553
  %5202 = vmatprep.subr.bf16.mxu0 %v4550
  %5203 = vmatpush1.bf16.msra.mxu0 %v4549
  %5204 = vmatprep.subr.bf16.mxu0 %v4546
  %5205 = vmatpush1.bf16.msra.mxu0 %v4545
  %5206 = vmatprep.subr.bf16.mxu0 %v4542
  %5207 = vmatpush1.bf16.msra.mxu0 %v4541
  %5208 = vmatprep.subr.bf16.mxu0 %v4538
  %5209 = vmatpush1.bf16.msra.mxu0 %v4537
  %5210 = vmatprep.subr.bf16.mxu0 %v4534
  %5211 = vmatpush1.bf16.msra.mxu0 %v4533
  %5212 = vmatprep.subr.bf16.mxu0 %v4594
  %5213 = vmatpush2.bf16.msra.mxu0 %v4593
  %5214 = vmatprep.subr.bf16.mxu0 %v4590
  %5215 = vmatpush2.bf16.msra.mxu0 %v4589
  %5216 = vmatprep.subr.bf16.mxu0 %v4586
  %5217 = vmatpush2.bf16.msra.mxu0 %v4585
  %5218 = vmatprep.subr.bf16.mxu0 %v4582
  %5219 = vmatpush2.bf16.msra.mxu0 %v4581
  %5220 = vmatprep.subr.bf16.mxu0 %v4578
  %5221 = vmatpush2.bf16.msra.mxu0 %v4577
  %5222 = vmatprep.subr.bf16.mxu0 %v4574
  %5223 = vmatpush2.bf16.msra.mxu0 %v4573
  %5224 = vmatprep.subr.bf16.mxu0 %v4570
  %5225 = vmatpush2.bf16.msra.mxu0 %v4569
  %5226 = vmatprep.subr.bf16.mxu0 %v4566
  %5227 = vmatpush2.bf16.msra.mxu0 %v4565
  %5228 = vmatprep.mubr.bf16.mxu0 %v5138
  %5229 = vmatmul.mubr.bf16.gmra.mxu0 %v5137
  %v5230 = vpop.f32.mrf.mxu0
  %v5231 = vadd.f32 %v5178, %v5230
  %v5232 = vpop.f32.mrf.mxu0
  %v5233 = vadd.f32 %v5180, %v5232
  %v5234 = vpop.f32.mrf.mxu0
  %v5235 = vadd.f32 %v5182, %v5234
  %v5236 = vpop.f32.mrf.mxu0
  %v5237 = vadd.f32 %v5184, %v5236
  %5238 = vmatprep.mubr.bf16.mxu0 %v5142
  %5239 = vmatmul.mubr.bf16.gmra.mxu0 %v5141
  %v5240 = vpop.f32.mrf.mxu0
  %v5241 = vadd.f32 %v5188, %v5240
  %v5242 = vpop.f32.mrf.mxu0
  %v5243 = vadd.f32 %v5190, %v5242
  %v5244 = vpop.f32.mrf.mxu0
  %v5245 = vadd.f32 %v5192, %v5244
  %v5246 = vpop.f32.mrf.mxu0
  %v5247 = vadd.f32 %v5194, %v5246
  %5248 = vdwg.mxu0
  %5249 = vmatprep.subr.bf16.mxu0 %v4500
  %5250 = vmatpush1.bf16.msra.mxu0 %v4499
  %5251 = vmatprep.subr.bf16.mxu0 %v4496
  %5252 = vmatpush1.bf16.msra.mxu0 %v4495
  %5253 = vmatprep.subr.bf16.mxu0 %v4492
  %5254 = vmatpush1.bf16.msra.mxu0 %v4491
  %5255 = vmatprep.subr.bf16.mxu0 %v4488
  %5256 = vmatpush1.bf16.msra.mxu0 %v4487
  %5257 = vmatprep.subr.bf16.mxu0 %v4484
  %5258 = vmatpush1.bf16.msra.mxu0 %v4483
  %5259 = vmatprep.subr.bf16.mxu0 %v4480
  %5260 = vmatpush1.bf16.msra.mxu0 %v4479
  %5261 = vmatprep.subr.bf16.mxu0 %v4476
  %5262 = vmatpush1.bf16.msra.mxu0 %v4475
  %5263 = vmatprep.subr.bf16.mxu0 %v4472
  %5264 = vmatpush1.bf16.msra.mxu0 %v4471
  %5265 = vmatprep.subr.bf16.mxu0 %v4532
  %5266 = vmatpush2.bf16.msra.mxu0 %v4531
  %5267 = vmatprep.subr.bf16.mxu0 %v4528
  %5268 = vmatpush2.bf16.msra.mxu0 %v4527
  %5269 = vmatprep.subr.bf16.mxu0 %v4524
  %5270 = vmatpush2.bf16.msra.mxu0 %v4523
  %5271 = vmatprep.subr.bf16.mxu0 %v4520
  %5272 = vmatpush2.bf16.msra.mxu0 %v4519
  %5273 = vmatprep.subr.bf16.mxu0 %v4516
  %5274 = vmatpush2.bf16.msra.mxu0 %v4515
  %5275 = vmatprep.subr.bf16.mxu0 %v4512
  %5276 = vmatpush2.bf16.msra.mxu0 %v4511
  %5277 = vmatprep.subr.bf16.mxu0 %v4508
  %5278 = vmatpush2.bf16.msra.mxu0 %v4507
  %5279 = vmatprep.subr.bf16.mxu0 %v4504
  %5280 = vmatpush2.bf16.msra.mxu0 %v4503
  %5281 = vmatprep.mubr.bf16.mxu0 %v5136
  %5282 = vmatmul.mubr.bf16.gmra.mxu0 %v5135
  %v5283 = vpop.f32.mrf.mxu0
  %v5284 = vadd.f32 0.0, %v5283
  %v5285 = vpop.f32.mrf.mxu0
  %v5286 = vadd.f32 0.0, %v5285
  %v5287 = vpop.f32.mrf.mxu0
  %v5288 = vadd.f32 0.0, %v5287
  %v5289 = vpop.f32.mrf.mxu0
  %v5290 = vadd.f32 0.0, %v5289
  %5291 = vmatprep.mubr.bf16.mxu0 %v5140
  %5292 = vmatmul.mubr.bf16.gmra.mxu0 %v5139
  %v5293 = vpop.f32.mrf.mxu0
  %v5294 = vadd.f32 0.0, %v5293
  %v5295 = vpop.f32.mrf.mxu0
  %v5296 = vadd.f32 0.0, %v5295
  %v5297 = vpop.f32.mrf.mxu0
  %v5298 = vadd.f32 0.0, %v5297
  %v5299 = vpop.f32.mrf.mxu0
  %v5300 = vadd.f32 0.0, %v5299
  %5301 = vdwg.mxu0
  %5302 = vmatprep.subr.bf16.mxu0 %v4564
  %5303 = vmatpush1.bf16.msra.mxu0 %v4563
  %5304 = vmatprep.subr.bf16.mxu0 %v4560
  %5305 = vmatpush1.bf16.msra.mxu0 %v4559
  %5306 = vmatprep.subr.bf16.mxu0 %v4556
  %5307 = vmatpush1.bf16.msra.mxu0 %v4555
  %5308 = vmatprep.subr.bf16.mxu0 %v4552
  %5309 = vmatpush1.bf16.msra.mxu0 %v4551
  %5310 = vmatprep.subr.bf16.mxu0 %v4548
  %5311 = vmatpush1.bf16.msra.mxu0 %v4547
  %5312 = vmatprep.subr.bf16.mxu0 %v4544
  %5313 = vmatpush1.bf16.msra.mxu0 %v4543
  %5314 = vmatprep.subr.bf16.mxu0 %v4540
  %5315 = vmatpush1.bf16.msra.mxu0 %v4539
  %5316 = vmatprep.subr.bf16.mxu0 %v4536
  %5317 = vmatpush1.bf16.msra.mxu0 %v4535
  %5318 = vmatprep.subr.bf16.mxu0 %v4596
  %5319 = vmatpush2.bf16.msra.mxu0 %v4595
  %5320 = vmatprep.subr.bf16.mxu0 %v4592
  %5321 = vmatpush2.bf16.msra.mxu0 %v4591
  %5322 = vmatprep.subr.bf16.mxu0 %v4588
  %5323 = vmatpush2.bf16.msra.mxu0 %v4587
  %5324 = vmatprep.subr.bf16.mxu0 %v4584
  %5325 = vmatpush2.bf16.msra.mxu0 %v4583
  %5326 = vmatprep.subr.bf16.mxu0 %v4580
  %5327 = vmatpush2.bf16.msra.mxu0 %v4579
  %5328 = vmatprep.subr.bf16.mxu0 %v4576
  %5329 = vmatpush2.bf16.msra.mxu0 %v4575
  %5330 = vmatprep.subr.bf16.mxu0 %v4572
  %5331 = vmatpush2.bf16.msra.mxu0 %v4571
  %5332 = vmatprep.subr.bf16.mxu0 %v4568
  %5333 = vmatpush2.bf16.msra.mxu0 %v4567
  %5334 = vmatprep.mubr.bf16.mxu0 %v5138
  %5335 = vmatmul.mubr.bf16.gmra.mxu0 %v5137
  %v5336 = vpop.f32.mrf.mxu0
  %v5337 = vadd.f32 %v5284, %v5336
  %v5338 = vpop.f32.mrf.mxu0
  %v5339 = vadd.f32 %v5286, %v5338
  %v5340 = vpop.f32.mrf.mxu0
  %v5341 = vadd.f32 %v5288, %v5340
  %v5342 = vpop.f32.mrf.mxu0
  %v5343 = vadd.f32 %v5290, %v5342
  %5344 = vmatprep.mubr.bf16.mxu0 %v5142
  %5345 = vmatmul.mubr.bf16.gmra.mxu0 %v5141
  %v5346 = vpop.f32.mrf.mxu0
  %v5347 = vadd.f32 %v5294, %v5346
  %v5348 = vpop.f32.mrf.mxu0
  %v5349 = vadd.f32 %v5296, %v5348
  %v5350 = vpop.f32.mrf.mxu0
  %v5351 = vadd.f32 %v5298, %v5350
  %v5352 = vpop.f32.mrf.mxu0
  %v5353 = vadd.f32 %v5300, %v5352
  %5354 = vdwg.mxu0
  %v5355 = vld [vmem:[%s4] sm:$0xf]
  %v5356 = vld [vmem:[%s4 + $0x4] sm:$0xf]
  %v5357 = vld [vmem:[%s4 + $0x8] sm:$0xf]
  %v5358 = vld [vmem:[%s4 + $0xc] sm:$0xf]
  %v5359 = vpack.c.bf16 %v5235, %v5231
  %v5360 = vpack.c.bf16 %v5237, %v5233
  %v5361 = vpack.c.bf16 %v5341, %v5337
  %v5362 = vpack.c.bf16 %v5343, %v5339
  %v5363 = vpack.c.bf16 %v5245, %v5241
  %v5364 = vpack.c.bf16 %v5247, %v5243
  %v5365 = vpack.c.bf16 %v5351, %v5347
  %v5366 = vpack.c.bf16 %v5353, %v5349
  %v5367 = vld [vmem:[%s7] sm:$0xff]
  %v5368 = vld [vmem:[%s7 + $0x8] sm:$0xff]
  %v5369 = vld [vmem:[%s7 + $0x10] sm:$0xff]
  %v5370 = vld [vmem:[%s7 + $0x18] sm:$0xff]
  %v5371 = vld [vmem:[%s7 + $0x20] sm:$0xff]
  %v5372 = vld [vmem:[%s7 + $0x28] sm:$0xff]
  %v5373 = vld [vmem:[%s7 + $0x30] sm:$0xff]
  %v5374 = vld [vmem:[%s7 + $0x38] sm:$0xff]
  %v5375 = vld [vmem:[%s7 + $0x40] sm:$0xff]
  %v5376 = vld [vmem:[%s7 + $0x48] sm:$0xff]
  %v5377 = vld [vmem:[%s7 + $0x50] sm:$0xff]
  %v5378 = vld [vmem:[%s7 + $0x58] sm:$0xff]
  %v5379 = vld [vmem:[%s7 + $0x60] sm:$0xff]
  %v5380 = vld [vmem:[%s7 + $0x68] sm:$0xff]
  %v5381 = vld [vmem:[%s7 + $0x70] sm:$0xff]
  %v5382 = vld [vmem:[%s7 + $0x78] sm:$0xff]
  %v5387 = vunpack.c.l.b16 %v5355
  %v5388 = vunpack.c.l.b16 %v5356
  %v5389 = vunpack.c.l.b16 %v5357
  %v5390 = vunpack.c.l.b16 %v5358
  %v5391 = vpack.c.b16 %v5388, %v5387
  %v5392 = vpack.c.b16 %v5390, %v5389
  %v5394 = vsel %vm1178, %v5391, 0
  %v5397 = vsel %vm1178, %v5392, 0
  %5399 = vmatprep.subr.bf16.mxu0 0
  %5400 = vmatpush1.bf16.msra.mxu0 0
  %5401 = vmatprep.subr.bf16.mxu0 0
  %5402 = vmatpush1.bf16.msra.mxu0 0
  %5403 = vmatprep.subr.bf16.mxu0 0
  %5404 = vmatpush1.bf16.msra.mxu0 0
  %5405 = vmatprep.subr.bf16.mxu0 0
  %5406 = vmatpush1.bf16.msra.mxu0 0
  %5407 = vmatprep.subr.bf16.mxu0 0
  %5408 = vmatpush1.bf16.msra.mxu0 0
  %5409 = vmatprep.subr.bf16.mxu0 0
  %5410 = vmatpush1.bf16.msra.mxu0 0
  %5411 = vmatprep.subr.bf16.mxu0 %v5364
  %5412 = vmatpush1.bf16.msra.mxu0 %v5363
  %5413 = vmatprep.subr.bf16.mxu0 %v5360
  %5414 = vmatpush1.bf16.msra.mxu0 %v5359
  %5415 = vmatprep.subr.bf16.mxu0 0
  %5416 = vmatpush2.bf16.msra.mxu0 0
  %5417 = vmatprep.subr.bf16.mxu0 0
  %5418 = vmatpush2.bf16.msra.mxu0 0
  %5419 = vmatprep.subr.bf16.mxu0 0
  %5420 = vmatpush2.bf16.msra.mxu0 0
  %5421 = vmatprep.subr.bf16.mxu0 0
  %5422 = vmatpush2.bf16.msra.mxu0 0
  %5423 = vmatprep.subr.bf16.mxu0 0
  %5424 = vmatpush2.bf16.msra.mxu0 0
  %5425 = vmatprep.subr.bf16.mxu0 0
  %5426 = vmatpush2.bf16.msra.mxu0 0
  %5427 = vmatprep.subr.bf16.mxu0 0
  %5428 = vmatpush2.bf16.msra.mxu0 0
  %5429 = vmatprep.subr.bf16.mxu0 0
  %5430 = vmatpush2.bf16.msra.mxu0 0
  %5431 = vmatprep.mubr.bf16.mxu0 0
  %5432 = vmatmul.mubr.bf16.gmra.mxu0 %v5394
  %v5433 = vpop.f32.mrf.mxu0
  %v5434 = vadd.f32 %v5367, %v5433
  %v5435 = vpop.f32.mrf.mxu0
  %v5436 = vadd.f32 %v5368, %v5435
  %v5437 = vpop.f32.mrf.mxu0
  %v5438 = vadd.f32 %v5371, %v5437
  %v5439 = vpop.f32.mrf.mxu0
  %v5440 = vadd.f32 %v5372, %v5439
  %5441 = vmatprep.mubr.bf16.mxu0 0
  %5442 = vmatmul.mubr.bf16.gmra.mxu0 %v5397
  %v5443 = vpop.f32.mrf.mxu0
  %v5444 = vadd.f32 %v5375, %v5443
  %v5445 = vpop.f32.mrf.mxu0
  %v5446 = vadd.f32 %v5376, %v5445
  %v5447 = vpop.f32.mrf.mxu0
  %v5448 = vadd.f32 %v5379, %v5447
  %v5449 = vpop.f32.mrf.mxu0
  %v5450 = vadd.f32 %v5380, %v5449
  %5451 = vdwg.mxu0
  %5452 = vmatprep.subr.bf16.mxu0 0
  %5453 = vmatpush1.bf16.msra.mxu0 0
  %5454 = vmatprep.subr.bf16.mxu0 0
  %5455 = vmatpush1.bf16.msra.mxu0 0
  %5456 = vmatprep.subr.bf16.mxu0 0
  %5457 = vmatpush1.bf16.msra.mxu0 0
  %5458 = vmatprep.subr.bf16.mxu0 0
  %5459 = vmatpush1.bf16.msra.mxu0 0
  %5460 = vmatprep.subr.bf16.mxu0 0
  %5461 = vmatpush1.bf16.msra.mxu0 0
  %5462 = vmatprep.subr.bf16.mxu0 0
  %5463 = vmatpush1.bf16.msra.mxu0 0
  %5464 = vmatprep.subr.bf16.mxu0 %v5366
  %5465 = vmatpush1.bf16.msra.mxu0 %v5365
  %5466 = vmatprep.subr.bf16.mxu0 %v5362
  %5467 = vmatpush1.bf16.msra.mxu0 %v5361
  %5468 = vmatprep.subr.bf16.mxu0 0
  %5469 = vmatpush2.bf16.msra.mxu0 0
  %5470 = vmatprep.subr.bf16.mxu0 0
  %5471 = vmatpush2.bf16.msra.mxu0 0
  %5472 = vmatprep.subr.bf16.mxu0 0
  %5473 = vmatpush2.bf16.msra.mxu0 0
  %5474 = vmatprep.subr.bf16.mxu0 0
  %5475 = vmatpush2.bf16.msra.mxu0 0
  %5476 = vmatprep.subr.bf16.mxu0 0
  %5477 = vmatpush2.bf16.msra.mxu0 0
  %5478 = vmatprep.subr.bf16.mxu0 0
  %5479 = vmatpush2.bf16.msra.mxu0 0
  %5480 = vmatprep.subr.bf16.mxu0 0
  %5481 = vmatpush2.bf16.msra.mxu0 0
  %5482 = vmatprep.subr.bf16.mxu0 0
  %5483 = vmatpush2.bf16.msra.mxu0 0
  %5484 = vmatprep.mubr.bf16.mxu0 0
  %5485 = vmatmul.mubr.bf16.gmra.mxu0 %v5394
  %v5486 = vpop.f32.mrf.mxu0
  %v5487 = vadd.f32 %v5369, %v5486
  %v5488 = vpop.f32.mrf.mxu0
  %v5489 = vadd.f32 %v5370, %v5488
  %v5490 = vpop.f32.mrf.mxu0
  %v5491 = vadd.f32 %v5373, %v5490
  %v5492 = vpop.f32.mrf.mxu0
  %v5493 = vadd.f32 %v5374, %v5492
  %5494 = vmatprep.mubr.bf16.mxu0 0
  %5495 = vmatmul.mubr.bf16.gmra.mxu0 %v5397
  %v5496 = vpop.f32.mrf.mxu0
  %v5497 = vadd.f32 %v5377, %v5496
  %v5498 = vpop.f32.mrf.mxu0
  %v5499 = vadd.f32 %v5378, %v5498
  %v5500 = vpop.f32.mrf.mxu0
  %v5501 = vadd.f32 %v5381, %v5500
  %v5502 = vpop.f32.mrf.mxu0
  %v5503 = vadd.f32 %v5382, %v5502
  %5504 = vdwg.mxu0
  %vm5505 = vcmp.gt.f32.partialorder %v5434, 0.0
  %vm5506 = vcmp.gt.f32.partialorder %v5436, 0.0
  %vm5507 = vcmp.gt.f32.partialorder %v5487, 0.0
  %vm5508 = vcmp.gt.f32.partialorder %v5489, 0.0
  %vm5509 = vcmp.gt.f32.partialorder %v5438, 0.0
  %vm5510 = vcmp.gt.f32.partialorder %v5440, 0.0
  %vm5511 = vcmp.gt.f32.partialorder %v5491, 0.0
  %vm5512 = vcmp.gt.f32.partialorder %v5493, 0.0
  %vm5513 = vcmp.gt.f32.partialorder %v5444, 0.0
  %vm5514 = vcmp.gt.f32.partialorder %v5446, 0.0
  %vm5515 = vcmp.gt.f32.partialorder %v5497, 0.0
  %vm5516 = vcmp.gt.f32.partialorder %v5499, 0.0
  %vm5517 = vcmp.gt.f32.partialorder %v5448, 0.0
  %vm5518 = vcmp.gt.f32.partialorder %v5450, 0.0
  %vm5519 = vcmp.gt.f32.partialorder %v5501, 0.0
  %vm5520 = vcmp.gt.f32.partialorder %v5503, 0.0
  %v5521 = vmul.f32 %v5434, 0.01
  %v5522 = vmul.f32 %v5436, 0.01
  %v5523 = vmul.f32 %v5487, 0.01
  %v5524 = vmul.f32 %v5489, 0.01
  %v5525 = vmul.f32 %v5438, 0.01
  %v5526 = vmul.f32 %v5440, 0.01
  %v5527 = vmul.f32 %v5491, 0.01
  %v5528 = vmul.f32 %v5493, 0.01
  %v5529 = vmul.f32 %v5444, 0.01
  %v5530 = vmul.f32 %v5446, 0.01
  %v5531 = vmul.f32 %v5497, 0.01
  %v5532 = vmul.f32 %v5499, 0.01
  %v5533 = vmul.f32 %v5448, 0.01
  %v5534 = vmul.f32 %v5450, 0.01
  %v5535 = vmul.f32 %v5501, 0.01
  %v5536 = vmul.f32 %v5503, 0.01
  %v5537 = vsel %vm5505, %v5434, %v5521
  %v5538 = vsel %vm5506, %v5436, %v5522
  %v5539 = vsel %vm5507, %v5487, %v5523
  %v5540 = vsel %vm5508, %v5489, %v5524
  %v5541 = vsel %vm5509, %v5438, %v5525
  %v5542 = vsel %vm5510, %v5440, %v5526
  %v5543 = vsel %vm5511, %v5491, %v5527
  %v5544 = vsel %vm5512, %v5493, %v5528
  %v5545 = vsel %vm5513, %v5444, %v5529
  %v5546 = vsel %vm5514, %v5446, %v5530
  %v5547 = vsel %vm5515, %v5497, %v5531
  %v5548 = vsel %vm5516, %v5499, %v5532
  %v5549 = vsel %vm5517, %v5448, %v5533
  %v5550 = vsel %vm5518, %v5450, %v5534
  %v5551 = vsel %vm5519, %v5501, %v5535
  %v5552 = vsel %vm5520, %v5503, %v5536
  %v5553 = vld [vmem:[%s5] sm:$0xf]
  %v5554 = vld [vmem:[%s5 + $0x4] sm:$0xf]
  %v5555 = vld [vmem:[%s5 + $0x8] sm:$0xf]
  %v5556 = vld [vmem:[%s5 + $0xc] sm:$0xf]
  %v5557 = vpack.c.bf16 %v5541, %v5537
  %v5558 = vpack.c.bf16 %v5542, %v5538
  %v5559 = vpack.c.bf16 %v5543, %v5539
  %v5560 = vpack.c.bf16 %v5544, %v5540
  %v5561 = vpack.c.bf16 %v5549, %v5545
  %v5562 = vpack.c.bf16 %v5550, %v5546
  %v5563 = vpack.c.bf16 %v5551, %v5547
  %v5564 = vpack.c.bf16 %v5552, %v5548
  %v5565 = vld [vmem:[%s8] sm:$0xff]
  %v5566 = vld [vmem:[%s8 + $0x8] sm:$0xff]
  %v5567 = vld [vmem:[%s8 + $0x10] sm:$0xff]
  %v5568 = vld [vmem:[%s8 + $0x18] sm:$0xff]
  %v5569 = vld [vmem:[%s8 + $0x20] sm:$0xff]
  %v5570 = vld [vmem:[%s8 + $0x28] sm:$0xff]
  %v5571 = vld [vmem:[%s8 + $0x30] sm:$0xff]
  %v5572 = vld [vmem:[%s8 + $0x38] sm:$0xff]
  %v5573 = vld [vmem:[%s8 + $0x40] sm:$0xff]
  %v5574 = vld [vmem:[%s8 + $0x48] sm:$0xff]
  %v5575 = vld [vmem:[%s8 + $0x50] sm:$0xff]
  %v5576 = vld [vmem:[%s8 + $0x58] sm:$0xff]
  %v5577 = vld [vmem:[%s8 + $0x60] sm:$0xff]
  %v5578 = vld [vmem:[%s8 + $0x68] sm:$0xff]
  %v5579 = vld [vmem:[%s8 + $0x70] sm:$0xff]
  %v5580 = vld [vmem:[%s8 + $0x78] sm:$0xff]
  %v5585 = vunpack.c.l.b16 %v5553
  %v5586 = vunpack.c.l.b16 %v5554
  %v5587 = vunpack.c.l.b16 %v5555
  %v5588 = vunpack.c.l.b16 %v5556
  %v5589 = vpack.c.b16 %v5586, %v5585
  %v5590 = vpack.c.b16 %v5588, %v5587
  %v5592 = vsel %vm1178, %v5589, 0
  %v5595 = vsel %vm1178, %v5590, 0
  %5597 = vmatprep.subr.bf16.mxu0 0
  %5598 = vmatpush1.bf16.msra.mxu0 0
  %5599 = vmatprep.subr.bf16.mxu0 0
  %5600 = vmatpush1.bf16.msra.mxu0 0
  %5601 = vmatprep.subr.bf16.mxu0 0
  %5602 = vmatpush1.bf16.msra.mxu0 0
  %5603 = vmatprep.subr.bf16.mxu0 0
  %5604 = vmatpush1.bf16.msra.mxu0 0
  %5605 = vmatprep.subr.bf16.mxu0 0
  %5606 = vmatpush1.bf16.msra.mxu0 0
  %5607 = vmatprep.subr.bf16.mxu0 0
  %5608 = vmatpush1.bf16.msra.mxu0 0
  %5609 = vmatprep.subr.bf16.mxu0 %v5562
  %5610 = vmatpush1.bf16.msra.mxu0 %v5561
  %5611 = vmatprep.subr.bf16.mxu0 %v5558
  %5612 = vmatpush1.bf16.msra.mxu0 %v5557
  %5613 = vmatprep.subr.bf16.mxu0 0
  %5614 = vmatpush2.bf16.msra.mxu0 0
  %5615 = vmatprep.subr.bf16.mxu0 0
  %5616 = vmatpush2.bf16.msra.mxu0 0
  %5617 = vmatprep.subr.bf16.mxu0 0
  %5618 = vmatpush2.bf16.msra.mxu0 0
  %5619 = vmatprep.subr.bf16.mxu0 0
  %5620 = vmatpush2.bf16.msra.mxu0 0
  %5621 = vmatprep.subr.bf16.mxu0 0
  %5622 = vmatpush2.bf16.msra.mxu0 0
  %5623 = vmatprep.subr.bf16.mxu0 0
  %5624 = vmatpush2.bf16.msra.mxu0 0
  %5625 = vmatprep.subr.bf16.mxu0 0
  %5626 = vmatpush2.bf16.msra.mxu0 0
  %5627 = vmatprep.subr.bf16.mxu0 0
  %5628 = vmatpush2.bf16.msra.mxu0 0
  %5629 = vmatprep.mubr.bf16.mxu0 0
  %5630 = vmatmul.mubr.bf16.gmra.mxu0 %v5592
  %v5631 = vpop.f32.mrf.mxu0
  %v5632 = vadd.f32 %v5565, %v5631
  %v5633 = vpop.f32.mrf.mxu0
  %v5634 = vadd.f32 %v5566, %v5633
  %v5635 = vpop.f32.mrf.mxu0
  %v5636 = vadd.f32 %v5569, %v5635
  %v5637 = vpop.f32.mrf.mxu0
  %v5638 = vadd.f32 %v5570, %v5637
  %5639 = vmatprep.mubr.bf16.mxu0 0
  %5640 = vmatmul.mubr.bf16.gmra.mxu0 %v5595
  %v5641 = vpop.f32.mrf.mxu0
  %v5642 = vadd.f32 %v5573, %v5641
  %v5643 = vpop.f32.mrf.mxu0
  %v5644 = vadd.f32 %v5574, %v5643
  %v5645 = vpop.f32.mrf.mxu0
  %v5646 = vadd.f32 %v5577, %v5645
  %v5647 = vpop.f32.mrf.mxu0
  %v5648 = vadd.f32 %v5578, %v5647
  %5649 = vdwg.mxu0
  %5650 = vmatprep.subr.bf16.mxu0 0
  %5651 = vmatpush1.bf16.msra.mxu0 0
  %5652 = vmatprep.subr.bf16.mxu0 0
  %5653 = vmatpush1.bf16.msra.mxu0 0
  %5654 = vmatprep.subr.bf16.mxu0 0
  %5655 = vmatpush1.bf16.msra.mxu0 0
  %5656 = vmatprep.subr.bf16.mxu0 0
  %5657 = vmatpush1.bf16.msra.mxu0 0
  %5658 = vmatprep.subr.bf16.mxu0 0
  %5659 = vmatpush1.bf16.msra.mxu0 0
  %5660 = vmatprep.subr.bf16.mxu0 0
  %5661 = vmatpush1.bf16.msra.mxu0 0
  %5662 = vmatprep.subr.bf16.mxu0 %v5564
  %5663 = vmatpush1.bf16.msra.mxu0 %v5563
  %5664 = vmatprep.subr.bf16.mxu0 %v5560
  %5665 = vmatpush1.bf16.msra.mxu0 %v5559
  %5666 = vmatprep.subr.bf16.mxu0 0
  %5667 = vmatpush2.bf16.msra.mxu0 0
  %5668 = vmatprep.subr.bf16.mxu0 0
  %5669 = vmatpush2.bf16.msra.mxu0 0
  %5670 = vmatprep.subr.bf16.mxu0 0
  %5671 = vmatpush2.bf16.msra.mxu0 0
  %5672 = vmatprep.subr.bf16.mxu0 0
  %5673 = vmatpush2.bf16.msra.mxu0 0
  %5674 = vmatprep.subr.bf16.mxu0 0
  %5675 = vmatpush2.bf16.msra.mxu0 0
  %5676 = vmatprep.subr.bf16.mxu0 0
  %5677 = vmatpush2.bf16.msra.mxu0 0
  %5678 = vmatprep.subr.bf16.mxu0 0
  %5679 = vmatpush2.bf16.msra.mxu0 0
  %5680 = vmatprep.subr.bf16.mxu0 0
  %5681 = vmatpush2.bf16.msra.mxu0 0
  %5682 = vmatprep.mubr.bf16.mxu0 0
  %5683 = vmatmul.mubr.bf16.gmra.mxu0 %v5592
  %v5684 = vpop.f32.mrf.mxu0
  %v5685 = vadd.f32 %v5567, %v5684
  %v5686 = vpop.f32.mrf.mxu0
  %v5687 = vadd.f32 %v5568, %v5686
  %v5688 = vpop.f32.mrf.mxu0
  %v5689 = vadd.f32 %v5571, %v5688
  %v5690 = vpop.f32.mrf.mxu0
  %v5691 = vadd.f32 %v5572, %v5690
  %5692 = vmatprep.mubr.bf16.mxu0 0
  %5693 = vmatmul.mubr.bf16.gmra.mxu0 %v5595
  %v5694 = vpop.f32.mrf.mxu0
  %v5695 = vadd.f32 %v5575, %v5694
  %v5696 = vpop.f32.mrf.mxu0
  %v5697 = vadd.f32 %v5576, %v5696
  %v5698 = vpop.f32.mrf.mxu0
  %v5699 = vadd.f32 %v5579, %v5698
  %v5700 = vpop.f32.mrf.mxu0
  %v5701 = vadd.f32 %v5580, %v5700
  %5702 = vdwg.mxu0
  %v5703 = vld [vmem:[#allocation3] sm:$0xff]
  %v5704 = vld [vmem:[#allocation3 + $0x8] sm:$0xff]
  %v5705 = vld [vmem:[#allocation3 + $0x10] sm:$0xff]
  %v5706 = vld [vmem:[#allocation3 + $0x18] sm:$0xff]
  %v5707 = vld [vmem:[#allocation3 + $0x20] sm:$0xff]
  %v5708 = vld [vmem:[#allocation3 + $0x28] sm:$0xff]
  %v5709 = vld [vmem:[#allocation3 + $0x30] sm:$0xff]
  %v5710 = vld [vmem:[#allocation3 + $0x38] sm:$0xff]
  %v5711 = vld [vmem:[#allocation3 + $0x40] sm:$0xff]
  %v5712 = vld [vmem:[#allocation3 + $0x48] sm:$0xff]
  %v5713 = vld [vmem:[#allocation3 + $0x50] sm:$0xff]
  %v5714 = vld [vmem:[#allocation3 + $0x58] sm:$0xff]
  %v5715 = vld [vmem:[#allocation3 + $0x60] sm:$0xff]
  %v5716 = vld [vmem:[#allocation3 + $0x68] sm:$0xff]
  %v5717 = vld [vmem:[#allocation3 + $0x70] sm:$0xff]
  %v5718 = vld [vmem:[#allocation3 + $0x78] sm:$0xff]
  %v5719 = vmul.f32 %v5632, 0.375
  %v5720 = vmul.f32 %v5634, 0.375
  %v5721 = vmul.f32 %v5685, 0.375
  %v5722 = vmul.f32 %v5687, 0.375
  %v5723 = vmul.f32 %v5636, 0.375
  %v5724 = vmul.f32 %v5638, 0.375
  %v5725 = vmul.f32 %v5689, 0.375
  %v5726 = vmul.f32 %v5691, 0.375
  %v5727 = vmul.f32 %v5642, 0.375
  %v5728 = vmul.f32 %v5644, 0.375
  %v5729 = vmul.f32 %v5695, 0.375
  %v5730 = vmul.f32 %v5697, 0.375
  %v5731 = vmul.f32 %v5646, 0.375
  %v5732 = vmul.f32 %v5648, 0.375
  %v5733 = vmul.f32 %v5699, 0.375
  %v5734 = vmul.f32 %v5701, 0.375
  %v5735 = vadd.f32 %v5703, %v5719
  %v5736 = vadd.f32 %v5704, %v5720
  %v5737 = vadd.f32 %v5705, %v5721
  %v5738 = vadd.f32 %v5706, %v5722
  %v5739 = vadd.f32 %v5707, %v5723
  %v5740 = vadd.f32 %v5708, %v5724
  %v5741 = vadd.f32 %v5709, %v5725
  %v5742 = vadd.f32 %v5710, %v5726
  %v5743 = vadd.f32 %v5711, %v5727
  %v5744 = vadd.f32 %v5712, %v5728
  %v5745 = vadd.f32 %v5713, %v5729
  %v5746 = vadd.f32 %v5714, %v5730
  %v5747 = vadd.f32 %v5715, %v5731
  %v5748 = vadd.f32 %v5716, %v5732
  %v5749 = vadd.f32 %v5717, %v5733
  %v5750 = vadd.f32 %v5718, %v5734
  %5751 = vst [vmem:[#allocation3] sm:$0xff] %v5735
  %5752 = vst [vmem:[#allocation3 + $0x8] sm:$0xff] %v5736
  %5753 = vst [vmem:[#allocation3 + $0x10] sm:$0xff] %v5737
  %5754 = vst [vmem:[#allocation3 + $0x18] sm:$0xff] %v5738
  %5755 = vst [vmem:[#allocation3 + $0x20] sm:$0xff] %v5739
  %5756 = vst [vmem:[#allocation3 + $0x28] sm:$0xff] %v5740
  %5757 = vst [vmem:[#allocation3 + $0x30] sm:$0xff] %v5741
  %5758 = vst [vmem:[#allocation3 + $0x38] sm:$0xff] %v5742
  %5759 = vst [vmem:[#allocation3 + $0x40] sm:$0xff] %v5743
  %5760 = vst [vmem:[#allocation3 + $0x48] sm:$0xff] %v5744
  %5761 = vst [vmem:[#allocation3 + $0x50] sm:$0xff] %v5745
  %5762 = vst [vmem:[#allocation3 + $0x58] sm:$0xff] %v5746
  %5763 = vst [vmem:[#allocation3 + $0x60] sm:$0xff] %v5747
  %5764 = vst [vmem:[#allocation3 + $0x68] sm:$0xff] %v5748
  %5765 = vst [vmem:[#allocation3 + $0x70] sm:$0xff] %v5749
  %5766 = vst [vmem:[#allocation3 + $0x78] sm:$0xff] %v5750
  %v5767 = vld [vmem:[#allocation2] sm:$0xff]
  %v5768 = vld [vmem:[#allocation2 + $0x8] sm:$0xff]
  %v5769 = vld [vmem:[#allocation2 + $0x10] sm:$0xff]
  %v5770 = vld [vmem:[#allocation2 + $0x18] sm:$0xff]
  %v5771 = vld [vmem:[#allocation2 + $0x20] sm:$0xff]
  %v5772 = vld [vmem:[#allocation2 + $0x28] sm:$0xff]
  %v5773 = vld [vmem:[#allocation2 + $0x30] sm:$0xff]
  %v5774 = vld [vmem:[#allocation2 + $0x38] sm:$0xff]
  %v5775 = vld [vmem:[#allocation2 + $0x40] sm:$0xff]
  %v5776 = vld [vmem:[#allocation2 + $0x48] sm:$0xff]
  %v5777 = vld [vmem:[#allocation2 + $0x50] sm:$0xff]
  %v5778 = vld [vmem:[#allocation2 + $0x58] sm:$0xff]
  %v5779 = vld [vmem:[#allocation2 + $0x60] sm:$0xff]
  %v5780 = vld [vmem:[#allocation2 + $0x68] sm:$0xff]
  %v5781 = vld [vmem:[#allocation2 + $0x70] sm:$0xff]
  %v5782 = vld [vmem:[#allocation2 + $0x78] sm:$0xff]
  %v5783 = vadd.f32 %v3773, %v5632
  %v5784 = vadd.f32 %v3774, %v5634
  %v5785 = vadd.f32 %v3775, %v5685
  %v5786 = vadd.f32 %v3776, %v5687
  %v5787 = vadd.f32 %v3777, %v5636
  %v5788 = vadd.f32 %v3778, %v5638
  %v5789 = vadd.f32 %v3779, %v5689
  %v5790 = vadd.f32 %v3780, %v5691
  %v5791 = vadd.f32 %v3781, %v5642
  %v5792 = vadd.f32 %v3782, %v5644
  %v5793 = vadd.f32 %v3783, %v5695
  %v5794 = vadd.f32 %v3784, %v5697
  %v5795 = vadd.f32 %v3785, %v5646
  %v5796 = vadd.f32 %v3786, %v5648
  %v5797 = vadd.f32 %v3787, %v5699
  %v5798 = vadd.f32 %v3788, %v5701
  %v5799 = vadd.f32 %v5767, %v5783
  %v5800 = vadd.f32 %v5768, %v5784
  %v5801 = vadd.f32 %v5769, %v5785
  %v5802 = vadd.f32 %v5770, %v5786
  %v5803 = vadd.f32 %v5771, %v5787
  %v5804 = vadd.f32 %v5772, %v5788
  %v5805 = vadd.f32 %v5773, %v5789
  %v5806 = vadd.f32 %v5774, %v5790
  %v5807 = vadd.f32 %v5775, %v5791
  %v5808 = vadd.f32 %v5776, %v5792
  %v5809 = vadd.f32 %v5777, %v5793
  %v5810 = vadd.f32 %v5778, %v5794
  %v5811 = vadd.f32 %v5779, %v5795
  %v5812 = vadd.f32 %v5780, %v5796
  %v5813 = vadd.f32 %v5781, %v5797
  %v5814 = vadd.f32 %v5782, %v5798
  %v5815 = vadd.f32 %v5799, %v104
  %v5816 = vadd.f32 %v5800, %v105
  %v5817 = vadd.f32 %v5801, %v106
  %v5818 = vadd.f32 %v5802, %v107
  %v5819 = vadd.f32 %v5803, %v108
  %v5820 = vadd.f32 %v5804, %v109
  %v5821 = vadd.f32 %v5805, %v110
  %v5822 = vadd.f32 %v5806, %v111
  %v5823 = vadd.f32 %v5807, %v112
  %v5824 = vadd.f32 %v5808, %v113
  %v5825 = vadd.f32 %v5809, %v114
  %v5826 = vadd.f32 %v5810, %v115
  %v5827 = vadd.f32 %v5811, %v116
  %v5828 = vadd.f32 %v5812, %v117
  %v5829 = vadd.f32 %v5813, %v118
  %v5830 = vadd.f32 %v5814, %v119
  %v5831 = vld [vmem:[%s2] sm:$0xff]
  %v5832 = vld [vmem:[%s2 + $0x8] sm:$0xff]
  %v5833 = vld [vmem:[%s2 + $0x10] sm:$0xff]
  %v5834 = vld [vmem:[%s2 + $0x18] sm:$0xff]
  %v5835 = vld [vmem:[%s2 + $0x20] sm:$0xff]
  %v5836 = vld [vmem:[%s2 + $0x28] sm:$0xff]
  %v5837 = vld [vmem:[%s2 + $0x30] sm:$0xff]
  %v5838 = vld [vmem:[%s2 + $0x38] sm:$0xff]
  %v5839 = vld [vmem:[%s2 + $0x40] sm:$0xff]
  %v5840 = vld [vmem:[%s2 + $0x48] sm:$0xff]
  %v5841 = vld [vmem:[%s2 + $0x50] sm:$0xff]
  %v5842 = vld [vmem:[%s2 + $0x58] sm:$0xff]
  %v5843 = vld [vmem:[%s2 + $0x60] sm:$0xff]
  %v5844 = vld [vmem:[%s2 + $0x68] sm:$0xff]
  %v5845 = vld [vmem:[%s2 + $0x70] sm:$0xff]
  %v5846 = vld [vmem:[%s2 + $0x78] sm:$0xff]
  %v5847 = vld [vmem:[%s2 + $0x80] sm:$0xff]
  %v5848 = vld [vmem:[%s2 + $0x88] sm:$0xff]
  %v5849 = vld [vmem:[%s2 + $0x90] sm:$0xff]
  %v5850 = vld [vmem:[%s2 + $0x98] sm:$0xff]
  %v5851 = vld [vmem:[%s2 + $0xa0] sm:$0xff]
  %v5852 = vld [vmem:[%s2 + $0xa8] sm:$0xff]
  %v5853 = vld [vmem:[%s2 + $0xb0] sm:$0xff]
  %v5854 = vld [vmem:[%s2 + $0xb8] sm:$0xff]
  %v5855 = vld [vmem:[%s2 + $0xc0] sm:$0xff]
  %v5856 = vld [vmem:[%s2 + $0xc8] sm:$0xff]
  %v5857 = vld [vmem:[%s2 + $0xd0] sm:$0xff]
  %v5858 = vld [vmem:[%s2 + $0xd8] sm:$0xff]
  %v5859 = vld [vmem:[%s2 + $0xe0] sm:$0xff]
  %v5860 = vld [vmem:[%s2 + $0xe8] sm:$0xff]
  %v5861 = vld [vmem:[%s2 + $0xf0] sm:$0xff]
  %v5862 = vld [vmem:[%s2 + $0xf8] sm:$0xff]
  %v5863 = vld [vmem:[%s2 + $0x100] sm:$0xff]
  %v5864 = vld [vmem:[%s2 + $0x108] sm:$0xff]
  %v5865 = vld [vmem:[%s2 + $0x110] sm:$0xff]
  %v5866 = vld [vmem:[%s2 + $0x118] sm:$0xff]
  %v5867 = vld [vmem:[%s2 + $0x120] sm:$0xff]
  %v5868 = vld [vmem:[%s2 + $0x128] sm:$0xff]
  %v5869 = vld [vmem:[%s2 + $0x130] sm:$0xff]
  %v5870 = vld [vmem:[%s2 + $0x138] sm:$0xff]
  %v5871 = vld [vmem:[%s2 + $0x140] sm:$0xff]
  %v5872 = vld [vmem:[%s2 + $0x148] sm:$0xff]
  %v5873 = vld [vmem:[%s2 + $0x150] sm:$0xff]
  %v5874 = vld [vmem:[%s2 + $0x158] sm:$0xff]
  %v5875 = vld [vmem:[%s2 + $0x160] sm:$0xff]
  %v5876 = vld [vmem:[%s2 + $0x168] sm:$0xff]
  %v5877 = vld [vmem:[%s2 + $0x170] sm:$0xff]
  %v5878 = vld [vmem:[%s2 + $0x178] sm:$0xff]
  %v5879 = vld [vmem:[%s2 + $0x180] sm:$0xff]
  %v5880 = vld [vmem:[%s2 + $0x188] sm:$0xff]
  %v5881 = vld [vmem:[%s2 + $0x190] sm:$0xff]
  %v5882 = vld [vmem:[%s2 + $0x198] sm:$0xff]
  %v5883 = vld [vmem:[%s2 + $0x1a0] sm:$0xff]
  %v5884 = vld [vmem:[%s2 + $0x1a8] sm:$0xff]
  %v5885 = vld [vmem:[%s2 + $0x1b0] sm:$0xff]
  %v5886 = vld [vmem:[%s2 + $0x1b8] sm:$0xff]
  %v5887 = vld [vmem:[%s2 + $0x1c0] sm:$0xff]
  %v5888 = vld [vmem:[%s2 + $0x1c8] sm:$0xff]
  %v5889 = vld [vmem:[%s2 + $0x1d0] sm:$0xff]
  %v5890 = vld [vmem:[%s2 + $0x1d8] sm:$0xff]
  %v5891 = vld [vmem:[%s2 + $0x1e0] sm:$0xff]
  %v5892 = vld [vmem:[%s2 + $0x1e8] sm:$0xff]
  %v5893 = vld [vmem:[%s2 + $0x1f0] sm:$0xff]
  %v5894 = vld [vmem:[%s2 + $0x1f8] sm:$0xff]
  %v5895 = vld [vmem:[%s2 + $0x200] sm:$0xff]
  %v5896 = vld [vmem:[%s2 + $0x208] sm:$0xff]
  %v5897 = vld [vmem:[%s2 + $0x210] sm:$0xff]
  %v5898 = vld [vmem:[%s2 + $0x218] sm:$0xff]
  %v5899 = vld [vmem:[%s2 + $0x220] sm:$0xff]
  %v5900 = vld [vmem:[%s2 + $0x228] sm:$0xff]
  %v5901 = vld [vmem:[%s2 + $0x230] sm:$0xff]
  %v5902 = vld [vmem:[%s2 + $0x238] sm:$0xff]
  %v5903 = vld [vmem:[%s2 + $0x240] sm:$0xff]
  %v5904 = vld [vmem:[%s2 + $0x248] sm:$0xff]
  %v5905 = vld [vmem:[%s2 + $0x250] sm:$0xff]
  %v5906 = vld [vmem:[%s2 + $0x258] sm:$0xff]
  %v5907 = vld [vmem:[%s2 + $0x260] sm:$0xff]
  %v5908 = vld [vmem:[%s2 + $0x268] sm:$0xff]
  %v5909 = vld [vmem:[%s2 + $0x270] sm:$0xff]
  %v5910 = vld [vmem:[%s2 + $0x278] sm:$0xff]
  %v5911 = vld [vmem:[%s2 + $0x280] sm:$0xff]
  %v5912 = vld [vmem:[%s2 + $0x288] sm:$0xff]
  %v5913 = vld [vmem:[%s2 + $0x290] sm:$0xff]
  %v5914 = vld [vmem:[%s2 + $0x298] sm:$0xff]
  %v5915 = vld [vmem:[%s2 + $0x2a0] sm:$0xff]
  %v5916 = vld [vmem:[%s2 + $0x2a8] sm:$0xff]
  %v5917 = vld [vmem:[%s2 + $0x2b0] sm:$0xff]
  %v5918 = vld [vmem:[%s2 + $0x2b8] sm:$0xff]
  %v5919 = vld [vmem:[%s2 + $0x2c0] sm:$0xff]
  %v5920 = vld [vmem:[%s2 + $0x2c8] sm:$0xff]
  %v5921 = vld [vmem:[%s2 + $0x2d0] sm:$0xff]
  %v5922 = vld [vmem:[%s2 + $0x2d8] sm:$0xff]
  %v5923 = vld [vmem:[%s2 + $0x2e0] sm:$0xff]
  %v5924 = vld [vmem:[%s2 + $0x2e8] sm:$0xff]
  %v5925 = vld [vmem:[%s2 + $0x2f0] sm:$0xff]
  %v5926 = vld [vmem:[%s2 + $0x2f8] sm:$0xff]
  %v5927 = vld [vmem:[%s2 + $0x300] sm:$0xff]
  %v5928 = vld [vmem:[%s2 + $0x308] sm:$0xff]
  %v5929 = vld [vmem:[%s2 + $0x310] sm:$0xff]
  %v5930 = vld [vmem:[%s2 + $0x318] sm:$0xff]
  %v5931 = vld [vmem:[%s2 + $0x320] sm:$0xff]
  %v5932 = vld [vmem:[%s2 + $0x328] sm:$0xff]
  %v5933 = vld [vmem:[%s2 + $0x330] sm:$0xff]
  %v5934 = vld [vmem:[%s2 + $0x338] sm:$0xff]
  %v5935 = vld [vmem:[%s2 + $0x340] sm:$0xff]
  %v5936 = vld [vmem:[%s2 + $0x348] sm:$0xff]
  %v5937 = vld [vmem:[%s2 + $0x350] sm:$0xff]
  %v5938 = vld [vmem:[%s2 + $0x358] sm:$0xff]
  %v5939 = vld [vmem:[%s2 + $0x360] sm:$0xff]
  %v5940 = vld [vmem:[%s2 + $0x368] sm:$0xff]
  %v5941 = vld [vmem:[%s2 + $0x370] sm:$0xff]
  %v5942 = vld [vmem:[%s2 + $0x378] sm:$0xff]
  %v5943 = vld [vmem:[%s2 + $0x380] sm:$0xff]
  %v5944 = vld [vmem:[%s2 + $0x388] sm:$0xff]
  %v5945 = vld [vmem:[%s2 + $0x390] sm:$0xff]
  %v5946 = vld [vmem:[%s2 + $0x398] sm:$0xff]
  %v5947 = vld [vmem:[%s2 + $0x3a0] sm:$0xff]
  %v5948 = vld [vmem:[%s2 + $0x3a8] sm:$0xff]
  %v5949 = vld [vmem:[%s2 + $0x3b0] sm:$0xff]
  %v5950 = vld [vmem:[%s2 + $0x3b8] sm:$0xff]
  %v5951 = vld [vmem:[%s2 + $0x3c0] sm:$0xff]
  %v5952 = vld [vmem:[%s2 + $0x3c8] sm:$0xff]
  %v5953 = vld [vmem:[%s2 + $0x3d0] sm:$0xff]
  %v5954 = vld [vmem:[%s2 + $0x3d8] sm:$0xff]
  %v5955 = vld [vmem:[%s2 + $0x3e0] sm:$0xff]
  %v5956 = vld [vmem:[%s2 + $0x3e8] sm:$0xff]
  %v5957 = vld [vmem:[%s2 + $0x3f0] sm:$0xff]
  %v5958 = vld [vmem:[%s2 + $0x3f8] sm:$0xff]
  %v5959 = vpack.c.bf16 %v5819, %v5815
  %v5960 = vpack.c.bf16 %v5820, %v5816
  %v5961 = vpack.c.bf16 %v5821, %v5817
  %v5962 = vpack.c.bf16 %v5822, %v5818
  %v5963 = vpack.c.bf16 %v5827, %v5823
  %v5964 = vpack.c.bf16 %v5828, %v5824
  %v5965 = vpack.c.bf16 %v5829, %v5825
  %v5966 = vpack.c.bf16 %v5830, %v5826
  %v6095 = vunpack.c.l.b16 %v5831
  %v6096 = vunpack.c.h.b16 %v5831
  %v6097 = vunpack.c.l.b16 %v5832
  %v6098 = vunpack.c.h.b16 %v5832
  %v6099 = vunpack.c.l.b16 %v5833
  %v6100 = vunpack.c.h.b16 %v5833
  %v6101 = vunpack.c.l.b16 %v5834
  %v6102 = vunpack.c.h.b16 %v5834
  %v6103 = vunpack.c.l.b16 %v5835
  %v6104 = vunpack.c.h.b16 %v5835
  %v6105 = vunpack.c.l.b16 %v5836
  %v6106 = vunpack.c.h.b16 %v5836
  %v6107 = vunpack.c.l.b16 %v5837
  %v6108 = vunpack.c.h.b16 %v5837
  %v6109 = vunpack.c.l.b16 %v5838
  %v6110 = vunpack.c.h.b16 %v5838
  %v6111 = vunpack.c.l.b16 %v5839
  %v6112 = vunpack.c.h.b16 %v5839
  %v6113 = vunpack.c.l.b16 %v5840
  %v6114 = vunpack.c.h.b16 %v5840
  %v6115 = vunpack.c.l.b16 %v5841
  %v6116 = vunpack.c.h.b16 %v5841
  %v6117 = vunpack.c.l.b16 %v5842
  %v6118 = vunpack.c.h.b16 %v5842
  %v6119 = vunpack.c.l.b16 %v5843
  %v6120 = vunpack.c.h.b16 %v5843
  %v6121 = vunpack.c.l.b16 %v5844
  %v6122 = vunpack.c.h.b16 %v5844
  %v6123 = vunpack.c.l.b16 %v5845
  %v6124 = vunpack.c.h.b16 %v5845
  %v6125 = vunpack.c.l.b16 %v5846
  %v6126 = vunpack.c.h.b16 %v5846
  %v6127 = vunpack.c.l.b16 %v5847
  %v6128 = vunpack.c.h.b16 %v5847
  %v6129 = vunpack.c.l.b16 %v5848
  %v6130 = vunpack.c.h.b16 %v5848
  %v6131 = vunpack.c.l.b16 %v5849
  %v6132 = vunpack.c.h.b16 %v5849
  %v6133 = vunpack.c.l.b16 %v5850
  %v6134 = vunpack.c.h.b16 %v5850
  %v6135 = vunpack.c.l.b16 %v5851
  %v6136 = vunpack.c.h.b16 %v5851
  %v6137 = vunpack.c.l.b16 %v5852
  %v6138 = vunpack.c.h.b16 %v5852
  %v6139 = vunpack.c.l.b16 %v5853
  %v6140 = vunpack.c.h.b16 %v5853
  %v6141 = vunpack.c.l.b16 %v5854
  %v6142 = vunpack.c.h.b16 %v5854
  %v6143 = vunpack.c.l.b16 %v5855
  %v6144 = vunpack.c.h.b16 %v5855
  %v6145 = vunpack.c.l.b16 %v5856
  %v6146 = vunpack.c.h.b16 %v5856
  %v6147 = vunpack.c.l.b16 %v5857
  %v6148 = vunpack.c.h.b16 %v5857
  %v6149 = vunpack.c.l.b16 %v5858
  %v6150 = vunpack.c.h.b16 %v5858
  %v6151 = vunpack.c.l.b16 %v5859
  %v6152 = vunpack.c.h.b16 %v5859
  %v6153 = vunpack.c.l.b16 %v5860
  %v6154 = vunpack.c.h.b16 %v5860
  %v6155 = vunpack.c.l.b16 %v5861
  %v6156 = vunpack.c.h.b16 %v5861
  %v6157 = vunpack.c.l.b16 %v5862
  %v6158 = vunpack.c.h.b16 %v5862
  %v6159 = vunpack.c.l.b16 %v5863
  %v6160 = vunpack.c.h.b16 %v5863
  %v6161 = vunpack.c.l.b16 %v5864
  %v6162 = vunpack.c.h.b16 %v5864
  %v6163 = vunpack.c.l.b16 %v5865
  %v6164 = vunpack.c.h.b16 %v5865
  %v6165 = vunpack.c.l.b16 %v5866
  %v6166 = vunpack.c.h.b16 %v5866
  %v6167 = vunpack.c.l.b16 %v5867
  %v6168 = vunpack.c.h.b16 %v5867
  %v6169 = vunpack.c.l.b16 %v5868
  %v6170 = vunpack.c.h.b16 %v5868
  %v6171 = vunpack.c.l.b16 %v5869
  %v6172 = vunpack.c.h.b16 %v5869
  %v6173 = vunpack.c.l.b16 %v5870
  %v6174 = vunpack.c.h.b16 %v5870
  %v6175 = vunpack.c.l.b16 %v5871
  %v6176 = vunpack.c.h.b16 %v5871
  %v6177 = vunpack.c.l.b16 %v5872
  %v6178 = vunpack.c.h.b16 %v5872
  %v6179 = vunpack.c.l.b16 %v5873
  %v6180 = vunpack.c.h.b16 %v5873
  %v6181 = vunpack.c.l.b16 %v5874
  %v6182 = vunpack.c.h.b16 %v5874
  %v6183 = vunpack.c.l.b16 %v5875
  %v6184 = vunpack.c.h.b16 %v5875
  %v6185 = vunpack.c.l.b16 %v5876
  %v6186 = vunpack.c.h.b16 %v5876
  %v6187 = vunpack.c.l.b16 %v5877
  %v6188 = vunpack.c.h.b16 %v5877
  %v6189 = vunpack.c.l.b16 %v5878
  %v6190 = vunpack.c.h.b16 %v5878
  %v6191 = vunpack.c.l.b16 %v5879
  %v6192 = vunpack.c.h.b16 %v5879
  %v6193 = vunpack.c.l.b16 %v5880
  %v6194 = vunpack.c.h.b16 %v5880
  %v6195 = vunpack.c.l.b16 %v5881
  %v6196 = vunpack.c.h.b16 %v5881
  %v6197 = vunpack.c.l.b16 %v5882
  %v6198 = vunpack.c.h.b16 %v5882
  %v6199 = vunpack.c.l.b16 %v5883
  %v6200 = vunpack.c.h.b16 %v5883
  %v6201 = vunpack.c.l.b16 %v5884
  %v6202 = vunpack.c.h.b16 %v5884
  %v6203 = vunpack.c.l.b16 %v5885
  %v6204 = vunpack.c.h.b16 %v5885
  %v6205 = vunpack.c.l.b16 %v5886
  %v6206 = vunpack.c.h.b16 %v5886
  %v6207 = vunpack.c.l.b16 %v5887
  %v6208 = vunpack.c.h.b16 %v5887
  %v6209 = vunpack.c.l.b16 %v5888
  %v6210 = vunpack.c.h.b16 %v5888
  %v6211 = vunpack.c.l.b16 %v5889
  %v6212 = vunpack.c.h.b16 %v5889
  %v6213 = vunpack.c.l.b16 %v5890
  %v6214 = vunpack.c.h.b16 %v5890
  %v6215 = vunpack.c.l.b16 %v5891
  %v6216 = vunpack.c.h.b16 %v5891
  %v6217 = vunpack.c.l.b16 %v5892
  %v6218 = vunpack.c.h.b16 %v5892
  %v6219 = vunpack.c.l.b16 %v5893
  %v6220 = vunpack.c.h.b16 %v5893
  %v6221 = vunpack.c.l.b16 %v5894
  %v6222 = vunpack.c.h.b16 %v5894
  %v6223 = vunpack.c.l.b16 %v5895
  %v6224 = vunpack.c.h.b16 %v5895
  %v6225 = vunpack.c.l.b16 %v5896
  %v6226 = vunpack.c.h.b16 %v5896
  %v6227 = vunpack.c.l.b16 %v5897
  %v6228 = vunpack.c.h.b16 %v5897
  %v6229 = vunpack.c.l.b16 %v5898
  %v6230 = vunpack.c.h.b16 %v5898
  %v6231 = vunpack.c.l.b16 %v5899
  %v6232 = vunpack.c.h.b16 %v5899
  %v6233 = vunpack.c.l.b16 %v5900
  %v6234 = vunpack.c.h.b16 %v5900
  %v6235 = vunpack.c.l.b16 %v5901
  %v6236 = vunpack.c.h.b16 %v5901
  %v6237 = vunpack.c.l.b16 %v5902
  %v6238 = vunpack.c.h.b16 %v5902
  %v6239 = vunpack.c.l.b16 %v5903
  %v6240 = vunpack.c.h.b16 %v5903
  %v6241 = vunpack.c.l.b16 %v5904
  %v6242 = vunpack.c.h.b16 %v5904
  %v6243 = vunpack.c.l.b16 %v5905
  %v6244 = vunpack.c.h.b16 %v5905
  %v6245 = vunpack.c.l.b16 %v5906
  %v6246 = vunpack.c.h.b16 %v5906
  %v6247 = vunpack.c.l.b16 %v5907
  %v6248 = vunpack.c.h.b16 %v5907
  %v6249 = vunpack.c.l.b16 %v5908
  %v6250 = vunpack.c.h.b16 %v5908
  %v6251 = vunpack.c.l.b16 %v5909
  %v6252 = vunpack.c.h.b16 %v5909
  %v6253 = vunpack.c.l.b16 %v5910
  %v6254 = vunpack.c.h.b16 %v5910
  %v6255 = vunpack.c.l.b16 %v5911
  %v6256 = vunpack.c.h.b16 %v5911
  %v6257 = vunpack.c.l.b16 %v5912
  %v6258 = vunpack.c.h.b16 %v5912
  %v6259 = vunpack.c.l.b16 %v5913
  %v6260 = vunpack.c.h.b16 %v5913
  %v6261 = vunpack.c.l.b16 %v5914
  %v6262 = vunpack.c.h.b16 %v5914
  %v6263 = vunpack.c.l.b16 %v5915
  %v6264 = vunpack.c.h.b16 %v5915
  %v6265 = vunpack.c.l.b16 %v5916
  %v6266 = vunpack.c.h.b16 %v5916
  %v6267 = vunpack.c.l.b16 %v5917
  %v6268 = vunpack.c.h.b16 %v5917
  %v6269 = vunpack.c.l.b16 %v5918
  %v6270 = vunpack.c.h.b16 %v5918
  %v6271 = vunpack.c.l.b16 %v5919
  %v6272 = vunpack.c.h.b16 %v5919
  %v6273 = vunpack.c.l.b16 %v5920
  %v6274 = vunpack.c.h.b16 %v5920
  %v6275 = vunpack.c.l.b16 %v5921
  %v6276 = vunpack.c.h.b16 %v5921
  %v6277 = vunpack.c.l.b16 %v5922
  %v6278 = vunpack.c.h.b16 %v5922
  %v6279 = vunpack.c.l.b16 %v5923
  %v6280 = vunpack.c.h.b16 %v5923
  %v6281 = vunpack.c.l.b16 %v5924
  %v6282 = vunpack.c.h.b16 %v5924
  %v6283 = vunpack.c.l.b16 %v5925
  %v6284 = vunpack.c.h.b16 %v5925
  %v6285 = vunpack.c.l.b16 %v5926
  %v6286 = vunpack.c.h.b16 %v5926
  %v6287 = vunpack.c.l.b16 %v5927
  %v6288 = vunpack.c.h.b16 %v5927
  %v6289 = vunpack.c.l.b16 %v5928
  %v6290 = vunpack.c.h.b16 %v5928
  %v6291 = vunpack.c.l.b16 %v5929
  %v6292 = vunpack.c.h.b16 %v5929
  %v6293 = vunpack.c.l.b16 %v5930
  %v6294 = vunpack.c.h.b16 %v5930
  %v6295 = vunpack.c.l.b16 %v5931
  %v6296 = vunpack.c.h.b16 %v5931
  %v6297 = vunpack.c.l.b16 %v5932
  %v6298 = vunpack.c.h.b16 %v5932
  %v6299 = vunpack.c.l.b16 %v5933
  %v6300 = vunpack.c.h.b16 %v5933
  %v6301 = vunpack.c.l.b16 %v5934
  %v6302 = vunpack.c.h.b16 %v5934
  %v6303 = vunpack.c.l.b16 %v5935
  %v6304 = vunpack.c.h.b16 %v5935
  %v6305 = vunpack.c.l.b16 %v5936
  %v6306 = vunpack.c.h.b16 %v5936
  %v6307 = vunpack.c.l.b16 %v5937
  %v6308 = vunpack.c.h.b16 %v5937
  %v6309 = vunpack.c.l.b16 %v5938
  %v6310 = vunpack.c.h.b16 %v5938
  %v6311 = vunpack.c.l.b16 %v5939
  %v6312 = vunpack.c.h.b16 %v5939
  %v6313 = vunpack.c.l.b16 %v5940
  %v6314 = vunpack.c.h.b16 %v5940
  %v6315 = vunpack.c.l.b16 %v5941
  %v6316 = vunpack.c.h.b16 %v5941
  %v6317 = vunpack.c.l.b16 %v5942
  %v6318 = vunpack.c.h.b16 %v5942
  %v6319 = vunpack.c.l.b16 %v5943
  %v6320 = vunpack.c.h.b16 %v5943
  %v6321 = vunpack.c.l.b16 %v5944
  %v6322 = vunpack.c.h.b16 %v5944
  %v6323 = vunpack.c.l.b16 %v5945
  %v6324 = vunpack.c.h.b16 %v5945
  %v6325 = vunpack.c.l.b16 %v5946
  %v6326 = vunpack.c.h.b16 %v5946
  %v6327 = vunpack.c.l.b16 %v5947
  %v6328 = vunpack.c.h.b16 %v5947
  %v6329 = vunpack.c.l.b16 %v5948
  %v6330 = vunpack.c.h.b16 %v5948
  %v6331 = vunpack.c.l.b16 %v5949
  %v6332 = vunpack.c.h.b16 %v5949
  %v6333 = vunpack.c.l.b16 %v5950
  %v6334 = vunpack.c.h.b16 %v5950
  %v6335 = vunpack.c.l.b16 %v5951
  %v6336 = vunpack.c.h.b16 %v5951
  %v6337 = vunpack.c.l.b16 %v5952
  %v6338 = vunpack.c.h.b16 %v5952
  %v6339 = vunpack.c.l.b16 %v5953
  %v6340 = vunpack.c.h.b16 %v5953
  %v6341 = vunpack.c.l.b16 %v5954
  %v6342 = vunpack.c.h.b16 %v5954
  %v6343 = vunpack.c.l.b16 %v5955
  %v6344 = vunpack.c.h.b16 %v5955
  %v6345 = vunpack.c.l.b16 %v5956
  %v6346 = vunpack.c.h.b16 %v5956
  %v6347 = vunpack.c.l.b16 %v5957
  %v6348 = vunpack.c.h.b16 %v5957
  %v6349 = vunpack.c.l.b16 %v5958
  %v6350 = vunpack.c.h.b16 %v5958
  %v6351 = vpack.c.b16 %v6099, %v6095
  %v6352 = vpack.c.b16 %v6100, %v6096
  %v6353 = vpack.c.b16 %v6101, %v6097
  %v6354 = vpack.c.b16 %v6102, %v6098
  %v6355 = vpack.c.b16 %v6107, %v6103
  %v6356 = vpack.c.b16 %v6108, %v6104
  %v6357 = vpack.c.b16 %v6109, %v6105
  %v6358 = vpack.c.b16 %v6110, %v6106
  %v6359 = vpack.c.b16 %v6115, %v6111
  %v6360 = vpack.c.b16 %v6116, %v6112
  %v6361 = vpack.c.b16 %v6117, %v6113
  %v6362 = vpack.c.b16 %v6118, %v6114
  %v6363 = vpack.c.b16 %v6123, %v6119
  %v6364 = vpack.c.b16 %v6124, %v6120
  %v6365 = vpack.c.b16 %v6125, %v6121
  %v6366 = vpack.c.b16 %v6126, %v6122
  %v6367 = vpack.c.b16 %v6131, %v6127
  %v6368 = vpack.c.b16 %v6132, %v6128
  %v6369 = vpack.c.b16 %v6133, %v6129
  %v6370 = vpack.c.b16 %v6134, %v6130
  %v6371 = vpack.c.b16 %v6139, %v6135
  %v6372 = vpack.c.b16 %v6140, %v6136
  %v6373 = vpack.c.b16 %v6141, %v6137
  %v6374 = vpack.c.b16 %v6142, %v6138
  %v6375 = vpack.c.b16 %v6147, %v6143
  %v6376 = vpack.c.b16 %v6148, %v6144
  %v6377 = vpack.c.b16 %v6149, %v6145
  %v6378 = vpack.c.b16 %v6150, %v6146
  %v6379 = vpack.c.b16 %v6155, %v6151
  %v6380 = vpack.c.b16 %v6156, %v6152
  %v6381 = vpack.c.b16 %v6157, %v6153
  %v6382 = vpack.c.b16 %v6158, %v6154
  %v6383 = vpack.c.b16 %v6163, %v6159
  %v6384 = vpack.c.b16 %v6164, %v6160
  %v6385 = vpack.c.b16 %v6165, %v6161
  %v6386 = vpack.c.b16 %v6166, %v6162
  %v6387 = vpack.c.b16 %v6171, %v6167
  %v6388 = vpack.c.b16 %v6172, %v6168
  %v6389 = vpack.c.b16 %v6173, %v6169
  %v6390 = vpack.c.b16 %v6174, %v6170
  %v6391 = vpack.c.b16 %v6179, %v6175
  %v6392 = vpack.c.b16 %v6180, %v6176
  %v6393 = vpack.c.b16 %v6181, %v6177
  %v6394 = vpack.c.b16 %v6182, %v6178
  %v6395 = vpack.c.b16 %v6187, %v6183
  %v6396 = vpack.c.b16 %v6188, %v6184
  %v6397 = vpack.c.b16 %v6189, %v6185
  %v6398 = vpack.c.b16 %v6190, %v6186
  %v6399 = vpack.c.b16 %v6195, %v6191
  %v6400 = vpack.c.b16 %v6196, %v6192
  %v6401 = vpack.c.b16 %v6197, %v6193
  %v6402 = vpack.c.b16 %v6198, %v6194
  %v6403 = vpack.c.b16 %v6203, %v6199
  %v6404 = vpack.c.b16 %v6204, %v6200
  %v6405 = vpack.c.b16 %v6205, %v6201
  %v6406 = vpack.c.b16 %v6206, %v6202
  %v6407 = vpack.c.b16 %v6211, %v6207
  %v6408 = vpack.c.b16 %v6212, %v6208
  %v6409 = vpack.c.b16 %v6213, %v6209
  %v6410 = vpack.c.b16 %v6214, %v6210
  %v6411 = vpack.c.b16 %v6219, %v6215
  %v6412 = vpack.c.b16 %v6220, %v6216
  %v6413 = vpack.c.b16 %v6221, %v6217
  %v6414 = vpack.c.b16 %v6222, %v6218
  %v6415 = vpack.c.b16 %v6227, %v6223
  %v6416 = vpack.c.b16 %v6228, %v6224
  %v6417 = vpack.c.b16 %v6229, %v6225
  %v6418 = vpack.c.b16 %v6230, %v6226
  %v6419 = vpack.c.b16 %v6235, %v6231
  %v6420 = vpack.c.b16 %v6236, %v6232
  %v6421 = vpack.c.b16 %v6237, %v6233
  %v6422 = vpack.c.b16 %v6238, %v6234
  %v6423 = vpack.c.b16 %v6243, %v6239
  %v6424 = vpack.c.b16 %v6244, %v6240
  %v6425 = vpack.c.b16 %v6245, %v6241
  %v6426 = vpack.c.b16 %v6246, %v6242
  %v6427 = vpack.c.b16 %v6251, %v6247
  %v6428 = vpack.c.b16 %v6252, %v6248
  %v6429 = vpack.c.b16 %v6253, %v6249
  %v6430 = vpack.c.b16 %v6254, %v6250
  %v6431 = vpack.c.b16 %v6259, %v6255
  %v6432 = vpack.c.b16 %v6260, %v6256
  %v6433 = vpack.c.b16 %v6261, %v6257
  %v6434 = vpack.c.b16 %v6262, %v6258
  %v6435 = vpack.c.b16 %v6267, %v6263
  %v6436 = vpack.c.b16 %v6268, %v6264
  %v6437 = vpack.c.b16 %v6269, %v6265
  %v6438 = vpack.c.b16 %v6270, %v6266
  %v6439 = vpack.c.b16 %v6275, %v6271
  %v6440 = vpack.c.b16 %v6276, %v6272
  %v6441 = vpack.c.b16 %v6277, %v6273
  %v6442 = vpack.c.b16 %v6278, %v6274
  %v6443 = vpack.c.b16 %v6283, %v6279
  %v6444 = vpack.c.b16 %v6284, %v6280
  %v6445 = vpack.c.b16 %v6285, %v6281
  %v6446 = vpack.c.b16 %v6286, %v6282
  %v6447 = vpack.c.b16 %v6291, %v6287
  %v6448 = vpack.c.b16 %v6292, %v6288
  %v6449 = vpack.c.b16 %v6293, %v6289
  %v6450 = vpack.c.b16 %v6294, %v6290
  %v6451 = vpack.c.b16 %v6299, %v6295
  %v6452 = vpack.c.b16 %v6300, %v6296
  %v6453 = vpack.c.b16 %v6301, %v6297
  %v6454 = vpack.c.b16 %v6302, %v6298
  %v6455 = vpack.c.b16 %v6307, %v6303
  %v6456 = vpack.c.b16 %v6308, %v6304
  %v6457 = vpack.c.b16 %v6309, %v6305
  %v6458 = vpack.c.b16 %v6310, %v6306
  %v6459 = vpack.c.b16 %v6315, %v6311
  %v6460 = vpack.c.b16 %v6316, %v6312
  %v6461 = vpack.c.b16 %v6317, %v6313
  %v6462 = vpack.c.b16 %v6318, %v6314
  %v6463 = vpack.c.b16 %v6323, %v6319
  %v6464 = vpack.c.b16 %v6324, %v6320
  %v6465 = vpack.c.b16 %v6325, %v6321
  %v6466 = vpack.c.b16 %v6326, %v6322
  %v6467 = vpack.c.b16 %v6331, %v6327
  %v6468 = vpack.c.b16 %v6332, %v6328
  %v6469 = vpack.c.b16 %v6333, %v6329
  %v6470 = vpack.c.b16 %v6334, %v6330
  %v6471 = vpack.c.b16 %v6339, %v6335
  %v6472 = vpack.c.b16 %v6340, %v6336
  %v6473 = vpack.c.b16 %v6341, %v6337
  %v6474 = vpack.c.b16 %v6342, %v6338
  %v6475 = vpack.c.b16 %v6347, %v6343
  %v6476 = vpack.c.b16 %v6348, %v6344
  %v6477 = vpack.c.b16 %v6349, %v6345
  %v6478 = vpack.c.b16 %v6350, %v6346
  %6607 = vmatprep.subr.bf16.mxu0 %v6380
  %6608 = vmatpush1.bf16.msra.mxu0 %v6379
  %6609 = vmatprep.subr.bf16.mxu0 %v6376
  %6610 = vmatpush1.bf16.msra.mxu0 %v6375
  %6611 = vmatprep.subr.bf16.mxu0 %v6372
  %6612 = vmatpush1.bf16.msra.mxu0 %v6371
  %6613 = vmatprep.subr.bf16.mxu0 %v6368
  %6614 = vmatpush1.bf16.msra.mxu0 %v6367
  %6615 = vmatprep.subr.bf16.mxu0 %v6364
  %6616 = vmatpush1.bf16.msra.mxu0 %v6363
  %6617 = vmatprep.subr.bf16.mxu0 %v6360
  %6618 = vmatpush1.bf16.msra.mxu0 %v6359
  %6619 = vmatprep.subr.bf16.mxu0 %v6356
  %6620 = vmatpush1.bf16.msra.mxu0 %v6355
  %6621 = vmatprep.subr.bf16.mxu0 %v6352
  %6622 = vmatpush1.bf16.msra.mxu0 %v6351
  %6623 = vmatprep.subr.bf16.mxu0 %v6412
  %6624 = vmatpush2.bf16.msra.mxu0 %v6411
  %6625 = vmatprep.subr.bf16.mxu0 %v6408
  %6626 = vmatpush2.bf16.msra.mxu0 %v6407
  %6627 = vmatprep.subr.bf16.mxu0 %v6404
  %6628 = vmatpush2.bf16.msra.mxu0 %v6403
  %6629 = vmatprep.subr.bf16.mxu0 %v6400
  %6630 = vmatpush2.bf16.msra.mxu0 %v6399
  %6631 = vmatprep.subr.bf16.mxu0 %v6396
  %6632 = vmatpush2.bf16.msra.mxu0 %v6395
  %6633 = vmatprep.subr.bf16.mxu0 %v6392
  %6634 = vmatpush2.bf16.msra.mxu0 %v6391
  %6635 = vmatprep.subr.bf16.mxu0 %v6388
  %6636 = vmatpush2.bf16.msra.mxu0 %v6387
  %6637 = vmatprep.subr.bf16.mxu0 %v6384
  %6638 = vmatpush2.bf16.msra.mxu0 %v6383
  %6639 = vmatprep.mubr.bf16.mxu0 %v5960
  %6640 = vmatmul.mubr.bf16.gmra.mxu0 %v5959
  %v6641 = vpop.f32.mrf.mxu0
  %v6642 = vadd.f32 0.0, %v6641
  %v6643 = vpop.f32.mrf.mxu0
  %v6644 = vadd.f32 0.0, %v6643
  %v6645 = vpop.f32.mrf.mxu0
  %v6646 = vadd.f32 0.0, %v6645
  %v6647 = vpop.f32.mrf.mxu0
  %v6648 = vadd.f32 0.0, %v6647
  %6649 = vmatprep.mubr.bf16.mxu0 %v5964
  %6650 = vmatmul.mubr.bf16.gmra.mxu0 %v5963
  %v6651 = vpop.f32.mrf.mxu0
  %v6652 = vadd.f32 0.0, %v6651
  %v6653 = vpop.f32.mrf.mxu0
  %v6654 = vadd.f32 0.0, %v6653
  %v6655 = vpop.f32.mrf.mxu0
  %v6656 = vadd.f32 0.0, %v6655
  %v6657 = vpop.f32.mrf.mxu0
  %v6658 = vadd.f32 0.0, %v6657
  %6659 = vdwg.mxu0
  %6660 = vmatprep.subr.bf16.mxu0 %v6444
  %6661 = vmatpush1.bf16.msra.mxu0 %v6443
  %6662 = vmatprep.subr.bf16.mxu0 %v6440
  %6663 = vmatpush1.bf16.msra.mxu0 %v6439
  %6664 = vmatprep.subr.bf16.mxu0 %v6436
  %6665 = vmatpush1.bf16.msra.mxu0 %v6435
  %6666 = vmatprep.subr.bf16.mxu0 %v6432
  %6667 = vmatpush1.bf16.msra.mxu0 %v6431
  %6668 = vmatprep.subr.bf16.mxu0 %v6428
  %6669 = vmatpush1.bf16.msra.mxu0 %v6427
  %6670 = vmatprep.subr.bf16.mxu0 %v6424
  %6671 = vmatpush1.bf16.msra.mxu0 %v6423
  %6672 = vmatprep.subr.bf16.mxu0 %v6420
  %6673 = vmatpush1.bf16.msra.mxu0 %v6419
  %6674 = vmatprep.subr.bf16.mxu0 %v6416
  %6675 = vmatpush1.bf16.msra.mxu0 %v6415
  %6676 = vmatprep.subr.bf16.mxu0 %v6476
  %6677 = vmatpush2.bf16.msra.mxu0 %v6475
  %6678 = vmatprep.subr.bf16.mxu0 %v6472
  %6679 = vmatpush2.bf16.msra.mxu0 %v6471
  %6680 = vmatprep.subr.bf16.mxu0 %v6468
  %6681 = vmatpush2.bf16.msra.mxu0 %v6467
  %6682 = vmatprep.subr.bf16.mxu0 %v6464
  %6683 = vmatpush2.bf16.msra.mxu0 %v6463
  %6684 = vmatprep.subr.bf16.mxu0 %v6460
  %6685 = vmatpush2.bf16.msra.mxu0 %v6459
  %6686 = vmatprep.subr.bf16.mxu0 %v6456
  %6687 = vmatpush2.bf16.msra.mxu0 %v6455
  %6688 = vmatprep.subr.bf16.mxu0 %v6452
  %6689 = vmatpush2.bf16.msra.mxu0 %v6451
  %6690 = vmatprep.subr.bf16.mxu0 %v6448
  %6691 = vmatpush2.bf16.msra.mxu0 %v6447
  %6692 = vmatprep.mubr.bf16.mxu0 %v5962
  %6693 = vmatmul.mubr.bf16.gmra.mxu0 %v5961
  %v6694 = vpop.f32.mrf.mxu0
  %v6695 = vadd.f32 %v6642, %v6694
  %v6696 = vpop.f32.mrf.mxu0
  %v6697 = vadd.f32 %v6644, %v6696
  %v6698 = vpop.f32.mrf.mxu0
  %v6699 = vadd.f32 %v6646, %v6698
  %v6700 = vpop.f32.mrf.mxu0
  %v6701 = vadd.f32 %v6648, %v6700
  %6702 = vmatprep.mubr.bf16.mxu0 %v5966
  %6703 = vmatmul.mubr.bf16.gmra.mxu0 %v5965
  %v6704 = vpop.f32.mrf.mxu0
  %v6705 = vadd.f32 %v6652, %v6704
  %v6706 = vpop.f32.mrf.mxu0
  %v6707 = vadd.f32 %v6654, %v6706
  %v6708 = vpop.f32.mrf.mxu0
  %v6709 = vadd.f32 %v6656, %v6708
  %v6710 = vpop.f32.mrf.mxu0
  %v6711 = vadd.f32 %v6658, %v6710
  %6712 = vdwg.mxu0
  %6713 = vmatprep.subr.bf16.mxu0 %v6382
  %6714 = vmatpush1.bf16.msra.mxu0 %v6381
  %6715 = vmatprep.subr.bf16.mxu0 %v6378
  %6716 = vmatpush1.bf16.msra.mxu0 %v6377
  %6717 = vmatprep.subr.bf16.mxu0 %v6374
  %6718 = vmatpush1.bf16.msra.mxu0 %v6373
  %6719 = vmatprep.subr.bf16.mxu0 %v6370
  %6720 = vmatpush1.bf16.msra.mxu0 %v6369
  %6721 = vmatprep.subr.bf16.mxu0 %v6366
  %6722 = vmatpush1.bf16.msra.mxu0 %v6365
  %6723 = vmatprep.subr.bf16.mxu0 %v6362
  %6724 = vmatpush1.bf16.msra.mxu0 %v6361
  %6725 = vmatprep.subr.bf16.mxu0 %v6358
  %6726 = vmatpush1.bf16.msra.mxu0 %v6357
  %6727 = vmatprep.subr.bf16.mxu0 %v6354
  %6728 = vmatpush1.bf16.msra.mxu0 %v6353
  %6729 = vmatprep.subr.bf16.mxu0 %v6414
  %6730 = vmatpush2.bf16.msra.mxu0 %v6413
  %6731 = vmatprep.subr.bf16.mxu0 %v6410
  %6732 = vmatpush2.bf16.msra.mxu0 %v6409
  %6733 = vmatprep.subr.bf16.mxu0 %v6406
  %6734 = vmatpush2.bf16.msra.mxu0 %v6405
  %6735 = vmatprep.subr.bf16.mxu0 %v6402
  %6736 = vmatpush2.bf16.msra.mxu0 %v6401
  %6737 = vmatprep.subr.bf16.mxu0 %v6398
  %6738 = vmatpush2.bf16.msra.mxu0 %v6397
  %6739 = vmatprep.subr.bf16.mxu0 %v6394
  %6740 = vmatpush2.bf16.msra.mxu0 %v6393
  %6741 = vmatprep.subr.bf16.mxu0 %v6390
  %6742 = vmatpush2.bf16.msra.mxu0 %v6389
  %6743 = vmatprep.subr.bf16.mxu0 %v6386
  %6744 = vmatpush2.bf16.msra.mxu0 %v6385
  %6745 = vmatprep.mubr.bf16.mxu0 %v5960
  %6746 = vmatmul.mubr.bf16.gmra.mxu0 %v5959
  %v6747 = vpop.f32.mrf.mxu0
  %v6748 = vadd.f32 0.0, %v6747
  %v6749 = vpop.f32.mrf.mxu0
  %v6750 = vadd.f32 0.0, %v6749
  %v6751 = vpop.f32.mrf.mxu0
  %v6752 = vadd.f32 0.0, %v6751
  %v6753 = vpop.f32.mrf.mxu0
  %v6754 = vadd.f32 0.0, %v6753
  %6755 = vmatprep.mubr.bf16.mxu0 %v5964
  %6756 = vmatmul.mubr.bf16.gmra.mxu0 %v5963
  %v6757 = vpop.f32.mrf.mxu0
  %v6758 = vadd.f32 0.0, %v6757
  %v6759 = vpop.f32.mrf.mxu0
  %v6760 = vadd.f32 0.0, %v6759
  %v6761 = vpop.f32.mrf.mxu0
  %v6762 = vadd.f32 0.0, %v6761
  %v6763 = vpop.f32.mrf.mxu0
  %v6764 = vadd.f32 0.0, %v6763
  %6765 = vdwg.mxu0
  %6766 = vmatprep.subr.bf16.mxu0 %v6446
  %6767 = vmatpush1.bf16.msra.mxu0 %v6445
  %6768 = vmatprep.subr.bf16.mxu0 %v6442
  %6769 = vmatpush1.bf16.msra.mxu0 %v6441
  %6770 = vmatprep.subr.bf16.mxu0 %v6438
  %6771 = vmatpush1.bf16.msra.mxu0 %v6437
  %6772 = vmatprep.subr.bf16.mxu0 %v6434
  %6773 = vmatpush1.bf16.msra.mxu0 %v6433
  %6774 = vmatprep.subr.bf16.mxu0 %v6430
  %6775 = vmatpush1.bf16.msra.mxu0 %v6429
  %6776 = vmatprep.subr.bf16.mxu0 %v6426
  %6777 = vmatpush1.bf16.msra.mxu0 %v6425
  %6778 = vmatprep.subr.bf16.mxu0 %v6422
  %6779 = vmatpush1.bf16.msra.mxu0 %v6421
  %6780 = vmatprep.subr.bf16.mxu0 %v6418
  %6781 = vmatpush1.bf16.msra.mxu0 %v6417
  %6782 = vmatprep.subr.bf16.mxu0 %v6478
  %6783 = vmatpush2.bf16.msra.mxu0 %v6477
  %6784 = vmatprep.subr.bf16.mxu0 %v6474
  %6785 = vmatpush2.bf16.msra.mxu0 %v6473
  %6786 = vmatprep.subr.bf16.mxu0 %v6470
  %6787 = vmatpush2.bf16.msra.mxu0 %v6469
  %6788 = vmatprep.subr.bf16.mxu0 %v6466
  %6789 = vmatpush2.bf16.msra.mxu0 %v6465
  %6790 = vmatprep.subr.bf16.mxu0 %v6462
  %6791 = vmatpush2.bf16.msra.mxu0 %v6461
  %6792 = vmatprep.subr.bf16.mxu0 %v6458
  %6793 = vmatpush2.bf16.msra.mxu0 %v6457
  %6794 = vmatprep.subr.bf16.mxu0 %v6454
  %6795 = vmatpush2.bf16.msra.mxu0 %v6453
  %6796 = vmatprep.subr.bf16.mxu0 %v6450
  %6797 = vmatpush2.bf16.msra.mxu0 %v6449
  %6798 = vmatprep.mubr.bf16.mxu0 %v5962
  %6799 = vmatmul.mubr.bf16.gmra.mxu0 %v5961
  %v6800 = vpop.f32.mrf.mxu0
  %v6801 = vadd.f32 %v6748, %v6800
  %v6802 = vpop.f32.mrf.mxu0
  %v6803 = vadd.f32 %v6750, %v6802
  %v6804 = vpop.f32.mrf.mxu0
  %v6805 = vadd.f32 %v6752, %v6804
  %v6806 = vpop.f32.mrf.mxu0
  %v6807 = vadd.f32 %v6754, %v6806
  %6808 = vmatprep.mubr.bf16.mxu0 %v5966
  %6809 = vmatmul.mubr.bf16.gmra.mxu0 %v5965
  %v6810 = vpop.f32.mrf.mxu0
  %v6811 = vadd.f32 %v6758, %v6810
  %v6812 = vpop.f32.mrf.mxu0
  %v6813 = vadd.f32 %v6760, %v6812
  %v6814 = vpop.f32.mrf.mxu0
  %v6815 = vadd.f32 %v6762, %v6814
  %v6816 = vpop.f32.mrf.mxu0
  %v6817 = vadd.f32 %v6764, %v6816
  %6818 = vdwg.mxu0
  %v6819 = vld [vmem:[%s3] sm:$0xf]
  %v6820 = vld [vmem:[%s3 + $0x4] sm:$0xf]
  %v6821 = vld [vmem:[%s3 + $0x8] sm:$0xf]
  %v6822 = vld [vmem:[%s3 + $0xc] sm:$0xf]
  %v6823 = vpack.c.bf16 %v6699, %v6695
  %v6824 = vpack.c.bf16 %v6701, %v6697
  %v6825 = vpack.c.bf16 %v6805, %v6801
  %v6826 = vpack.c.bf16 %v6807, %v6803
  %v6827 = vpack.c.bf16 %v6709, %v6705
  %v6828 = vpack.c.bf16 %v6711, %v6707
  %v6829 = vpack.c.bf16 %v6815, %v6811
  %v6830 = vpack.c.bf16 %v6817, %v6813
  %v6831 = vld [vmem:[%s6] sm:$0xff]
  %v6832 = vld [vmem:[%s6 + $0x8] sm:$0xff]
  %v6833 = vld [vmem:[%s6 + $0x10] sm:$0xff]
  %v6834 = vld [vmem:[%s6 + $0x18] sm:$0xff]
  %v6835 = vld [vmem:[%s6 + $0x20] sm:$0xff]
  %v6836 = vld [vmem:[%s6 + $0x28] sm:$0xff]
  %v6837 = vld [vmem:[%s6 + $0x30] sm:$0xff]
  %v6838 = vld [vmem:[%s6 + $0x38] sm:$0xff]
  %v6839 = vld [vmem:[%s6 + $0x40] sm:$0xff]
  %v6840 = vld [vmem:[%s6 + $0x48] sm:$0xff]
  %v6841 = vld [vmem:[%s6 + $0x50] sm:$0xff]
  %v6842 = vld [vmem:[%s6 + $0x58] sm:$0xff]
  %v6843 = vld [vmem:[%s6 + $0x60] sm:$0xff]
  %v6844 = vld [vmem:[%s6 + $0x68] sm:$0xff]
  %v6845 = vld [vmem:[%s6 + $0x70] sm:$0xff]
  %v6846 = vld [vmem:[%s6 + $0x78] sm:$0xff]
  %v6851 = vunpack.c.l.b16 %v6819
  %v6852 = vunpack.c.l.b16 %v6820
  %v6853 = vunpack.c.l.b16 %v6821
  %v6854 = vunpack.c.l.b16 %v6822
  %v6855 = vpack.c.b16 %v6852, %v6851
  %v6856 = vpack.c.b16 %v6854, %v6853
  %v6858 = vsel %vm1178, %v6855, 0
  %v6861 = vsel %vm1178, %v6856, 0
  %6863 = vmatprep.subr.bf16.mxu0 0
  %6864 = vmatpush1.bf16.msra.mxu0 0
  %6865 = vmatprep.subr.bf16.mxu0 0
  %6866 = vmatpush1.bf16.msra.mxu0 0
  %6867 = vmatprep.subr.bf16.mxu0 0
  %6868 = vmatpush1.bf16.msra.mxu0 0
  %6869 = vmatprep.subr.bf16.mxu0 0
  %6870 = vmatpush1.bf16.msra.mxu0 0
  %6871 = vmatprep.subr.bf16.mxu0 0
  %6872 = vmatpush1.bf16.msra.mxu0 0
  %6873 = vmatprep.subr.bf16.mxu0 0
  %6874 = vmatpush1.bf16.msra.mxu0 0
  %6875 = vmatprep.subr.bf16.mxu0 %v6828
  %6876 = vmatpush1.bf16.msra.mxu0 %v6827
  %6877 = vmatprep.subr.bf16.mxu0 %v6824
  %6878 = vmatpush1.bf16.msra.mxu0 %v6823
  %6879 = vmatprep.subr.bf16.mxu0 0
  %6880 = vmatpush2.bf16.msra.mxu0 0
  %6881 = vmatprep.subr.bf16.mxu0 0
  %6882 = vmatpush2.bf16.msra.mxu0 0
  %6883 = vmatprep.subr.bf16.mxu0 0
  %6884 = vmatpush2.bf16.msra.mxu0 0
  %6885 = vmatprep.subr.bf16.mxu0 0
  %6886 = vmatpush2.bf16.msra.mxu0 0
  %6887 = vmatprep.subr.bf16.mxu0 0
  %6888 = vmatpush2.bf16.msra.mxu0 0
  %6889 = vmatprep.subr.bf16.mxu0 0
  %6890 = vmatpush2.bf16.msra.mxu0 0
  %6891 = vmatprep.subr.bf16.mxu0 0
  %6892 = vmatpush2.bf16.msra.mxu0 0
  %6893 = vmatprep.subr.bf16.mxu0 0
  %6894 = vmatpush2.bf16.msra.mxu0 0
  %6895 = vmatprep.mubr.bf16.mxu0 0
  %6896 = vmatmul.mubr.bf16.gmra.mxu0 %v6858
  %v6897 = vpop.f32.mrf.mxu0
  %v6898 = vadd.f32 %v6831, %v6897
  %v6899 = vpop.f32.mrf.mxu0
  %v6900 = vadd.f32 %v6832, %v6899
  %v6901 = vpop.f32.mrf.mxu0
  %v6902 = vadd.f32 %v6835, %v6901
  %v6903 = vpop.f32.mrf.mxu0
  %v6904 = vadd.f32 %v6836, %v6903
  %6905 = vmatprep.mubr.bf16.mxu0 0
  %6906 = vmatmul.mubr.bf16.gmra.mxu0 %v6861
  %v6907 = vpop.f32.mrf.mxu0
  %v6908 = vadd.f32 %v6839, %v6907
  %v6909 = vpop.f32.mrf.mxu0
  %v6910 = vadd.f32 %v6840, %v6909
  %v6911 = vpop.f32.mrf.mxu0
  %v6912 = vadd.f32 %v6843, %v6911
  %v6913 = vpop.f32.mrf.mxu0
  %v6914 = vadd.f32 %v6844, %v6913
  %6915 = vdwg.mxu0
  %6916 = vmatprep.subr.bf16.mxu0 0
  %6917 = vmatpush1.bf16.msra.mxu0 0
  %6918 = vmatprep.subr.bf16.mxu0 0
  %6919 = vmatpush1.bf16.msra.mxu0 0
  %6920 = vmatprep.subr.bf16.mxu0 0
  %6921 = vmatpush1.bf16.msra.mxu0 0
  %6922 = vmatprep.subr.bf16.mxu0 0
  %6923 = vmatpush1.bf16.msra.mxu0 0
  %6924 = vmatprep.subr.bf16.mxu0 0
  %6925 = vmatpush1.bf16.msra.mxu0 0
  %6926 = vmatprep.subr.bf16.mxu0 0
  %6927 = vmatpush1.bf16.msra.mxu0 0
  %6928 = vmatprep.subr.bf16.mxu0 %v6830
  %6929 = vmatpush1.bf16.msra.mxu0 %v6829
  %6930 = vmatprep.subr.bf16.mxu0 %v6826
  %6931 = vmatpush1.bf16.msra.mxu0 %v6825
  %6932 = vmatprep.subr.bf16.mxu0 0
  %6933 = vmatpush2.bf16.msra.mxu0 0
  %6934 = vmatprep.subr.bf16.mxu0 0
  %6935 = vmatpush2.bf16.msra.mxu0 0
  %6936 = vmatprep.subr.bf16.mxu0 0
  %6937 = vmatpush2.bf16.msra.mxu0 0
  %6938 = vmatprep.subr.bf16.mxu0 0
  %6939 = vmatpush2.bf16.msra.mxu0 0
  %6940 = vmatprep.subr.bf16.mxu0 0
  %6941 = vmatpush2.bf16.msra.mxu0 0
  %6942 = vmatprep.subr.bf16.mxu0 0
  %6943 = vmatpush2.bf16.msra.mxu0 0
  %6944 = vmatprep.subr.bf16.mxu0 0
  %6945 = vmatpush2.bf16.msra.mxu0 0
  %6946 = vmatprep.subr.bf16.mxu0 0
  %6947 = vmatpush2.bf16.msra.mxu0 0
  %6948 = vmatprep.mubr.bf16.mxu0 0
  %6949 = vmatmul.mubr.bf16.gmra.mxu0 %v6858
  %v6950 = vpop.f32.mrf.mxu0
  %v6951 = vadd.f32 %v6833, %v6950
  %v6952 = vpop.f32.mrf.mxu0
  %v6953 = vadd.f32 %v6834, %v6952
  %v6954 = vpop.f32.mrf.mxu0
  %v6955 = vadd.f32 %v6837, %v6954
  %v6956 = vpop.f32.mrf.mxu0
  %v6957 = vadd.f32 %v6838, %v6956
  %6958 = vmatprep.mubr.bf16.mxu0 0
  %6959 = vmatmul.mubr.bf16.gmra.mxu0 %v6861
  %v6960 = vpop.f32.mrf.mxu0
  %v6961 = vadd.f32 %v6841, %v6960
  %v6962 = vpop.f32.mrf.mxu0
  %v6963 = vadd.f32 %v6842, %v6962
  %v6964 = vpop.f32.mrf.mxu0
  %v6965 = vadd.f32 %v6845, %v6964
  %v6966 = vpop.f32.mrf.mxu0
  %v6967 = vadd.f32 %v6846, %v6966
  %6968 = vdwg.mxu0
  %vm6969 = vcmp.gt.f32.partialorder %v6898, 0.0
  %vm6970 = vcmp.gt.f32.partialorder %v6900, 0.0
  %vm6971 = vcmp.gt.f32.partialorder %v6951, 0.0
  %vm6972 = vcmp.gt.f32.partialorder %v6953, 0.0
  %vm6973 = vcmp.gt.f32.partialorder %v6902, 0.0
  %vm6974 = vcmp.gt.f32.partialorder %v6904, 0.0
  %vm6975 = vcmp.gt.f32.partialorder %v6955, 0.0
  %vm6976 = vcmp.gt.f32.partialorder %v6957, 0.0
  %vm6977 = vcmp.gt.f32.partialorder %v6908, 0.0
  %vm6978 = vcmp.gt.f32.partialorder %v6910, 0.0
  %vm6979 = vcmp.gt.f32.partialorder %v6961, 0.0
  %vm6980 = vcmp.gt.f32.partialorder %v6963, 0.0
  %vm6981 = vcmp.gt.f32.partialorder %v6912, 0.0
  %vm6982 = vcmp.gt.f32.partialorder %v6914, 0.0
  %vm6983 = vcmp.gt.f32.partialorder %v6965, 0.0
  %vm6984 = vcmp.gt.f32.partialorder %v6967, 0.0
  %v6985 = vmul.f32 %v6898, 0.01
  %v6986 = vmul.f32 %v6900, 0.01
  %v6987 = vmul.f32 %v6951, 0.01
  %v6988 = vmul.f32 %v6953, 0.01
  %v6989 = vmul.f32 %v6902, 0.01
  %v6990 = vmul.f32 %v6904, 0.01
  %v6991 = vmul.f32 %v6955, 0.01
  %v6992 = vmul.f32 %v6957, 0.01
  %v6993 = vmul.f32 %v6908, 0.01
  %v6994 = vmul.f32 %v6910, 0.01
  %v6995 = vmul.f32 %v6961, 0.01
  %v6996 = vmul.f32 %v6963, 0.01
  %v6997 = vmul.f32 %v6912, 0.01
  %v6998 = vmul.f32 %v6914, 0.01
  %v6999 = vmul.f32 %v6965, 0.01
  %v7000 = vmul.f32 %v6967, 0.01
  %v7001 = vsel %vm6969, %v6898, %v6985
  %v7002 = vsel %vm6970, %v6900, %v6986
  %v7003 = vsel %vm6971, %v6951, %v6987
  %v7004 = vsel %vm6972, %v6953, %v6988
  %v7005 = vsel %vm6973, %v6902, %v6989
  %v7006 = vsel %vm6974, %v6904, %v6990
  %v7007 = vsel %vm6975, %v6955, %v6991
  %v7008 = vsel %vm6976, %v6957, %v6992
  %v7009 = vsel %vm6977, %v6908, %v6993
  %v7010 = vsel %vm6978, %v6910, %v6994
  %v7011 = vsel %vm6979, %v6961, %v6995
  %v7012 = vsel %vm6980, %v6963, %v6996
  %v7013 = vsel %vm6981, %v6912, %v6997
  %v7014 = vsel %vm6982, %v6914, %v6998
  %v7015 = vsel %vm6983, %v6965, %v6999
  %v7016 = vsel %vm6984, %v6967, %v7000
  %v7017 = vpack.c.bf16 %v7005, %v7001
  %v7018 = vpack.c.bf16 %v7006, %v7002
  %v7019 = vpack.c.bf16 %v7007, %v7003
  %v7020 = vpack.c.bf16 %v7008, %v7004
  %v7021 = vpack.c.bf16 %v7013, %v7009
  %v7022 = vpack.c.bf16 %v7014, %v7010
  %v7023 = vpack.c.bf16 %v7015, %v7011
  %v7024 = vpack.c.bf16 %v7016, %v7012
  %7025 = vmatprep.subr.bf16.mxu0 %v6380
  %7026 = vmatpush1.bf16.msra.mxu0 %v6379
  %7027 = vmatprep.subr.bf16.mxu0 %v6376
  %7028 = vmatpush1.bf16.msra.mxu0 %v6375
  %7029 = vmatprep.subr.bf16.mxu0 %v6372
  %7030 = vmatpush1.bf16.msra.mxu0 %v6371
  %7031 = vmatprep.subr.bf16.mxu0 %v6368
  %7032 = vmatpush1.bf16.msra.mxu0 %v6367
  %7033 = vmatprep.subr.bf16.mxu0 %v6364
  %7034 = vmatpush1.bf16.msra.mxu0 %v6363
  %7035 = vmatprep.subr.bf16.mxu0 %v6360
  %7036 = vmatpush1.bf16.msra.mxu0 %v6359
  %7037 = vmatprep.subr.bf16.mxu0 %v6356
  %7038 = vmatpush1.bf16.msra.mxu0 %v6355
  %7039 = vmatprep.subr.bf16.mxu0 %v6352
  %7040 = vmatpush1.bf16.msra.mxu0 %v6351
  %7041 = vmatprep.subr.bf16.mxu0 %v6412
  %7042 = vmatpush2.bf16.msra.mxu0 %v6411
  %7043 = vmatprep.subr.bf16.mxu0 %v6408
  %7044 = vmatpush2.bf16.msra.mxu0 %v6407
  %7045 = vmatprep.subr.bf16.mxu0 %v6404
  %7046 = vmatpush2.bf16.msra.mxu0 %v6403
  %7047 = vmatprep.subr.bf16.mxu0 %v6400
  %7048 = vmatpush2.bf16.msra.mxu0 %v6399
  %7049 = vmatprep.subr.bf16.mxu0 %v6396
  %7050 = vmatpush2.bf16.msra.mxu0 %v6395
  %7051 = vmatprep.subr.bf16.mxu0 %v6392
  %7052 = vmatpush2.bf16.msra.mxu0 %v6391
  %7053 = vmatprep.subr.bf16.mxu0 %v6388
  %7054 = vmatpush2.bf16.msra.mxu0 %v6387
  %7055 = vmatprep.subr.bf16.mxu0 %v6384
  %7056 = vmatpush2.bf16.msra.mxu0 %v6383
  %7057 = vmatprep.mubr.bf16.mxu0 %v7018
  %7058 = vmatmul.mubr.bf16.gmra.mxu0 %v7017
  %v7059 = vpop.f32.mrf.mxu0
  %v7060 = vadd.f32 0.0, %v7059
  %v7061 = vpop.f32.mrf.mxu0
  %v7062 = vadd.f32 0.0, %v7061
  %v7063 = vpop.f32.mrf.mxu0
  %v7064 = vadd.f32 0.0, %v7063
  %v7065 = vpop.f32.mrf.mxu0
  %v7066 = vadd.f32 0.0, %v7065
  %7067 = vmatprep.mubr.bf16.mxu0 %v7022
  %7068 = vmatmul.mubr.bf16.gmra.mxu0 %v7021
  %v7069 = vpop.f32.mrf.mxu0
  %v7070 = vadd.f32 0.0, %v7069
  %v7071 = vpop.f32.mrf.mxu0
  %v7072 = vadd.f32 0.0, %v7071
  %v7073 = vpop.f32.mrf.mxu0
  %v7074 = vadd.f32 0.0, %v7073
  %v7075 = vpop.f32.mrf.mxu0
  %v7076 = vadd.f32 0.0, %v7075
  %7077 = vdwg.mxu0
  %7078 = vmatprep.subr.bf16.mxu0 %v6444
  %7079 = vmatpush1.bf16.msra.mxu0 %v6443
  %7080 = vmatprep.subr.bf16.mxu0 %v6440
  %7081 = vmatpush1.bf16.msra.mxu0 %v6439
  %7082 = vmatprep.subr.bf16.mxu0 %v6436
  %7083 = vmatpush1.bf16.msra.mxu0 %v6435
  %7084 = vmatprep.subr.bf16.mxu0 %v6432
  %7085 = vmatpush1.bf16.msra.mxu0 %v6431
  %7086 = vmatprep.subr.bf16.mxu0 %v6428
  %7087 = vmatpush1.bf16.msra.mxu0 %v6427
  %7088 = vmatprep.subr.bf16.mxu0 %v6424
  %7089 = vmatpush1.bf16.msra.mxu0 %v6423
  %7090 = vmatprep.subr.bf16.mxu0 %v6420
  %7091 = vmatpush1.bf16.msra.mxu0 %v6419
  %7092 = vmatprep.subr.bf16.mxu0 %v6416
  %7093 = vmatpush1.bf16.msra.mxu0 %v6415
  %7094 = vmatprep.subr.bf16.mxu0 %v6476
  %7095 = vmatpush2.bf16.msra.mxu0 %v6475
  %7096 = vmatprep.subr.bf16.mxu0 %v6472
  %7097 = vmatpush2.bf16.msra.mxu0 %v6471
  %7098 = vmatprep.subr.bf16.mxu0 %v6468
  %7099 = vmatpush2.bf16.msra.mxu0 %v6467
  %7100 = vmatprep.subr.bf16.mxu0 %v6464
  %7101 = vmatpush2.bf16.msra.mxu0 %v6463
  %7102 = vmatprep.subr.bf16.mxu0 %v6460
  %7103 = vmatpush2.bf16.msra.mxu0 %v6459
  %7104 = vmatprep.subr.bf16.mxu0 %v6456
  %7105 = vmatpush2.bf16.msra.mxu0 %v6455
  %7106 = vmatprep.subr.bf16.mxu0 %v6452
  %7107 = vmatpush2.bf16.msra.mxu0 %v6451
  %7108 = vmatprep.subr.bf16.mxu0 %v6448
  %7109 = vmatpush2.bf16.msra.mxu0 %v6447
  %7110 = vmatprep.mubr.bf16.mxu0 %v7020
  %7111 = vmatmul.mubr.bf16.gmra.mxu0 %v7019
  %v7112 = vpop.f32.mrf.mxu0
  %v7113 = vadd.f32 %v7060, %v7112
  %v7114 = vpop.f32.mrf.mxu0
  %v7115 = vadd.f32 %v7062, %v7114
  %v7116 = vpop.f32.mrf.mxu0
  %v7117 = vadd.f32 %v7064, %v7116
  %v7118 = vpop.f32.mrf.mxu0
  %v7119 = vadd.f32 %v7066, %v7118
  %7120 = vmatprep.mubr.bf16.mxu0 %v7024
  %7121 = vmatmul.mubr.bf16.gmra.mxu0 %v7023
  %v7122 = vpop.f32.mrf.mxu0
  %v7123 = vadd.f32 %v7070, %v7122
  %v7124 = vpop.f32.mrf.mxu0
  %v7125 = vadd.f32 %v7072, %v7124
  %v7126 = vpop.f32.mrf.mxu0
  %v7127 = vadd.f32 %v7074, %v7126
  %v7128 = vpop.f32.mrf.mxu0
  %v7129 = vadd.f32 %v7076, %v7128
  %7130 = vdwg.mxu0
  %7131 = vmatprep.subr.bf16.mxu0 %v6382
  %7132 = vmatpush1.bf16.msra.mxu0 %v6381
  %7133 = vmatprep.subr.bf16.mxu0 %v6378
  %7134 = vmatpush1.bf16.msra.mxu0 %v6377
  %7135 = vmatprep.subr.bf16.mxu0 %v6374
  %7136 = vmatpush1.bf16.msra.mxu0 %v6373
  %7137 = vmatprep.subr.bf16.mxu0 %v6370
  %7138 = vmatpush1.bf16.msra.mxu0 %v6369
  %7139 = vmatprep.subr.bf16.mxu0 %v6366
  %7140 = vmatpush1.bf16.msra.mxu0 %v6365
  %7141 = vmatprep.subr.bf16.mxu0 %v6362
  %7142 = vmatpush1.bf16.msra.mxu0 %v6361
  %7143 = vmatprep.subr.bf16.mxu0 %v6358
  %7144 = vmatpush1.bf16.msra.mxu0 %v6357
  %7145 = vmatprep.subr.bf16.mxu0 %v6354
  %7146 = vmatpush1.bf16.msra.mxu0 %v6353
  %7147 = vmatprep.subr.bf16.mxu0 %v6414
  %7148 = vmatpush2.bf16.msra.mxu0 %v6413
  %7149 = vmatprep.subr.bf16.mxu0 %v6410
  %7150 = vmatpush2.bf16.msra.mxu0 %v6409
  %7151 = vmatprep.subr.bf16.mxu0 %v6406
  %7152 = vmatpush2.bf16.msra.mxu0 %v6405
  %7153 = vmatprep.subr.bf16.mxu0 %v6402
  %7154 = vmatpush2.bf16.msra.mxu0 %v6401
  %7155 = vmatprep.subr.bf16.mxu0 %v6398
  %7156 = vmatpush2.bf16.msra.mxu0 %v6397
  %7157 = vmatprep.subr.bf16.mxu0 %v6394
  %7158 = vmatpush2.bf16.msra.mxu0 %v6393
  %7159 = vmatprep.subr.bf16.mxu0 %v6390
  %7160 = vmatpush2.bf16.msra.mxu0 %v6389
  %7161 = vmatprep.subr.bf16.mxu0 %v6386
  %7162 = vmatpush2.bf16.msra.mxu0 %v6385
  %7163 = vmatprep.mubr.bf16.mxu0 %v7018
  %7164 = vmatmul.mubr.bf16.gmra.mxu0 %v7017
  %v7165 = vpop.f32.mrf.mxu0
  %v7166 = vadd.f32 0.0, %v7165
  %v7167 = vpop.f32.mrf.mxu0
  %v7168 = vadd.f32 0.0, %v7167
  %v7169 = vpop.f32.mrf.mxu0
  %v7170 = vadd.f32 0.0, %v7169
  %v7171 = vpop.f32.mrf.mxu0
  %v7172 = vadd.f32 0.0, %v7171
  %7173 = vmatprep.mubr.bf16.mxu0 %v7022
  %7174 = vmatmul.mubr.bf16.gmra.mxu0 %v7021
  %v7175 = vpop.f32.mrf.mxu0
  %v7176 = vadd.f32 0.0, %v7175
  %v7177 = vpop.f32.mrf.mxu0
  %v7178 = vadd.f32 0.0, %v7177
  %v7179 = vpop.f32.mrf.mxu0
  %v7180 = vadd.f32 0.0, %v7179
  %v7181 = vpop.f32.mrf.mxu0
  %v7182 = vadd.f32 0.0, %v7181
  %7183 = vdwg.mxu0
  %7184 = vmatprep.subr.bf16.mxu0 %v6446
  %7185 = vmatpush1.bf16.msra.mxu0 %v6445
  %7186 = vmatprep.subr.bf16.mxu0 %v6442
  %7187 = vmatpush1.bf16.msra.mxu0 %v6441
  %7188 = vmatprep.subr.bf16.mxu0 %v6438
  %7189 = vmatpush1.bf16.msra.mxu0 %v6437
  %7190 = vmatprep.subr.bf16.mxu0 %v6434
  %7191 = vmatpush1.bf16.msra.mxu0 %v6433
  %7192 = vmatprep.subr.bf16.mxu0 %v6430
  %7193 = vmatpush1.bf16.msra.mxu0 %v6429
  %7194 = vmatprep.subr.bf16.mxu0 %v6426
  %7195 = vmatpush1.bf16.msra.mxu0 %v6425
  %7196 = vmatprep.subr.bf16.mxu0 %v6422
  %7197 = vmatpush1.bf16.msra.mxu0 %v6421
  %7198 = vmatprep.subr.bf16.mxu0 %v6418
  %7199 = vmatpush1.bf16.msra.mxu0 %v6417
  %7200 = vmatprep.subr.bf16.mxu0 %v6478
  %7201 = vmatpush2.bf16.msra.mxu0 %v6477
  %7202 = vmatprep.subr.bf16.mxu0 %v6474
  %7203 = vmatpush2.bf16.msra.mxu0 %v6473
  %7204 = vmatprep.subr.bf16.mxu0 %v6470
  %7205 = vmatpush2.bf16.msra.mxu0 %v6469
  %7206 = vmatprep.subr.bf16.mxu0 %v6466
  %7207 = vmatpush2.bf16.msra.mxu0 %v6465
  %7208 = vmatprep.subr.bf16.mxu0 %v6462
  %7209 = vmatpush2.bf16.msra.mxu0 %v6461
  %7210 = vmatprep.subr.bf16.mxu0 %v6458
  %7211 = vmatpush2.bf16.msra.mxu0 %v6457
  %7212 = vmatprep.subr.bf16.mxu0 %v6454
  %7213 = vmatpush2.bf16.msra.mxu0 %v6453
  %7214 = vmatprep.subr.bf16.mxu0 %v6450
  %7215 = vmatpush2.bf16.msra.mxu0 %v6449
  %7216 = vmatprep.mubr.bf16.mxu0 %v7020
  %7217 = vmatmul.mubr.bf16.gmra.mxu0 %v7019
  %v7218 = vpop.f32.mrf.mxu0
  %v7219 = vadd.f32 %v7166, %v7218
  %v7220 = vpop.f32.mrf.mxu0
  %v7221 = vadd.f32 %v7168, %v7220
  %v7222 = vpop.f32.mrf.mxu0
  %v7223 = vadd.f32 %v7170, %v7222
  %v7224 = vpop.f32.mrf.mxu0
  %v7225 = vadd.f32 %v7172, %v7224
  %7226 = vmatprep.mubr.bf16.mxu0 %v7024
  %7227 = vmatmul.mubr.bf16.gmra.mxu0 %v7023
  %v7228 = vpop.f32.mrf.mxu0
  %v7229 = vadd.f32 %v7176, %v7228
  %v7230 = vpop.f32.mrf.mxu0
  %v7231 = vadd.f32 %v7178, %v7230
  %v7232 = vpop.f32.mrf.mxu0
  %v7233 = vadd.f32 %v7180, %v7232
  %v7234 = vpop.f32.mrf.mxu0
  %v7235 = vadd.f32 %v7182, %v7234
  %7236 = vdwg.mxu0
  %v7237 = vld [vmem:[%s4] sm:$0xf]
  %v7238 = vld [vmem:[%s4 + $0x4] sm:$0xf]
  %v7239 = vld [vmem:[%s4 + $0x8] sm:$0xf]
  %v7240 = vld [vmem:[%s4 + $0xc] sm:$0xf]
  %v7241 = vpack.c.bf16 %v7117, %v7113
  %v7242 = vpack.c.bf16 %v7119, %v7115
  %v7243 = vpack.c.bf16 %v7223, %v7219
  %v7244 = vpack.c.bf16 %v7225, %v7221
  %v7245 = vpack.c.bf16 %v7127, %v7123
  %v7246 = vpack.c.bf16 %v7129, %v7125
  %v7247 = vpack.c.bf16 %v7233, %v7229
  %v7248 = vpack.c.bf16 %v7235, %v7231
  %v7249 = vld [vmem:[%s7] sm:$0xff]
  %v7250 = vld [vmem:[%s7 + $0x8] sm:$0xff]
  %v7251 = vld [vmem:[%s7 + $0x10] sm:$0xff]
  %v7252 = vld [vmem:[%s7 + $0x18] sm:$0xff]
  %v7253 = vld [vmem:[%s7 + $0x20] sm:$0xff]
  %v7254 = vld [vmem:[%s7 + $0x28] sm:$0xff]
  %v7255 = vld [vmem:[%s7 + $0x30] sm:$0xff]
  %v7256 = vld [vmem:[%s7 + $0x38] sm:$0xff]
  %v7257 = vld [vmem:[%s7 + $0x40] sm:$0xff]
  %v7258 = vld [vmem:[%s7 + $0x48] sm:$0xff]
  %v7259 = vld [vmem:[%s7 + $0x50] sm:$0xff]
  %v7260 = vld [vmem:[%s7 + $0x58] sm:$0xff]
  %v7261 = vld [vmem:[%s7 + $0x60] sm:$0xff]
  %v7262 = vld [vmem:[%s7 + $0x68] sm:$0xff]
  %v7263 = vld [vmem:[%s7 + $0x70] sm:$0xff]
  %v7264 = vld [vmem:[%s7 + $0x78] sm:$0xff]
  %v7269 = vunpack.c.l.b16 %v7237
  %v7270 = vunpack.c.l.b16 %v7238
  %v7271 = vunpack.c.l.b16 %v7239
  %v7272 = vunpack.c.l.b16 %v7240
  %v7273 = vpack.c.b16 %v7270, %v7269
  %v7274 = vpack.c.b16 %v7272, %v7271
  %v7276 = vsel %vm1178, %v7273, 0
  %v7279 = vsel %vm1178, %v7274, 0
  %7281 = vmatprep.subr.bf16.mxu0 0
  %7282 = vmatpush1.bf16.msra.mxu0 0
  %7283 = vmatprep.subr.bf16.mxu0 0
  %7284 = vmatpush1.bf16.msra.mxu0 0
  %7285 = vmatprep.subr.bf16.mxu0 0
  %7286 = vmatpush1.bf16.msra.mxu0 0
  %7287 = vmatprep.subr.bf16.mxu0 0
  %7288 = vmatpush1.bf16.msra.mxu0 0
  %7289 = vmatprep.subr.bf16.mxu0 0
  %7290 = vmatpush1.bf16.msra.mxu0 0
  %7291 = vmatprep.subr.bf16.mxu0 0
  %7292 = vmatpush1.bf16.msra.mxu0 0
  %7293 = vmatprep.subr.bf16.mxu0 %v7246
  %7294 = vmatpush1.bf16.msra.mxu0 %v7245
  %7295 = vmatprep.subr.bf16.mxu0 %v7242
  %7296 = vmatpush1.bf16.msra.mxu0 %v7241
  %7297 = vmatprep.subr.bf16.mxu0 0
  %7298 = vmatpush2.bf16.msra.mxu0 0
  %7299 = vmatprep.subr.bf16.mxu0 0
  %7300 = vmatpush2.bf16.msra.mxu0 0
  %7301 = vmatprep.subr.bf16.mxu0 0
  %7302 = vmatpush2.bf16.msra.mxu0 0
  %7303 = vmatprep.subr.bf16.mxu0 0
  %7304 = vmatpush2.bf16.msra.mxu0 0
  %7305 = vmatprep.subr.bf16.mxu0 0
  %7306 = vmatpush2.bf16.msra.mxu0 0
  %7307 = vmatprep.subr.bf16.mxu0 0
  %7308 = vmatpush2.bf16.msra.mxu0 0
  %7309 = vmatprep.subr.bf16.mxu0 0
  %7310 = vmatpush2.bf16.msra.mxu0 0
  %7311 = vmatprep.subr.bf16.mxu0 0
  %7312 = vmatpush2.bf16.msra.mxu0 0
  %7313 = vmatprep.mubr.bf16.mxu0 0
  %7314 = vmatmul.mubr.bf16.gmra.mxu0 %v7276
  %v7315 = vpop.f32.mrf.mxu0
  %v7316 = vadd.f32 %v7249, %v7315
  %v7317 = vpop.f32.mrf.mxu0
  %v7318 = vadd.f32 %v7250, %v7317
  %v7319 = vpop.f32.mrf.mxu0
  %v7320 = vadd.f32 %v7253, %v7319
  %v7321 = vpop.f32.mrf.mxu0
  %v7322 = vadd.f32 %v7254, %v7321
  %7323 = vmatprep.mubr.bf16.mxu0 0
  %7324 = vmatmul.mubr.bf16.gmra.mxu0 %v7279
  %v7325 = vpop.f32.mrf.mxu0
  %v7326 = vadd.f32 %v7257, %v7325
  %v7327 = vpop.f32.mrf.mxu0
  %v7328 = vadd.f32 %v7258, %v7327
  %v7329 = vpop.f32.mrf.mxu0
  %v7330 = vadd.f32 %v7261, %v7329
  %v7331 = vpop.f32.mrf.mxu0
  %v7332 = vadd.f32 %v7262, %v7331
  %7333 = vdwg.mxu0
  %7334 = vmatprep.subr.bf16.mxu0 0
  %7335 = vmatpush1.bf16.msra.mxu0 0
  %7336 = vmatprep.subr.bf16.mxu0 0
  %7337 = vmatpush1.bf16.msra.mxu0 0
  %7338 = vmatprep.subr.bf16.mxu0 0
  %7339 = vmatpush1.bf16.msra.mxu0 0
  %7340 = vmatprep.subr.bf16.mxu0 0
  %7341 = vmatpush1.bf16.msra.mxu0 0
  %7342 = vmatprep.subr.bf16.mxu0 0
  %7343 = vmatpush1.bf16.msra.mxu0 0
  %7344 = vmatprep.subr.bf16.mxu0 0
  %7345 = vmatpush1.bf16.msra.mxu0 0
  %7346 = vmatprep.subr.bf16.mxu0 %v7248
  %7347 = vmatpush1.bf16.msra.mxu0 %v7247
  %7348 = vmatprep.subr.bf16.mxu0 %v7244
  %7349 = vmatpush1.bf16.msra.mxu0 %v7243
  %7350 = vmatprep.subr.bf16.mxu0 0
  %7351 = vmatpush2.bf16.msra.mxu0 0
  %7352 = vmatprep.subr.bf16.mxu0 0
  %7353 = vmatpush2.bf16.msra.mxu0 0
  %7354 = vmatprep.subr.bf16.mxu0 0
  %7355 = vmatpush2.bf16.msra.mxu0 0
  %7356 = vmatprep.subr.bf16.mxu0 0
  %7357 = vmatpush2.bf16.msra.mxu0 0
  %7358 = vmatprep.subr.bf16.mxu0 0
  %7359 = vmatpush2.bf16.msra.mxu0 0
  %7360 = vmatprep.subr.bf16.mxu0 0
  %7361 = vmatpush2.bf16.msra.mxu0 0
  %7362 = vmatprep.subr.bf16.mxu0 0
  %7363 = vmatpush2.bf16.msra.mxu0 0
  %7364 = vmatprep.subr.bf16.mxu0 0
  %7365 = vmatpush2.bf16.msra.mxu0 0
  %7366 = vmatprep.mubr.bf16.mxu0 0
  %7367 = vmatmul.mubr.bf16.gmra.mxu0 %v7276
  %v7368 = vpop.f32.mrf.mxu0
  %v7369 = vadd.f32 %v7251, %v7368
  %v7370 = vpop.f32.mrf.mxu0
  %v7371 = vadd.f32 %v7252, %v7370
  %v7372 = vpop.f32.mrf.mxu0
  %v7373 = vadd.f32 %v7255, %v7372
  %v7374 = vpop.f32.mrf.mxu0
  %v7375 = vadd.f32 %v7256, %v7374
  %7376 = vmatprep.mubr.bf16.mxu0 0
  %7377 = vmatmul.mubr.bf16.gmra.mxu0 %v7279
  %v7378 = vpop.f32.mrf.mxu0
  %v7379 = vadd.f32 %v7259, %v7378
  %v7380 = vpop.f32.mrf.mxu0
  %v7381 = vadd.f32 %v7260, %v7380
  %v7382 = vpop.f32.mrf.mxu0
  %v7383 = vadd.f32 %v7263, %v7382
  %v7384 = vpop.f32.mrf.mxu0
  %v7385 = vadd.f32 %v7264, %v7384
  %7386 = vdwg.mxu0
  %vm7387 = vcmp.gt.f32.partialorder %v7316, 0.0
  %vm7388 = vcmp.gt.f32.partialorder %v7318, 0.0
  %vm7389 = vcmp.gt.f32.partialorder %v7369, 0.0
  %vm7390 = vcmp.gt.f32.partialorder %v7371, 0.0
  %vm7391 = vcmp.gt.f32.partialorder %v7320, 0.0
  %vm7392 = vcmp.gt.f32.partialorder %v7322, 0.0
  %vm7393 = vcmp.gt.f32.partialorder %v7373, 0.0
  %vm7394 = vcmp.gt.f32.partialorder %v7375, 0.0
  %vm7395 = vcmp.gt.f32.partialorder %v7326, 0.0
  %vm7396 = vcmp.gt.f32.partialorder %v7328, 0.0
  %vm7397 = vcmp.gt.f32.partialorder %v7379, 0.0
  %vm7398 = vcmp.gt.f32.partialorder %v7381, 0.0
  %vm7399 = vcmp.gt.f32.partialorder %v7330, 0.0
  %vm7400 = vcmp.gt.f32.partialorder %v7332, 0.0
  %vm7401 = vcmp.gt.f32.partialorder %v7383, 0.0
  %vm7402 = vcmp.gt.f32.partialorder %v7385, 0.0
  %v7403 = vmul.f32 %v7316, 0.01
  %v7404 = vmul.f32 %v7318, 0.01
  %v7405 = vmul.f32 %v7369, 0.01
  %v7406 = vmul.f32 %v7371, 0.01
  %v7407 = vmul.f32 %v7320, 0.01
  %v7408 = vmul.f32 %v7322, 0.01
  %v7409 = vmul.f32 %v7373, 0.01
  %v7410 = vmul.f32 %v7375, 0.01
  %v7411 = vmul.f32 %v7326, 0.01
  %v7412 = vmul.f32 %v7328, 0.01
  %v7413 = vmul.f32 %v7379, 0.01
  %v7414 = vmul.f32 %v7381, 0.01
  %v7415 = vmul.f32 %v7330, 0.01
  %v7416 = vmul.f32 %v7332, 0.01
  %v7417 = vmul.f32 %v7383, 0.01
  %v7418 = vmul.f32 %v7385, 0.01
  %v7419 = vsel %vm7387, %v7316, %v7403
  %v7420 = vsel %vm7388, %v7318, %v7404
  %v7421 = vsel %vm7389, %v7369, %v7405
  %v7422 = vsel %vm7390, %v7371, %v7406
  %v7423 = vsel %vm7391, %v7320, %v7407
  %v7424 = vsel %vm7392, %v7322, %v7408
  %v7425 = vsel %vm7393, %v7373, %v7409
  %v7426 = vsel %vm7394, %v7375, %v7410
  %v7427 = vsel %vm7395, %v7326, %v7411
  %v7428 = vsel %vm7396, %v7328, %v7412
  %v7429 = vsel %vm7397, %v7379, %v7413
  %v7430 = vsel %vm7398, %v7381, %v7414
  %v7431 = vsel %vm7399, %v7330, %v7415
  %v7432 = vsel %vm7400, %v7332, %v7416
  %v7433 = vsel %vm7401, %v7383, %v7417
  %v7434 = vsel %vm7402, %v7385, %v7418
  %v7435 = vld [vmem:[%s5] sm:$0xf]
  %v7436 = vld [vmem:[%s5 + $0x4] sm:$0xf]
  %v7437 = vld [vmem:[%s5 + $0x8] sm:$0xf]
  %v7438 = vld [vmem:[%s5 + $0xc] sm:$0xf]
  %v7439 = vpack.c.bf16 %v7423, %v7419
  %v7440 = vpack.c.bf16 %v7424, %v7420
  %v7441 = vpack.c.bf16 %v7425, %v7421
  %v7442 = vpack.c.bf16 %v7426, %v7422
  %v7443 = vpack.c.bf16 %v7431, %v7427
  %v7444 = vpack.c.bf16 %v7432, %v7428
  %v7445 = vpack.c.bf16 %v7433, %v7429
  %v7446 = vpack.c.bf16 %v7434, %v7430
  %v7447 = vld [vmem:[%s8] sm:$0xff]
  %v7448 = vld [vmem:[%s8 + $0x8] sm:$0xff]
  %v7449 = vld [vmem:[%s8 + $0x10] sm:$0xff]
  %v7450 = vld [vmem:[%s8 + $0x18] sm:$0xff]
  %v7451 = vld [vmem:[%s8 + $0x20] sm:$0xff]
  %v7452 = vld [vmem:[%s8 + $0x28] sm:$0xff]
  %v7453 = vld [vmem:[%s8 + $0x30] sm:$0xff]
  %v7454 = vld [vmem:[%s8 + $0x38] sm:$0xff]
  %v7455 = vld [vmem:[%s8 + $0x40] sm:$0xff]
  %v7456 = vld [vmem:[%s8 + $0x48] sm:$0xff]
  %v7457 = vld [vmem:[%s8 + $0x50] sm:$0xff]
  %v7458 = vld [vmem:[%s8 + $0x58] sm:$0xff]
  %v7459 = vld [vmem:[%s8 + $0x60] sm:$0xff]
  %v7460 = vld [vmem:[%s8 + $0x68] sm:$0xff]
  %v7461 = vld [vmem:[%s8 + $0x70] sm:$0xff]
  %v7462 = vld [vmem:[%s8 + $0x78] sm:$0xff]
  %v7467 = vunpack.c.l.b16 %v7435
  %v7468 = vunpack.c.l.b16 %v7436
  %v7469 = vunpack.c.l.b16 %v7437
  %v7470 = vunpack.c.l.b16 %v7438
  %v7471 = vpack.c.b16 %v7468, %v7467
  %v7472 = vpack.c.b16 %v7470, %v7469
  %v7474 = vsel %vm1178, %v7471, 0
  %v7477 = vsel %vm1178, %v7472, 0
  %7479 = vmatprep.subr.bf16.mxu0 0
  %7480 = vmatpush1.bf16.msra.mxu0 0
  %7481 = vmatprep.subr.bf16.mxu0 0
  %7482 = vmatpush1.bf16.msra.mxu0 0
  %7483 = vmatprep.subr.bf16.mxu0 0
  %7484 = vmatpush1.bf16.msra.mxu0 0
  %7485 = vmatprep.subr.bf16.mxu0 0
  %7486 = vmatpush1.bf16.msra.mxu0 0
  %7487 = vmatprep.subr.bf16.mxu0 0
  %7488 = vmatpush1.bf16.msra.mxu0 0
  %7489 = vmatprep.subr.bf16.mxu0 0
  %7490 = vmatpush1.bf16.msra.mxu0 0
  %7491 = vmatprep.subr.bf16.mxu0 %v7444
  %7492 = vmatpush1.bf16.msra.mxu0 %v7443
  %7493 = vmatprep.subr.bf16.mxu0 %v7440
  %7494 = vmatpush1.bf16.msra.mxu0 %v7439
  %7495 = vmatprep.subr.bf16.mxu0 0
  %7496 = vmatpush2.bf16.msra.mxu0 0
  %7497 = vmatprep.subr.bf16.mxu0 0
  %7498 = vmatpush2.bf16.msra.mxu0 0
  %7499 = vmatprep.subr.bf16.mxu0 0
  %7500 = vmatpush2.bf16.msra.mxu0 0
  %7501 = vmatprep.subr.bf16.mxu0 0
  %7502 = vmatpush2.bf16.msra.mxu0 0
  %7503 = vmatprep.subr.bf16.mxu0 0
  %7504 = vmatpush2.bf16.msra.mxu0 0
  %7505 = vmatprep.subr.bf16.mxu0 0
  %7506 = vmatpush2.bf16.msra.mxu0 0
  %7507 = vmatprep.subr.bf16.mxu0 0
  %7508 = vmatpush2.bf16.msra.mxu0 0
  %7509 = vmatprep.subr.bf16.mxu0 0
  %7510 = vmatpush2.bf16.msra.mxu0 0
  %7511 = vmatprep.mubr.bf16.mxu0 0
  %7512 = vmatmul.mubr.bf16.gmra.mxu0 %v7474
  %v7513 = vpop.f32.mrf.mxu0
  %v7514 = vadd.f32 %v7447, %v7513
  %v7515 = vpop.f32.mrf.mxu0
  %v7516 = vadd.f32 %v7448, %v7515
  %v7517 = vpop.f32.mrf.mxu0
  %v7518 = vadd.f32 %v7451, %v7517
  %v7519 = vpop.f32.mrf.mxu0
  %v7520 = vadd.f32 %v7452, %v7519
  %7521 = vmatprep.mubr.bf16.mxu0 0
  %7522 = vmatmul.mubr.bf16.gmra.mxu0 %v7477
  %v7523 = vpop.f32.mrf.mxu0
  %v7524 = vadd.f32 %v7455, %v7523
  %v7525 = vpop.f32.mrf.mxu0
  %v7526 = vadd.f32 %v7456, %v7525
  %v7527 = vpop.f32.mrf.mxu0
  %v7528 = vadd.f32 %v7459, %v7527
  %v7529 = vpop.f32.mrf.mxu0
  %v7530 = vadd.f32 %v7460, %v7529
  %7531 = vdwg.mxu0
  %7532 = vmatprep.subr.bf16.mxu0 0
  %7533 = vmatpush1.bf16.msra.mxu0 0
  %7534 = vmatprep.subr.bf16.mxu0 0
  %7535 = vmatpush1.bf16.msra.mxu0 0
  %7536 = vmatprep.subr.bf16.mxu0 0
  %7537 = vmatpush1.bf16.msra.mxu0 0
  %7538 = vmatprep.subr.bf16.mxu0 0
  %7539 = vmatpush1.bf16.msra.mxu0 0
  %7540 = vmatprep.subr.bf16.mxu0 0
  %7541 = vmatpush1.bf16.msra.mxu0 0
  %7542 = vmatprep.subr.bf16.mxu0 0
  %7543 = vmatpush1.bf16.msra.mxu0 0
  %7544 = vmatprep.subr.bf16.mxu0 %v7446
  %7545 = vmatpush1.bf16.msra.mxu0 %v7445
  %7546 = vmatprep.subr.bf16.mxu0 %v7442
  %7547 = vmatpush1.bf16.msra.mxu0 %v7441
  %7548 = vmatprep.subr.bf16.mxu0 0
  %7549 = vmatpush2.bf16.msra.mxu0 0
  %7550 = vmatprep.subr.bf16.mxu0 0
  %7551 = vmatpush2.bf16.msra.mxu0 0
  %7552 = vmatprep.subr.bf16.mxu0 0
  %7553 = vmatpush2.bf16.msra.mxu0 0
  %7554 = vmatprep.subr.bf16.mxu0 0
  %7555 = vmatpush2.bf16.msra.mxu0 0
  %7556 = vmatprep.subr.bf16.mxu0 0
  %7557 = vmatpush2.bf16.msra.mxu0 0
  %7558 = vmatprep.subr.bf16.mxu0 0
  %7559 = vmatpush2.bf16.msra.mxu0 0
  %7560 = vmatprep.subr.bf16.mxu0 0
  %7561 = vmatpush2.bf16.msra.mxu0 0
  %7562 = vmatprep.subr.bf16.mxu0 0
  %7563 = vmatpush2.bf16.msra.mxu0 0
  %7564 = vmatprep.mubr.bf16.mxu0 0
  %7565 = vmatmul.mubr.bf16.gmra.mxu0 %v7474
  %v7566 = vpop.f32.mrf.mxu0
  %v7567 = vadd.f32 %v7449, %v7566
  %v7568 = vpop.f32.mrf.mxu0
  %v7569 = vadd.f32 %v7450, %v7568
  %v7570 = vpop.f32.mrf.mxu0
  %v7571 = vadd.f32 %v7453, %v7570
  %v7572 = vpop.f32.mrf.mxu0
  %v7573 = vadd.f32 %v7454, %v7572
  %7574 = vmatprep.mubr.bf16.mxu0 0
  %7575 = vmatmul.mubr.bf16.gmra.mxu0 %v7477
  %v7576 = vpop.f32.mrf.mxu0
  %v7577 = vadd.f32 %v7457, %v7576
  %v7578 = vpop.f32.mrf.mxu0
  %v7579 = vadd.f32 %v7458, %v7578
  %v7580 = vpop.f32.mrf.mxu0
  %v7581 = vadd.f32 %v7461, %v7580
  %v7582 = vpop.f32.mrf.mxu0
  %v7583 = vadd.f32 %v7462, %v7582
  %7584 = vdwg.mxu0
  %v7585 = vld [vmem:[#allocation3] sm:$0xff]
  %v7586 = vld [vmem:[#allocation3 + $0x8] sm:$0xff]
  %v7587 = vld [vmem:[#allocation3 + $0x10] sm:$0xff]
  %v7588 = vld [vmem:[#allocation3 + $0x18] sm:$0xff]
  %v7589 = vld [vmem:[#allocation3 + $0x20] sm:$0xff]
  %v7590 = vld [vmem:[#allocation3 + $0x28] sm:$0xff]
  %v7591 = vld [vmem:[#allocation3 + $0x30] sm:$0xff]
  %v7592 = vld [vmem:[#allocation3 + $0x38] sm:$0xff]
  %v7593 = vld [vmem:[#allocation3 + $0x40] sm:$0xff]
  %v7594 = vld [vmem:[#allocation3 + $0x48] sm:$0xff]
  %v7595 = vld [vmem:[#allocation3 + $0x50] sm:$0xff]
  %v7596 = vld [vmem:[#allocation3 + $0x58] sm:$0xff]
  %v7597 = vld [vmem:[#allocation3 + $0x60] sm:$0xff]
  %v7598 = vld [vmem:[#allocation3 + $0x68] sm:$0xff]
  %v7599 = vld [vmem:[#allocation3 + $0x70] sm:$0xff]
  %v7600 = vld [vmem:[#allocation3 + $0x78] sm:$0xff]
  %v7601 = vmul.f32 %v7514, 0.125
  %v7602 = vmul.f32 %v7516, 0.125
  %v7603 = vmul.f32 %v7567, 0.125
  %v7604 = vmul.f32 %v7569, 0.125
  %v7605 = vmul.f32 %v7518, 0.125
  %v7606 = vmul.f32 %v7520, 0.125
  %v7607 = vmul.f32 %v7571, 0.125
  %v7608 = vmul.f32 %v7573, 0.125
  %v7609 = vmul.f32 %v7524, 0.125
  %v7610 = vmul.f32 %v7526, 0.125
  %v7611 = vmul.f32 %v7577, 0.125
  %v7612 = vmul.f32 %v7579, 0.125
  %v7613 = vmul.f32 %v7528, 0.125
  %v7614 = vmul.f32 %v7530, 0.125
  %v7615 = vmul.f32 %v7581, 0.125
  %v7616 = vmul.f32 %v7583, 0.125
  %v7617 = vadd.f32 %v7585, %v7601
  %v7618 = vadd.f32 %v7586, %v7602
  %v7619 = vadd.f32 %v7587, %v7603
  %v7620 = vadd.f32 %v7588, %v7604
  %v7621 = vadd.f32 %v7589, %v7605
  %v7622 = vadd.f32 %v7590, %v7606
  %v7623 = vadd.f32 %v7591, %v7607
  %v7624 = vadd.f32 %v7592, %v7608
  %v7625 = vadd.f32 %v7593, %v7609
  %v7626 = vadd.f32 %v7594, %v7610
  %v7627 = vadd.f32 %v7595, %v7611
  %v7628 = vadd.f32 %v7596, %v7612
  %v7629 = vadd.f32 %v7597, %v7613
  %v7630 = vadd.f32 %v7598, %v7614
  %v7631 = vadd.f32 %v7599, %v7615
  %v7632 = vadd.f32 %v7600, %v7616
  %7633 = vst [vmem:[#allocation2] sm:$0xff] %v7617
  %7634 = vst [vmem:[#allocation2 + $0x8] sm:$0xff] %v7618
  %7635 = vst [vmem:[#allocation2 + $0x10] sm:$0xff] %v7619
  %7636 = vst [vmem:[#allocation2 + $0x18] sm:$0xff] %v7620
  %7637 = vst [vmem:[#allocation2 + $0x20] sm:$0xff] %v7621
  %7638 = vst [vmem:[#allocation2 + $0x28] sm:$0xff] %v7622
  %7639 = vst [vmem:[#allocation2 + $0x30] sm:$0xff] %v7623
  %7640 = vst [vmem:[#allocation2 + $0x38] sm:$0xff] %v7624
  %7641 = vst [vmem:[#allocation2 + $0x40] sm:$0xff] %v7625
  %7642 = vst [vmem:[#allocation2 + $0x48] sm:$0xff] %v7626
  %7643 = vst [vmem:[#allocation2 + $0x50] sm:$0xff] %v7627
  %7644 = vst [vmem:[#allocation2 + $0x58] sm:$0xff] %v7628
  %7645 = vst [vmem:[#allocation2 + $0x60] sm:$0xff] %v7629
  %7646 = vst [vmem:[#allocation2 + $0x68] sm:$0xff] %v7630
  %7647 = vst [vmem:[#allocation2 + $0x70] sm:$0xff] %v7631
  %7648 = vst [vmem:[#allocation2 + $0x78] sm:$0xff] %v7632
  %v7649 = vld [vmem:[#allocation2] sm:$0xff]
  %v7650 = vld [vmem:[#allocation2 + $0x8] sm:$0xff]
  %v7651 = vld [vmem:[#allocation2 + $0x10] sm:$0xff]
  %v7652 = vld [vmem:[#allocation2 + $0x18] sm:$0xff]
  %v7653 = vld [vmem:[#allocation2 + $0x20] sm:$0xff]
  %v7654 = vld [vmem:[#allocation2 + $0x28] sm:$0xff]
  %v7655 = vld [vmem:[#allocation2 + $0x30] sm:$0xff]
  %v7656 = vld [vmem:[#allocation2 + $0x38] sm:$0xff]
  %v7657 = vld [vmem:[#allocation2 + $0x40] sm:$0xff]
  %v7658 = vld [vmem:[#allocation2 + $0x48] sm:$0xff]
  %v7659 = vld [vmem:[#allocation2 + $0x50] sm:$0xff]
  %v7660 = vld [vmem:[#allocation2 + $0x58] sm:$0xff]
  %v7661 = vld [vmem:[#allocation2 + $0x60] sm:$0xff]
  %v7662 = vld [vmem:[#allocation2 + $0x68] sm:$0xff]
  %v7663 = vld [vmem:[#allocation2 + $0x70] sm:$0xff]
  %v7664 = vld [vmem:[#allocation2 + $0x78] sm:$0xff]
  %v7665 = vld [vmem:[%s9] sm:$0xff]
  %v7666 = vld [vmem:[%s9 + $0x8] sm:$0xff]
  %v7667 = vld [vmem:[%s9 + $0x10] sm:$0xff]
  %v7668 = vld [vmem:[%s9 + $0x18] sm:$0xff]
  %v7669 = vld [vmem:[%s9 + $0x20] sm:$0xff]
  %v7670 = vld [vmem:[%s9 + $0x28] sm:$0xff]
  %v7671 = vld [vmem:[%s9 + $0x30] sm:$0xff]
  %v7672 = vld [vmem:[%s9 + $0x38] sm:$0xff]
  %v7673 = vld [vmem:[%s9 + $0x40] sm:$0xff]
  %v7674 = vld [vmem:[%s9 + $0x48] sm:$0xff]
  %v7675 = vld [vmem:[%s9 + $0x50] sm:$0xff]
  %v7676 = vld [vmem:[%s9 + $0x58] sm:$0xff]
  %v7677 = vld [vmem:[%s9 + $0x60] sm:$0xff]
  %v7678 = vld [vmem:[%s9 + $0x68] sm:$0xff]
  %v7679 = vld [vmem:[%s9 + $0x70] sm:$0xff]
  %v7680 = vld [vmem:[%s9 + $0x78] sm:$0xff]
  %v7681 = vld [vmem:[%s9 + $0x80] sm:$0xff]
  %v7682 = vld [vmem:[%s9 + $0x88] sm:$0xff]
  %v7683 = vld [vmem:[%s9 + $0x90] sm:$0xff]
  %v7684 = vld [vmem:[%s9 + $0x98] sm:$0xff]
  %v7685 = vld [vmem:[%s9 + $0xa0] sm:$0xff]
  %v7686 = vld [vmem:[%s9 + $0xa8] sm:$0xff]
  %v7687 = vld [vmem:[%s9 + $0xb0] sm:$0xff]
  %v7688 = vld [vmem:[%s9 + $0xb8] sm:$0xff]
  %v7689 = vld [vmem:[%s9 + $0xc0] sm:$0xff]
  %v7690 = vld [vmem:[%s9 + $0xc8] sm:$0xff]
  %v7691 = vld [vmem:[%s9 + $0xd0] sm:$0xff]
  %v7692 = vld [vmem:[%s9 + $0xd8] sm:$0xff]
  %v7693 = vld [vmem:[%s9 + $0xe0] sm:$0xff]
  %v7694 = vld [vmem:[%s9 + $0xe8] sm:$0xff]
  %v7695 = vld [vmem:[%s9 + $0xf0] sm:$0xff]
  %v7696 = vld [vmem:[%s9 + $0xf8] sm:$0xff]
  %v7697 = vld [vmem:[%s9 + $0x100] sm:$0xff]
  %v7698 = vld [vmem:[%s9 + $0x108] sm:$0xff]
  %v7699 = vld [vmem:[%s9 + $0x110] sm:$0xff]
  %v7700 = vld [vmem:[%s9 + $0x118] sm:$0xff]
  %v7701 = vld [vmem:[%s9 + $0x120] sm:$0xff]
  %v7702 = vld [vmem:[%s9 + $0x128] sm:$0xff]
  %v7703 = vld [vmem:[%s9 + $0x130] sm:$0xff]
  %v7704 = vld [vmem:[%s9 + $0x138] sm:$0xff]
  %v7705 = vld [vmem:[%s9 + $0x140] sm:$0xff]
  %v7706 = vld [vmem:[%s9 + $0x148] sm:$0xff]
  %v7707 = vld [vmem:[%s9 + $0x150] sm:$0xff]
  %v7708 = vld [vmem:[%s9 + $0x158] sm:$0xff]
  %v7709 = vld [vmem:[%s9 + $0x160] sm:$0xff]
  %v7710 = vld [vmem:[%s9 + $0x168] sm:$0xff]
  %v7711 = vld [vmem:[%s9 + $0x170] sm:$0xff]
  %v7712 = vld [vmem:[%s9 + $0x178] sm:$0xff]
  %v7713 = vld [vmem:[%s9 + $0x180] sm:$0xff]
  %v7714 = vld [vmem:[%s9 + $0x188] sm:$0xff]
  %v7715 = vld [vmem:[%s9 + $0x190] sm:$0xff]
  %v7716 = vld [vmem:[%s9 + $0x198] sm:$0xff]
  %v7717 = vld [vmem:[%s9 + $0x1a0] sm:$0xff]
  %v7718 = vld [vmem:[%s9 + $0x1a8] sm:$0xff]
  %v7719 = vld [vmem:[%s9 + $0x1b0] sm:$0xff]
  %v7720 = vld [vmem:[%s9 + $0x1b8] sm:$0xff]
  %v7721 = vld [vmem:[%s9 + $0x1c0] sm:$0xff]
  %v7722 = vld [vmem:[%s9 + $0x1c8] sm:$0xff]
  %v7723 = vld [vmem:[%s9 + $0x1d0] sm:$0xff]
  %v7724 = vld [vmem:[%s9 + $0x1d8] sm:$0xff]
  %v7725 = vld [vmem:[%s9 + $0x1e0] sm:$0xff]
  %v7726 = vld [vmem:[%s9 + $0x1e8] sm:$0xff]
  %v7727 = vld [vmem:[%s9 + $0x1f0] sm:$0xff]
  %v7728 = vld [vmem:[%s9 + $0x1f8] sm:$0xff]
  %v7729 = vld [vmem:[%s9 + $0x200] sm:$0xff]
  %v7730 = vld [vmem:[%s9 + $0x208] sm:$0xff]
  %v7731 = vld [vmem:[%s9 + $0x210] sm:$0xff]
  %v7732 = vld [vmem:[%s9 + $0x218] sm:$0xff]
  %v7733 = vld [vmem:[%s9 + $0x220] sm:$0xff]
  %v7734 = vld [vmem:[%s9 + $0x228] sm:$0xff]
  %v7735 = vld [vmem:[%s9 + $0x230] sm:$0xff]
  %v7736 = vld [vmem:[%s9 + $0x238] sm:$0xff]
  %v7737 = vld [vmem:[%s9 + $0x240] sm:$0xff]
  %v7738 = vld [vmem:[%s9 + $0x248] sm:$0xff]
  %v7739 = vld [vmem:[%s9 + $0x250] sm:$0xff]
  %v7740 = vld [vmem:[%s9 + $0x258] sm:$0xff]
  %v7741 = vld [vmem:[%s9 + $0x260] sm:$0xff]
  %v7742 = vld [vmem:[%s9 + $0x268] sm:$0xff]
  %v7743 = vld [vmem:[%s9 + $0x270] sm:$0xff]
  %v7744 = vld [vmem:[%s9 + $0x278] sm:$0xff]
  %v7745 = vld [vmem:[%s9 + $0x280] sm:$0xff]
  %v7746 = vld [vmem:[%s9 + $0x288] sm:$0xff]
  %v7747 = vld [vmem:[%s9 + $0x290] sm:$0xff]
  %v7748 = vld [vmem:[%s9 + $0x298] sm:$0xff]
  %v7749 = vld [vmem:[%s9 + $0x2a0] sm:$0xff]
  %v7750 = vld [vmem:[%s9 + $0x2a8] sm:$0xff]
  %v7751 = vld [vmem:[%s9 + $0x2b0] sm:$0xff]
  %v7752 = vld [vmem:[%s9 + $0x2b8] sm:$0xff]
  %v7753 = vld [vmem:[%s9 + $0x2c0] sm:$0xff]
  %v7754 = vld [vmem:[%s9 + $0x2c8] sm:$0xff]
  %v7755 = vld [vmem:[%s9 + $0x2d0] sm:$0xff]
  %v7756 = vld [vmem:[%s9 + $0x2d8] sm:$0xff]
  %v7757 = vld [vmem:[%s9 + $0x2e0] sm:$0xff]
  %v7758 = vld [vmem:[%s9 + $0x2e8] sm:$0xff]
  %v7759 = vld [vmem:[%s9 + $0x2f0] sm:$0xff]
  %v7760 = vld [vmem:[%s9 + $0x2f8] sm:$0xff]
  %v7761 = vld [vmem:[%s9 + $0x300] sm:$0xff]
  %v7762 = vld [vmem:[%s9 + $0x308] sm:$0xff]
  %v7763 = vld [vmem:[%s9 + $0x310] sm:$0xff]
  %v7764 = vld [vmem:[%s9 + $0x318] sm:$0xff]
  %v7765 = vld [vmem:[%s9 + $0x320] sm:$0xff]
  %v7766 = vld [vmem:[%s9 + $0x328] sm:$0xff]
  %v7767 = vld [vmem:[%s9 + $0x330] sm:$0xff]
  %v7768 = vld [vmem:[%s9 + $0x338] sm:$0xff]
  %v7769 = vld [vmem:[%s9 + $0x340] sm:$0xff]
  %v7770 = vld [vmem:[%s9 + $0x348] sm:$0xff]
  %v7771 = vld [vmem:[%s9 + $0x350] sm:$0xff]
  %v7772 = vld [vmem:[%s9 + $0x358] sm:$0xff]
  %v7773 = vld [vmem:[%s9 + $0x360] sm:$0xff]
  %v7774 = vld [vmem:[%s9 + $0x368] sm:$0xff]
  %v7775 = vld [vmem:[%s9 + $0x370] sm:$0xff]
  %v7776 = vld [vmem:[%s9 + $0x378] sm:$0xff]
  %v7777 = vld [vmem:[%s9 + $0x380] sm:$0xff]
  %v7778 = vld [vmem:[%s9 + $0x388] sm:$0xff]
  %v7779 = vld [vmem:[%s9 + $0x390] sm:$0xff]
  %v7780 = vld [vmem:[%s9 + $0x398] sm:$0xff]
  %v7781 = vld [vmem:[%s9 + $0x3a0] sm:$0xff]
  %v7782 = vld [vmem:[%s9 + $0x3a8] sm:$0xff]
  %v7783 = vld [vmem:[%s9 + $0x3b0] sm:$0xff]
  %v7784 = vld [vmem:[%s9 + $0x3b8] sm:$0xff]
  %v7785 = vld [vmem:[%s9 + $0x3c0] sm:$0xff]
  %v7786 = vld [vmem:[%s9 + $0x3c8] sm:$0xff]
  %v7787 = vld [vmem:[%s9 + $0x3d0] sm:$0xff]
  %v7788 = vld [vmem:[%s9 + $0x3d8] sm:$0xff]
  %v7789 = vld [vmem:[%s9 + $0x3e0] sm:$0xff]
  %v7790 = vld [vmem:[%s9 + $0x3e8] sm:$0xff]
  %v7791 = vld [vmem:[%s9 + $0x3f0] sm:$0xff]
  %v7792 = vld [vmem:[%s9 + $0x3f8] sm:$0xff]
  %v7793 = vpack.c.bf16 %v7653, %v7649
  %v7794 = vpack.c.bf16 %v7654, %v7650
  %v7795 = vpack.c.bf16 %v7655, %v7651
  %v7796 = vpack.c.bf16 %v7656, %v7652
  %v7797 = vpack.c.bf16 %v7661, %v7657
  %v7798 = vpack.c.bf16 %v7662, %v7658
  %v7799 = vpack.c.bf16 %v7663, %v7659
  %v7800 = vpack.c.bf16 %v7664, %v7660
  %v7801 = vld [vmem:[%s10] sm:$0xff]
  %v7802 = vld [vmem:[%s10 + $0x8] sm:$0xff]
  %v7803 = vld [vmem:[%s10 + $0x10] sm:$0xff]
  %v7804 = vld [vmem:[%s10 + $0x18] sm:$0xff]
  %v7805 = vld [vmem:[%s10 + $0x20] sm:$0xff]
  %v7806 = vld [vmem:[%s10 + $0x28] sm:$0xff]
  %v7807 = vld [vmem:[%s10 + $0x30] sm:$0xff]
  %v7808 = vld [vmem:[%s10 + $0x38] sm:$0xff]
  %v7809 = vld [vmem:[%s10 + $0x40] sm:$0xff]
  %v7810 = vld [vmem:[%s10 + $0x48] sm:$0xff]
  %v7811 = vld [vmem:[%s10 + $0x50] sm:$0xff]
  %v7812 = vld [vmem:[%s10 + $0x58] sm:$0xff]
  %v7813 = vld [vmem:[%s10 + $0x60] sm:$0xff]
  %v7814 = vld [vmem:[%s10 + $0x68] sm:$0xff]
  %v7815 = vld [vmem:[%s10 + $0x70] sm:$0xff]
  %v7816 = vld [vmem:[%s10 + $0x78] sm:$0xff]
  %v7945 = vunpack.c.l.b16 %v7665
  %v7946 = vunpack.c.h.b16 %v7665
  %v7947 = vunpack.c.l.b16 %v7666
  %v7948 = vunpack.c.h.b16 %v7666
  %v7949 = vunpack.c.l.b16 %v7667
  %v7950 = vunpack.c.h.b16 %v7667
  %v7951 = vunpack.c.l.b16 %v7668
  %v7952 = vunpack.c.h.b16 %v7668
  %v7953 = vunpack.c.l.b16 %v7669
  %v7954 = vunpack.c.h.b16 %v7669
  %v7955 = vunpack.c.l.b16 %v7670
  %v7956 = vunpack.c.h.b16 %v7670
  %v7957 = vunpack.c.l.b16 %v7671
  %v7958 = vunpack.c.h.b16 %v7671
  %v7959 = vunpack.c.l.b16 %v7672
  %v7960 = vunpack.c.h.b16 %v7672
  %v7961 = vunpack.c.l.b16 %v7673
  %v7962 = vunpack.c.h.b16 %v7673
  %v7963 = vunpack.c.l.b16 %v7674
  %v7964 = vunpack.c.h.b16 %v7674
  %v7965 = vunpack.c.l.b16 %v7675
  %v7966 = vunpack.c.h.b16 %v7675
  %v7967 = vunpack.c.l.b16 %v7676
  %v7968 = vunpack.c.h.b16 %v7676
  %v7969 = vunpack.c.l.b16 %v7677
  %v7970 = vunpack.c.h.b16 %v7677
  %v7971 = vunpack.c.l.b16 %v7678
  %v7972 = vunpack.c.h.b16 %v7678
  %v7973 = vunpack.c.l.b16 %v7679
  %v7974 = vunpack.c.h.b16 %v7679
  %v7975 = vunpack.c.l.b16 %v7680
  %v7976 = vunpack.c.h.b16 %v7680
  %v7977 = vunpack.c.l.b16 %v7681
  %v7978 = vunpack.c.h.b16 %v7681
  %v7979 = vunpack.c.l.b16 %v7682
  %v7980 = vunpack.c.h.b16 %v7682
  %v7981 = vunpack.c.l.b16 %v7683
  %v7982 = vunpack.c.h.b16 %v7683
  %v7983 = vunpack.c.l.b16 %v7684
  %v7984 = vunpack.c.h.b16 %v7684
  %v7985 = vunpack.c.l.b16 %v7685
  %v7986 = vunpack.c.h.b16 %v7685
  %v7987 = vunpack.c.l.b16 %v7686
  %v7988 = vunpack.c.h.b16 %v7686
  %v7989 = vunpack.c.l.b16 %v7687
  %v7990 = vunpack.c.h.b16 %v7687
  %v7991 = vunpack.c.l.b16 %v7688
  %v7992 = vunpack.c.h.b16 %v7688
  %v7993 = vunpack.c.l.b16 %v7689
  %v7994 = vunpack.c.h.b16 %v7689
  %v7995 = vunpack.c.l.b16 %v7690
  %v7996 = vunpack.c.h.b16 %v7690
  %v7997 = vunpack.c.l.b16 %v7691
  %v7998 = vunpack.c.h.b16 %v7691
  %v7999 = vunpack.c.l.b16 %v7692
  %v8000 = vunpack.c.h.b16 %v7692
  %v8001 = vunpack.c.l.b16 %v7693
  %v8002 = vunpack.c.h.b16 %v7693
  %v8003 = vunpack.c.l.b16 %v7694
  %v8004 = vunpack.c.h.b16 %v7694
  %v8005 = vunpack.c.l.b16 %v7695
  %v8006 = vunpack.c.h.b16 %v7695
  %v8007 = vunpack.c.l.b16 %v7696
  %v8008 = vunpack.c.h.b16 %v7696
  %v8009 = vunpack.c.l.b16 %v7697
  %v8010 = vunpack.c.h.b16 %v7697
  %v8011 = vunpack.c.l.b16 %v7698
  %v8012 = vunpack.c.h.b16 %v7698
  %v8013 = vunpack.c.l.b16 %v7699
  %v8014 = vunpack.c.h.b16 %v7699
  %v8015 = vunpack.c.l.b16 %v7700
  %v8016 = vunpack.c.h.b16 %v7700
  %v8017 = vunpack.c.l.b16 %v7701
  %v8018 = vunpack.c.h.b16 %v7701
  %v8019 = vunpack.c.l.b16 %v7702
  %v8020 = vunpack.c.h.b16 %v7702
  %v8021 = vunpack.c.l.b16 %v7703
  %v8022 = vunpack.c.h.b16 %v7703
  %v8023 = vunpack.c.l.b16 %v7704
  %v8024 = vunpack.c.h.b16 %v7704
  %v8025 = vunpack.c.l.b16 %v7705
  %v8026 = vunpack.c.h.b16 %v7705
  %v8027 = vunpack.c.l.b16 %v7706
  %v8028 = vunpack.c.h.b16 %v7706
  %v8029 = vunpack.c.l.b16 %v7707
  %v8030 = vunpack.c.h.b16 %v7707
  %v8031 = vunpack.c.l.b16 %v7708
  %v8032 = vunpack.c.h.b16 %v7708
  %v8033 = vunpack.c.l.b16 %v7709
  %v8034 = vunpack.c.h.b16 %v7709
  %v8035 = vunpack.c.l.b16 %v7710
  %v8036 = vunpack.c.h.b16 %v7710
  %v8037 = vunpack.c.l.b16 %v7711
  %v8038 = vunpack.c.h.b16 %v7711
  %v8039 = vunpack.c.l.b16 %v7712
  %v8040 = vunpack.c.h.b16 %v7712
  %v8041 = vunpack.c.l.b16 %v7713
  %v8042 = vunpack.c.h.b16 %v7713
  %v8043 = vunpack.c.l.b16 %v7714
  %v8044 = vunpack.c.h.b16 %v7714
  %v8045 = vunpack.c.l.b16 %v7715
  %v8046 = vunpack.c.h.b16 %v7715
  %v8047 = vunpack.c.l.b16 %v7716
  %v8048 = vunpack.c.h.b16 %v7716
  %v8049 = vunpack.c.l.b16 %v7717
  %v8050 = vunpack.c.h.b16 %v7717
  %v8051 = vunpack.c.l.b16 %v7718
  %v8052 = vunpack.c.h.b16 %v7718
  %v8053 = vunpack.c.l.b16 %v7719
  %v8054 = vunpack.c.h.b16 %v7719
  %v8055 = vunpack.c.l.b16 %v7720
  %v8056 = vunpack.c.h.b16 %v7720
  %v8057 = vunpack.c.l.b16 %v7721
  %v8058 = vunpack.c.h.b16 %v7721
  %v8059 = vunpack.c.l.b16 %v7722
  %v8060 = vunpack.c.h.b16 %v7722
  %v8061 = vunpack.c.l.b16 %v7723
  %v8062 = vunpack.c.h.b16 %v7723
  %v8063 = vunpack.c.l.b16 %v7724
  %v8064 = vunpack.c.h.b16 %v7724
  %v8065 = vunpack.c.l.b16 %v7725
  %v8066 = vunpack.c.h.b16 %v7725
  %v8067 = vunpack.c.l.b16 %v7726
  %v8068 = vunpack.c.h.b16 %v7726
  %v8069 = vunpack.c.l.b16 %v7727
  %v8070 = vunpack.c.h.b16 %v7727
  %v8071 = vunpack.c.l.b16 %v7728
  %v8072 = vunpack.c.h.b16 %v7728
  %v8073 = vunpack.c.l.b16 %v7729
  %v8074 = vunpack.c.h.b16 %v7729
  %v8075 = vunpack.c.l.b16 %v7730
  %v8076 = vunpack.c.h.b16 %v7730
  %v8077 = vunpack.c.l.b16 %v7731
  %v8078 = vunpack.c.h.b16 %v7731
  %v8079 = vunpack.c.l.b16 %v7732
  %v8080 = vunpack.c.h.b16 %v7732
  %v8081 = vunpack.c.l.b16 %v7733
  %v8082 = vunpack.c.h.b16 %v7733
  %v8083 = vunpack.c.l.b16 %v7734
  %v8084 = vunpack.c.h.b16 %v7734
  %v8085 = vunpack.c.l.b16 %v7735
  %v8086 = vunpack.c.h.b16 %v7735
  %v8087 = vunpack.c.l.b16 %v7736
  %v8088 = vunpack.c.h.b16 %v7736
  %v8089 = vunpack.c.l.b16 %v7737
  %v8090 = vunpack.c.h.b16 %v7737
  %v8091 = vunpack.c.l.b16 %v7738
  %v8092 = vunpack.c.h.b16 %v7738
  %v8093 = vunpack.c.l.b16 %v7739
  %v8094 = vunpack.c.h.b16 %v7739
  %v8095 = vunpack.c.l.b16 %v7740
  %v8096 = vunpack.c.h.b16 %v7740
  %v8097 = vunpack.c.l.b16 %v7741
  %v8098 = vunpack.c.h.b16 %v7741
  %v8099 = vunpack.c.l.b16 %v7742
  %v8100 = vunpack.c.h.b16 %v7742
  %v8101 = vunpack.c.l.b16 %v7743
  %v8102 = vunpack.c.h.b16 %v7743
  %v8103 = vunpack.c.l.b16 %v7744
  %v8104 = vunpack.c.h.b16 %v7744
  %v8105 = vunpack.c.l.b16 %v7745
  %v8106 = vunpack.c.h.b16 %v7745
  %v8107 = vunpack.c.l.b16 %v7746
  %v8108 = vunpack.c.h.b16 %v7746
  %v8109 = vunpack.c.l.b16 %v7747
  %v8110 = vunpack.c.h.b16 %v7747
  %v8111 = vunpack.c.l.b16 %v7748
  %v8112 = vunpack.c.h.b16 %v7748
  %v8113 = vunpack.c.l.b16 %v7749
  %v8114 = vunpack.c.h.b16 %v7749
  %v8115 = vunpack.c.l.b16 %v7750
  %v8116 = vunpack.c.h.b16 %v7750
  %v8117 = vunpack.c.l.b16 %v7751
  %v8118 = vunpack.c.h.b16 %v7751
  %v8119 = vunpack.c.l.b16 %v7752
  %v8120 = vunpack.c.h.b16 %v7752
  %v8121 = vunpack.c.l.b16 %v7753
  %v8122 = vunpack.c.h.b16 %v7753
  %v8123 = vunpack.c.l.b16 %v7754
  %v8124 = vunpack.c.h.b16 %v7754
  %v8125 = vunpack.c.l.b16 %v7755
  %v8126 = vunpack.c.h.b16 %v7755
  %v8127 = vunpack.c.l.b16 %v7756
  %v8128 = vunpack.c.h.b16 %v7756
  %v8129 = vunpack.c.l.b16 %v7757
  %v8130 = vunpack.c.h.b16 %v7757
  %v8131 = vunpack.c.l.b16 %v7758
  %v8132 = vunpack.c.h.b16 %v7758
  %v8133 = vunpack.c.l.b16 %v7759
  %v8134 = vunpack.c.h.b16 %v7759
  %v8135 = vunpack.c.l.b16 %v7760
  %v8136 = vunpack.c.h.b16 %v7760
  %v8137 = vunpack.c.l.b16 %v7761
  %v8138 = vunpack.c.h.b16 %v7761
  %v8139 = vunpack.c.l.b16 %v7762
  %v8140 = vunpack.c.h.b16 %v7762
  %v8141 = vunpack.c.l.b16 %v7763
  %v8142 = vunpack.c.h.b16 %v7763
  %v8143 = vunpack.c.l.b16 %v7764
  %v8144 = vunpack.c.h.b16 %v7764
  %v8145 = vunpack.c.l.b16 %v7765
  %v8146 = vunpack.c.h.b16 %v7765
  %v8147 = vunpack.c.l.b16 %v7766
  %v8148 = vunpack.c.h.b16 %v7766
  %v8149 = vunpack.c.l.b16 %v7767
  %v8150 = vunpack.c.h.b16 %v7767
  %v8151 = vunpack.c.l.b16 %v7768
  %v8152 = vunpack.c.h.b16 %v7768
  %v8153 = vunpack.c.l.b16 %v7769
  %v8154 = vunpack.c.h.b16 %v7769
  %v8155 = vunpack.c.l.b16 %v7770
  %v8156 = vunpack.c.h.b16 %v7770
  %v8157 = vunpack.c.l.b16 %v7771
  %v8158 = vunpack.c.h.b16 %v7771
  %v8159 = vunpack.c.l.b16 %v7772
  %v8160 = vunpack.c.h.b16 %v7772
  %v8161 = vunpack.c.l.b16 %v7773
  %v8162 = vunpack.c.h.b16 %v7773
  %v8163 = vunpack.c.l.b16 %v7774
  %v8164 = vunpack.c.h.b16 %v7774
  %v8165 = vunpack.c.l.b16 %v7775
  %v8166 = vunpack.c.h.b16 %v7775
  %v8167 = vunpack.c.l.b16 %v7776
  %v8168 = vunpack.c.h.b16 %v7776
  %v8169 = vunpack.c.l.b16 %v7777
  %v8170 = vunpack.c.h.b16 %v7777
  %v8171 = vunpack.c.l.b16 %v7778
  %v8172 = vunpack.c.h.b16 %v7778
  %v8173 = vunpack.c.l.b16 %v7779
  %v8174 = vunpack.c.h.b16 %v7779
  %v8175 = vunpack.c.l.b16 %v7780
  %v8176 = vunpack.c.h.b16 %v7780
  %v8177 = vunpack.c.l.b16 %v7781
  %v8178 = vunpack.c.h.b16 %v7781
  %v8179 = vunpack.c.l.b16 %v7782
  %v8180 = vunpack.c.h.b16 %v7782
  %v8181 = vunpack.c.l.b16 %v7783
  %v8182 = vunpack.c.h.b16 %v7783
  %v8183 = vunpack.c.l.b16 %v7784
  %v8184 = vunpack.c.h.b16 %v7784
  %v8185 = vunpack.c.l.b16 %v7785
  %v8186 = vunpack.c.h.b16 %v7785
  %v8187 = vunpack.c.l.b16 %v7786
  %v8188 = vunpack.c.h.b16 %v7786
  %v8189 = vunpack.c.l.b16 %v7787
  %v8190 = vunpack.c.h.b16 %v7787
  %v8191 = vunpack.c.l.b16 %v7788
  %v8192 = vunpack.c.h.b16 %v7788
  %v8193 = vunpack.c.l.b16 %v7789
  %v8194 = vunpack.c.h.b16 %v7789
  %v8195 = vunpack.c.l.b16 %v7790
  %v8196 = vunpack.c.h.b16 %v7790
  %v8197 = vunpack.c.l.b16 %v7791
  %v8198 = vunpack.c.h.b16 %v7791
  %v8199 = vunpack.c.l.b16 %v7792
  %v8200 = vunpack.c.h.b16 %v7792
  %v8201 = vpack.c.b16 %v7949, %v7945
  %v8202 = vpack.c.b16 %v7950, %v7946
  %v8203 = vpack.c.b16 %v7951, %v7947
  %v8204 = vpack.c.b16 %v7952, %v7948
  %v8205 = vpack.c.b16 %v7957, %v7953
  %v8206 = vpack.c.b16 %v7958, %v7954
  %v8207 = vpack.c.b16 %v7959, %v7955
  %v8208 = vpack.c.b16 %v7960, %v7956
  %v8209 = vpack.c.b16 %v7965, %v7961
  %v8210 = vpack.c.b16 %v7966, %v7962
  %v8211 = vpack.c.b16 %v7967, %v7963
  %v8212 = vpack.c.b16 %v7968, %v7964
  %v8213 = vpack.c.b16 %v7973, %v7969
  %v8214 = vpack.c.b16 %v7974, %v7970
  %v8215 = vpack.c.b16 %v7975, %v7971
  %v8216 = vpack.c.b16 %v7976, %v7972
  %v8217 = vpack.c.b16 %v7981, %v7977
  %v8218 = vpack.c.b16 %v7982, %v7978
  %v8219 = vpack.c.b16 %v7983, %v7979
  %v8220 = vpack.c.b16 %v7984, %v7980
  %v8221 = vpack.c.b16 %v7989, %v7985
  %v8222 = vpack.c.b16 %v7990, %v7986
  %v8223 = vpack.c.b16 %v7991, %v7987
  %v8224 = vpack.c.b16 %v7992, %v7988
  %v8225 = vpack.c.b16 %v7997, %v7993
  %v8226 = vpack.c.b16 %v7998, %v7994
  %v8227 = vpack.c.b16 %v7999, %v7995
  %v8228 = vpack.c.b16 %v8000, %v7996
  %v8229 = vpack.c.b16 %v8005, %v8001
  %v8230 = vpack.c.b16 %v8006, %v8002
  %v8231 = vpack.c.b16 %v8007, %v8003
  %v8232 = vpack.c.b16 %v8008, %v8004
  %v8233 = vpack.c.b16 %v8013, %v8009
  %v8234 = vpack.c.b16 %v8014, %v8010
  %v8235 = vpack.c.b16 %v8015, %v8011
  %v8236 = vpack.c.b16 %v8016, %v8012
  %v8237 = vpack.c.b16 %v8021, %v8017
  %v8238 = vpack.c.b16 %v8022, %v8018
  %v8239 = vpack.c.b16 %v8023, %v8019
  %v8240 = vpack.c.b16 %v8024, %v8020
  %v8241 = vpack.c.b16 %v8029, %v8025
  %v8242 = vpack.c.b16 %v8030, %v8026
  %v8243 = vpack.c.b16 %v8031, %v8027
  %v8244 = vpack.c.b16 %v8032, %v8028
  %v8245 = vpack.c.b16 %v8037, %v8033
  %v8246 = vpack.c.b16 %v8038, %v8034
  %v8247 = vpack.c.b16 %v8039, %v8035
  %v8248 = vpack.c.b16 %v8040, %v8036
  %v8249 = vpack.c.b16 %v8045, %v8041
  %v8250 = vpack.c.b16 %v8046, %v8042
  %v8251 = vpack.c.b16 %v8047, %v8043
  %v8252 = vpack.c.b16 %v8048, %v8044
  %v8253 = vpack.c.b16 %v8053, %v8049
  %v8254 = vpack.c.b16 %v8054, %v8050
  %v8255 = vpack.c.b16 %v8055, %v8051
  %v8256 = vpack.c.b16 %v8056, %v8052
  %v8257 = vpack.c.b16 %v8061, %v8057
  %v8258 = vpack.c.b16 %v8062, %v8058
  %v8259 = vpack.c.b16 %v8063, %v8059
  %v8260 = vpack.c.b16 %v8064, %v8060
  %v8261 = vpack.c.b16 %v8069, %v8065
  %v8262 = vpack.c.b16 %v8070, %v8066
  %v8263 = vpack.c.b16 %v8071, %v8067
  %v8264 = vpack.c.b16 %v8072, %v8068
  %v8265 = vpack.c.b16 %v8077, %v8073
  %v8266 = vpack.c.b16 %v8078, %v8074
  %v8267 = vpack.c.b16 %v8079, %v8075
  %v8268 = vpack.c.b16 %v8080, %v8076
  %v8269 = vpack.c.b16 %v8085, %v8081
  %v8270 = vpack.c.b16 %v8086, %v8082
  %v8271 = vpack.c.b16 %v8087, %v8083
  %v8272 = vpack.c.b16 %v8088, %v8084
  %v8273 = vpack.c.b16 %v8093, %v8089
  %v8274 = vpack.c.b16 %v8094, %v8090
  %v8275 = vpack.c.b16 %v8095, %v8091
  %v8276 = vpack.c.b16 %v8096, %v8092
  %v8277 = vpack.c.b16 %v8101, %v8097
  %v8278 = vpack.c.b16 %v8102, %v8098
  %v8279 = vpack.c.b16 %v8103, %v8099
  %v8280 = vpack.c.b16 %v8104, %v8100
  %v8281 = vpack.c.b16 %v8109, %v8105
  %v8282 = vpack.c.b16 %v8110, %v8106
  %v8283 = vpack.c.b16 %v8111, %v8107
  %v8284 = vpack.c.b16 %v8112, %v8108
  %v8285 = vpack.c.b16 %v8117, %v8113
  %v8286 = vpack.c.b16 %v8118, %v8114
  %v8287 = vpack.c.b16 %v8119, %v8115
  %v8288 = vpack.c.b16 %v8120, %v8116
  %v8289 = vpack.c.b16 %v8125, %v8121
  %v8290 = vpack.c.b16 %v8126, %v8122
  %v8291 = vpack.c.b16 %v8127, %v8123
  %v8292 = vpack.c.b16 %v8128, %v8124
  %v8293 = vpack.c.b16 %v8133, %v8129
  %v8294 = vpack.c.b16 %v8134, %v8130
  %v8295 = vpack.c.b16 %v8135, %v8131
  %v8296 = vpack.c.b16 %v8136, %v8132
  %v8297 = vpack.c.b16 %v8141, %v8137
  %v8298 = vpack.c.b16 %v8142, %v8138
  %v8299 = vpack.c.b16 %v8143, %v8139
  %v8300 = vpack.c.b16 %v8144, %v8140
  %v8301 = vpack.c.b16 %v8149, %v8145
  %v8302 = vpack.c.b16 %v8150, %v8146
  %v8303 = vpack.c.b16 %v8151, %v8147
  %v8304 = vpack.c.b16 %v8152, %v8148
  %v8305 = vpack.c.b16 %v8157, %v8153
  %v8306 = vpack.c.b16 %v8158, %v8154
  %v8307 = vpack.c.b16 %v8159, %v8155
  %v8308 = vpack.c.b16 %v8160, %v8156
  %v8309 = vpack.c.b16 %v8165, %v8161
  %v8310 = vpack.c.b16 %v8166, %v8162
  %v8311 = vpack.c.b16 %v8167, %v8163
  %v8312 = vpack.c.b16 %v8168, %v8164
  %v8313 = vpack.c.b16 %v8173, %v8169
  %v8314 = vpack.c.b16 %v8174, %v8170
  %v8315 = vpack.c.b16 %v8175, %v8171
  %v8316 = vpack.c.b16 %v8176, %v8172
  %v8317 = vpack.c.b16 %v8181, %v8177
  %v8318 = vpack.c.b16 %v8182, %v8178
  %v8319 = vpack.c.b16 %v8183, %v8179
  %v8320 = vpack.c.b16 %v8184, %v8180
  %v8321 = vpack.c.b16 %v8189, %v8185
  %v8322 = vpack.c.b16 %v8190, %v8186
  %v8323 = vpack.c.b16 %v8191, %v8187
  %v8324 = vpack.c.b16 %v8192, %v8188
  %v8325 = vpack.c.b16 %v8197, %v8193
  %v8326 = vpack.c.b16 %v8198, %v8194
  %v8327 = vpack.c.b16 %v8199, %v8195
  %v8328 = vpack.c.b16 %v8200, %v8196
  %8457 = vmatprep.subr.bf16.mxu0 %v8230
  %8458 = vmatpush1.bf16.msra.mxu0 %v8229
  %8459 = vmatprep.subr.bf16.mxu0 %v8226
  %8460 = vmatpush1.bf16.msra.mxu0 %v8225
  %8461 = vmatprep.subr.bf16.mxu0 %v8222
  %8462 = vmatpush1.bf16.msra.mxu0 %v8221
  %8463 = vmatprep.subr.bf16.mxu0 %v8218
  %8464 = vmatpush1.bf16.msra.mxu0 %v8217
  %8465 = vmatprep.subr.bf16.mxu0 %v8214
  %8466 = vmatpush1.bf16.msra.mxu0 %v8213
  %8467 = vmatprep.subr.bf16.mxu0 %v8210
  %8468 = vmatpush1.bf16.msra.mxu0 %v8209
  %8469 = vmatprep.subr.bf16.mxu0 %v8206
  %8470 = vmatpush1.bf16.msra.mxu0 %v8205
  %8471 = vmatprep.subr.bf16.mxu0 %v8202
  %8472 = vmatpush1.bf16.msra.mxu0 %v8201
  %8473 = vmatprep.subr.bf16.mxu0 %v8262
  %8474 = vmatpush2.bf16.msra.mxu0 %v8261
  %8475 = vmatprep.subr.bf16.mxu0 %v8258
  %8476 = vmatpush2.bf16.msra.mxu0 %v8257
  %8477 = vmatprep.subr.bf16.mxu0 %v8254
  %8478 = vmatpush2.bf16.msra.mxu0 %v8253
  %8479 = vmatprep.subr.bf16.mxu0 %v8250
  %8480 = vmatpush2.bf16.msra.mxu0 %v8249
  %8481 = vmatprep.subr.bf16.mxu0 %v8246
  %8482 = vmatpush2.bf16.msra.mxu0 %v8245
  %8483 = vmatprep.subr.bf16.mxu0 %v8242
  %8484 = vmatpush2.bf16.msra.mxu0 %v8241
  %8485 = vmatprep.subr.bf16.mxu0 %v8238
  %8486 = vmatpush2.bf16.msra.mxu0 %v8237
  %8487 = vmatprep.subr.bf16.mxu0 %v8234
  %8488 = vmatpush2.bf16.msra.mxu0 %v8233
  %8489 = vmatprep.mubr.bf16.mxu0 %v7794
  %8490 = vmatmul.mubr.bf16.gmra.mxu0 %v7793
  %v8491 = vpop.f32.mrf.mxu0
  %v8492 = vadd.f32 %v7801, %v8491
  %v8493 = vpop.f32.mrf.mxu0
  %v8494 = vadd.f32 %v7802, %v8493
  %v8495 = vpop.f32.mrf.mxu0
  %v8496 = vadd.f32 %v7805, %v8495
  %v8497 = vpop.f32.mrf.mxu0
  %v8498 = vadd.f32 %v7806, %v8497
  %8499 = vmatprep.mubr.bf16.mxu0 %v7798
  %8500 = vmatmul.mubr.bf16.gmra.mxu0 %v7797
  %v8501 = vpop.f32.mrf.mxu0
  %v8502 = vadd.f32 %v7809, %v8501
  %v8503 = vpop.f32.mrf.mxu0
  %v8504 = vadd.f32 %v7810, %v8503
  %v8505 = vpop.f32.mrf.mxu0
  %v8506 = vadd.f32 %v7813, %v8505
  %v8507 = vpop.f32.mrf.mxu0
  %v8508 = vadd.f32 %v7814, %v8507
  %8509 = vdwg.mxu0
  %8510 = vmatprep.subr.bf16.mxu0 %v8294
  %8511 = vmatpush1.bf16.msra.mxu0 %v8293
  %8512 = vmatprep.subr.bf16.mxu0 %v8290
  %8513 = vmatpush1.bf16.msra.mxu0 %v8289
  %8514 = vmatprep.subr.bf16.mxu0 %v8286
  %8515 = vmatpush1.bf16.msra.mxu0 %v8285
  %8516 = vmatprep.subr.bf16.mxu0 %v8282
  %8517 = vmatpush1.bf16.msra.mxu0 %v8281
  %8518 = vmatprep.subr.bf16.mxu0 %v8278
  %8519 = vmatpush1.bf16.msra.mxu0 %v8277
  %8520 = vmatprep.subr.bf16.mxu0 %v8274
  %8521 = vmatpush1.bf16.msra.mxu0 %v8273
  %8522 = vmatprep.subr.bf16.mxu0 %v8270
  %8523 = vmatpush1.bf16.msra.mxu0 %v8269
  %8524 = vmatprep.subr.bf16.mxu0 %v8266
  %8525 = vmatpush1.bf16.msra.mxu0 %v8265
  %8526 = vmatprep.subr.bf16.mxu0 %v8326
  %8527 = vmatpush2.bf16.msra.mxu0 %v8325
  %8528 = vmatprep.subr.bf16.mxu0 %v8322
  %8529 = vmatpush2.bf16.msra.mxu0 %v8321
  %8530 = vmatprep.subr.bf16.mxu0 %v8318
  %8531 = vmatpush2.bf16.msra.mxu0 %v8317
  %8532 = vmatprep.subr.bf16.mxu0 %v8314
  %8533 = vmatpush2.bf16.msra.mxu0 %v8313
  %8534 = vmatprep.subr.bf16.mxu0 %v8310
  %8535 = vmatpush2.bf16.msra.mxu0 %v8309
  %8536 = vmatprep.subr.bf16.mxu0 %v8306
  %8537 = vmatpush2.bf16.msra.mxu0 %v8305
  %8538 = vmatprep.subr.bf16.mxu0 %v8302
  %8539 = vmatpush2.bf16.msra.mxu0 %v8301
  %8540 = vmatprep.subr.bf16.mxu0 %v8298
  %8541 = vmatpush2.bf16.msra.mxu0 %v8297
  %8542 = vmatprep.mubr.bf16.mxu0 %v7796
  %8543 = vmatmul.mubr.bf16.gmra.mxu0 %v7795
  %v8544 = vpop.f32.mrf.mxu0
  %v8545 = vadd.f32 %v8492, %v8544
  %v8546 = vpop.f32.mrf.mxu0
  %v8547 = vadd.f32 %v8494, %v8546
  %v8548 = vpop.f32.mrf.mxu0
  %v8549 = vadd.f32 %v8496, %v8548
  %v8550 = vpop.f32.mrf.mxu0
  %v8551 = vadd.f32 %v8498, %v8550
  %8552 = vmatprep.mubr.bf16.mxu0 %v7800
  %8553 = vmatmul.mubr.bf16.gmra.mxu0 %v7799
  %v8554 = vpop.f32.mrf.mxu0
  %v8555 = vadd.f32 %v8502, %v8554
  %v8556 = vpop.f32.mrf.mxu0
  %v8557 = vadd.f32 %v8504, %v8556
  %v8558 = vpop.f32.mrf.mxu0
  %v8559 = vadd.f32 %v8506, %v8558
  %v8560 = vpop.f32.mrf.mxu0
  %v8561 = vadd.f32 %v8508, %v8560
  %8562 = vdwg.mxu0
  %8563 = vmatprep.subr.bf16.mxu0 %v8232
  %8564 = vmatpush1.bf16.msra.mxu0 %v8231
  %8565 = vmatprep.subr.bf16.mxu0 %v8228
  %8566 = vmatpush1.bf16.msra.mxu0 %v8227
  %8567 = vmatprep.subr.bf16.mxu0 %v8224
  %8568 = vmatpush1.bf16.msra.mxu0 %v8223
  %8569 = vmatprep.subr.bf16.mxu0 %v8220
  %8570 = vmatpush1.bf16.msra.mxu0 %v8219
  %8571 = vmatprep.subr.bf16.mxu0 %v8216
  %8572 = vmatpush1.bf16.msra.mxu0 %v8215
  %8573 = vmatprep.subr.bf16.mxu0 %v8212
  %8574 = vmatpush1.bf16.msra.mxu0 %v8211
  %8575 = vmatprep.subr.bf16.mxu0 %v8208
  %8576 = vmatpush1.bf16.msra.mxu0 %v8207
  %8577 = vmatprep.subr.bf16.mxu0 %v8204
  %8578 = vmatpush1.bf16.msra.mxu0 %v8203
  %8579 = vmatprep.subr.bf16.mxu0 %v8264
  %8580 = vmatpush2.bf16.msra.mxu0 %v8263
  %8581 = vmatprep.subr.bf16.mxu0 %v8260
  %8582 = vmatpush2.bf16.msra.mxu0 %v8259
  %8583 = vmatprep.subr.bf16.mxu0 %v8256
  %8584 = vmatpush2.bf16.msra.mxu0 %v8255
  %8585 = vmatprep.subr.bf16.mxu0 %v8252
  %8586 = vmatpush2.bf16.msra.mxu0 %v8251
  %8587 = vmatprep.subr.bf16.mxu0 %v8248
  %8588 = vmatpush2.bf16.msra.mxu0 %v8247
  %8589 = vmatprep.subr.bf16.mxu0 %v8244
  %8590 = vmatpush2.bf16.msra.mxu0 %v8243
  %8591 = vmatprep.subr.bf16.mxu0 %v8240
  %8592 = vmatpush2.bf16.msra.mxu0 %v8239
  %8593 = vmatprep.subr.bf16.mxu0 %v8236
  %8594 = vmatpush2.bf16.msra.mxu0 %v8235
  %8595 = vmatprep.mubr.bf16.mxu0 %v7794
  %8596 = vmatmul.mubr.bf16.gmra.mxu0 %v7793
  %v8597 = vpop.f32.mrf.mxu0
  %v8598 = vadd.f32 %v7803, %v8597
  %v8599 = vpop.f32.mrf.mxu0
  %v8600 = vadd.f32 %v7804, %v8599
  %v8601 = vpop.f32.mrf.mxu0
  %v8602 = vadd.f32 %v7807, %v8601
  %v8603 = vpop.f32.mrf.mxu0
  %v8604 = vadd.f32 %v7808, %v8603
  %8605 = vmatprep.mubr.bf16.mxu0 %v7798
  %8606 = vmatmul.mubr.bf16.gmra.mxu0 %v7797
  %v8607 = vpop.f32.mrf.mxu0
  %v8608 = vadd.f32 %v7811, %v8607
  %v8609 = vpop.f32.mrf.mxu0
  %v8610 = vadd.f32 %v7812, %v8609
  %v8611 = vpop.f32.mrf.mxu0
  %v8612 = vadd.f32 %v7815, %v8611
  %v8613 = vpop.f32.mrf.mxu0
  %v8614 = vadd.f32 %v7816, %v8613
  %8615 = vdwg.mxu0
  %8616 = vmatprep.subr.bf16.mxu0 %v8296
  %8617 = vmatpush1.bf16.msra.mxu0 %v8295
  %8618 = vmatprep.subr.bf16.mxu0 %v8292
  %8619 = vmatpush1.bf16.msra.mxu0 %v8291
  %8620 = vmatprep.subr.bf16.mxu0 %v8288
  %8621 = vmatpush1.bf16.msra.mxu0 %v8287
  %8622 = vmatprep.subr.bf16.mxu0 %v8284
  %8623 = vmatpush1.bf16.msra.mxu0 %v8283
  %8624 = vmatprep.subr.bf16.mxu0 %v8280
  %8625 = vmatpush1.bf16.msra.mxu0 %v8279
  %8626 = vmatprep.subr.bf16.mxu0 %v8276
  %8627 = vmatpush1.bf16.msra.mxu0 %v8275
  %8628 = vmatprep.subr.bf16.mxu0 %v8272
  %8629 = vmatpush1.bf16.msra.mxu0 %v8271
  %8630 = vmatprep.subr.bf16.mxu0 %v8268
  %8631 = vmatpush1.bf16.msra.mxu0 %v8267
  %8632 = vmatprep.subr.bf16.mxu0 %v8328
  %8633 = vmatpush2.bf16.msra.mxu0 %v8327
  %8634 = vmatprep.subr.bf16.mxu0 %v8324
  %8635 = vmatpush2.bf16.msra.mxu0 %v8323
  %8636 = vmatprep.subr.bf16.mxu0 %v8320
  %8637 = vmatpush2.bf16.msra.mxu0 %v8319
  %8638 = vmatprep.subr.bf16.mxu0 %v8316
  %8639 = vmatpush2.bf16.msra.mxu0 %v8315
  %8640 = vmatprep.subr.bf16.mxu0 %v8312
  %8641 = vmatpush2.bf16.msra.mxu0 %v8311
  %8642 = vmatprep.subr.bf16.mxu0 %v8308
  %8643 = vmatpush2.bf16.msra.mxu0 %v8307
  %8644 = vmatprep.subr.bf16.mxu0 %v8304
  %8645 = vmatpush2.bf16.msra.mxu0 %v8303
  %8646 = vmatprep.subr.bf16.mxu0 %v8300
  %8647 = vmatpush2.bf16.msra.mxu0 %v8299
  %8648 = vmatprep.mubr.bf16.mxu0 %v7796
  %8649 = vmatmul.mubr.bf16.gmra.mxu0 %v7795
  %v8650 = vpop.f32.mrf.mxu0
  %v8651 = vadd.f32 %v8598, %v8650
  %v8652 = vpop.f32.mrf.mxu0
  %v8653 = vadd.f32 %v8600, %v8652
  %v8654 = vpop.f32.mrf.mxu0
  %v8655 = vadd.f32 %v8602, %v8654
  %v8656 = vpop.f32.mrf.mxu0
  %v8657 = vadd.f32 %v8604, %v8656
  %8658 = vmatprep.mubr.bf16.mxu0 %v7800
  %8659 = vmatmul.mubr.bf16.gmra.mxu0 %v7799
  %v8660 = vpop.f32.mrf.mxu0
  %v8661 = vadd.f32 %v8608, %v8660
  %v8662 = vpop.f32.mrf.mxu0
  %v8663 = vadd.f32 %v8610, %v8662
  %v8664 = vpop.f32.mrf.mxu0
  %v8665 = vadd.f32 %v8612, %v8664
  %v8666 = vpop.f32.mrf.mxu0
  %v8667 = vadd.f32 %v8614, %v8666
  %8668 = vdwg.mxu0
  %8669 = vst [vmem:[%s11] sm:$0xff] %v8545
  %8670 = vst [vmem:[%s11 + $0x8] sm:$0xff] %v8547
  %8671 = vst [vmem:[%s11 + $0x10] sm:$0xff] %v8549
  %8672 = vst [vmem:[%s11 + $0x18] sm:$0xff] %v8551
  %8673 = vst [vmem:[%s11 + $0x20] sm:$0xff] %v8555
  %8674 = vst [vmem:[%s11 + $0x28] sm:$0xff] %v8557
  %8675 = vst [vmem:[%s11 + $0x30] sm:$0xff] %v8559
  %8676 = vst [vmem:[%s11 + $0x38] sm:$0xff] %v8561
  %s8677 = scalar_lea.vmem %s11, 64
  %8678 = vst [vmem:[%s8677] sm:$0xff] %v8651
  %8679 = vst [vmem:[%s8677 + $0x8] sm:$0xff] %v8653
  %8680 = vst [vmem:[%s8677 + $0x10] sm:$0xff] %v8655
  %8681 = vst [vmem:[%s8677 + $0x18] sm:$0xff] %v8657
  %8682 = vst [vmem:[%s8677 + $0x20] sm:$0xff] %v8661
  %8683 = vst [vmem:[%s8677 + $0x28] sm:$0xff] %v8663
  %8684 = vst [vmem:[%s8677 + $0x30] sm:$0xff] %v8665
  %8685 = vst [vmem:[%s8677 + $0x38] sm:$0xff] %v8667
  // Predicated region
  $region46: #{sode_forward.1} parent=0 // pred_check
    _
  $region47: #{sode_forward.1} parent=0 // pred_check_branch
    %8687 = sbr.rel (0) target = $region49
  $region48: #{sode_forward.1} parent=0 // pred_region
    _
  $region49: #{sode_forward.1} parent=0 // pred_fallthru
    _
  // Predicated region
  $region50: #{sode_forward.1} parent=0 // pred_check
    _
  $region51: #{sode_forward.1} parent=0 // pred_check_branch
    %8689 = sbr.rel (0) target = $region53
  $region52: #{sode_forward.1} parent=0 // pred_region
    _
  $region53: #{sode_forward.1} parent=0 // pred_fallthru
    _

</llo_original>
